<compile_context>
chip_gen: v7x
topology: tpu7x:2x2x1
jax: 0.10.0
libtpu: 0.0.40
codegen_flags: <defaults>
</compile_context>

<pallas_src>
import functools

import numpy as np
import jax
import jax.numpy as jnp
from jax.experimental import pallas as pl
from jax.experimental.pallas import tpu as pltpu

NEG = -1e30  # finite "-inf" additive bias (keeps exp() finite / NaN-free)


def _round_up(x, m):
    return ((x + m - 1) // m) * m


# ----------------------------------------------------------------------------
# Pallas kernel: masked multi-head cross-attention, query length 1 per row.
# Grid = (row blocks [parallel], key-slot blocks [arbitrary/reduction]).
# ----------------------------------------------------------------------------
def _mhca_kernel(q_ref, kv_ref, bias_ref, wq_ref, wkv_ref, wo_ref, hsel_ref,
                 out_ref, qp_sc, m_sc, l_sc, acc_sc, *, num_slots):
    p = pl.program_id(1)
    last = pl.num_programs(1) - 1
    TB = q_ref.shape[0]
    E = kv_ref.shape[-1]
    Ep = wq_ref.shape[1]

    @pl.when(p == 0)
    def _():
        # Q projection (scale folded into Wq host-side) + softmax state init.
        qp_sc[...] = jnp.dot(q_ref[...], wq_ref[...],
                             preferred_element_type=jnp.float32)
        m_sc[...] = jnp.full_like(m_sc, NEG)
        l_sc[...] = jnp.zeros_like(l_sc)
        acc_sc[...] = jnp.zeros_like(acc_sc)

    qp = qp_sc[...]                                            # (TB, Ep)

    # One fused bf16 [K|V] projection for every slot in this block
    # (bf16 x bf16 on the MXU, f32 accumulation).
    kv_flat = kv_ref[...].reshape(num_slots * TB, E)           # (Pb*TB, E)
    kvp = jnp.dot(kv_flat, wkv_ref[...],
                  preferred_element_type=jnp.float32)          # (Pb*TB, 2Ep)
    k_all = kvp[:, :Ep].reshape(num_slots, TB, Ep)
    v_all = kvp[:, Ep:].reshape(num_slots, TB, Ep)

    # Per-head scores for all slots in one MXU pass: the block-ones selector
    # reduces over each head's lanes AND broadcasts the score back to all of
    # that head's lanes, so every softmax op below is a full-width VPU op.
    prod = qp[None, :, :] * k_all                              # (Pb, TB, Ep)
    sc = jnp.dot(prod.reshape(num_slots * TB, Ep), hsel_ref[...],
                 preferred_element_type=jnp.float32
                 ).reshape(num_slots, TB, Ep)
    sc = sc + bias_ref[...]                                    # additive mask

    # Two-pass online softmax: block max, then one exp + accumulate per slot.
    m_blk = sc[0]
    for s in range(1, num_slots):
        m_blk = jnp.maximum(m_blk, sc[s])
    m_new = jnp.maximum(m_sc[...], m_blk)

    p0 = jnp.exp(sc[0] - m_new)
    l_blk = p0
    acc_blk = p0 * v_all[0]
    for s in range(1, num_slots):
        ps = jnp.exp(sc[s] - m_new)
        l_blk = l_blk + ps
        acc_blk = acc_blk + ps * v_all[s]

    # Cross-block rescale happens once per grid step (not once per slot).
    alpha = jnp.exp(m_sc[...] - m_new)
    l_sc[...] = alpha * l_sc[...] + l_blk
    acc_sc[...] = alpha * acc_sc[...] + acc_blk
    m_sc[...] = m_new

    @pl.when(p == last)
    def _():
        denom = jnp.maximum(l_sc[...], 1e-30)   # NaN-proof padded rows
        out_ref[...] = jnp.dot(acc_sc[...] / denom, wo_ref[...],
                               preferred_element_type=jnp.float32
                               ).astype(out_ref.dtype)


def mhca_single_query_pallas(q0, kv_pbe, bias_pb, wq, wk, wv, wo, *,
                             num_heads, block_rows=1024, slots_per_step=None):
    """Masked MHCA with a single query per row.

    q0:      [BG, E]    queries (one per grid point), f32.
    kv_pbe:  [P, BG, E] key/value token stream, slot-major (bf16 or f32).
    bias_pb: [P, BG]    additive score bias (0 for real tokens, -1e30 masked).
    Returns  [BG, E]    attention output, f32.
    """
    BG, E = q0.shape
    P = kv_pbe.shape[0]
    head_dim = E // num_heads
    scale = 1.0 / float(np.sqrt(head_dim))
    Ep = _round_up(max(E, 128), 128)            # lane-dense compute width
    kv_dtype = kv_pbe.dtype
    kv_isz = np.dtype(kv_dtype).itemsize

    # VMEM budget from the physical size (64 MiB v7x, 128 MiB v5e/v6e), with
    # 25% headroom for compiler-internal scratch.
    try:
        phys_vmem = int(pltpu.get_tpu_info().vmem_capacity_bytes)
    except Exception:
        phys_vmem = 64 * 2**20
    budget = (phys_vmem * 3) // 4

    def vmem_est(tb, pb):
        bufs = 2 * (tb * E * 4                      # q blocks
                    + pb * tb * E * kv_isz          # kv blocks
                    + pb * tb * 4                   # bias blocks
                    + tb * Ep * 4)                  # out blocks
        weights = 2 * (E * Ep * 4 + E * 2 * Ep * kv_isz + 2 * Ep * Ep * 4)
        scratch = 4 * tb * Ep * 4                   # qp / m / l / acc
        temps = 7 * pb * tb * Ep * 4                # kvp, k, v, prod, sc, exp
        return bufs + weights + scratch + temps

    # Row tile: as large as block_rows (no ">=2 blocks" cap — on single-TC
    # v5e/v6e halving TB only adds per-step overhead); key slots per step
    # default to all of P so the reduction axis collapses to one step.
    TB = max(128, min(block_rows, _round_up(BG, 128)))
    Pb = P if slots_per_step is None else max(1, min(int(slots_per_step), P))
    while vmem_est(TB, Pb) > budget and (TB > 256 or Pb > 1):
        if TB > 256:
            TB = max(256, _round_up(TB // 2, 128))
        else:
            Pb = (Pb + 1) // 2

    BGp = _round_up(BG, TB)
    Pp = _round_up(P, Pb)

    # Padded rows have zero q/kv; padded slots get a NEG bias so they add
    # nothing for real rows.  Fully-masked (padded) rows stay finite
    # (exp(NEG-NEG)=1, v=0) so no NaNs are produced.
    q_p = jnp.pad(q0.astype(jnp.float32), ((0, BGp - BG), (0, 0)))
    kv_p = jnp.pad(kv_pbe, ((0, Pp - P), (0, BGp - BG), (0, 0)))
    bias_p = jnp.full((Pp, BGp, 1), NEG, jnp.float32)
    bias_p = bias_p.at[:P, :BG, 0].set(bias_pb.astype(jnp.float32))

    # Weights, zero-padded to Ep output lanes; scale folded into Wq; [Wk|Wv]
    # fused and carried in the kv dtype so the kv matmul runs bf16 on the MXU.
    wq_p = jnp.zeros((E, Ep), jnp.float32).at[:, :E].set(
        wq.astype(jnp.float32) * scale)
    wk_p = jnp.zeros((E, Ep), jnp.float32).at[:, :E].set(wk.astype(jnp.float32))
    wv_p = jnp.zeros((E, Ep), jnp.float32).at[:, :E].set(wv.astype(jnp.float32))
    wkv_p = jnp.concatenate([wk_p, wv_p], axis=1).astype(kv_dtype)  # (E, 2Ep)
    wo_p = jnp.zeros((Ep, Ep), jnp.float32).at[:E, :E].set(wo.astype(jnp.float32))
    # Head selector: padded lanes follow the last real head (keeps their
    # running sums finite; their values are zero so they contribute nothing).
    head_id = np.minimum(np.arange(Ep), E - 1) // head_dim
    hsel = jnp.asarray(head_id[:, None] == head_id[None, :], jnp.float32)

    est = vmem_est(TB, Pb)
    vmem_limit = int(min(budget, max(32 * 2**20, est + est // 2)))

    kernel = functools.partial(_mhca_kernel, num_slots=Pb)

    out = pl.pallas_call(
        kernel,
        out_shape=jax.ShapeDtypeStruct((BGp, Ep), jnp.float32),
        grid_spec=pltpu.PrefetchScalarGridSpec(
            num_scalar_prefetch=0,
            grid=(BGp // TB, Pp // Pb),                 # reduction axis last
            in_specs=[
                pl.BlockSpec((TB, E), lambda i, p: (i, 0)),          # queries
                pl.BlockSpec((Pb, TB, E), lambda i, p: (p, i, 0)),   # kv slots
                pl.BlockSpec((Pb, TB, 1), lambda i, p: (p, i, 0)),   # bias
                pl.BlockSpec((E, Ep), lambda i, p: (0, 0)),          # Wq
                pl.BlockSpec((E, 2 * Ep), lambda i, p: (0, 0)),      # [Wk|Wv]
                pl.BlockSpec((Ep, Ep), lambda i, p: (0, 0)),         # Wo
                pl.BlockSpec((Ep, Ep), lambda i, p: (0, 0)),         # head sel
            ],
            out_specs=pl.BlockSpec((TB, Ep), lambda i, p: (i, 0)),
            scratch_shapes=[
                pltpu.VMEM((TB, Ep), jnp.float32),   # projected, scaled Q
                pltpu.VMEM((TB, Ep), jnp.float32),   # running max (per head)
                pltpu.VMEM((TB, Ep), jnp.float32),   # running sum (per head)
                pltpu.VMEM((TB, Ep), jnp.float32),   # output accumulator
            ],
        ),
        compiler_params=pltpu.CompilerParams(
            dimension_semantics=("parallel", "arbitrary"),
            vmem_limit_bytes=vmem_limit),
    )(q_p, kv_p, bias_p, wq_p, wkv_p, wo_p, hsel)
    return out[:BG, :E]


# Pure-JAX reference for correctness checking (same math, no Pallas).
def mhca_single_query_ref(q0, kv_pbe, bias_pb, wq, wk, wv, wo, *, num_heads):
    BG, E = q0.shape
    dh = E // num_heads
    joint = jnp.transpose(kv_pbe.astype(jnp.float32), (1, 0, 2))  # (BG, P, E)
    bias = jnp.transpose(bias_pb.astype(jnp.float32), (1, 0))     # (BG, P)
    P = joint.shape[1]
    Q = (q0 @ wq).reshape(BG, num_heads, dh)
    K = jnp.einsum("bpe,ef->bpf", joint, wk).reshape(BG, P, num_heads, dh)
    V = jnp.einsum("bpe,ef->bpf", joint, wv).reshape(BG, P, num_heads, dh)
    s = jnp.einsum("bhd,bphd->bhp", Q, K) / np.sqrt(dh)
    s = s + bias[:, None, :]
    a = jax.nn.softmax(s, axis=-1)
    o = jnp.einsum("bhp,bphd->bhd", a, V).reshape(BG, E)
    return o @ wo


# ----------------------------------------------------------------------------
# Host-side glue reproducing the PyTorch module's forward pass.
# ----------------------------------------------------------------------------
def construct_grid(grid_range, points_per_dim):
    axes = [jnp.linspace(lo, hi, n, dtype=jnp.float32)
            for (lo, hi), n in zip(grid_range, points_per_dim)]
    return jnp.stack(jnp.meshgrid(*axes, indexing="ij"), axis=-1)


def flatten_grid(g):
    m, e = g.shape[0], g.shape[-1]
    dims = g.shape[1:-1]
    flat = g.reshape(m, -1, e)

    def unflatten(y):
        return y.reshape(m, *dims, y.shape[-1])

    return flat, unflatten


def nearest_gridded_neighbours_k1(x, x_grid):
    dims = x_grid.shape[1:-1]
    grid_shape_f = jnp.asarray(dims, jnp.float32)
    xg_flat, _ = flatten_grid(x_grid)
    gmin = xg_flat.min(axis=1)                                   # (m, dx)
    gmax = xg_flat.max(axis=1)
    spacing = (gmax - gmin) / (grid_shape_f[None] - 1.0)
    multi = jnp.floor((x - gmin[:, None, :] + spacing[:, None, :] / 2.0)
                      / spacing[:, None, :])
    multi = jnp.clip(multi, 0.0, grid_shape_f[None, None, :] - 1.0).astype(jnp.int32)
    strides = np.array([int(np.prod(dims[d + 1:], dtype=np.int64))
                        for d in range(len(dims))], dtype=np.int32)
    return jnp.sum(multi * jnp.asarray(strides)[None, None, :], axis=-1).astype(jnp.int32)


def compute_cumcount_idx(nearest_idx):
    # O(n^2) like the reference; fine for moderate n.
    n = nearest_idx.shape[1]
    eq = nearest_idx[:, :, None] == nearest_idx[:, None, :]
    tril = jnp.tril(jnp.ones((n, n), dtype=bool), k=-1)
    return jnp.sum(eq & tril[None], axis=-1).astype(jnp.int32)


def pt_grid_encoder_through_time_forward(params, x, z, time_grid, *,
                                         time_dim=0, num_heads=4,
                                         attention_impl="pallas",
                                         max_patch=None,
                                         kv_dtype=jnp.bfloat16,
                                         block_rows=1024, slots_per_step=None):
    grid, latents = params["grid"], params["latents"]
    m, n, _ = x.shape
    nt = time_grid.shape[1]
    spatial = grid.shape[:-1]
    d_sp = grid.shape[-1]
    E = latents.shape[-1]
    new_shape = spatial[:time_dim] + (nt,) + spatial[time_dim:]

    # x_grid: repeat spatial grid over (batch, time), splice time coord in.
    g = jnp.expand_dims(grid, axis=time_dim)
    g = jnp.broadcast_to(g[None], (m, *new_shape, d_sp))
    t_shape = (m,) + (1,) * time_dim + (nt,) + (1,) * (len(spatial) - time_dim)
    tg = jnp.broadcast_to(time_grid.reshape(t_shape).astype(jnp.float32),
                          (m, *new_shape))
    x_grid = jnp.concatenate(
        [g[..., :time_dim], tg[..., None], g[..., time_dim:]], axis=-1)

    # z_grid (pseudo-token latents) repeated over (batch, time).
    lat = jnp.expand_dims(latents, axis=time_dim)
    z_grid0 = jnp.broadcast_to(lat[None], (m, *new_shape, E))

    # --- mhca_to_grid ---
    _, unflatten = flatten_grid(x_grid)
    G = int(np.prod(new_shape))
    nearest = nearest_gridded_neighbours_k1(x, x_grid)            # (m, n)
    cum = compute_cumcount_idx(nearest)                           # (m, n)

    if max_patch is None:
        # Data-dependent sizing, matching PyTorch's
        # construct_nearest_neighbour_matrix (cumcount.max()+1 z slots);
        # forces a host sync — pass a static bound when running under jit.
        max_patch = 0 if n == 0 else int(jax.device_get(jnp.max(cum))) + 1
    P = max_patch + 1   # + 1 grid-token slot

    # Quantize the K/V weights to the kv dtype once so the Pallas kernel and
    # the reference see exactly the same numerics.
    wk_q = params["wk"].astype(kv_dtype).astype(jnp.float32)
    wv_q = params["wv"].astype(kv_dtype).astype(jnp.float32)

    zg_flat = z_grid0.reshape(m, G, E).astype(jnp.float32)
    # Build key/values directly slot-major and in the kv dtype (no f32 blowup
    # + separate cast pass); mask is built as an additive score bias.
    kv_t = jnp.zeros((P, m, G, E), kv_dtype)
    kv_t = kv_t.at[0].set(zg_flat.astype(kv_dtype))               # grid token
    bias_t = jnp.full((P, m, G), NEG, jnp.float32)
    bias_t = bias_t.at[0].set(0.0)
    if n > 0:
        b_idx = jnp.broadcast_to(jnp.arange(m)[:, None], (m, n))
        kv_t = kv_t.at[1 + cum, b_idx, nearest].set(z.astype(kv_dtype))
        bias_t = bias_t.at[1 + cum, b_idx, nearest].set(0.0)

    q0 = zg_flat.reshape(m * G, E)
    kv_pbe = kv_t.reshape(P, m * G, E)
    bias_pb = bias_t.reshape(P, m * G)

    if attention_impl == "pallas":
        out = mhca_single_query_pallas(
            q0, kv_pbe, bias_pb, params["wq"], wk_q, wv_q, params["wo"],
            num_heads=num_heads, block_rows=block_rows,
            slots_per_step=slots_per_step)
    else:
        out = mhca_single_query_ref(
            q0, kv_pbe, bias_pb, params["wq"], wk_q, wv_q, params["wo"],
            num_heads=num_heads)

    z_grid = unflatten(out.reshape(m, G, E))
    return x_grid, z_grid


def init_params(key, *, embed_dim, grid_range, points_per_dim):
    grid = construct_grid(grid_range, points_per_dim)
    k1, k2, k3, k4, k5 = jax.random.split(key, 5)
    scale = 1.0 / np.sqrt(embed_dim)
    return {
        "grid": grid,
        "latents": jax.random.normal(k1, (*grid.shape[:-1], embed_dim), jnp.float32),
        "wq": jax.random.normal(k2, (embed_dim, embed_dim), jnp.float32) * scale,
        "wk": jax.random.normal(k3, (embed_dim, embed_dim), jnp.float32) * scale,
        "wv": jax.random.normal(k4, (embed_dim, embed_dim), jnp.float32) * scale,
        "wo": jax.random.normal(k5, (embed_dim, embed_dim), jnp.float32) * scale,
    }


if __name__ == "__main__":
    key = jax.random.PRNGKey(0)
    m, n, nt, E, H = 2, 16, 4, 32, 4
    grid_range = ((-1.0, 1.0), (-1.0, 1.0))
    points_per_dim = (8, 8)

    kp, kx, kz, kt = jax.random.split(key, 4)
    params = init_params(kp, embed_dim=E, grid_range=grid_range,
                         points_per_dim=points_per_dim)

    # x coordinates: [time, spatial0, spatial1] (time_dim = 0 => dx = 3)
    x_sp = jax.random.uniform(kx, (m, n, 2), minval=-1.0, maxval=1.0)
    x_t = jax.random.uniform(kt, (m, n, 1), minval=0.0, maxval=1.0)
    x = jnp.concatenate([x_t, x_sp], axis=-1).astype(jnp.float32)
    z = jax.random.normal(kz, (m, n, E), jnp.float32)
    time_grid = (jnp.broadcast_to(jnp.linspace(0.0, 1.0, nt), (m, nt))
                 + 0.05 * jnp.arange(m, dtype=jnp.float32)[:, None])

    # Pallas, default config (data-dependent P, single reduction step, big
    # row tile, bf16 kv stream, lane-dense Ep=128 compute path).
    x_grid, z_grid = pt_grid_encoder_through_time_forward(
        params, x, z, time_grid, time_dim=0, num_heads=H,
        attention_impl="pallas")
    jax.block_until_ready((x_grid, z_grid))

    # Pure-JAX reference (sees the same bf16-quantized kv stream / weights).
    x_grid_ref, z_grid_ref = pt_grid_encoder_through_time_forward(
        params, x, z, time_grid, time_dim=0, num_heads=H,
        attention_impl="ref")
    jax.block_until_ready((x_grid_ref, z_grid_ref))

    # Pallas again with a static worst-case P, several slot blocks and small
    # row tiles so the multi-step online-softmax carry and the padded-slot
    # path are exercised.
    _, z_grid_multi = pt_grid_encoder_through_time_forward(
        params, x, z, time_grid, time_dim=0, num_heads=H,
        attention_impl="pallas", max_patch=n, slots_per_step=4,
        block_rows=128)
    jax.block_until_ready(z_grid_multi)

    assert x_grid.shape == (m, nt, 8, 8, 3)
    assert z_grid.shape == (m, nt, 8, 8, E)
    np.testing.assert_allclose(np.asarray(x_grid), np.asarray(x_grid_ref),
                               rtol=1e-5, atol=1e-5)
    np.testing.assert_allclose(np.asarray(z_grid), np.asarray(z_grid_ref),
                               rtol=2e-3, atol=2e-3)
    np.testing.assert_allclose(np.asarray(z_grid_multi), np.asarray(z_grid_ref),
                               rtol=2e-3, atol=2e-3)
    print("KERNEL_OK")
</pallas_src>

<mosaic_0001>
module attributes {stable_mosaic.version = 11 : i64} {
  func.func @_mhca_kernel(%arg0: i32, %arg1: i32, %arg2: memref<512x32xf32, #tpu.memory_space<vmem>>, %arg3: memref<2x512x32xbf16, #tpu.memory_space<vmem>>, %arg4: memref<2x512x1xf32, #tpu.memory_space<vmem>>, %arg5: memref<32x128xf32, #tpu.memory_space<vmem>>, %arg6: memref<32x256xbf16, #tpu.memory_space<vmem>>, %arg7: memref<128x128xf32, #tpu.memory_space<vmem>>, %arg8: memref<128x128xf32, #tpu.memory_space<vmem>>, %arg9: memref<512x128xf32, #tpu.memory_space<vmem>>, %arg10: memref<512x128xf32, #tpu.memory_space<vmem>>, %arg11: memref<512x128xf32, #tpu.memory_space<vmem>>, %arg12: memref<512x128xf32, #tpu.memory_space<vmem>>, %arg13: memref<512x128xf32, #tpu.memory_space<vmem>>) attributes {dimension_semantics = [#tpu.dimension_semantics<parallel>, #tpu.dimension_semantics<arbitrary>], iteration_bounds = array<i64: 1, 1>, scalar_prefetch = 0 : i64, scratch_operands = 4 : i64, tpu.core_type = #tpu.core_type<tc>, window_params = [{transform_indices = @transform_0, window_bounds = array<i64: 512, 32>}, {transform_indices = @transform_1, window_bounds = array<i64: 2, 512, 32>}, {transform_indices = @transform_2, window_bounds = array<i64: 2, 512, 1>}, {pipeline_mode = #tpu.pipeline_mode<synchronous>, transform_indices = @transform_3, window_bounds = array<i64: 32, 128>}, {pipeline_mode = #tpu.pipeline_mode<synchronous>, transform_indices = @transform_4, window_bounds = array<i64: 32, 256>}, {pipeline_mode = #tpu.pipeline_mode<synchronous>, transform_indices = @transform_5, window_bounds = array<i64: 128, 128>}, {pipeline_mode = #tpu.pipeline_mode<synchronous>, transform_indices = @transform_6, window_bounds = array<i64: 128, 128>}, {transform_indices = @transform_7, window_bounds = array<i64: 512, 128>}]} {
    %c0_i32 = arith.constant 0 : i32
    %0 = arith.cmpi eq, %arg1, %c0_i32 : i32
    %1 = arith.extui %0 : i1 to i32
    %c0_i32_0 = arith.constant 0 : i32
    %2 = arith.cmpi ne, %1, %c0_i32_0 : i32
    scf.if %2 {
      %c0_29 = arith.constant 0 : index
      %c0_30 = arith.constant 0 : index
      %60 = vector.load %arg2[%c0_29, %c0_30] : memref<512x32xf32, #tpu.memory_space<vmem>>, vector<512x32xf32>
      %c0_31 = arith.constant 0 : index
      %c0_32 = arith.constant 0 : index
      %61 = vector.load %arg5[%c0_31, %c0_32] : memref<32x128xf32, #tpu.memory_space<vmem>>, vector<32x128xf32>
      %cst_33 = arith.constant dense<0.000000e+00> : vector<512x128xf32>
      %62 = tpu.matmul %60, %61, %cst_33 {dimension_numbers = #tpu.dot_dimension_numbers<[1], [0], [0], [1], [0, 0, 1, 1], [], []>} : vector<512x32xf32>, vector<32x128xf32>, vector<512x128xf32> -> vector<512x128xf32>
      %c0_34 = arith.constant 0 : index
      %c0_35 = arith.constant 0 : index
      %63 = vector.load %arg10[%c0_34, %c0_35] : memref<512x128xf32, #tpu.memory_space<vmem>>, vector<512x128xf32>
      tpu.vector_store %arg10[%c0_34, %c0_35], %62 {strides = array<i32>} : memref<512x128xf32, #tpu.memory_space<vmem>>, vector<512x128xf32>,
      %cst_36 = arith.constant -1.000000e+30 : f32
      %64 = vector.broadcast %cst_36 : f32 to vector<512x128xf32>
      %c0_37 = arith.constant 0 : index
      %c0_38 = arith.constant 0 : index
      %65 = vector.load %arg11[%c0_37, %c0_38] : memref<512x128xf32, #tpu.memory_space<vmem>>, vector<512x128xf32>
      tpu.vector_store %arg11[%c0_37, %c0_38], %64 {strides = array<i32>} : memref<512x128xf32, #tpu.memory_space<vmem>>, vector<512x128xf32>,
      %cst_39 = arith.constant 0.000000e+00 : f32
      %66 = vector.broadcast %cst_39 : f32 to vector<512x128xf32>
      %c0_40 = arith.constant 0 : index
      %c0_41 = arith.constant 0 : index
      %67 = vector.load %arg12[%c0_40, %c0_41] : memref<512x128xf32, #tpu.memory_space<vmem>>, vector<512x128xf32>
      tpu.vector_store %arg12[%c0_40, %c0_41], %66 {strides = array<i32>} : memref<512x128xf32, #tpu.memory_space<vmem>>, vector<512x128xf32>,
      %cst_42 = arith.constant 0.000000e+00 : f32
      %68 = vector.broadcast %cst_42 : f32 to vector<512x128xf32>
      %c0_43 = arith.constant 0 : index
      %c0_44 = arith.constant 0 : index
      %69 = vector.load %arg13[%c0_43, %c0_44] : memref<512x128xf32, #tpu.memory_space<vmem>>, vector<512x128xf32>
      tpu.vector_store %arg13[%c0_43, %c0_44], %68 {strides = array<i32>} : memref<512x128xf32, #tpu.memory_space<vmem>>, vector<512x128xf32>,
    } else {
    }
    %c0 = arith.constant 0 : index
    %c0_1 = arith.constant 0 : index
    %3 = vector.load %arg10[%c0, %c0_1] : memref<512x128xf32, #tpu.memory_space<vmem>>, vector<512x128xf32>
    %c0_2 = arith.constant 0 : index
    %c0_3 = arith.constant 0 : index
    %c0_4 = arith.constant 0 : index
    %4 = vector.load %arg3[%c0_2, %c0_3, %c0_4] : memref<2x512x32xbf16, #tpu.memory_space<vmem>>, vector<2x512x32xbf16>
    %5 = vector.shape_cast %4 : vector<2x512x32xbf16> to vector<1024x32xbf16>
    %c0_5 = arith.constant 0 : index
    %c0_6 = arith.constant 0 : index
    %6 = vector.load %arg6[%c0_5, %c0_6] : memref<32x256xbf16, #tpu.memory_space<vmem>>, vector<32x256xbf16>
    %cst = arith.constant dense<0.000000e+00> : vector<1024x256xf32>
    %7 = tpu.matmul %5, %6, %cst {dimension_numbers = #tpu.dot_dimension_numbers<[1], [0], [0], [1], [0, 0, 1, 1], [], []>} : vector<1024x32xbf16>, vector<32x256xbf16>, vector<1024x256xf32> -> vector<1024x256xf32>
    %8 = vector.extract_strided_slice %7 {offsets = [0, 0], sizes = [1024, 128], strides = [1, 1]} : vector<1024x256xf32> to vector<1024x128xf32>
    %9 = vector.shape_cast %8 : vector<1024x128xf32> to vector<2x512x128xf32>
    %10 = vector.extract_strided_slice %7 {offsets = [0, 128], sizes = [1024, 128], strides = [1, 1]} : vector<1024x256xf32> to vector<1024x128xf32>
    %11 = vector.shape_cast %10 : vector<1024x128xf32> to vector<2x512x128xf32>
    %12 = vector.shape_cast %3 : vector<512x128xf32> to vector<1x512x128xf32>
    %13 = vector.broadcast %12 : vector<1x512x128xf32> to vector<2x512x128xf32>
    %14 = arith.mulf %13, %9 : vector<2x512x128xf32>
    %15 = vector.shape_cast %14 : vector<2x512x128xf32> to vector<1024x128xf32>
    %c0_7 = arith.constant 0 : index
    %c0_8 = arith.constant 0 : index
    %16 = vector.load %arg8[%c0_7, %c0_8] : memref<128x128xf32, #tpu.memory_space<vmem>>, vector<128x128xf32>
    %cst_9 = arith.constant dense<0.000000e+00> : vector<1024x128xf32>
    %17 = tpu.matmul %15, %16, %cst_9 {dimension_numbers = #tpu.dot_dimension_numbers<[1], [0], [0], [1], [0, 0, 1, 1], [], []>} : vector<1024x128xf32>, vector<128x128xf32>, vector<1024x128xf32> -> vector<1024x128xf32>
    %18 = vector.shape_cast %17 : vector<1024x128xf32> to vector<2x512x128xf32>
    %c0_10 = arith.constant 0 : index
    %c0_11 = arith.constant 0 : index
    %c0_12 = arith.constant 0 : index
    %19 = vector.load %arg4[%c0_10, %c0_11, %c0_12] : memref<2x512x1xf32, #tpu.memory_space<vmem>>, vector<2x512x1xf32>
    %20 = vector.broadcast %19 : vector<2x512x1xf32> to vector<2x512x128xf32>
    %21 = arith.addf %18, %20 : vector<2x512x128xf32>
    %22 = vector.extract_strided_slice %21 {offsets = [0, 0, 0], sizes = [1, 512, 128], strides = [1, 1, 1]} : vector<2x512x128xf32> to vector<1x512x128xf32>
    %23 = vector.shape_cast %22 : vector<1x512x128xf32> to vector<512x128xf32>
    %24 = vector.extract_strided_slice %21 {offsets = [1, 0, 0], sizes = [1, 512, 128], strides = [1, 1, 1]} : vector<2x512x128xf32> to vector<1x512x128xf32>
    %25 = vector.shape_cast %24 : vector<1x512x128xf32> to vector<512x128xf32>
    %26 = arith.maximumf %23, %25 : vector<512x128xf32>
    %c0_13 = arith.constant 0 : index
    %c0_14 = arith.constant 0 : index
    %27 = vector.load %arg11[%c0_13, %c0_14] : memref<512x128xf32, #tpu.memory_space<vmem>>, vector<512x128xf32>
    %28 = arith.maximumf %27, %26 : vector<512x128xf32>
    %29 = vector.extract_strided_slice %21 {offsets = [0, 0, 0], sizes = [1, 512, 128], strides = [1, 1, 1]} : vector<2x512x128xf32> to vector<1x512x128xf32>
    %30 = vector.shape_cast %29 : vector<1x512x128xf32> to vector<512x128xf32>
    %31 = arith.subf %30, %28 : vector<512x128xf32>
    %32 = math.exp %31 : vector<512x128xf32>
    %33 = vector.extract_strided_slice %11 {offsets = [0, 0, 0], sizes = [1, 512, 128], strides = [1, 1, 1]} : vector<2x512x128xf32> to vector<1x512x128xf32>
    %34 = vector.shape_cast %33 : vector<1x512x128xf32> to vector<512x128xf32>
    %35 = arith.mulf %32, %34 : vector<512x128xf32>
    %36 = vector.extract_strided_slice %21 {offsets = [1, 0, 0], sizes = [1, 512, 128], strides = [1, 1, 1]} : vector<2x512x128xf32> to vector<1x512x128xf32>
    %37 = vector.shape_cast %36 : vector<1x512x128xf32> to vector<512x128xf32>
    %38 = arith.subf %37, %28 : vector<512x128xf32>
    %39 = math.exp %38 : vector<512x128xf32>
    %40 = arith.addf %32, %39 : vector<512x128xf32>
    %41 = vector.extract_strided_slice %11 {offsets = [1, 0, 0], sizes = [1, 512, 128], strides = [1, 1, 1]} : vector<2x512x128xf32> to vector<1x512x128xf32>
    %42 = vector.shape_cast %41 : vector<1x512x128xf32> to vector<512x128xf32>
    %43 = arith.mulf %39, %42 : vector<512x128xf32>
    %44 = arith.addf %35, %43 : vector<512x128xf32>
    %c0_15 = arith.constant 0 : index
    %c0_16 = arith.constant 0 : index
    %45 = vector.load %arg11[%c0_15, %c0_16] : memref<512x128xf32, #tpu.memory_space<vmem>>, vector<512x128xf32>
    %46 = arith.subf %45, %28 : vector<512x128xf32>
    %47 = math.exp %46 : vector<512x128xf32>
    %c0_17 = arith.constant 0 : index
    %c0_18 = arith.constant 0 : index
    %48 = vector.load %arg12[%c0_17, %c0_18] : memref<512x128xf32, #tpu.memory_space<vmem>>, vector<512x128xf32>
    %49 = arith.mulf %47, %48 : vector<512x128xf32>
    %50 = arith.addf %49, %40 : vector<512x128xf32>
    %c0_19 = arith.constant 0 : index
    %c0_20 = arith.constant 0 : index
    %51 = vector.load %arg12[%c0_19, %c0_20] : memref<512x128xf32, #tpu.memory_space<vmem>>, vector<512x128xf32>
    tpu.vector_store %arg12[%c0_19, %c0_20], %50 {strides = array<i32>} : memref<512x128xf32, #tpu.memory_space<vmem>>, vector<512x128xf32>,
    %c0_21 = arith.constant 0 : index
    %c0_22 = arith.constant 0 : index
    %52 = vector.load %arg13[%c0_21, %c0_22] : memref<512x128xf32, #tpu.memory_space<vmem>>, vector<512x128xf32>
    %53 = arith.mulf %47, %52 : vector<512x128xf32>
    %54 = arith.addf %53, %44 : vector<512x128xf32>
    %c0_23 = arith.constant 0 : index
    %c0_24 = arith.constant 0 : index
    %55 = vector.load %arg13[%c0_23, %c0_24] : memref<512x128xf32, #tpu.memory_space<vmem>>, vector<512x128xf32>
    tpu.vector_store %arg13[%c0_23, %c0_24], %54 {strides = array<i32>} : memref<512x128xf32, #tpu.memory_space<vmem>>, vector<512x128xf32>,
    %c0_25 = arith.constant 0 : index
    %c0_26 = arith.constant 0 : index
    %56 = vector.load %arg11[%c0_25, %c0_26] : memref<512x128xf32, #tpu.memory_space<vmem>>, vector<512x128xf32>
    tpu.vector_store %arg11[%c0_25, %c0_26], %28 {strides = array<i32>} : memref<512x128xf32, #tpu.memory_space<vmem>>, vector<512x128xf32>,
    %c0_i32_27 = arith.constant 0 : i32
    %57 = arith.cmpi eq, %arg1, %c0_i32_27 : i32
    %58 = arith.extui %57 : i1 to i32
    %c0_i32_28 = arith.constant 0 : i32
    %59 = arith.cmpi ne, %58, %c0_i32_28 : i32
    scf.if %59 {
      %c0_29 = arith.constant 0 : index
      %c0_30 = arith.constant 0 : index
      %60 = vector.load %arg12[%c0_29, %c0_30] : memref<512x128xf32, #tpu.memory_space<vmem>>, vector<512x128xf32>
      %cst_31 = arith.constant 1.000000e-30 : f32
      %61 = vector.broadcast %cst_31 : f32 to vector<512x128xf32>
      %62 = arith.maximumf %60, %61 : vector<512x128xf32>
      %c0_32 = arith.constant 0 : index
      %c0_33 = arith.constant 0 : index
      %63 = vector.load %arg13[%c0_32, %c0_33] : memref<512x128xf32, #tpu.memory_space<vmem>>, vector<512x128xf32>
      %64 = arith.divf %63, %62 : vector<512x128xf32>
      %c0_34 = arith.constant 0 : index
      %c0_35 = arith.constant 0 : index
      %65 = vector.load %arg7[%c0_34, %c0_35] : memref<128x128xf32, #tpu.memory_space<vmem>>, vector<128x128xf32>
      %cst_36 = arith.constant dense<0.000000e+00> : vector<512x128xf32>
      %66 = tpu.matmul %64, %65, %cst_36 {dimension_numbers = #tpu.dot_dimension_numbers<[1], [0], [0], [1], [0, 0, 1, 1], [], []>} : vector<512x128xf32>, vector<128x128xf32>, vector<512x128xf32> -> vector<512x128xf32>
      %c0_37 = arith.constant 0 : index
      %c0_38 = arith.constant 0 : index
      %67 = vector.load %arg9[%c0_37, %c0_38] : memref<512x128xf32, #tpu.memory_space<vmem>>, vector<512x128xf32>
      tpu.vector_store %arg9[%c0_37, %c0_38], %66 {strides = array<i32>} : memref<512x128xf32, #tpu.memory_space<vmem>>, vector<512x128xf32>,
    } else {
    }
    return
  }
  func.func @transform_0(%arg0: i32, %arg1: i32) -> (i32, i32) {
    %c0_i32 = arith.constant 0 : i32
    %c0_i32_0 = arith.constant 0 : i32
    return %arg0, %c0_i32 : i32, i32
  }
  func.func @transform_1(%arg0: i32, %arg1: i32) -> (i32, i32, i32) {
    %c0_i32 = arith.constant 0 : i32
    %c0_i32_0 = arith.constant 0 : i32
    return %arg1, %arg0, %c0_i32 : i32, i32, i32
  }
  func.func @transform_2(%arg0: i32, %arg1: i32) -> (i32, i32, i32) {
    %c0_i32 = arith.constant 0 : i32
    %c0_i32_0 = arith.constant 0 : i32
    return %arg1, %arg0, %c0_i32 : i32, i32, i32
  }
  func.func @transform_3(%arg0: i32, %arg1: i32) -> (i32, i32) {
    %c0_i32 = arith.constant 0 : i32
    %c0_i32_0 = arith.constant 0 : i32
    %c0_i32_1 = arith.constant 0 : i32
    return %c0_i32, %c0_i32_0 : i32, i32
  }
  func.func @transform_4(%arg0: i32, %arg1: i32) -> (i32, i32) {
    %c0_i32 = arith.constant 0 : i32
    %c0_i32_0 = arith.constant 0 : i32
    %c0_i32_1 = arith.constant 0 : i32
    return %c0_i32, %c0_i32_0 : i32, i32
  }
  func.func @transform_5(%arg0: i32, %arg1: i32) -> (i32, i32) {
    %c0_i32 = arith.constant 0 : i32
    %c0_i32_0 = arith.constant 0 : i32
    %c0_i32_1 = arith.constant 0 : i32
    return %c0_i32, %c0_i32_0 : i32, i32
  }
  func.func @transform_6(%arg0: i32, %arg1: i32) -> (i32, i32) {
    %c0_i32 = arith.constant 0 : i32
    %c0_i32_0 = arith.constant 0 : i32
    %c0_i32_1 = arith.constant 0 : i32
    return %c0_i32, %c0_i32_0 : i32, i32
  }
  func.func @transform_7(%arg0: i32, %arg1: i32) -> (i32, i32) {
    %c0_i32 = arith.constant 0 : i32
    %c0_i32_0 = arith.constant 0 : i32
    return %arg0, %c0_i32 : i32, i32
  }
}

</mosaic_0001>

<llo_original>
// kernel: tpu_custom_call.1
$region0: #{tpu_custom_call.1}
  #allocation0 [shape = 'u32[]', space=smem, size = 0x4, offset = 0x4, fixed_abs, tag = 'smem constant byte address 0x4 - core index']
  #allocation1 [shape = 'u32[144,128]{1,0:T(1,128)}', space=vmem, size = 0x12000, scoped, tag = 'internal scratch']
  #allocation2 [shape = 'f32[512,128]{1,0:T(8,128)}', space=vmem, size = 0x40000, scoped, tag = 'scratch operand']
  #allocation3 [shape = 'f32[512,128]{1,0:T(8,128)}', space=vmem, size = 0x40000, scoped, tag = 'scratch operand']
  #allocation4 [shape = 'f32[512,128]{1,0:T(8,128)}', space=vmem, size = 0x40000, scoped, tag = 'scratch operand']
  #allocation5 [shape = 'f32[512,128]{1,0:T(8,128)}', space=vmem, size = 0x40000, scoped, tag = 'scratch operand']
  %s0 = inlined_call_operand.vmem [shape: f32[512,32], index: 0, kind: input, shape index: {}]
  %s1 = inlined_call_operand.vmem [shape: bf16[2,512,32], index: 1, kind: input, shape index: {}]
  %s2 = inlined_call_operand.vmem [shape: f32[2,512,1], index: 2, kind: input, shape index: {}]
  %s3 = inlined_call_operand.vmem [shape: f32[32,128], index: 3, kind: input, shape index: {}]
  %s4 = inlined_call_operand.vmem [shape: bf16[32,256], index: 4, kind: input, shape index: {}]
  %s5 = inlined_call_operand.vmem [shape: f32[128,128], index: 5, kind: input, shape index: {}]
  %s6 = inlined_call_operand.vmem [shape: f32[128,128], index: 6, kind: input, shape index: {}]
  %s7 = inlined_call_operand.hbm [shape: f32[512,128], index: 7, kind: output, shape index: {}]
  %s8 = sld [smem:[#allocation0]]
  $region46: #{tpu_custom_call.1} parent=0
    _
  %s10 = ssub.s32 1, %s8
  %s11 = scalar_select 0, %s10, %s8
  $region1: #{tpu_custom_call.1} parent=0
    #allocation6 [shape = 'u8[262144]{0}', space=vmem, size = 0x40000, scoped, tag = 'output window, operand 0, single buffered']
    #allocation7 [shape = 's32[1]{0}', space=sflag, size = 0x4, scoped, tag = 'scoped memory for tpu_custom_call.1']
    %12 = vsyncpa [#allocation7], 0
    // Predicated region
    $region2: #{tpu_custom_call.1} parent=1 // pred_check
      _
    $region3: #{tpu_custom_call.1} parent=1 // pred_check_branch
      %14 = sbr.rel (0) target = $region5
    $region4: #{tpu_custom_call.1} parent=1 // pred_region
      _
    $region5: #{tpu_custom_call.1} parent=1 // pred_fallthru
      _
    // Predicated region
    $region6: #{tpu_custom_call.1} parent=1 // pred_check
      _
    $region7: #{tpu_custom_call.1} parent=1 // pred_check_branch
      %16 = sbr.rel (0) target = $region9
    $region8: #{tpu_custom_call.1} parent=1 // pred_region
      _
    $region9: #{tpu_custom_call.1} parent=1 // pred_fallthru
      _
    // Predicated region
    $region10: #{tpu_custom_call.1} parent=1 // pred_check
      _
    $region11: #{tpu_custom_call.1} parent=1 // pred_check_branch
      %18 = sbr.rel (0) target = $region13
    $region12: #{tpu_custom_call.1} parent=1 // pred_region
      _
    $region13: #{tpu_custom_call.1} parent=1 // pred_fallthru
      _
    // Predicated region
    $region14: #{tpu_custom_call.1} parent=1 // pred_check
      _
    $region15: #{tpu_custom_call.1} parent=1 // pred_check_branch
      %20 = sbr.rel (0) target = $region17
    $region16: #{tpu_custom_call.1} parent=1 // pred_region
      _
    $region17: #{tpu_custom_call.1} parent=1 // pred_fallthru
      _
    // Predicated region
    $region18: #{tpu_custom_call.1} parent=1 // pred_check
      _
    $region19: #{tpu_custom_call.1} parent=1 // pred_check_branch
      %22 = sbr.rel (0) target = $region21
    $region20: #{tpu_custom_call.1} parent=1 // pred_region
      _
    $region21: #{tpu_custom_call.1} parent=1 // pred_fallthru
      _
    // Predicated region
    $region22: #{tpu_custom_call.1} parent=1 // pred_check
      _
    $region23: #{tpu_custom_call.1} parent=1 // pred_check_branch
      %24 = sbr.rel (0) target = $region25
    $region24: #{tpu_custom_call.1} parent=1 // pred_region
      _
    $region25: #{tpu_custom_call.1} parent=1 // pred_fallthru
      _
    // Predicated region
    $region26: #{tpu_custom_call.1} parent=1 // pred_check
      _
    $region27: #{tpu_custom_call.1} parent=1 // pred_check_branch
      %26 = sbr.rel (0) target = $region29
    $region28: #{tpu_custom_call.1} parent=1 // pred_region
      _
    $region29: #{tpu_custom_call.1} parent=1 // pred_fallthru
      _
    %p28 = scmp.eq.s32.totalorder 0, 0
    // Predicated region
    $region30: #{tpu_custom_call.1} parent=1 // pred_check
      %p29 = pneg %p28
    $region31: #{tpu_custom_call.1} parent=1 // pred_check_branch
      %31 = sbr.rel (%p29) target = $region33
    $region32: #{tpu_custom_call.1} parent=1 // pred_region
      %v32 = vld [vmem:[%s0] sm:$0xff]
      %v33 = vld [vmem:[%s0 + $0x8] sm:$0xff]
      %v34 = vld [vmem:[%s0 + $0x10] sm:$0xff]
      %v35 = vld [vmem:[%s0 + $0x18] sm:$0xff]
      %v36 = vld [vmem:[%s0 + $0x20] sm:$0xff]
      %v37 = vld [vmem:[%s0 + $0x28] sm:$0xff]
      %v38 = vld [vmem:[%s0 + $0x30] sm:$0xff]
      %v39 = vld [vmem:[%s0 + $0x38] sm:$0xff]
      %v40 = vld [vmem:[%s0 + $0x40] sm:$0xff]
      %v41 = vld [vmem:[%s0 + $0x48] sm:$0xff]
      %v42 = vld [vmem:[%s0 + $0x50] sm:$0xff]
      %v43 = vld [vmem:[%s0 + $0x58] sm:$0xff]
      %v44 = vld [vmem:[%s0 + $0x60] sm:$0xff]
      %v45 = vld [vmem:[%s0 + $0x68] sm:$0xff]
      %v46 = vld [vmem:[%s0 + $0x70] sm:$0xff]
      %v47 = vld [vmem:[%s0 + $0x78] sm:$0xff]
      %v48 = vld [vmem:[%s0 + $0x80] sm:$0xff]
      %v49 = vld [vmem:[%s0 + $0x88] sm:$0xff]
      %v50 = vld [vmem:[%s0 + $0x90] sm:$0xff]
      %v51 = vld [vmem:[%s0 + $0x98] sm:$0xff]
      %v52 = vld [vmem:[%s0 + $0xa0] sm:$0xff]
      %v53 = vld [vmem:[%s0 + $0xa8] sm:$0xff]
      %v54 = vld [vmem:[%s0 + $0xb0] sm:$0xff]
      %v55 = vld [vmem:[%s0 + $0xb8] sm:$0xff]
      %v56 = vld [vmem:[%s0 + $0xc0] sm:$0xff]
      %v57 = vld [vmem:[%s0 + $0xc8] sm:$0xff]
      %v58 = vld [vmem:[%s0 + $0xd0] sm:$0xff]
      %v59 = vld [vmem:[%s0 + $0xd8] sm:$0xff]
      %v60 = vld [vmem:[%s0 + $0xe0] sm:$0xff]
      %v61 = vld [vmem:[%s0 + $0xe8] sm:$0xff]
      %v62 = vld [vmem:[%s0 + $0xf0] sm:$0xff]
      %v63 = vld [vmem:[%s0 + $0xf8] sm:$0xff]
      %v64 = vld [vmem:[%s0 + $0x100] sm:$0xff]
      %v65 = vld [vmem:[%s0 + $0x108] sm:$0xff]
      %v66 = vld [vmem:[%s0 + $0x110] sm:$0xff]
      %v67 = vld [vmem:[%s0 + $0x118] sm:$0xff]
      %v68 = vld [vmem:[%s0 + $0x120] sm:$0xff]
      %v69 = vld [vmem:[%s0 + $0x128] sm:$0xff]
      %v70 = vld [vmem:[%s0 + $0x130] sm:$0xff]
      %v71 = vld [vmem:[%s0 + $0x138] sm:$0xff]
      %v72 = vld [vmem:[%s0 + $0x140] sm:$0xff]
      %v73 = vld [vmem:[%s0 + $0x148] sm:$0xff]
      %v74 = vld [vmem:[%s0 + $0x150] sm:$0xff]
      %v75 = vld [vmem:[%s0 + $0x158] sm:$0xff]
      %v76 = vld [vmem:[%s0 + $0x160] sm:$0xff]
      %v77 = vld [vmem:[%s0 + $0x168] sm:$0xff]
      %v78 = vld [vmem:[%s0 + $0x170] sm:$0xff]
      %v79 = vld [vmem:[%s0 + $0x178] sm:$0xff]
      %v80 = vld [vmem:[%s0 + $0x180] sm:$0xff]
      %v81 = vld [vmem:[%s0 + $0x188] sm:$0xff]
      %v82 = vld [vmem:[%s0 + $0x190] sm:$0xff]
      %v83 = vld [vmem:[%s0 + $0x198] sm:$0xff]
      %v84 = vld [vmem:[%s0 + $0x1a0] sm:$0xff]
      %v85 = vld [vmem:[%s0 + $0x1a8] sm:$0xff]
      %v86 = vld [vmem:[%s0 + $0x1b0] sm:$0xff]
      %v87 = vld [vmem:[%s0 + $0x1b8] sm:$0xff]
      %v88 = vld [vmem:[%s0 + $0x1c0] sm:$0xff]
      %v89 = vld [vmem:[%s0 + $0x1c8] sm:$0xff]
      %v90 = vld [vmem:[%s0 + $0x1d0] sm:$0xff]
      %v91 = vld [vmem:[%s0 + $0x1d8] sm:$0xff]
      %v92 = vld [vmem:[%s0 + $0x1e0] sm:$0xff]
      %v93 = vld [vmem:[%s0 + $0x1e8] sm:$0xff]
      %v94 = vld [vmem:[%s0 + $0x1f0] sm:$0xff]
      %v95 = vld [vmem:[%s0 + $0x1f8] sm:$0xff]
      %v96 = vld [vmem:[%s3] sm:$0xff]
      %v97 = vld [vmem:[%s3 + $0x8] sm:$0xff]
      %v98 = vld [vmem:[%s3 + $0x10] sm:$0xff]
      %v99 = vld [vmem:[%s3 + $0x18] sm:$0xff]
      %vm100 = vcmask 261120
      %v102 = vsel %vm100, %v32, 0
      %v105 = vsel %vm100, %v33, 0
      %v108 = vsel %vm100, %v34, 0
      %v111 = vsel %vm100, %v35, 0
      %v114 = vsel %vm100, %v36, 0
      %v117 = vsel %vm100, %v37, 0
      %v120 = vsel %vm100, %v38, 0
      %v123 = vsel %vm100, %v39, 0
      %v126 = vsel %vm100, %v40, 0
      %v129 = vsel %vm100, %v41, 0
      %v132 = vsel %vm100, %v42, 0
      %v135 = vsel %vm100, %v43, 0
      %v138 = vsel %vm100, %v44, 0
      %v141 = vsel %vm100, %v45, 0
      %v144 = vsel %vm100, %v46, 0
      %v147 = vsel %vm100, %v47, 0
      %v150 = vsel %vm100, %v48, 0
      %v153 = vsel %vm100, %v49, 0
      %v156 = vsel %vm100, %v50, 0
      %v159 = vsel %vm100, %v51, 0
      %v162 = vsel %vm100, %v52, 0
      %v165 = vsel %vm100, %v53, 0
      %v168 = vsel %vm100, %v54, 0
      %v171 = vsel %vm100, %v55, 0
      %v174 = vsel %vm100, %v56, 0
      %v177 = vsel %vm100, %v57, 0
      %v180 = vsel %vm100, %v58, 0
      %v183 = vsel %vm100, %v59, 0
      %v186 = vsel %vm100, %v60, 0
      %v189 = vsel %vm100, %v61, 0
      %v192 = vsel %vm100, %v62, 0
      %v195 = vsel %vm100, %v63, 0
      %v198 = vsel %vm100, %v64, 0
      %v201 = vsel %vm100, %v65, 0
      %v204 = vsel %vm100, %v66, 0
      %v207 = vsel %vm100, %v67, 0
      %v210 = vsel %vm100, %v68, 0
      %v213 = vsel %vm100, %v69, 0
      %v216 = vsel %vm100, %v70, 0
      %v219 = vsel %vm100, %v71, 0
      %v222 = vsel %vm100, %v72, 0
      %v225 = vsel %vm100, %v73, 0
      %v228 = vsel %vm100, %v74, 0
      %v231 = vsel %vm100, %v75, 0
      %v234 = vsel %vm100, %v76, 0
      %v237 = vsel %vm100, %v77, 0
      %v240 = vsel %vm100, %v78, 0
      %v243 = vsel %vm100, %v79, 0
      %v246 = vsel %vm100, %v80, 0
      %v249 = vsel %vm100, %v81, 0
      %v252 = vsel %vm100, %v82, 0
      %v255 = vsel %vm100, %v83, 0
      %v258 = vsel %vm100, %v84, 0
      %v261 = vsel %vm100, %v85, 0
      %v264 = vsel %vm100, %v86, 0
      %v267 = vsel %vm100, %v87, 0
      %v270 = vsel %vm100, %v88, 0
      %v273 = vsel %vm100, %v89, 0
      %v276 = vsel %vm100, %v90, 0
      %v279 = vsel %vm100, %v91, 0
      %v282 = vsel %vm100, %v92, 0
      %v285 = vsel %vm100, %v93, 0
      %v288 = vsel %vm100, %v94, 0
      %v291 = vsel %vm100, %v95, 0
      %293 = vmatprep.subr.mxu0 0.0
      %294 = vmatpush1.msra.mxu0 %v96
      %295 = vmatprep.subr.mxu0 0.0
      %296 = vmatpush1.msra.mxu0 %v97
      %297 = vmatprep.subr.mxu0 0.0
      %298 = vmatpush1.msra.mxu0 %v98
      %299 = vmatprep.subr.mxu0 0.0
      %300 = vmatpush1.msra.mxu0 %v99
      %301 = vmatprep.subr.mxu0 0.0
      %302 = vmatpush1.msra.mxu0 0.0
      %303 = vmatprep.subr.mxu0 0.0
      %304 = vmatpush1.msra.mxu0 0.0
      %305 = vmatprep.subr.mxu0 0.0
      %306 = vmatpush1.msra.mxu0 0.0
      %307 = vmatprep.subr.mxu0 0.0
      %308 = vmatpush1.msra.mxu0 0.0
      %309 = vmatprep.subr.mxu0 0.0
      %310 = vmatpush1.msra.mxu0 0.0
      %311 = vmatprep.subr.mxu0 0.0
      %312 = vmatpush1.msra.mxu0 0.0
      %313 = vmatprep.subr.mxu0 0.0
      %314 = vmatpush1.msra.mxu0 0.0
      %315 = vmatprep.subr.mxu0 0.0
      %316 = vmatpush1.msra.mxu0 0.0
      %317 = vmatprep.subr.mxu0 0.0
      %318 = vmatpush1.msra.mxu0 0.0
      %319 = vmatprep.subr.mxu0 0.0
      %320 = vmatpush1.msra.mxu0 0.0
      %321 = vmatprep.subr.mxu0 0.0
      %322 = vmatpush1.msra.mxu0 0.0
      %323 = vmatprep.subr.mxu0 0.0
      %324 = vmatpush1.msra.mxu0 0.0
      %325 = vmatprep.subr.mxu0 0.0
      %326 = vmatpush1.msra.mxu0 0.0
      %327 = vmatprep.subr.mxu0 0.0
      %328 = vmatpush1.msra.mxu0 0.0
      %329 = vmatprep.subr.mxu0 0.0
      %330 = vmatpush1.msra.mxu0 0.0
      %331 = vmatprep.subr.mxu0 0.0
      %332 = vmatpush1.msra.mxu0 0.0
      %333 = vmatprep.subr.mxu0 0.0
      %334 = vmatpush1.msra.mxu0 0.0
      %335 = vmatprep.subr.mxu0 0.0
      %336 = vmatpush1.msra.mxu0 0.0
      %337 = vmatprep.subr.mxu0 0.0
      %338 = vmatpush1.msra.mxu0 0.0
      %339 = vmatprep.subr.mxu0 0.0
      %340 = vmatpush1.msra.mxu0 0.0
      %341 = vmatprep.subr.mxu0 0.0
      %342 = vmatpush1.msra.mxu0 0.0
      %343 = vmatprep.subr.mxu0 0.0
      %344 = vmatpush1.msra.mxu0 0.0
      %345 = vmatprep.subr.mxu0 0.0
      %346 = vmatpush1.msra.mxu0 0.0
      %347 = vmatprep.subr.mxu0 0.0
      %348 = vmatpush1.msra.mxu0 0.0
      %349 = vmatprep.subr.mxu0 0.0
      %350 = vmatpush1.msra.mxu0 0.0
      %351 = vmatprep.subr.mxu0 0.0
      %352 = vmatpush1.msra.mxu0 0.0
      %353 = vmatprep.subr.mxu0 0.0
      %354 = vmatpush1.msra.mxu0 0.0
      %355 = vmatprep.subr.mxu0 0.0
      %356 = vmatpush1.msra.mxu0 0.0
      %357 = vmatprep.mubr.f32.mxu0 0.0
      %358 = vmatmul.mubr.f32.gmra.mrb[0].mxu0 %v102
      %v359 = vpop.f32.mrb[0].mxu0
      %v360 = vadd.f32 0.0, %v359
      %v361 = vpop.f32.mrb[0].mxu0
      %362 = vmatprep.mubr.f32.mxu0 0.0
      %363 = vmatmul.mubr.f32.gmra.mrb[0].mxu0 %v105
      %v364 = vpop.f32.mrb[0].mxu0
      %v365 = vadd.f32 0.0, %v364
      %v366 = vpop.f32.mrb[0].mxu0
      %367 = vmatprep.mubr.f32.mxu0 0.0
      %368 = vmatmul.mubr.f32.gmra.mrb[0].mxu0 %v108
      %v369 = vpop.f32.mrb[0].mxu0
      %v370 = vadd.f32 0.0, %v369
      %v371 = vpop.f32.mrb[0].mxu0
      %372 = vmatprep.mubr.f32.mxu0 0.0
      %373 = vmatmul.mubr.f32.gmra.mrb[0].mxu0 %v111
      %v374 = vpop.f32.mrb[0].mxu0
      %v375 = vadd.f32 0.0, %v374
      %v376 = vpop.f32.mrb[0].mxu0
      %377 = vmatprep.mubr.f32.mxu0 0.0
      %378 = vmatmul.mubr.f32.gmra.mrb[0].mxu0 %v114
      %v379 = vpop.f32.mrb[0].mxu0
      %v380 = vadd.f32 0.0, %v379
      %v381 = vpop.f32.mrb[0].mxu0
      %382 = vmatprep.mubr.f32.mxu0 0.0
      %383 = vmatmul.mubr.f32.gmra.mrb[0].mxu0 %v117
      %v384 = vpop.f32.mrb[0].mxu0
      %v385 = vadd.f32 0.0, %v384
      %v386 = vpop.f32.mrb[0].mxu0
      %387 = vmatprep.mubr.f32.mxu0 0.0
      %388 = vmatmul.mubr.f32.gmra.mrb[0].mxu0 %v120
      %v389 = vpop.f32.mrb[0].mxu0
      %v390 = vadd.f32 0.0, %v389
      %v391 = vpop.f32.mrb[0].mxu0
      %392 = vmatprep.mubr.f32.mxu0 0.0
      %393 = vmatmul.mubr.f32.gmra.mrb[0].mxu0 %v123
      %v394 = vpop.f32.mrb[0].mxu0
      %v395 = vadd.f32 0.0, %v394
      %v396 = vpop.f32.mrb[0].mxu0
      %397 = vmatprep.mubr.f32.mxu0 0.0
      %398 = vmatmul.mubr.f32.gmra.mrb[0].mxu0 %v126
      %v399 = vpop.f32.mrb[0].mxu0
      %v400 = vadd.f32 0.0, %v399
      %v401 = vpop.f32.mrb[0].mxu0
      %402 = vmatprep.mubr.f32.mxu0 0.0
      %403 = vmatmul.mubr.f32.gmra.mrb[0].mxu0 %v129
      %v404 = vpop.f32.mrb[0].mxu0
      %v405 = vadd.f32 0.0, %v404
      %v406 = vpop.f32.mrb[0].mxu0
      %407 = vmatprep.mubr.f32.mxu0 0.0
      %408 = vmatmul.mubr.f32.gmra.mrb[0].mxu0 %v132
      %v409 = vpop.f32.mrb[0].mxu0
      %v410 = vadd.f32 0.0, %v409
      %v411 = vpop.f32.mrb[0].mxu0
      %412 = vmatprep.mubr.f32.mxu0 0.0
      %413 = vmatmul.mubr.f32.gmra.mrb[0].mxu0 %v135
      %v414 = vpop.f32.mrb[0].mxu0
      %v415 = vadd.f32 0.0, %v414
      %v416 = vpop.f32.mrb[0].mxu0
      %417 = vmatprep.mubr.f32.mxu0 0.0
      %418 = vmatmul.mubr.f32.gmra.mrb[0].mxu0 %v138
      %v419 = vpop.f32.mrb[0].mxu0
      %v420 = vadd.f32 0.0, %v419
      %v421 = vpop.f32.mrb[0].mxu0
      %422 = vmatprep.mubr.f32.mxu0 0.0
      %423 = vmatmul.mubr.f32.gmra.mrb[0].mxu0 %v141
      %v424 = vpop.f32.mrb[0].mxu0
      %v425 = vadd.f32 0.0, %v424
      %v426 = vpop.f32.mrb[0].mxu0
      %427 = vmatprep.mubr.f32.mxu0 0.0
      %428 = vmatmul.mubr.f32.gmra.mrb[0].mxu0 %v144
      %v429 = vpop.f32.mrb[0].mxu0
      %v430 = vadd.f32 0.0, %v429
      %v431 = vpop.f32.mrb[0].mxu0
      %432 = vmatprep.mubr.f32.mxu0 0.0
      %433 = vmatmul.mubr.f32.gmra.mrb[0].mxu0 %v147
      %v434 = vpop.f32.mrb[0].mxu0
      %v435 = vadd.f32 0.0, %v434
      %v436 = vpop.f32.mrb[0].mxu0
      %437 = vmatprep.mubr.f32.mxu0 0.0
      %438 = vmatmul.mubr.f32.gmra.mrb[0].mxu0 %v150
      %v439 = vpop.f32.mrb[0].mxu0
      %v440 = vadd.f32 0.0, %v439
      %v441 = vpop.f32.mrb[0].mxu0
      %442 = vmatprep.mubr.f32.mxu0 0.0
      %443 = vmatmul.mubr.f32.gmra.mrb[0].mxu0 %v153
      %v444 = vpop.f32.mrb[0].mxu0
      %v445 = vadd.f32 0.0, %v444
      %v446 = vpop.f32.mrb[0].mxu0
      %447 = vmatprep.mubr.f32.mxu0 0.0
      %448 = vmatmul.mubr.f32.gmra.mrb[0].mxu0 %v156
      %v449 = vpop.f32.mrb[0].mxu0
      %v450 = vadd.f32 0.0, %v449
      %v451 = vpop.f32.mrb[0].mxu0
      %452 = vmatprep.mubr.f32.mxu0 0.0
      %453 = vmatmul.mubr.f32.gmra.mrb[0].mxu0 %v159
      %v454 = vpop.f32.mrb[0].mxu0
      %v455 = vadd.f32 0.0, %v454
      %v456 = vpop.f32.mrb[0].mxu0
      %457 = vmatprep.mubr.f32.mxu0 0.0
      %458 = vmatmul.mubr.f32.gmra.mrb[0].mxu0 %v162
      %v459 = vpop.f32.mrb[0].mxu0
      %v460 = vadd.f32 0.0, %v459
      %v461 = vpop.f32.mrb[0].mxu0
      %462 = vmatprep.mubr.f32.mxu0 0.0
      %463 = vmatmul.mubr.f32.gmra.mrb[0].mxu0 %v165
      %v464 = vpop.f32.mrb[0].mxu0
      %v465 = vadd.f32 0.0, %v464
      %v466 = vpop.f32.mrb[0].mxu0
      %467 = vmatprep.mubr.f32.mxu0 0.0
      %468 = vmatmul.mubr.f32.gmra.mrb[0].mxu0 %v168
      %v469 = vpop.f32.mrb[0].mxu0
      %v470 = vadd.f32 0.0, %v469
      %v471 = vpop.f32.mrb[0].mxu0
      %472 = vmatprep.mubr.f32.mxu0 0.0
      %473 = vmatmul.mubr.f32.gmra.mrb[0].mxu0 %v171
      %v474 = vpop.f32.mrb[0].mxu0
      %v475 = vadd.f32 0.0, %v474
      %v476 = vpop.f32.mrb[0].mxu0
      %477 = vmatprep.mubr.f32.mxu0 0.0
      %478 = vmatmul.mubr.f32.gmra.mrb[0].mxu0 %v174
      %v479 = vpop.f32.mrb[0].mxu0
      %v480 = vadd.f32 0.0, %v479
      %v481 = vpop.f32.mrb[0].mxu0
      %482 = vmatprep.mubr.f32.mxu0 0.0
      %483 = vmatmul.mubr.f32.gmra.mrb[0].mxu0 %v177
      %v484 = vpop.f32.mrb[0].mxu0
      %v485 = vadd.f32 0.0, %v484
      %v486 = vpop.f32.mrb[0].mxu0
      %487 = vmatprep.mubr.f32.mxu0 0.0
      %488 = vmatmul.mubr.f32.gmra.mrb[0].mxu0 %v180
      %v489 = vpop.f32.mrb[0].mxu0
      %v490 = vadd.f32 0.0, %v489
      %v491 = vpop.f32.mrb[0].mxu0
      %492 = vmatprep.mubr.f32.mxu0 0.0
      %493 = vmatmul.mubr.f32.gmra.mrb[0].mxu0 %v183
      %v494 = vpop.f32.mrb[0].mxu0
      %v495 = vadd.f32 0.0, %v494
      %v496 = vpop.f32.mrb[0].mxu0
      %497 = vmatprep.mubr.f32.mxu0 0.0
      %498 = vmatmul.mubr.f32.gmra.mrb[0].mxu0 %v186
      %v499 = vpop.f32.mrb[0].mxu0
      %v500 = vadd.f32 0.0, %v499
      %v501 = vpop.f32.mrb[0].mxu0
      %502 = vmatprep.mubr.f32.mxu0 0.0
      %503 = vmatmul.mubr.f32.gmra.mrb[0].mxu0 %v189
      %v504 = vpop.f32.mrb[0].mxu0
      %v505 = vadd.f32 0.0, %v504
      %v506 = vpop.f32.mrb[0].mxu0
      %507 = vmatprep.mubr.f32.mxu0 0.0
      %508 = vmatmul.mubr.f32.gmra.mrb[0].mxu0 %v192
      %v509 = vpop.f32.mrb[0].mxu0
      %v510 = vadd.f32 0.0, %v509
      %v511 = vpop.f32.mrb[0].mxu0
      %512 = vmatprep.mubr.f32.mxu0 0.0
      %513 = vmatmul.mubr.f32.gmra.mrb[0].mxu0 %v195
      %v514 = vpop.f32.mrb[0].mxu0
      %v515 = vadd.f32 0.0, %v514
      %v516 = vpop.f32.mrb[0].mxu0
      %517 = vmatprep.mubr.f32.mxu0 0.0
      %518 = vmatmul.mubr.f32.gmra.mrb[0].mxu0 %v198
      %v519 = vpop.f32.mrb[0].mxu0
      %v520 = vadd.f32 0.0, %v519
      %v521 = vpop.f32.mrb[0].mxu0
      %522 = vmatprep.mubr.f32.mxu0 0.0
      %523 = vmatmul.mubr.f32.gmra.mrb[0].mxu0 %v201
      %v524 = vpop.f32.mrb[0].mxu0
      %v525 = vadd.f32 0.0, %v524
      %v526 = vpop.f32.mrb[0].mxu0
      %527 = vmatprep.mubr.f32.mxu0 0.0
      %528 = vmatmul.mubr.f32.gmra.mrb[0].mxu0 %v204
      %v529 = vpop.f32.mrb[0].mxu0
      %v530 = vadd.f32 0.0, %v529
      %v531 = vpop.f32.mrb[0].mxu0
      %532 = vmatprep.mubr.f32.mxu0 0.0
      %533 = vmatmul.mubr.f32.gmra.mrb[0].mxu0 %v207
      %v534 = vpop.f32.mrb[0].mxu0
      %v535 = vadd.f32 0.0, %v534
      %v536 = vpop.f32.mrb[0].mxu0
      %537 = vmatprep.mubr.f32.mxu0 0.0
      %538 = vmatmul.mubr.f32.gmra.mrb[0].mxu0 %v210
      %v539 = vpop.f32.mrb[0].mxu0
      %v540 = vadd.f32 0.0, %v539
      %v541 = vpop.f32.mrb[0].mxu0
      %542 = vmatprep.mubr.f32.mxu0 0.0
      %543 = vmatmul.mubr.f32.gmra.mrb[0].mxu0 %v213
      %v544 = vpop.f32.mrb[0].mxu0
      %v545 = vadd.f32 0.0, %v544
      %v546 = vpop.f32.mrb[0].mxu0
      %547 = vmatprep.mubr.f32.mxu0 0.0
      %548 = vmatmul.mubr.f32.gmra.mrb[0].mxu0 %v216
      %v549 = vpop.f32.mrb[0].mxu0
      %v550 = vadd.f32 0.0, %v549
      %v551 = vpop.f32.mrb[0].mxu0
      %552 = vmatprep.mubr.f32.mxu0 0.0
      %553 = vmatmul.mubr.f32.gmra.mrb[0].mxu0 %v219
      %v554 = vpop.f32.mrb[0].mxu0
      %v555 = vadd.f32 0.0, %v554
      %v556 = vpop.f32.mrb[0].mxu0
      %557 = vmatprep.mubr.f32.mxu0 0.0
      %558 = vmatmul.mubr.f32.gmra.mrb[0].mxu0 %v222
      %v559 = vpop.f32.mrb[0].mxu0
      %v560 = vadd.f32 0.0, %v559
      %v561 = vpop.f32.mrb[0].mxu0
      %562 = vmatprep.mubr.f32.mxu0 0.0
      %563 = vmatmul.mubr.f32.gmra.mrb[0].mxu0 %v225
      %v564 = vpop.f32.mrb[0].mxu0
      %v565 = vadd.f32 0.0, %v564
      %v566 = vpop.f32.mrb[0].mxu0
      %567 = vmatprep.mubr.f32.mxu0 0.0
      %568 = vmatmul.mubr.f32.gmra.mrb[0].mxu0 %v228
      %v569 = vpop.f32.mrb[0].mxu0
      %v570 = vadd.f32 0.0, %v569
      %v571 = vpop.f32.mrb[0].mxu0
      %572 = vmatprep.mubr.f32.mxu0 0.0
      %573 = vmatmul.mubr.f32.gmra.mrb[0].mxu0 %v231
      %v574 = vpop.f32.mrb[0].mxu0
      %v575 = vadd.f32 0.0, %v574
      %v576 = vpop.f32.mrb[0].mxu0
      %577 = vmatprep.mubr.f32.mxu0 0.0
      %578 = vmatmul.mubr.f32.gmra.mrb[0].mxu0 %v234
      %v579 = vpop.f32.mrb[0].mxu0
      %v580 = vadd.f32 0.0, %v579
      %v581 = vpop.f32.mrb[0].mxu0
      %582 = vmatprep.mubr.f32.mxu0 0.0
      %583 = vmatmul.mubr.f32.gmra.mrb[0].mxu0 %v237
      %v584 = vpop.f32.mrb[0].mxu0
      %v585 = vadd.f32 0.0, %v584
      %v586 = vpop.f32.mrb[0].mxu0
      %587 = vmatprep.mubr.f32.mxu0 0.0
      %588 = vmatmul.mubr.f32.gmra.mrb[0].mxu0 %v240
      %v589 = vpop.f32.mrb[0].mxu0
      %v590 = vadd.f32 0.0, %v589
      %v591 = vpop.f32.mrb[0].mxu0
      %592 = vmatprep.mubr.f32.mxu0 0.0
      %593 = vmatmul.mubr.f32.gmra.mrb[0].mxu0 %v243
      %v594 = vpop.f32.mrb[0].mxu0
      %v595 = vadd.f32 0.0, %v594
      %v596 = vpop.f32.mrb[0].mxu0
      %597 = vmatprep.mubr.f32.mxu0 0.0
      %598 = vmatmul.mubr.f32.gmra.mrb[0].mxu0 %v246
      %v599 = vpop.f32.mrb[0].mxu0
      %v600 = vadd.f32 0.0, %v599
      %v601 = vpop.f32.mrb[0].mxu0
      %602 = vmatprep.mubr.f32.mxu0 0.0
      %603 = vmatmul.mubr.f32.gmra.mrb[0].mxu0 %v249
      %v604 = vpop.f32.mrb[0].mxu0
      %v605 = vadd.f32 0.0, %v604
      %v606 = vpop.f32.mrb[0].mxu0
      %607 = vmatprep.mubr.f32.mxu0 0.0
      %608 = vmatmul.mubr.f32.gmra.mrb[0].mxu0 %v252
      %v609 = vpop.f32.mrb[0].mxu0
      %v610 = vadd.f32 0.0, %v609
      %v611 = vpop.f32.mrb[0].mxu0
      %612 = vmatprep.mubr.f32.mxu0 0.0
      %613 = vmatmul.mubr.f32.gmra.mrb[0].mxu0 %v255
      %v614 = vpop.f32.mrb[0].mxu0
      %v615 = vadd.f32 0.0, %v614
      %v616 = vpop.f32.mrb[0].mxu0
      %617 = vmatprep.mubr.f32.mxu0 0.0
      %618 = vmatmul.mubr.f32.gmra.mrb[0].mxu0 %v258
      %v619 = vpop.f32.mrb[0].mxu0
      %v620 = vadd.f32 0.0, %v619
      %v621 = vpop.f32.mrb[0].mxu0
      %622 = vmatprep.mubr.f32.mxu0 0.0
      %623 = vmatmul.mubr.f32.gmra.mrb[0].mxu0 %v261
      %v624 = vpop.f32.mrb[0].mxu0
      %v625 = vadd.f32 0.0, %v624
      %v626 = vpop.f32.mrb[0].mxu0
      %627 = vmatprep.mubr.f32.mxu0 0.0
      %628 = vmatmul.mubr.f32.gmra.mrb[0].mxu0 %v264
      %v629 = vpop.f32.mrb[0].mxu0
      %v630 = vadd.f32 0.0, %v629
      %v631 = vpop.f32.mrb[0].mxu0
      %632 = vmatprep.mubr.f32.mxu0 0.0
      %633 = vmatmul.mubr.f32.gmra.mrb[0].mxu0 %v267
      %v634 = vpop.f32.mrb[0].mxu0
      %v635 = vadd.f32 0.0, %v634
      %v636 = vpop.f32.mrb[0].mxu0
      %637 = vmatprep.mubr.f32.mxu0 0.0
      %638 = vmatmul.mubr.f32.gmra.mrb[0].mxu0 %v270
      %v639 = vpop.f32.mrb[0].mxu0
      %v640 = vadd.f32 0.0, %v639
      %v641 = vpop.f32.mrb[0].mxu0
      %642 = vmatprep.mubr.f32.mxu0 0.0
      %643 = vmatmul.mubr.f32.gmra.mrb[0].mxu0 %v273
      %v644 = vpop.f32.mrb[0].mxu0
      %v645 = vadd.f32 0.0, %v644
      %v646 = vpop.f32.mrb[0].mxu0
      %647 = vmatprep.mubr.f32.mxu0 0.0
      %648 = vmatmul.mubr.f32.gmra.mrb[0].mxu0 %v276
      %v649 = vpop.f32.mrb[0].mxu0
      %v650 = vadd.f32 0.0, %v649
      %v651 = vpop.f32.mrb[0].mxu0
      %652 = vmatprep.mubr.f32.mxu0 0.0
      %653 = vmatmul.mubr.f32.gmra.mrb[0].mxu0 %v279
      %v654 = vpop.f32.mrb[0].mxu0
      %v655 = vadd.f32 0.0, %v654
      %v656 = vpop.f32.mrb[0].mxu0
      %657 = vmatprep.mubr.f32.mxu0 0.0
      %658 = vmatmul.mubr.f32.gmra.mrb[0].mxu0 %v282
      %v659 = vpop.f32.mrb[0].mxu0
      %v660 = vadd.f32 0.0, %v659
      %v661 = vpop.f32.mrb[0].mxu0
      %662 = vmatprep.mubr.f32.mxu0 0.0
      %663 = vmatmul.mubr.f32.gmra.mrb[0].mxu0 %v285
      %v664 = vpop.f32.mrb[0].mxu0
      %v665 = vadd.f32 0.0, %v664
      %v666 = vpop.f32.mrb[0].mxu0
      %667 = vmatprep.mubr.f32.mxu0 0.0
      %668 = vmatmul.mubr.f32.gmra.mrb[0].mxu0 %v288
      %v669 = vpop.f32.mrb[0].mxu0
      %v670 = vadd.f32 0.0, %v669
      %v671 = vpop.f32.mrb[0].mxu0
      %672 = vmatprep.mubr.f32.mxu0 0.0
      %673 = vmatmul.mubr.f32.gmra.mrb[0].mxu0 %v291
      %v674 = vpop.f32.mrb[0].mxu0
      %v675 = vadd.f32 0.0, %v674
      %v676 = vpop.f32.mrb[0].mxu0
      %677 = vdwg.mxu0
      %678 = vst [vmem:[#allocation2] sm:$0xff] %v360
      %679 = vst [vmem:[#allocation2 + $0x8] sm:$0xff] %v365
      %680 = vst [vmem:[#allocation2 + $0x10] sm:$0xff] %v370
      %681 = vst [vmem:[#allocation2 + $0x18] sm:$0xff] %v375
      %682 = vst [vmem:[#allocation2 + $0x20] sm:$0xff] %v380
      %683 = vst [vmem:[#allocation2 + $0x28] sm:$0xff] %v385
      %684 = vst [vmem:[#allocation2 + $0x30] sm:$0xff] %v390
      %685 = vst [vmem:[#allocation2 + $0x38] sm:$0xff] %v395
      %686 = vst [vmem:[#allocation2 + $0x40] sm:$0xff] %v400
      %687 = vst [vmem:[#allocation2 + $0x48] sm:$0xff] %v405
      %688 = vst [vmem:[#allocation2 + $0x50] sm:$0xff] %v410
      %689 = vst [vmem:[#allocation2 + $0x58] sm:$0xff] %v415
      %690 = vst [vmem:[#allocation2 + $0x60] sm:$0xff] %v420
      %691 = vst [vmem:[#allocation2 + $0x68] sm:$0xff] %v425
      %692 = vst [vmem:[#allocation2 + $0x70] sm:$0xff] %v430
      %693 = vst [vmem:[#allocation2 + $0x78] sm:$0xff] %v435
      %694 = vst [vmem:[#allocation2 + $0x80] sm:$0xff] %v440
      %695 = vst [vmem:[#allocation2 + $0x88] sm:$0xff] %v445
      %696 = vst [vmem:[#allocation2 + $0x90] sm:$0xff] %v450
      %697 = vst [vmem:[#allocation2 + $0x98] sm:$0xff] %v455
      %698 = vst [vmem:[#allocation2 + $0xa0] sm:$0xff] %v460
      %699 = vst [vmem:[#allocation2 + $0xa8] sm:$0xff] %v465
      %700 = vst [vmem:[#allocation2 + $0xb0] sm:$0xff] %v470
      %701 = vst [vmem:[#allocation2 + $0xb8] sm:$0xff] %v475
      %702 = vst [vmem:[#allocation2 + $0xc0] sm:$0xff] %v480
      %703 = vst [vmem:[#allocation2 + $0xc8] sm:$0xff] %v485
      %704 = vst [vmem:[#allocation2 + $0xd0] sm:$0xff] %v490
      %705 = vst [vmem:[#allocation2 + $0xd8] sm:$0xff] %v495
      %706 = vst [vmem:[#allocation2 + $0xe0] sm:$0xff] %v500
      %707 = vst [vmem:[#allocation2 + $0xe8] sm:$0xff] %v505
      %708 = vst [vmem:[#allocation2 + $0xf0] sm:$0xff] %v510
      %709 = vst [vmem:[#allocation2 + $0xf8] sm:$0xff] %v515
      %710 = vst [vmem:[#allocation2 + $0x100] sm:$0xff] %v520
      %711 = vst [vmem:[#allocation2 + $0x108] sm:$0xff] %v525
      %712 = vst [vmem:[#allocation2 + $0x110] sm:$0xff] %v530
      %713 = vst [vmem:[#allocation2 + $0x118] sm:$0xff] %v535
      %714 = vst [vmem:[#allocation2 + $0x120] sm:$0xff] %v540
      %715 = vst [vmem:[#allocation2 + $0x128] sm:$0xff] %v545
      %716 = vst [vmem:[#allocation2 + $0x130] sm:$0xff] %v550
      %717 = vst [vmem:[#allocation2 + $0x138] sm:$0xff] %v555
      %718 = vst [vmem:[#allocation2 + $0x140] sm:$0xff] %v560
      %719 = vst [vmem:[#allocation2 + $0x148] sm:$0xff] %v565
      %720 = vst [vmem:[#allocation2 + $0x150] sm:$0xff] %v570
      %721 = vst [vmem:[#allocation2 + $0x158] sm:$0xff] %v575
      %722 = vst [vmem:[#allocation2 + $0x160] sm:$0xff] %v580
      %723 = vst [vmem:[#allocation2 + $0x168] sm:$0xff] %v585
      %724 = vst [vmem:[#allocation2 + $0x170] sm:$0xff] %v590
      %725 = vst [vmem:[#allocation2 + $0x178] sm:$0xff] %v595
      %726 = vst [vmem:[#allocation2 + $0x180] sm:$0xff] %v600
      %727 = vst [vmem:[#allocation2 + $0x188] sm:$0xff] %v605
      %728 = vst [vmem:[#allocation2 + $0x190] sm:$0xff] %v610
      %729 = vst [vmem:[#allocation2 + $0x198] sm:$0xff] %v615
      %730 = vst [vmem:[#allocation2 + $0x1a0] sm:$0xff] %v620
      %731 = vst [vmem:[#allocation2 + $0x1a8] sm:$0xff] %v625
      %732 = vst [vmem:[#allocation2 + $0x1b0] sm:$0xff] %v630
      %733 = vst [vmem:[#allocation2 + $0x1b8] sm:$0xff] %v635
      %734 = vst [vmem:[#allocation2 + $0x1c0] sm:$0xff] %v640
      %735 = vst [vmem:[#allocation2 + $0x1c8] sm:$0xff] %v645
      %736 = vst [vmem:[#allocation2 + $0x1d0] sm:$0xff] %v650
      %737 = vst [vmem:[#allocation2 + $0x1d8] sm:$0xff] %v655
      %738 = vst [vmem:[#allocation2 + $0x1e0] sm:$0xff] %v660
      %739 = vst [vmem:[#allocation2 + $0x1e8] sm:$0xff] %v665
      %740 = vst [vmem:[#allocation2 + $0x1f0] sm:$0xff] %v670
      %741 = vst [vmem:[#allocation2 + $0x1f8] sm:$0xff] %v675
      %742 = vst [vmem:[#allocation3] sm:$0xff] -1e+30
      %743 = vst [vmem:[#allocation3 + $0x8] sm:$0xff] -1e+30
      %744 = vst [vmem:[#allocation3 + $0x10] sm:$0xff] -1e+30
      %745 = vst [vmem:[#allocation3 + $0x18] sm:$0xff] -1e+30
      %746 = vst [vmem:[#allocation3 + $0x20] sm:$0xff] -1e+30
      %747 = vst [vmem:[#allocation3 + $0x28] sm:$0xff] -1e+30
      %748 = vst [vmem:[#allocation3 + $0x30] sm:$0xff] -1e+30
      %749 = vst [vmem:[#allocation3 + $0x38] sm:$0xff] -1e+30
      %750 = vst [vmem:[#allocation3 + $0x40] sm:$0xff] -1e+30
      %751 = vst [vmem:[#allocation3 + $0x48] sm:$0xff] -1e+30
      %752 = vst [vmem:[#allocation3 + $0x50] sm:$0xff] -1e+30
      %753 = vst [vmem:[#allocation3 + $0x58] sm:$0xff] -1e+30
      %754 = vst [vmem:[#allocation3 + $0x60] sm:$0xff] -1e+30
      %755 = vst [vmem:[#allocation3 + $0x68] sm:$0xff] -1e+30
      %756 = vst [vmem:[#allocation3 + $0x70] sm:$0xff] -1e+30
      %757 = vst [vmem:[#allocation3 + $0x78] sm:$0xff] -1e+30
      %758 = vst [vmem:[#allocation3 + $0x80] sm:$0xff] -1e+30
      %759 = vst [vmem:[#allocation3 + $0x88] sm:$0xff] -1e+30
      %760 = vst [vmem:[#allocation3 + $0x90] sm:$0xff] -1e+30
      %761 = vst [vmem:[#allocation3 + $0x98] sm:$0xff] -1e+30
      %762 = vst [vmem:[#allocation3 + $0xa0] sm:$0xff] -1e+30
      %763 = vst [vmem:[#allocation3 + $0xa8] sm:$0xff] -1e+30
      %764 = vst [vmem:[#allocation3 + $0xb0] sm:$0xff] -1e+30
      %765 = vst [vmem:[#allocation3 + $0xb8] sm:$0xff] -1e+30
      %766 = vst [vmem:[#allocation3 + $0xc0] sm:$0xff] -1e+30
      %767 = vst [vmem:[#allocation3 + $0xc8] sm:$0xff] -1e+30
      %768 = vst [vmem:[#allocation3 + $0xd0] sm:$0xff] -1e+30
      %769 = vst [vmem:[#allocation3 + $0xd8] sm:$0xff] -1e+30
      %770 = vst [vmem:[#allocation3 + $0xe0] sm:$0xff] -1e+30
      %771 = vst [vmem:[#allocation3 + $0xe8] sm:$0xff] -1e+30
      %772 = vst [vmem:[#allocation3 + $0xf0] sm:$0xff] -1e+30
      %773 = vst [vmem:[#allocation3 + $0xf8] sm:$0xff] -1e+30
      %774 = vst [vmem:[#allocation3 + $0x100] sm:$0xff] -1e+30
      %775 = vst [vmem:[#allocation3 + $0x108] sm:$0xff] -1e+30
      %776 = vst [vmem:[#allocation3 + $0x110] sm:$0xff] -1e+30
      %777 = vst [vmem:[#allocation3 + $0x118] sm:$0xff] -1e+30
      %778 = vst [vmem:[#allocation3 + $0x120] sm:$0xff] -1e+30
      %779 = vst [vmem:[#allocation3 + $0x128] sm:$0xff] -1e+30
      %780 = vst [vmem:[#allocation3 + $0x130] sm:$0xff] -1e+30
      %781 = vst [vmem:[#allocation3 + $0x138] sm:$0xff] -1e+30
      %782 = vst [vmem:[#allocation3 + $0x140] sm:$0xff] -1e+30
      %783 = vst [vmem:[#allocation3 + $0x148] sm:$0xff] -1e+30
      %784 = vst [vmem:[#allocation3 + $0x150] sm:$0xff] -1e+30
      %785 = vst [vmem:[#allocation3 + $0x158] sm:$0xff] -1e+30
      %786 = vst [vmem:[#allocation3 + $0x160] sm:$0xff] -1e+30
      %787 = vst [vmem:[#allocation3 + $0x168] sm:$0xff] -1e+30
      %788 = vst [vmem:[#allocation3 + $0x170] sm:$0xff] -1e+30
      %789 = vst [vmem:[#allocation3 + $0x178] sm:$0xff] -1e+30
      %790 = vst [vmem:[#allocation3 + $0x180] sm:$0xff] -1e+30
      %791 = vst [vmem:[#allocation3 + $0x188] sm:$0xff] -1e+30
      %792 = vst [vmem:[#allocation3 + $0x190] sm:$0xff] -1e+30
      %793 = vst [vmem:[#allocation3 + $0x198] sm:$0xff] -1e+30
      %794 = vst [vmem:[#allocation3 + $0x1a0] sm:$0xff] -1e+30
      %795 = vst [vmem:[#allocation3 + $0x1a8] sm:$0xff] -1e+30
      %796 = vst [vmem:[#allocation3 + $0x1b0] sm:$0xff] -1e+30
      %797 = vst [vmem:[#allocation3 + $0x1b8] sm:$0xff] -1e+30
      %798 = vst [vmem:[#allocation3 + $0x1c0] sm:$0xff] -1e+30
      %799 = vst [vmem:[#allocation3 + $0x1c8] sm:$0xff] -1e+30
      %800 = vst [vmem:[#allocation3 + $0x1d0] sm:$0xff] -1e+30
      %801 = vst [vmem:[#allocation3 + $0x1d8] sm:$0xff] -1e+30
      %802 = vst [vmem:[#allocation3 + $0x1e0] sm:$0xff] -1e+30
      %803 = vst [vmem:[#allocation3 + $0x1e8] sm:$0xff] -1e+30
      %804 = vst [vmem:[#allocation3 + $0x1f0] sm:$0xff] -1e+30
      %805 = vst [vmem:[#allocation3 + $0x1f8] sm:$0xff] -1e+30
      %806 = vst [vmem:[#allocation4] sm:$0xff] 0.0
      %807 = vst [vmem:[#allocation4 + $0x8] sm:$0xff] 0.0
      %808 = vst [vmem:[#allocation4 + $0x10] sm:$0xff] 0.0
      %809 = vst [vmem:[#allocation4 + $0x18] sm:$0xff] 0.0
      %810 = vst [vmem:[#allocation4 + $0x20] sm:$0xff] 0.0
      %811 = vst [vmem:[#allocation4 + $0x28] sm:$0xff] 0.0
      %812 = vst [vmem:[#allocation4 + $0x30] sm:$0xff] 0.0
      %813 = vst [vmem:[#allocation4 + $0x38] sm:$0xff] 0.0
      %814 = vst [vmem:[#allocation4 + $0x40] sm:$0xff] 0.0
      %815 = vst [vmem:[#allocation4 + $0x48] sm:$0xff] 0.0
      %816 = vst [vmem:[#allocation4 + $0x50] sm:$0xff] 0.0
      %817 = vst [vmem:[#allocation4 + $0x58] sm:$0xff] 0.0
      %818 = vst [vmem:[#allocation4 + $0x60] sm:$0xff] 0.0
      %819 = vst [vmem:[#allocation4 + $0x68] sm:$0xff] 0.0
      %820 = vst [vmem:[#allocation4 + $0x70] sm:$0xff] 0.0
      %821 = vst [vmem:[#allocation4 + $0x78] sm:$0xff] 0.0
      %822 = vst [vmem:[#allocation4 + $0x80] sm:$0xff] 0.0
      %823 = vst [vmem:[#allocation4 + $0x88] sm:$0xff] 0.0
      %824 = vst [vmem:[#allocation4 + $0x90] sm:$0xff] 0.0
      %825 = vst [vmem:[#allocation4 + $0x98] sm:$0xff] 0.0
      %826 = vst [vmem:[#allocation4 + $0xa0] sm:$0xff] 0.0
      %827 = vst [vmem:[#allocation4 + $0xa8] sm:$0xff] 0.0
      %828 = vst [vmem:[#allocation4 + $0xb0] sm:$0xff] 0.0
      %829 = vst [vmem:[#allocation4 + $0xb8] sm:$0xff] 0.0
      %830 = vst [vmem:[#allocation4 + $0xc0] sm:$0xff] 0.0
      %831 = vst [vmem:[#allocation4 + $0xc8] sm:$0xff] 0.0
      %832 = vst [vmem:[#allocation4 + $0xd0] sm:$0xff] 0.0
      %833 = vst [vmem:[#allocation4 + $0xd8] sm:$0xff] 0.0
      %834 = vst [vmem:[#allocation4 + $0xe0] sm:$0xff] 0.0
      %835 = vst [vmem:[#allocation4 + $0xe8] sm:$0xff] 0.0
      %836 = vst [vmem:[#allocation4 + $0xf0] sm:$0xff] 0.0
      %837 = vst [vmem:[#allocation4 + $0xf8] sm:$0xff] 0.0
      %838 = vst [vmem:[#allocation4 + $0x100] sm:$0xff] 0.0
      %839 = vst [vmem:[#allocation4 + $0x108] sm:$0xff] 0.0
      %840 = vst [vmem:[#allocation4 + $0x110] sm:$0xff] 0.0
      %841 = vst [vmem:[#allocation4 + $0x118] sm:$0xff] 0.0
      %842 = vst [vmem:[#allocation4 + $0x120] sm:$0xff] 0.0
      %843 = vst [vmem:[#allocation4 + $0x128] sm:$0xff] 0.0
      %844 = vst [vmem:[#allocation4 + $0x130] sm:$0xff] 0.0
      %845 = vst [vmem:[#allocation4 + $0x138] sm:$0xff] 0.0
      %846 = vst [vmem:[#allocation4 + $0x140] sm:$0xff] 0.0
      %847 = vst [vmem:[#allocation4 + $0x148] sm:$0xff] 0.0
      %848 = vst [vmem:[#allocation4 + $0x150] sm:$0xff] 0.0
      %849 = vst [vmem:[#allocation4 + $0x158] sm:$0xff] 0.0
      %850 = vst [vmem:[#allocation4 + $0x160] sm:$0xff] 0.0
      %851 = vst [vmem:[#allocation4 + $0x168] sm:$0xff] 0.0
      %852 = vst [vmem:[#allocation4 + $0x170] sm:$0xff] 0.0
      %853 = vst [vmem:[#allocation4 + $0x178] sm:$0xff] 0.0
      %854 = vst [vmem:[#allocation4 + $0x180] sm:$0xff] 0.0
      %855 = vst [vmem:[#allocation4 + $0x188] sm:$0xff] 0.0
      %856 = vst [vmem:[#allocation4 + $0x190] sm:$0xff] 0.0
      %857 = vst [vmem:[#allocation4 + $0x198] sm:$0xff] 0.0
      %858 = vst [vmem:[#allocation4 + $0x1a0] sm:$0xff] 0.0
      %859 = vst [vmem:[#allocation4 + $0x1a8] sm:$0xff] 0.0
      %860 = vst [vmem:[#allocation4 + $0x1b0] sm:$0xff] 0.0
      %861 = vst [vmem:[#allocation4 + $0x1b8] sm:$0xff] 0.0
      %862 = vst [vmem:[#allocation4 + $0x1c0] sm:$0xff] 0.0
      %863 = vst [vmem:[#allocation4 + $0x1c8] sm:$0xff] 0.0
      %864 = vst [vmem:[#allocation4 + $0x1d0] sm:$0xff] 0.0
      %865 = vst [vmem:[#allocation4 + $0x1d8] sm:$0xff] 0.0
      %866 = vst [vmem:[#allocation4 + $0x1e0] sm:$0xff] 0.0
      %867 = vst [vmem:[#allocation4 + $0x1e8] sm:$0xff] 0.0
      %868 = vst [vmem:[#allocation4 + $0x1f0] sm:$0xff] 0.0
      %869 = vst [vmem:[#allocation4 + $0x1f8] sm:$0xff] 0.0
      %870 = vst [vmem:[#allocation5] sm:$0xff] 0.0
      %871 = vst [vmem:[#allocation5 + $0x8] sm:$0xff] 0.0
      %872 = vst [vmem:[#allocation5 + $0x10] sm:$0xff] 0.0
      %873 = vst [vmem:[#allocation5 + $0x18] sm:$0xff] 0.0
      %874 = vst [vmem:[#allocation5 + $0x20] sm:$0xff] 0.0
      %875 = vst [vmem:[#allocation5 + $0x28] sm:$0xff] 0.0
      %876 = vst [vmem:[#allocation5 + $0x30] sm:$0xff] 0.0
      %877 = vst [vmem:[#allocation5 + $0x38] sm:$0xff] 0.0
      %878 = vst [vmem:[#allocation5 + $0x40] sm:$0xff] 0.0
      %879 = vst [vmem:[#allocation5 + $0x48] sm:$0xff] 0.0
      %880 = vst [vmem:[#allocation5 + $0x50] sm:$0xff] 0.0
      %881 = vst [vmem:[#allocation5 + $0x58] sm:$0xff] 0.0
      %882 = vst [vmem:[#allocation5 + $0x60] sm:$0xff] 0.0
      %883 = vst [vmem:[#allocation5 + $0x68] sm:$0xff] 0.0
      %884 = vst [vmem:[#allocation5 + $0x70] sm:$0xff] 0.0
      %885 = vst [vmem:[#allocation5 + $0x78] sm:$0xff] 0.0
      %886 = vst [vmem:[#allocation5 + $0x80] sm:$0xff] 0.0
      %887 = vst [vmem:[#allocation5 + $0x88] sm:$0xff] 0.0
      %888 = vst [vmem:[#allocation5 + $0x90] sm:$0xff] 0.0
      %889 = vst [vmem:[#allocation5 + $0x98] sm:$0xff] 0.0
      %890 = vst [vmem:[#allocation5 + $0xa0] sm:$0xff] 0.0
      %891 = vst [vmem:[#allocation5 + $0xa8] sm:$0xff] 0.0
      %892 = vst [vmem:[#allocation5 + $0xb0] sm:$0xff] 0.0
      %893 = vst [vmem:[#allocation5 + $0xb8] sm:$0xff] 0.0
      %894 = vst [vmem:[#allocation5 + $0xc0] sm:$0xff] 0.0
      %895 = vst [vmem:[#allocation5 + $0xc8] sm:$0xff] 0.0
      %896 = vst [vmem:[#allocation5 + $0xd0] sm:$0xff] 0.0
      %897 = vst [vmem:[#allocation5 + $0xd8] sm:$0xff] 0.0
      %898 = vst [vmem:[#allocation5 + $0xe0] sm:$0xff] 0.0
      %899 = vst [vmem:[#allocation5 + $0xe8] sm:$0xff] 0.0
      %900 = vst [vmem:[#allocation5 + $0xf0] sm:$0xff] 0.0
      %901 = vst [vmem:[#allocation5 + $0xf8] sm:$0xff] 0.0
      %902 = vst [vmem:[#allocation5 + $0x100] sm:$0xff] 0.0
      %903 = vst [vmem:[#allocation5 + $0x108] sm:$0xff] 0.0
      %904 = vst [vmem:[#allocation5 + $0x110] sm:$0xff] 0.0
      %905 = vst [vmem:[#allocation5 + $0x118] sm:$0xff] 0.0
      %906 = vst [vmem:[#allocation5 + $0x120] sm:$0xff] 0.0
      %907 = vst [vmem:[#allocation5 + $0x128] sm:$0xff] 0.0
      %908 = vst [vmem:[#allocation5 + $0x130] sm:$0xff] 0.0
      %909 = vst [vmem:[#allocation5 + $0x138] sm:$0xff] 0.0
      %910 = vst [vmem:[#allocation5 + $0x140] sm:$0xff] 0.0
      %911 = vst [vmem:[#allocation5 + $0x148] sm:$0xff] 0.0
      %912 = vst [vmem:[#allocation5 + $0x150] sm:$0xff] 0.0
      %913 = vst [vmem:[#allocation5 + $0x158] sm:$0xff] 0.0
      %914 = vst [vmem:[#allocation5 + $0x160] sm:$0xff] 0.0
      %915 = vst [vmem:[#allocation5 + $0x168] sm:$0xff] 0.0
      %916 = vst [vmem:[#allocation5 + $0x170] sm:$0xff] 0.0
      %917 = vst [vmem:[#allocation5 + $0x178] sm:$0xff] 0.0
      %918 = vst [vmem:[#allocation5 + $0x180] sm:$0xff] 0.0
      %919 = vst [vmem:[#allocation5 + $0x188] sm:$0xff] 0.0
      %920 = vst [vmem:[#allocation5 + $0x190] sm:$0xff] 0.0
      %921 = vst [vmem:[#allocation5 + $0x198] sm:$0xff] 0.0
      %922 = vst [vmem:[#allocation5 + $0x1a0] sm:$0xff] 0.0
      %923 = vst [vmem:[#allocation5 + $0x1a8] sm:$0xff] 0.0
      %924 = vst [vmem:[#allocation5 + $0x1b0] sm:$0xff] 0.0
      %925 = vst [vmem:[#allocation5 + $0x1b8] sm:$0xff] 0.0
      %926 = vst [vmem:[#allocation5 + $0x1c0] sm:$0xff] 0.0
      %927 = vst [vmem:[#allocation5 + $0x1c8] sm:$0xff] 0.0
      %928 = vst [vmem:[#allocation5 + $0x1d0] sm:$0xff] 0.0
      %929 = vst [vmem:[#allocation5 + $0x1d8] sm:$0xff] 0.0
      %930 = vst [vmem:[#allocation5 + $0x1e0] sm:$0xff] 0.0
      %931 = vst [vmem:[#allocation5 + $0x1e8] sm:$0xff] 0.0
      %932 = vst [vmem:[#allocation5 + $0x1f0] sm:$0xff] 0.0
      %933 = vst [vmem:[#allocation5 + $0x1f8] sm:$0xff] 0.0
    $region33: #{tpu_custom_call.1} parent=1 // pred_fallthru
      _
    %v934 = vld [vmem:[#allocation2] sm:$0xff]
    %v935 = vld [vmem:[#allocation2 + $0x8] sm:$0xff]
    %v936 = vld [vmem:[#allocation2 + $0x10] sm:$0xff]
    %v937 = vld [vmem:[#allocation2 + $0x18] sm:$0xff]
    %v938 = vld [vmem:[#allocation2 + $0x20] sm:$0xff]
    %v939 = vld [vmem:[#allocation2 + $0x28] sm:$0xff]
    %v940 = vld [vmem:[#allocation2 + $0x30] sm:$0xff]
    %v941 = vld [vmem:[#allocation2 + $0x38] sm:$0xff]
    %v942 = vld [vmem:[#allocation2 + $0x40] sm:$0xff]
    %v943 = vld [vmem:[#allocation2 + $0x48] sm:$0xff]
    %v944 = vld [vmem:[#allocation2 + $0x50] sm:$0xff]
    %v945 = vld [vmem:[#allocation2 + $0x58] sm:$0xff]
    %v946 = vld [vmem:[#allocation2 + $0x60] sm:$0xff]
    %v947 = vld [vmem:[#allocation2 + $0x68] sm:$0xff]
    %v948 = vld [vmem:[#allocation2 + $0x70] sm:$0xff]
    %v949 = vld [vmem:[#allocation2 + $0x78] sm:$0xff]
    %v950 = vld [vmem:[#allocation2 + $0x80] sm:$0xff]
    %v951 = vld [vmem:[#allocation2 + $0x88] sm:$0xff]
    %v952 = vld [vmem:[#allocation2 + $0x90] sm:$0xff]
    %v953 = vld [vmem:[#allocation2 + $0x98] sm:$0xff]
    %v954 = vld [vmem:[#allocation2 + $0xa0] sm:$0xff]
    %v955 = vld [vmem:[#allocation2 + $0xa8] sm:$0xff]
    %v956 = vld [vmem:[#allocation2 + $0xb0] sm:$0xff]
    %v957 = vld [vmem:[#allocation2 + $0xb8] sm:$0xff]
    %v958 = vld [vmem:[#allocation2 + $0xc0] sm:$0xff]
    %v959 = vld [vmem:[#allocation2 + $0xc8] sm:$0xff]
    %v960 = vld [vmem:[#allocation2 + $0xd0] sm:$0xff]
    %v961 = vld [vmem:[#allocation2 + $0xd8] sm:$0xff]
    %v962 = vld [vmem:[#allocation2 + $0xe0] sm:$0xff]
    %v963 = vld [vmem:[#allocation2 + $0xe8] sm:$0xff]
    %v964 = vld [vmem:[#allocation2 + $0xf0] sm:$0xff]
    %v965 = vld [vmem:[#allocation2 + $0xf8] sm:$0xff]
    %v966 = vld [vmem:[#allocation2 + $0x100] sm:$0xff]
    %v967 = vld [vmem:[#allocation2 + $0x108] sm:$0xff]
    %v968 = vld [vmem:[#allocation2 + $0x110] sm:$0xff]
    %v969 = vld [vmem:[#allocation2 + $0x118] sm:$0xff]
    %v970 = vld [vmem:[#allocation2 + $0x120] sm:$0xff]
    %v971 = vld [vmem:[#allocation2 + $0x128] sm:$0xff]
    %v972 = vld [vmem:[#allocation2 + $0x130] sm:$0xff]
    %v973 = vld [vmem:[#allocation2 + $0x138] sm:$0xff]
    %v974 = vld [vmem:[#allocation2 + $0x140] sm:$0xff]
    %v975 = vld [vmem:[#allocation2 + $0x148] sm:$0xff]
    %v976 = vld [vmem:[#allocation2 + $0x150] sm:$0xff]
    %v977 = vld [vmem:[#allocation2 + $0x158] sm:$0xff]
    %v978 = vld [vmem:[#allocation2 + $0x160] sm:$0xff]
    %v979 = vld [vmem:[#allocation2 + $0x168] sm:$0xff]
    %v980 = vld [vmem:[#allocation2 + $0x170] sm:$0xff]
    %v981 = vld [vmem:[#allocation2 + $0x178] sm:$0xff]
    %v982 = vld [vmem:[#allocation2 + $0x180] sm:$0xff]
    %v983 = vld [vmem:[#allocation2 + $0x188] sm:$0xff]
    %v984 = vld [vmem:[#allocation2 + $0x190] sm:$0xff]
    %v985 = vld [vmem:[#allocation2 + $0x198] sm:$0xff]
    %v986 = vld [vmem:[#allocation2 + $0x1a0] sm:$0xff]
    %v987 = vld [vmem:[#allocation2 + $0x1a8] sm:$0xff]
    %v988 = vld [vmem:[#allocation2 + $0x1b0] sm:$0xff]
    %v989 = vld [vmem:[#allocation2 + $0x1b8] sm:$0xff]
    %v990 = vld [vmem:[#allocation2 + $0x1c0] sm:$0xff]
    %v991 = vld [vmem:[#allocation2 + $0x1c8] sm:$0xff]
    %v992 = vld [vmem:[#allocation2 + $0x1d0] sm:$0xff]
    %v993 = vld [vmem:[#allocation2 + $0x1d8] sm:$0xff]
    %v994 = vld [vmem:[#allocation2 + $0x1e0] sm:$0xff]
    %v995 = vld [vmem:[#allocation2 + $0x1e8] sm:$0xff]
    %v996 = vld [vmem:[#allocation2 + $0x1f0] sm:$0xff]
    %v997 = vld [vmem:[#allocation2 + $0x1f8] sm:$0xff]
    %v998 = vld [vmem:[%s1] sm:$0xf]
    %v999 = vld [vmem:[%s1 + $0x4] sm:$0xf]
    %v1000 = vld [vmem:[%s1 + $0x8] sm:$0xf]
    %v1001 = vld [vmem:[%s1 + $0xc] sm:$0xf]
    %v1002 = vld [vmem:[%s1 + $0x10] sm:$0xf]
    %v1003 = vld [vmem:[%s1 + $0x14] sm:$0xf]
    %v1004 = vld [vmem:[%s1 + $0x18] sm:$0xf]
    %v1005 = vld [vmem:[%s1 + $0x1c] sm:$0xf]
    %v1006 = vld [vmem:[%s1 + $0x20] sm:$0xf]
    %v1007 = vld [vmem:[%s1 + $0x24] sm:$0xf]
    %v1008 = vld [vmem:[%s1 + $0x28] sm:$0xf]
    %v1009 = vld [vmem:[%s1 + $0x2c] sm:$0xf]
    %v1010 = vld [vmem:[%s1 + $0x30] sm:$0xf]
    %v1011 = vld [vmem:[%s1 + $0x34] sm:$0xf]
    %v1012 = vld [vmem:[%s1 + $0x38] sm:$0xf]
    %v1013 = vld [vmem:[%s1 + $0x3c] sm:$0xf]
    %v1014 = vld [vmem:[%s1 + $0x40] sm:$0xf]
    %v1015 = vld [vmem:[%s1 + $0x44] sm:$0xf]
    %v1016 = vld [vmem:[%s1 + $0x48] sm:$0xf]
    %v1017 = vld [vmem:[%s1 + $0x4c] sm:$0xf]
    %v1018 = vld [vmem:[%s1 + $0x50] sm:$0xf]
    %v1019 = vld [vmem:[%s1 + $0x54] sm:$0xf]
    %v1020 = vld [vmem:[%s1 + $0x58] sm:$0xf]
    %v1021 = vld [vmem:[%s1 + $0x5c] sm:$0xf]
    %v1022 = vld [vmem:[%s1 + $0x60] sm:$0xf]
    %v1023 = vld [vmem:[%s1 + $0x64] sm:$0xf]
    %v1024 = vld [vmem:[%s1 + $0x68] sm:$0xf]
    %v1025 = vld [vmem:[%s1 + $0x6c] sm:$0xf]
    %v1026 = vld [vmem:[%s1 + $0x70] sm:$0xf]
    %v1027 = vld [vmem:[%s1 + $0x74] sm:$0xf]
    %v1028 = vld [vmem:[%s1 + $0x78] sm:$0xf]
    %v1029 = vld [vmem:[%s1 + $0x7c] sm:$0xf]
    %v1030 = vld [vmem:[%s1 + $0x80] sm:$0xf]
    %v1031 = vld [vmem:[%s1 + $0x84] sm:$0xf]
    %v1032 = vld [vmem:[%s1 + $0x88] sm:$0xf]
    %v1033 = vld [vmem:[%s1 + $0x8c] sm:$0xf]
    %v1034 = vld [vmem:[%s1 + $0x90] sm:$0xf]
    %v1035 = vld [vmem:[%s1 + $0x94] sm:$0xf]
    %v1036 = vld [vmem:[%s1 + $0x98] sm:$0xf]
    %v1037 = vld [vmem:[%s1 + $0x9c] sm:$0xf]
    %v1038 = vld [vmem:[%s1 + $0xa0] sm:$0xf]
    %v1039 = vld [vmem:[%s1 + $0xa4] sm:$0xf]
    %v1040 = vld [vmem:[%s1 + $0xa8] sm:$0xf]
    %v1041 = vld [vmem:[%s1 + $0xac] sm:$0xf]
    %v1042 = vld [vmem:[%s1 + $0xb0] sm:$0xf]
    %v1043 = vld [vmem:[%s1 + $0xb4] sm:$0xf]
    %v1044 = vld [vmem:[%s1 + $0xb8] sm:$0xf]
    %v1045 = vld [vmem:[%s1 + $0xbc] sm:$0xf]
    %v1046 = vld [vmem:[%s1 + $0xc0] sm:$0xf]
    %v1047 = vld [vmem:[%s1 + $0xc4] sm:$0xf]
    %v1048 = vld [vmem:[%s1 + $0xc8] sm:$0xf]
    %v1049 = vld [vmem:[%s1 + $0xcc] sm:$0xf]
    %v1050 = vld [vmem:[%s1 + $0xd0] sm:$0xf]
    %v1051 = vld [vmem:[%s1 + $0xd4] sm:$0xf]
    %v1052 = vld [vmem:[%s1 + $0xd8] sm:$0xf]
    %v1053 = vld [vmem:[%s1 + $0xdc] sm:$0xf]
    %v1054 = vld [vmem:[%s1 + $0xe0] sm:$0xf]
    %v1055 = vld [vmem:[%s1 + $0xe4] sm:$0xf]
    %v1056 = vld [vmem:[%s1 + $0xe8] sm:$0xf]
    %v1057 = vld [vmem:[%s1 + $0xec] sm:$0xf]
    %v1058 = vld [vmem:[%s1 + $0xf0] sm:$0xf]
    %v1059 = vld [vmem:[%s1 + $0xf4] sm:$0xf]
    %v1060 = vld [vmem:[%s1 + $0xf8] sm:$0xf]
    %v1061 = vld [vmem:[%s1 + $0xfc] sm:$0xf]
    %v1062 = vld [vmem:[%s1 + $0x100] sm:$0xf]
    %v1063 = vld [vmem:[%s1 + $0x104] sm:$0xf]
    %v1064 = vld [vmem:[%s1 + $0x108] sm:$0xf]
    %v1065 = vld [vmem:[%s1 + $0x10c] sm:$0xf]
    %v1066 = vld [vmem:[%s1 + $0x110] sm:$0xf]
    %v1067 = vld [vmem:[%s1 + $0x114] sm:$0xf]
    %v1068 = vld [vmem:[%s1 + $0x118] sm:$0xf]
    %v1069 = vld [vmem:[%s1 + $0x11c] sm:$0xf]
    %v1070 = vld [vmem:[%s1 + $0x120] sm:$0xf]
    %v1071 = vld [vmem:[%s1 + $0x124] sm:$0xf]
    %v1072 = vld [vmem:[%s1 + $0x128] sm:$0xf]
    %v1073 = vld [vmem:[%s1 + $0x12c] sm:$0xf]
    %v1074 = vld [vmem:[%s1 + $0x130] sm:$0xf]
    %v1075 = vld [vmem:[%s1 + $0x134] sm:$0xf]
    %v1076 = vld [vmem:[%s1 + $0x138] sm:$0xf]
    %v1077 = vld [vmem:[%s1 + $0x13c] sm:$0xf]
    %v1078 = vld [vmem:[%s1 + $0x140] sm:$0xf]
    %v1079 = vld [vmem:[%s1 + $0x144] sm:$0xf]
    %v1080 = vld [vmem:[%s1 + $0x148] sm:$0xf]
    %v1081 = vld [vmem:[%s1 + $0x14c] sm:$0xf]
    %v1082 = vld [vmem:[%s1 + $0x150] sm:$0xf]
    %v1083 = vld [vmem:[%s1 + $0x154] sm:$0xf]
    %v1084 = vld [vmem:[%s1 + $0x158] sm:$0xf]
    %v1085 = vld [vmem:[%s1 + $0x15c] sm:$0xf]
    %v1086 = vld [vmem:[%s1 + $0x160] sm:$0xf]
    %v1087 = vld [vmem:[%s1 + $0x164] sm:$0xf]
    %v1088 = vld [vmem:[%s1 + $0x168] sm:$0xf]
    %v1089 = vld [vmem:[%s1 + $0x16c] sm:$0xf]
    %v1090 = vld [vmem:[%s1 + $0x170] sm:$0xf]
    %v1091 = vld [vmem:[%s1 + $0x174] sm:$0xf]
    %v1092 = vld [vmem:[%s1 + $0x178] sm:$0xf]
    %v1093 = vld [vmem:[%s1 + $0x17c] sm:$0xf]
    %v1094 = vld [vmem:[%s1 + $0x180] sm:$0xf]
    %v1095 = vld [vmem:[%s1 + $0x184] sm:$0xf]
    %v1096 = vld [vmem:[%s1 + $0x188] sm:$0xf]
    %v1097 = vld [vmem:[%s1 + $0x18c] sm:$0xf]
    %v1098 = vld [vmem:[%s1 + $0x190] sm:$0xf]
    %v1099 = vld [vmem:[%s1 + $0x194] sm:$0xf]
    %v1100 = vld [vmem:[%s1 + $0x198] sm:$0xf]
    %v1101 = vld [vmem:[%s1 + $0x19c] sm:$0xf]
    %v1102 = vld [vmem:[%s1 + $0x1a0] sm:$0xf]
    %v1103 = vld [vmem:[%s1 + $0x1a4] sm:$0xf]
    %v1104 = vld [vmem:[%s1 + $0x1a8] sm:$0xf]
    %v1105 = vld [vmem:[%s1 + $0x1ac] sm:$0xf]
    %v1106 = vld [vmem:[%s1 + $0x1b0] sm:$0xf]
    %v1107 = vld [vmem:[%s1 + $0x1b4] sm:$0xf]
    %v1108 = vld [vmem:[%s1 + $0x1b8] sm:$0xf]
    %v1109 = vld [vmem:[%s1 + $0x1bc] sm:$0xf]
    %v1110 = vld [vmem:[%s1 + $0x1c0] sm:$0xf]
    %v1111 = vld [vmem:[%s1 + $0x1c4] sm:$0xf]
    %v1112 = vld [vmem:[%s1 + $0x1c8] sm:$0xf]
    %v1113 = vld [vmem:[%s1 + $0x1cc] sm:$0xf]
    %v1114 = vld [vmem:[%s1 + $0x1d0] sm:$0xf]
    %v1115 = vld [vmem:[%s1 + $0x1d4] sm:$0xf]
    %v1116 = vld [vmem:[%s1 + $0x1d8] sm:$0xf]
    %v1117 = vld [vmem:[%s1 + $0x1dc] sm:$0xf]
    %v1118 = vld [vmem:[%s1 + $0x1e0] sm:$0xf]
    %v1119 = vld [vmem:[%s1 + $0x1e4] sm:$0xf]
    %v1120 = vld [vmem:[%s1 + $0x1e8] sm:$0xf]
    %v1121 = vld [vmem:[%s1 + $0x1ec] sm:$0xf]
    %v1122 = vld [vmem:[%s1 + $0x1f0] sm:$0xf]
    %v1123 = vld [vmem:[%s1 + $0x1f4] sm:$0xf]
    %v1124 = vld [vmem:[%s1 + $0x1f8] sm:$0xf]
    %v1125 = vld [vmem:[%s1 + $0x1fc] sm:$0xf]
    %v1126 = vld [vmem:[%s4] sm:$0xff]
    %v1127 = vld [vmem:[%s4 + $0x8] sm:$0xff]
    %v1128 = vld [vmem:[%s4 + $0x10] sm:$0xff]
    %v1129 = vld [vmem:[%s4 + $0x18] sm:$0xff]
    %v1258 = vunpack.c.l.b16 %v998
    %v1259 = vunpack.c.l.b16 %v999
    %v1260 = vunpack.c.l.b16 %v1000
    %v1261 = vunpack.c.l.b16 %v1001
    %v1262 = vunpack.c.l.b16 %v1002
    %v1263 = vunpack.c.l.b16 %v1003
    %v1264 = vunpack.c.l.b16 %v1004
    %v1265 = vunpack.c.l.b16 %v1005
    %v1266 = vunpack.c.l.b16 %v1006
    %v1267 = vunpack.c.l.b16 %v1007
    %v1268 = vunpack.c.l.b16 %v1008
    %v1269 = vunpack.c.l.b16 %v1009
    %v1270 = vunpack.c.l.b16 %v1010
    %v1271 = vunpack.c.l.b16 %v1011
    %v1272 = vunpack.c.l.b16 %v1012
    %v1273 = vunpack.c.l.b16 %v1013
    %v1274 = vunpack.c.l.b16 %v1014
    %v1275 = vunpack.c.l.b16 %v1015
    %v1276 = vunpack.c.l.b16 %v1016
    %v1277 = vunpack.c.l.b16 %v1017
    %v1278 = vunpack.c.l.b16 %v1018
    %v1279 = vunpack.c.l.b16 %v1019
    %v1280 = vunpack.c.l.b16 %v1020
    %v1281 = vunpack.c.l.b16 %v1021
    %v1282 = vunpack.c.l.b16 %v1022
    %v1283 = vunpack.c.l.b16 %v1023
    %v1284 = vunpack.c.l.b16 %v1024
    %v1285 = vunpack.c.l.b16 %v1025
    %v1286 = vunpack.c.l.b16 %v1026
    %v1287 = vunpack.c.l.b16 %v1027
    %v1288 = vunpack.c.l.b16 %v1028
    %v1289 = vunpack.c.l.b16 %v1029
    %v1290 = vunpack.c.l.b16 %v1030
    %v1291 = vunpack.c.l.b16 %v1031
    %v1292 = vunpack.c.l.b16 %v1032
    %v1293 = vunpack.c.l.b16 %v1033
    %v1294 = vunpack.c.l.b16 %v1034
    %v1295 = vunpack.c.l.b16 %v1035
    %v1296 = vunpack.c.l.b16 %v1036
    %v1297 = vunpack.c.l.b16 %v1037
    %v1298 = vunpack.c.l.b16 %v1038
    %v1299 = vunpack.c.l.b16 %v1039
    %v1300 = vunpack.c.l.b16 %v1040
    %v1301 = vunpack.c.l.b16 %v1041
    %v1302 = vunpack.c.l.b16 %v1042
    %v1303 = vunpack.c.l.b16 %v1043
    %v1304 = vunpack.c.l.b16 %v1044
    %v1305 = vunpack.c.l.b16 %v1045
    %v1306 = vunpack.c.l.b16 %v1046
    %v1307 = vunpack.c.l.b16 %v1047
    %v1308 = vunpack.c.l.b16 %v1048
    %v1309 = vunpack.c.l.b16 %v1049
    %v1310 = vunpack.c.l.b16 %v1050
    %v1311 = vunpack.c.l.b16 %v1051
    %v1312 = vunpack.c.l.b16 %v1052
    %v1313 = vunpack.c.l.b16 %v1053
    %v1314 = vunpack.c.l.b16 %v1054
    %v1315 = vunpack.c.l.b16 %v1055
    %v1316 = vunpack.c.l.b16 %v1056
    %v1317 = vunpack.c.l.b16 %v1057
    %v1318 = vunpack.c.l.b16 %v1058
    %v1319 = vunpack.c.l.b16 %v1059
    %v1320 = vunpack.c.l.b16 %v1060
    %v1321 = vunpack.c.l.b16 %v1061
    %v1322 = vunpack.c.l.b16 %v1062
    %v1323 = vunpack.c.l.b16 %v1063
    %v1324 = vunpack.c.l.b16 %v1064
    %v1325 = vunpack.c.l.b16 %v1065
    %v1326 = vunpack.c.l.b16 %v1066
    %v1327 = vunpack.c.l.b16 %v1067
    %v1328 = vunpack.c.l.b16 %v1068
    %v1329 = vunpack.c.l.b16 %v1069
    %v1330 = vunpack.c.l.b16 %v1070
    %v1331 = vunpack.c.l.b16 %v1071
    %v1332 = vunpack.c.l.b16 %v1072
    %v1333 = vunpack.c.l.b16 %v1073
    %v1334 = vunpack.c.l.b16 %v1074
    %v1335 = vunpack.c.l.b16 %v1075
    %v1336 = vunpack.c.l.b16 %v1076
    %v1337 = vunpack.c.l.b16 %v1077
    %v1338 = vunpack.c.l.b16 %v1078
    %v1339 = vunpack.c.l.b16 %v1079
    %v1340 = vunpack.c.l.b16 %v1080
    %v1341 = vunpack.c.l.b16 %v1081
    %v1342 = vunpack.c.l.b16 %v1082
    %v1343 = vunpack.c.l.b16 %v1083
    %v1344 = vunpack.c.l.b16 %v1084
    %v1345 = vunpack.c.l.b16 %v1085
    %v1346 = vunpack.c.l.b16 %v1086
    %v1347 = vunpack.c.l.b16 %v1087
    %v1348 = vunpack.c.l.b16 %v1088
    %v1349 = vunpack.c.l.b16 %v1089
    %v1350 = vunpack.c.l.b16 %v1090
    %v1351 = vunpack.c.l.b16 %v1091
    %v1352 = vunpack.c.l.b16 %v1092
    %v1353 = vunpack.c.l.b16 %v1093
    %v1354 = vunpack.c.l.b16 %v1094
    %v1355 = vunpack.c.l.b16 %v1095
    %v1356 = vunpack.c.l.b16 %v1096
    %v1357 = vunpack.c.l.b16 %v1097
    %v1358 = vunpack.c.l.b16 %v1098
    %v1359 = vunpack.c.l.b16 %v1099
    %v1360 = vunpack.c.l.b16 %v1100
    %v1361 = vunpack.c.l.b16 %v1101
    %v1362 = vunpack.c.l.b16 %v1102
    %v1363 = vunpack.c.l.b16 %v1103
    %v1364 = vunpack.c.l.b16 %v1104
    %v1365 = vunpack.c.l.b16 %v1105
    %v1366 = vunpack.c.l.b16 %v1106
    %v1367 = vunpack.c.l.b16 %v1107
    %v1368 = vunpack.c.l.b16 %v1108
    %v1369 = vunpack.c.l.b16 %v1109
    %v1370 = vunpack.c.l.b16 %v1110
    %v1371 = vunpack.c.l.b16 %v1111
    %v1372 = vunpack.c.l.b16 %v1112
    %v1373 = vunpack.c.l.b16 %v1113
    %v1374 = vunpack.c.l.b16 %v1114
    %v1375 = vunpack.c.l.b16 %v1115
    %v1376 = vunpack.c.l.b16 %v1116
    %v1377 = vunpack.c.l.b16 %v1117
    %v1378 = vunpack.c.l.b16 %v1118
    %v1379 = vunpack.c.l.b16 %v1119
    %v1380 = vunpack.c.l.b16 %v1120
    %v1381 = vunpack.c.l.b16 %v1121
    %v1382 = vunpack.c.l.b16 %v1122
    %v1383 = vunpack.c.l.b16 %v1123
    %v1384 = vunpack.c.l.b16 %v1124
    %v1385 = vunpack.c.l.b16 %v1125
    %v1386 = vpack.c.b16 %v1259, %v1258
    %v1387 = vpack.c.b16 %v1261, %v1260
    %v1388 = vpack.c.b16 %v1263, %v1262
    %v1389 = vpack.c.b16 %v1265, %v1264
    %v1390 = vpack.c.b16 %v1267, %v1266
    %v1391 = vpack.c.b16 %v1269, %v1268
    %v1392 = vpack.c.b16 %v1271, %v1270
    %v1393 = vpack.c.b16 %v1273, %v1272
    %v1394 = vpack.c.b16 %v1275, %v1274
    %v1395 = vpack.c.b16 %v1277, %v1276
    %v1396 = vpack.c.b16 %v1279, %v1278
    %v1397 = vpack.c.b16 %v1281, %v1280
    %v1398 = vpack.c.b16 %v1283, %v1282
    %v1399 = vpack.c.b16 %v1285, %v1284
    %v1400 = vpack.c.b16 %v1287, %v1286
    %v1401 = vpack.c.b16 %v1289, %v1288
    %v1402 = vpack.c.b16 %v1291, %v1290
    %v1403 = vpack.c.b16 %v1293, %v1292
    %v1404 = vpack.c.b16 %v1295, %v1294
    %v1405 = vpack.c.b16 %v1297, %v1296
    %v1406 = vpack.c.b16 %v1299, %v1298
    %v1407 = vpack.c.b16 %v1301, %v1300
    %v1408 = vpack.c.b16 %v1303, %v1302
    %v1409 = vpack.c.b16 %v1305, %v1304
    %v1410 = vpack.c.b16 %v1307, %v1306
    %v1411 = vpack.c.b16 %v1309, %v1308
    %v1412 = vpack.c.b16 %v1311, %v1310
    %v1413 = vpack.c.b16 %v1313, %v1312
    %v1414 = vpack.c.b16 %v1315, %v1314
    %v1415 = vpack.c.b16 %v1317, %v1316
    %v1416 = vpack.c.b16 %v1319, %v1318
    %v1417 = vpack.c.b16 %v1321, %v1320
    %v1418 = vpack.c.b16 %v1323, %v1322
    %v1419 = vpack.c.b16 %v1325, %v1324
    %v1420 = vpack.c.b16 %v1327, %v1326
    %v1421 = vpack.c.b16 %v1329, %v1328
    %v1422 = vpack.c.b16 %v1331, %v1330
    %v1423 = vpack.c.b16 %v1333, %v1332
    %v1424 = vpack.c.b16 %v1335, %v1334
    %v1425 = vpack.c.b16 %v1337, %v1336
    %v1426 = vpack.c.b16 %v1339, %v1338
    %v1427 = vpack.c.b16 %v1341, %v1340
    %v1428 = vpack.c.b16 %v1343, %v1342
    %v1429 = vpack.c.b16 %v1345, %v1344
    %v1430 = vpack.c.b16 %v1347, %v1346
    %v1431 = vpack.c.b16 %v1349, %v1348
    %v1432 = vpack.c.b16 %v1351, %v1350
    %v1433 = vpack.c.b16 %v1353, %v1352
    %v1434 = vpack.c.b16 %v1355, %v1354
    %v1435 = vpack.c.b16 %v1357, %v1356
    %v1436 = vpack.c.b16 %v1359, %v1358
    %v1437 = vpack.c.b16 %v1361, %v1360
    %v1438 = vpack.c.b16 %v1363, %v1362
    %v1439 = vpack.c.b16 %v1365, %v1364
    %v1440 = vpack.c.b16 %v1367, %v1366
    %v1441 = vpack.c.b16 %v1369, %v1368
    %v1442 = vpack.c.b16 %v1371, %v1370
    %v1443 = vpack.c.b16 %v1373, %v1372
    %v1444 = vpack.c.b16 %v1375, %v1374
    %v1445 = vpack.c.b16 %v1377, %v1376
    %v1446 = vpack.c.b16 %v1379, %v1378
    %v1447 = vpack.c.b16 %v1381, %v1380
    %v1448 = vpack.c.b16 %v1383, %v1382
    %v1449 = vpack.c.b16 %v1385, %v1384
    %v1454 = vunpack.c.l.b16 %v1126
    %v1455 = vunpack.c.h.b16 %v1126
    %v1456 = vunpack.c.l.b16 %v1127
    %v1457 = vunpack.c.h.b16 %v1127
    %v1458 = vunpack.c.l.b16 %v1128
    %v1459 = vunpack.c.h.b16 %v1128
    %v1460 = vunpack.c.l.b16 %v1129
    %v1461 = vunpack.c.h.b16 %v1129
    %v1462 = vpack.c.b16 %v1456, %v1454
    %v1463 = vpack.c.b16 %v1457, %v1455
    %v1464 = vpack.c.b16 %v1460, %v1458
    %v1465 = vpack.c.b16 %v1461, %v1459
    %vm1470 = vcmask 261120
    %v1472 = vsel %vm1470, %v1386, 0
    %v1475 = vsel %vm1470, %v1387, 0
    %v1478 = vsel %vm1470, %v1388, 0
    %v1481 = vsel %vm1470, %v1389, 0
    %v1484 = vsel %vm1470, %v1390, 0
    %v1487 = vsel %vm1470, %v1391, 0
    %v1490 = vsel %vm1470, %v1392, 0
    %v1493 = vsel %vm1470, %v1393, 0
    %v1496 = vsel %vm1470, %v1394, 0
    %v1499 = vsel %vm1470, %v1395, 0
    %v1502 = vsel %vm1470, %v1396, 0
    %v1505 = vsel %vm1470, %v1397, 0
    %v1508 = vsel %vm1470, %v1398, 0
    %v1511 = vsel %vm1470, %v1399, 0
    %v1514 = vsel %vm1470, %v1400, 0
    %v1517 = vsel %vm1470, %v1401, 0
    %v1520 = vsel %vm1470, %v1402, 0
    %v1523 = vsel %vm1470, %v1403, 0
    %v1526 = vsel %vm1470, %v1404, 0
    %v1529 = vsel %vm1470, %v1405, 0
    %v1532 = vsel %vm1470, %v1406, 0
    %v1535 = vsel %vm1470, %v1407, 0
    %v1538 = vsel %vm1470, %v1408, 0
    %v1541 = vsel %vm1470, %v1409, 0
    %v1544 = vsel %vm1470, %v1410, 0
    %v1547 = vsel %vm1470, %v1411, 0
    %v1550 = vsel %vm1470, %v1412, 0
    %v1553 = vsel %vm1470, %v1413, 0
    %v1556 = vsel %vm1470, %v1414, 0
    %v1559 = vsel %vm1470, %v1415, 0
    %v1562 = vsel %vm1470, %v1416, 0
    %v1565 = vsel %vm1470, %v1417, 0
    %v1568 = vsel %vm1470, %v1418, 0
    %v1571 = vsel %vm1470, %v1419, 0
    %v1574 = vsel %vm1470, %v1420, 0
    %v1577 = vsel %vm1470, %v1421, 0
    %v1580 = vsel %vm1470, %v1422, 0
    %v1583 = vsel %vm1470, %v1423, 0
    %v1586 = vsel %vm1470, %v1424, 0
    %v1589 = vsel %vm1470, %v1425, 0
    %v1592 = vsel %vm1470, %v1426, 0
    %v1595 = vsel %vm1470, %v1427, 0
    %v1598 = vsel %vm1470, %v1428, 0
    %v1601 = vsel %vm1470, %v1429, 0
    %v1604 = vsel %vm1470, %v1430, 0
    %v1607 = vsel %vm1470, %v1431, 0
    %v1610 = vsel %vm1470, %v1432, 0
    %v1613 = vsel %vm1470, %v1433, 0
    %v1616 = vsel %vm1470, %v1434, 0
    %v1619 = vsel %vm1470, %v1435, 0
    %v1622 = vsel %vm1470, %v1436, 0
    %v1625 = vsel %vm1470, %v1437, 0
    %v1628 = vsel %vm1470, %v1438, 0
    %v1631 = vsel %vm1470, %v1439, 0
    %v1634 = vsel %vm1470, %v1440, 0
    %v1637 = vsel %vm1470, %v1441, 0
    %v1640 = vsel %vm1470, %v1442, 0
    %v1643 = vsel %vm1470, %v1443, 0
    %v1646 = vsel %vm1470, %v1444, 0
    %v1649 = vsel %vm1470, %v1445, 0
    %v1652 = vsel %vm1470, %v1446, 0
    %v1655 = vsel %vm1470, %v1447, 0
    %v1658 = vsel %vm1470, %v1448, 0
    %v1661 = vsel %vm1470, %v1449, 0
    %1663 = vmatprep.subr.bf16.mxu0 %v1463
    %1664 = vmatpush1.bf16.msra.mxu0 %v1462
    %1665 = vmatprep.subr.bf16.mxu0 %v1465
    %1666 = vmatpush1.bf16.msra.mxu0 %v1464
    %1667 = vmatprep.subr.bf16.mxu0 0
    %1668 = vmatpush1.bf16.msra.mxu0 0
    %1669 = vmatprep.subr.bf16.mxu0 0
    %1670 = vmatpush1.bf16.msra.mxu0 0
    %1671 = vmatprep.subr.bf16.mxu0 0
    %1672 = vmatpush1.bf16.msra.mxu0 0
    %1673 = vmatprep.subr.bf16.mxu0 0
    %1674 = vmatpush1.bf16.msra.mxu0 0
    %1675 = vmatprep.subr.bf16.mxu0 0
    %1676 = vmatpush1.bf16.msra.mxu0 0
    %1677 = vmatprep.subr.bf16.mxu0 0
    %1678 = vmatpush1.bf16.msra.mxu0 0
    %1679 = vmatprep.subr.bf16.mxu0 0
    %1680 = vmatpush1.bf16.msra.mxu0 0
    %1681 = vmatprep.subr.bf16.mxu0 0
    %1682 = vmatpush1.bf16.msra.mxu0 0
    %1683 = vmatprep.subr.bf16.mxu0 0
    %1684 = vmatpush1.bf16.msra.mxu0 0
    %1685 = vmatprep.subr.bf16.mxu0 0
    %1686 = vmatpush1.bf16.msra.mxu0 0
    %1687 = vmatprep.subr.bf16.mxu0 0
    %1688 = vmatpush1.bf16.msra.mxu0 0
    %1689 = vmatprep.subr.bf16.mxu0 0
    %1690 = vmatpush1.bf16.msra.mxu0 0
    %1691 = vmatprep.subr.bf16.mxu0 0
    %1692 = vmatpush1.bf16.msra.mxu0 0
    %1693 = vmatprep.subr.bf16.mxu0 0
    %1694 = vmatpush1.bf16.msra.mxu0 0
    %1695 = vmatprep.mubr.bf16.mxu0 0
    %1696 = vmatmul.mubr.bf16.gmra.mrb[0].mxu0 %v1472
    %v1697 = vpop.f32.mrb[0].mxu0
    %v1698 = vadd.f32 0.0, %v1697
    %v1699 = vpop.f32.mrb[0].mxu0
    %v1700 = vadd.f32 0.0, %v1699
    %v1701 = vpop.f32.mrb[0].mxu0
    %v1702 = vadd.f32 0.0, %v1701
    %v1703 = vpop.f32.mrb[0].mxu0
    %v1704 = vadd.f32 0.0, %v1703
    %1705 = vmatprep.mubr.bf16.mxu0 0
    %1706 = vmatmul.mubr.bf16.gmra.mrb[0].mxu0 %v1475
    %v1707 = vpop.f32.mrb[0].mxu0
    %v1708 = vadd.f32 0.0, %v1707
    %v1709 = vpop.f32.mrb[0].mxu0
    %v1710 = vadd.f32 0.0, %v1709
    %v1711 = vpop.f32.mrb[0].mxu0
    %v1712 = vadd.f32 0.0, %v1711
    %v1713 = vpop.f32.mrb[0].mxu0
    %v1714 = vadd.f32 0.0, %v1713
    %1715 = vmatprep.mubr.bf16.mxu0 0
    %1716 = vmatmul.mubr.bf16.gmra.mrb[0].mxu0 %v1478
    %v1717 = vpop.f32.mrb[0].mxu0
    %v1718 = vadd.f32 0.0, %v1717
    %v1719 = vpop.f32.mrb[0].mxu0
    %v1720 = vadd.f32 0.0, %v1719
    %v1721 = vpop.f32.mrb[0].mxu0
    %v1722 = vadd.f32 0.0, %v1721
    %v1723 = vpop.f32.mrb[0].mxu0
    %v1724 = vadd.f32 0.0, %v1723
    %1725 = vmatprep.mubr.bf16.mxu0 0
    %1726 = vmatmul.mubr.bf16.gmra.mrb[0].mxu0 %v1481
    %v1727 = vpop.f32.mrb[0].mxu0
    %v1728 = vadd.f32 0.0, %v1727
    %v1729 = vpop.f32.mrb[0].mxu0
    %v1730 = vadd.f32 0.0, %v1729
    %v1731 = vpop.f32.mrb[0].mxu0
    %v1732 = vadd.f32 0.0, %v1731
    %v1733 = vpop.f32.mrb[0].mxu0
    %v1734 = vadd.f32 0.0, %v1733
    %1735 = vmatprep.mubr.bf16.mxu0 0
    %1736 = vmatmul.mubr.bf16.gmra.mrb[0].mxu0 %v1484
    %v1737 = vpop.f32.mrb[0].mxu0
    %v1738 = vadd.f32 0.0, %v1737
    %v1739 = vpop.f32.mrb[0].mxu0
    %v1740 = vadd.f32 0.0, %v1739
    %v1741 = vpop.f32.mrb[0].mxu0
    %v1742 = vadd.f32 0.0, %v1741
    %v1743 = vpop.f32.mrb[0].mxu0
    %v1744 = vadd.f32 0.0, %v1743
    %1745 = vmatprep.mubr.bf16.mxu0 0
    %1746 = vmatmul.mubr.bf16.gmra.mrb[0].mxu0 %v1487
    %v1747 = vpop.f32.mrb[0].mxu0
    %v1748 = vadd.f32 0.0, %v1747
    %v1749 = vpop.f32.mrb[0].mxu0
    %v1750 = vadd.f32 0.0, %v1749
    %v1751 = vpop.f32.mrb[0].mxu0
    %v1752 = vadd.f32 0.0, %v1751
    %v1753 = vpop.f32.mrb[0].mxu0
    %v1754 = vadd.f32 0.0, %v1753
    %1755 = vmatprep.mubr.bf16.mxu0 0
    %1756 = vmatmul.mubr.bf16.gmra.mrb[0].mxu0 %v1490
    %v1757 = vpop.f32.mrb[0].mxu0
    %v1758 = vadd.f32 0.0, %v1757
    %v1759 = vpop.f32.mrb[0].mxu0
    %v1760 = vadd.f32 0.0, %v1759
    %v1761 = vpop.f32.mrb[0].mxu0
    %v1762 = vadd.f32 0.0, %v1761
    %v1763 = vpop.f32.mrb[0].mxu0
    %v1764 = vadd.f32 0.0, %v1763
    %1765 = vmatprep.mubr.bf16.mxu0 0
    %1766 = vmatmul.mubr.bf16.gmra.mrb[0].mxu0 %v1493
    %v1767 = vpop.f32.mrb[0].mxu0
    %v1768 = vadd.f32 0.0, %v1767
    %v1769 = vpop.f32.mrb[0].mxu0
    %v1770 = vadd.f32 0.0, %v1769
    %v1771 = vpop.f32.mrb[0].mxu0
    %v1772 = vadd.f32 0.0, %v1771
    %v1773 = vpop.f32.mrb[0].mxu0
    %v1774 = vadd.f32 0.0, %v1773
    %1775 = vmatprep.mubr.bf16.mxu0 0
    %1776 = vmatmul.mubr.bf16.gmra.mrb[0].mxu0 %v1496
    %v1777 = vpop.f32.mrb[0].mxu0
    %v1778 = vadd.f32 0.0, %v1777
    %v1779 = vpop.f32.mrb[0].mxu0
    %v1780 = vadd.f32 0.0, %v1779
    %v1781 = vpop.f32.mrb[0].mxu0
    %v1782 = vadd.f32 0.0, %v1781
    %v1783 = vpop.f32.mrb[0].mxu0
    %v1784 = vadd.f32 0.0, %v1783
    %1785 = vmatprep.mubr.bf16.mxu0 0
    %1786 = vmatmul.mubr.bf16.gmra.mrb[0].mxu0 %v1499
    %v1787 = vpop.f32.mrb[0].mxu0
    %v1788 = vadd.f32 0.0, %v1787
    %v1789 = vpop.f32.mrb[0].mxu0
    %v1790 = vadd.f32 0.0, %v1789
    %v1791 = vpop.f32.mrb[0].mxu0
    %v1792 = vadd.f32 0.0, %v1791
    %v1793 = vpop.f32.mrb[0].mxu0
    %v1794 = vadd.f32 0.0, %v1793
    %1795 = vmatprep.mubr.bf16.mxu0 0
    %1796 = vmatmul.mubr.bf16.gmra.mrb[0].mxu0 %v1502
    %v1797 = vpop.f32.mrb[0].mxu0
    %v1798 = vadd.f32 0.0, %v1797
    %v1799 = vpop.f32.mrb[0].mxu0
    %v1800 = vadd.f32 0.0, %v1799
    %v1801 = vpop.f32.mrb[0].mxu0
    %v1802 = vadd.f32 0.0, %v1801
    %v1803 = vpop.f32.mrb[0].mxu0
    %v1804 = vadd.f32 0.0, %v1803
    %1805 = vmatprep.mubr.bf16.mxu0 0
    %1806 = vmatmul.mubr.bf16.gmra.mrb[0].mxu0 %v1505
    %v1807 = vpop.f32.mrb[0].mxu0
    %v1808 = vadd.f32 0.0, %v1807
    %v1809 = vpop.f32.mrb[0].mxu0
    %v1810 = vadd.f32 0.0, %v1809
    %v1811 = vpop.f32.mrb[0].mxu0
    %v1812 = vadd.f32 0.0, %v1811
    %v1813 = vpop.f32.mrb[0].mxu0
    %v1814 = vadd.f32 0.0, %v1813
    %1815 = vmatprep.mubr.bf16.mxu0 0
    %1816 = vmatmul.mubr.bf16.gmra.mrb[0].mxu0 %v1508
    %v1817 = vpop.f32.mrb[0].mxu0
    %v1818 = vadd.f32 0.0, %v1817
    %v1819 = vpop.f32.mrb[0].mxu0
    %v1820 = vadd.f32 0.0, %v1819
    %v1821 = vpop.f32.mrb[0].mxu0
    %v1822 = vadd.f32 0.0, %v1821
    %v1823 = vpop.f32.mrb[0].mxu0
    %v1824 = vadd.f32 0.0, %v1823
    %1825 = vmatprep.mubr.bf16.mxu0 0
    %1826 = vmatmul.mubr.bf16.gmra.mrb[0].mxu0 %v1511
    %v1827 = vpop.f32.mrb[0].mxu0
    %v1828 = vadd.f32 0.0, %v1827
    %v1829 = vpop.f32.mrb[0].mxu0
    %v1830 = vadd.f32 0.0, %v1829
    %v1831 = vpop.f32.mrb[0].mxu0
    %v1832 = vadd.f32 0.0, %v1831
    %v1833 = vpop.f32.mrb[0].mxu0
    %v1834 = vadd.f32 0.0, %v1833
    %1835 = vmatprep.mubr.bf16.mxu0 0
    %1836 = vmatmul.mubr.bf16.gmra.mrb[0].mxu0 %v1514
    %v1837 = vpop.f32.mrb[0].mxu0
    %v1838 = vadd.f32 0.0, %v1837
    %v1839 = vpop.f32.mrb[0].mxu0
    %v1840 = vadd.f32 0.0, %v1839
    %v1841 = vpop.f32.mrb[0].mxu0
    %v1842 = vadd.f32 0.0, %v1841
    %v1843 = vpop.f32.mrb[0].mxu0
    %v1844 = vadd.f32 0.0, %v1843
    %1845 = vmatprep.mubr.bf16.mxu0 0
    %1846 = vmatmul.mubr.bf16.gmra.mrb[0].mxu0 %v1517
    %v1847 = vpop.f32.mrb[0].mxu0
    %v1848 = vadd.f32 0.0, %v1847
    %v1849 = vpop.f32.mrb[0].mxu0
    %v1850 = vadd.f32 0.0, %v1849
    %v1851 = vpop.f32.mrb[0].mxu0
    %v1852 = vadd.f32 0.0, %v1851
    %v1853 = vpop.f32.mrb[0].mxu0
    %v1854 = vadd.f32 0.0, %v1853
    %1855 = vmatprep.mubr.bf16.mxu0 0
    %1856 = vmatmul.mubr.bf16.gmra.mrb[0].mxu0 %v1520
    %v1857 = vpop.f32.mrb[0].mxu0
    %v1858 = vadd.f32 0.0, %v1857
    %v1859 = vpop.f32.mrb[0].mxu0
    %v1860 = vadd.f32 0.0, %v1859
    %v1861 = vpop.f32.mrb[0].mxu0
    %v1862 = vadd.f32 0.0, %v1861
    %v1863 = vpop.f32.mrb[0].mxu0
    %v1864 = vadd.f32 0.0, %v1863
    %1865 = vmatprep.mubr.bf16.mxu0 0
    %1866 = vmatmul.mubr.bf16.gmra.mrb[0].mxu0 %v1523
    %v1867 = vpop.f32.mrb[0].mxu0
    %v1868 = vadd.f32 0.0, %v1867
    %v1869 = vpop.f32.mrb[0].mxu0
    %v1870 = vadd.f32 0.0, %v1869
    %v1871 = vpop.f32.mrb[0].mxu0
    %v1872 = vadd.f32 0.0, %v1871
    %v1873 = vpop.f32.mrb[0].mxu0
    %v1874 = vadd.f32 0.0, %v1873
    %1875 = vmatprep.mubr.bf16.mxu0 0
    %1876 = vmatmul.mubr.bf16.gmra.mrb[0].mxu0 %v1526
    %v1877 = vpop.f32.mrb[0].mxu0
    %v1878 = vadd.f32 0.0, %v1877
    %v1879 = vpop.f32.mrb[0].mxu0
    %v1880 = vadd.f32 0.0, %v1879
    %v1881 = vpop.f32.mrb[0].mxu0
    %v1882 = vadd.f32 0.0, %v1881
    %v1883 = vpop.f32.mrb[0].mxu0
    %v1884 = vadd.f32 0.0, %v1883
    %1885 = vmatprep.mubr.bf16.mxu0 0
    %1886 = vmatmul.mubr.bf16.gmra.mrb[0].mxu0 %v1529
    %v1887 = vpop.f32.mrb[0].mxu0
    %v1888 = vadd.f32 0.0, %v1887
    %v1889 = vpop.f32.mrb[0].mxu0
    %v1890 = vadd.f32 0.0, %v1889
    %v1891 = vpop.f32.mrb[0].mxu0
    %v1892 = vadd.f32 0.0, %v1891
    %v1893 = vpop.f32.mrb[0].mxu0
    %v1894 = vadd.f32 0.0, %v1893
    %1895 = vmatprep.mubr.bf16.mxu0 0
    %1896 = vmatmul.mubr.bf16.gmra.mrb[0].mxu0 %v1532
    %v1897 = vpop.f32.mrb[0].mxu0
    %v1898 = vadd.f32 0.0, %v1897
    %v1899 = vpop.f32.mrb[0].mxu0
    %v1900 = vadd.f32 0.0, %v1899
    %v1901 = vpop.f32.mrb[0].mxu0
    %v1902 = vadd.f32 0.0, %v1901
    %v1903 = vpop.f32.mrb[0].mxu0
    %v1904 = vadd.f32 0.0, %v1903
    %1905 = vmatprep.mubr.bf16.mxu0 0
    %1906 = vmatmul.mubr.bf16.gmra.mrb[0].mxu0 %v1535
    %v1907 = vpop.f32.mrb[0].mxu0
    %v1908 = vadd.f32 0.0, %v1907
    %v1909 = vpop.f32.mrb[0].mxu0
    %v1910 = vadd.f32 0.0, %v1909
    %v1911 = vpop.f32.mrb[0].mxu0
    %v1912 = vadd.f32 0.0, %v1911
    %v1913 = vpop.f32.mrb[0].mxu0
    %v1914 = vadd.f32 0.0, %v1913
    %1915 = vmatprep.mubr.bf16.mxu0 0
    %1916 = vmatmul.mubr.bf16.gmra.mrb[0].mxu0 %v1538
    %v1917 = vpop.f32.mrb[0].mxu0
    %v1918 = vadd.f32 0.0, %v1917
    %v1919 = vpop.f32.mrb[0].mxu0
    %v1920 = vadd.f32 0.0, %v1919
    %v1921 = vpop.f32.mrb[0].mxu0
    %v1922 = vadd.f32 0.0, %v1921
    %v1923 = vpop.f32.mrb[0].mxu0
    %v1924 = vadd.f32 0.0, %v1923
    %1925 = vmatprep.mubr.bf16.mxu0 0
    %1926 = vmatmul.mubr.bf16.gmra.mrb[0].mxu0 %v1541
    %v1927 = vpop.f32.mrb[0].mxu0
    %v1928 = vadd.f32 0.0, %v1927
    %v1929 = vpop.f32.mrb[0].mxu0
    %v1930 = vadd.f32 0.0, %v1929
    %v1931 = vpop.f32.mrb[0].mxu0
    %v1932 = vadd.f32 0.0, %v1931
    %v1933 = vpop.f32.mrb[0].mxu0
    %v1934 = vadd.f32 0.0, %v1933
    %1935 = vmatprep.mubr.bf16.mxu0 0
    %1936 = vmatmul.mubr.bf16.gmra.mrb[0].mxu0 %v1544
    %v1937 = vpop.f32.mrb[0].mxu0
    %v1938 = vadd.f32 0.0, %v1937
    %v1939 = vpop.f32.mrb[0].mxu0
    %v1940 = vadd.f32 0.0, %v1939
    %v1941 = vpop.f32.mrb[0].mxu0
    %v1942 = vadd.f32 0.0, %v1941
    %v1943 = vpop.f32.mrb[0].mxu0
    %v1944 = vadd.f32 0.0, %v1943
    %1945 = vmatprep.mubr.bf16.mxu0 0
    %1946 = vmatmul.mubr.bf16.gmra.mrb[0].mxu0 %v1547
    %v1947 = vpop.f32.mrb[0].mxu0
    %v1948 = vadd.f32 0.0, %v1947
    %v1949 = vpop.f32.mrb[0].mxu0
    %v1950 = vadd.f32 0.0, %v1949
    %v1951 = vpop.f32.mrb[0].mxu0
    %v1952 = vadd.f32 0.0, %v1951
    %v1953 = vpop.f32.mrb[0].mxu0
    %v1954 = vadd.f32 0.0, %v1953
    %1955 = vmatprep.mubr.bf16.mxu0 0
    %1956 = vmatmul.mubr.bf16.gmra.mrb[0].mxu0 %v1550
    %v1957 = vpop.f32.mrb[0].mxu0
    %v1958 = vadd.f32 0.0, %v1957
    %v1959 = vpop.f32.mrb[0].mxu0
    %v1960 = vadd.f32 0.0, %v1959
    %v1961 = vpop.f32.mrb[0].mxu0
    %v1962 = vadd.f32 0.0, %v1961
    %v1963 = vpop.f32.mrb[0].mxu0
    %v1964 = vadd.f32 0.0, %v1963
    %1965 = vmatprep.mubr.bf16.mxu0 0
    %1966 = vmatmul.mubr.bf16.gmra.mrb[0].mxu0 %v1553
    %v1967 = vpop.f32.mrb[0].mxu0
    %v1968 = vadd.f32 0.0, %v1967
    %v1969 = vpop.f32.mrb[0].mxu0
    %v1970 = vadd.f32 0.0, %v1969
    %v1971 = vpop.f32.mrb[0].mxu0
    %v1972 = vadd.f32 0.0, %v1971
    %v1973 = vpop.f32.mrb[0].mxu0
    %v1974 = vadd.f32 0.0, %v1973
    %1975 = vmatprep.mubr.bf16.mxu0 0
    %1976 = vmatmul.mubr.bf16.gmra.mrb[0].mxu0 %v1556
    %v1977 = vpop.f32.mrb[0].mxu0
    %v1978 = vadd.f32 0.0, %v1977
    %v1979 = vpop.f32.mrb[0].mxu0
    %v1980 = vadd.f32 0.0, %v1979
    %v1981 = vpop.f32.mrb[0].mxu0
    %v1982 = vadd.f32 0.0, %v1981
    %v1983 = vpop.f32.mrb[0].mxu0
    %v1984 = vadd.f32 0.0, %v1983
    %1985 = vmatprep.mubr.bf16.mxu0 0
    %1986 = vmatmul.mubr.bf16.gmra.mrb[0].mxu0 %v1559
    %v1987 = vpop.f32.mrb[0].mxu0
    %v1988 = vadd.f32 0.0, %v1987
    %v1989 = vpop.f32.mrb[0].mxu0
    %v1990 = vadd.f32 0.0, %v1989
    %v1991 = vpop.f32.mrb[0].mxu0
    %v1992 = vadd.f32 0.0, %v1991
    %v1993 = vpop.f32.mrb[0].mxu0
    %v1994 = vadd.f32 0.0, %v1993
    %1995 = vmatprep.mubr.bf16.mxu0 0
    %1996 = vmatmul.mubr.bf16.gmra.mrb[0].mxu0 %v1562
    %v1997 = vpop.f32.mrb[0].mxu0
    %v1998 = vadd.f32 0.0, %v1997
    %v1999 = vpop.f32.mrb[0].mxu0
    %v2000 = vadd.f32 0.0, %v1999
    %v2001 = vpop.f32.mrb[0].mxu0
    %v2002 = vadd.f32 0.0, %v2001
    %v2003 = vpop.f32.mrb[0].mxu0
    %v2004 = vadd.f32 0.0, %v2003
    %2005 = vmatprep.mubr.bf16.mxu0 0
    %2006 = vmatmul.mubr.bf16.gmra.mrb[0].mxu0 %v1565
    %v2007 = vpop.f32.mrb[0].mxu0
    %v2008 = vadd.f32 0.0, %v2007
    %v2009 = vpop.f32.mrb[0].mxu0
    %v2010 = vadd.f32 0.0, %v2009
    %v2011 = vpop.f32.mrb[0].mxu0
    %v2012 = vadd.f32 0.0, %v2011
    %v2013 = vpop.f32.mrb[0].mxu0
    %v2014 = vadd.f32 0.0, %v2013
    %2015 = vmatprep.mubr.bf16.mxu0 0
    %2016 = vmatmul.mubr.bf16.gmra.mrb[0].mxu0 %v1568
    %v2017 = vpop.f32.mrb[0].mxu0
    %v2018 = vadd.f32 0.0, %v2017
    %v2019 = vpop.f32.mrb[0].mxu0
    %v2020 = vadd.f32 0.0, %v2019
    %v2021 = vpop.f32.mrb[0].mxu0
    %v2022 = vadd.f32 0.0, %v2021
    %v2023 = vpop.f32.mrb[0].mxu0
    %v2024 = vadd.f32 0.0, %v2023
    %2025 = vmatprep.mubr.bf16.mxu0 0
    %2026 = vmatmul.mubr.bf16.gmra.mrb[0].mxu0 %v1571
    %v2027 = vpop.f32.mrb[0].mxu0
    %v2028 = vadd.f32 0.0, %v2027
    %v2029 = vpop.f32.mrb[0].mxu0
    %v2030 = vadd.f32 0.0, %v2029
    %v2031 = vpop.f32.mrb[0].mxu0
    %v2032 = vadd.f32 0.0, %v2031
    %v2033 = vpop.f32.mrb[0].mxu0
    %v2034 = vadd.f32 0.0, %v2033
    %2035 = vmatprep.mubr.bf16.mxu0 0
    %2036 = vmatmul.mubr.bf16.gmra.mrb[0].mxu0 %v1574
    %v2037 = vpop.f32.mrb[0].mxu0
    %v2038 = vadd.f32 0.0, %v2037
    %v2039 = vpop.f32.mrb[0].mxu0
    %v2040 = vadd.f32 0.0, %v2039
    %v2041 = vpop.f32.mrb[0].mxu0
    %v2042 = vadd.f32 0.0, %v2041
    %v2043 = vpop.f32.mrb[0].mxu0
    %v2044 = vadd.f32 0.0, %v2043
    %2045 = vmatprep.mubr.bf16.mxu0 0
    %2046 = vmatmul.mubr.bf16.gmra.mrb[0].mxu0 %v1577
    %v2047 = vpop.f32.mrb[0].mxu0
    %v2048 = vadd.f32 0.0, %v2047
    %v2049 = vpop.f32.mrb[0].mxu0
    %v2050 = vadd.f32 0.0, %v2049
    %v2051 = vpop.f32.mrb[0].mxu0
    %v2052 = vadd.f32 0.0, %v2051
    %v2053 = vpop.f32.mrb[0].mxu0
    %v2054 = vadd.f32 0.0, %v2053
    %2055 = vmatprep.mubr.bf16.mxu0 0
    %2056 = vmatmul.mubr.bf16.gmra.mrb[0].mxu0 %v1580
    %v2057 = vpop.f32.mrb[0].mxu0
    %v2058 = vadd.f32 0.0, %v2057
    %v2059 = vpop.f32.mrb[0].mxu0
    %v2060 = vadd.f32 0.0, %v2059
    %v2061 = vpop.f32.mrb[0].mxu0
    %v2062 = vadd.f32 0.0, %v2061
    %v2063 = vpop.f32.mrb[0].mxu0
    %v2064 = vadd.f32 0.0, %v2063
    %2065 = vmatprep.mubr.bf16.mxu0 0
    %2066 = vmatmul.mubr.bf16.gmra.mrb[0].mxu0 %v1583
    %v2067 = vpop.f32.mrb[0].mxu0
    %v2068 = vadd.f32 0.0, %v2067
    %v2069 = vpop.f32.mrb[0].mxu0
    %v2070 = vadd.f32 0.0, %v2069
    %v2071 = vpop.f32.mrb[0].mxu0
    %v2072 = vadd.f32 0.0, %v2071
    %v2073 = vpop.f32.mrb[0].mxu0
    %v2074 = vadd.f32 0.0, %v2073
    %2075 = vmatprep.mubr.bf16.mxu0 0
    %2076 = vmatmul.mubr.bf16.gmra.mrb[0].mxu0 %v1586
    %v2077 = vpop.f32.mrb[0].mxu0
    %v2078 = vadd.f32 0.0, %v2077
    %v2079 = vpop.f32.mrb[0].mxu0
    %v2080 = vadd.f32 0.0, %v2079
    %v2081 = vpop.f32.mrb[0].mxu0
    %v2082 = vadd.f32 0.0, %v2081
    %v2083 = vpop.f32.mrb[0].mxu0
    %v2084 = vadd.f32 0.0, %v2083
    %2085 = vmatprep.mubr.bf16.mxu0 0
    %2086 = vmatmul.mubr.bf16.gmra.mrb[0].mxu0 %v1589
    %v2087 = vpop.f32.mrb[0].mxu0
    %v2088 = vadd.f32 0.0, %v2087
    %v2089 = vpop.f32.mrb[0].mxu0
    %v2090 = vadd.f32 0.0, %v2089
    %v2091 = vpop.f32.mrb[0].mxu0
    %v2092 = vadd.f32 0.0, %v2091
    %v2093 = vpop.f32.mrb[0].mxu0
    %v2094 = vadd.f32 0.0, %v2093
    %2095 = vmatprep.mubr.bf16.mxu0 0
    %2096 = vmatmul.mubr.bf16.gmra.mrb[0].mxu0 %v1592
    %v2097 = vpop.f32.mrb[0].mxu0
    %v2098 = vadd.f32 0.0, %v2097
    %v2099 = vpop.f32.mrb[0].mxu0
    %v2100 = vadd.f32 0.0, %v2099
    %v2101 = vpop.f32.mrb[0].mxu0
    %v2102 = vadd.f32 0.0, %v2101
    %v2103 = vpop.f32.mrb[0].mxu0
    %v2104 = vadd.f32 0.0, %v2103
    %2105 = vmatprep.mubr.bf16.mxu0 0
    %2106 = vmatmul.mubr.bf16.gmra.mrb[0].mxu0 %v1595
    %v2107 = vpop.f32.mrb[0].mxu0
    %v2108 = vadd.f32 0.0, %v2107
    %v2109 = vpop.f32.mrb[0].mxu0
    %v2110 = vadd.f32 0.0, %v2109
    %v2111 = vpop.f32.mrb[0].mxu0
    %v2112 = vadd.f32 0.0, %v2111
    %v2113 = vpop.f32.mrb[0].mxu0
    %v2114 = vadd.f32 0.0, %v2113
    %2115 = vmatprep.mubr.bf16.mxu0 0
    %2116 = vmatmul.mubr.bf16.gmra.mrb[0].mxu0 %v1598
    %v2117 = vpop.f32.mrb[0].mxu0
    %v2118 = vadd.f32 0.0, %v2117
    %v2119 = vpop.f32.mrb[0].mxu0
    %v2120 = vadd.f32 0.0, %v2119
    %v2121 = vpop.f32.mrb[0].mxu0
    %v2122 = vadd.f32 0.0, %v2121
    %v2123 = vpop.f32.mrb[0].mxu0
    %v2124 = vadd.f32 0.0, %v2123
    %2125 = vmatprep.mubr.bf16.mxu0 0
    %2126 = vmatmul.mubr.bf16.gmra.mrb[0].mxu0 %v1601
    %v2127 = vpop.f32.mrb[0].mxu0
    %v2128 = vadd.f32 0.0, %v2127
    %v2129 = vpop.f32.mrb[0].mxu0
    %v2130 = vadd.f32 0.0, %v2129
    %v2131 = vpop.f32.mrb[0].mxu0
    %v2132 = vadd.f32 0.0, %v2131
    %v2133 = vpop.f32.mrb[0].mxu0
    %v2134 = vadd.f32 0.0, %v2133
    %2135 = vmatprep.mubr.bf16.mxu0 0
    %2136 = vmatmul.mubr.bf16.gmra.mrb[0].mxu0 %v1604
    %v2137 = vpop.f32.mrb[0].mxu0
    %v2138 = vadd.f32 0.0, %v2137
    %v2139 = vpop.f32.mrb[0].mxu0
    %v2140 = vadd.f32 0.0, %v2139
    %v2141 = vpop.f32.mrb[0].mxu0
    %v2142 = vadd.f32 0.0, %v2141
    %v2143 = vpop.f32.mrb[0].mxu0
    %v2144 = vadd.f32 0.0, %v2143
    %2145 = vmatprep.mubr.bf16.mxu0 0
    %2146 = vmatmul.mubr.bf16.gmra.mrb[0].mxu0 %v1607
    %v2147 = vpop.f32.mrb[0].mxu0
    %v2148 = vadd.f32 0.0, %v2147
    %v2149 = vpop.f32.mrb[0].mxu0
    %v2150 = vadd.f32 0.0, %v2149
    %v2151 = vpop.f32.mrb[0].mxu0
    %v2152 = vadd.f32 0.0, %v2151
    %v2153 = vpop.f32.mrb[0].mxu0
    %v2154 = vadd.f32 0.0, %v2153
    %2155 = vmatprep.mubr.bf16.mxu0 0
    %2156 = vmatmul.mubr.bf16.gmra.mrb[0].mxu0 %v1610
    %v2157 = vpop.f32.mrb[0].mxu0
    %v2158 = vadd.f32 0.0, %v2157
    %v2159 = vpop.f32.mrb[0].mxu0
    %v2160 = vadd.f32 0.0, %v2159
    %v2161 = vpop.f32.mrb[0].mxu0
    %v2162 = vadd.f32 0.0, %v2161
    %v2163 = vpop.f32.mrb[0].mxu0
    %v2164 = vadd.f32 0.0, %v2163
    %2165 = vmatprep.mubr.bf16.mxu0 0
    %2166 = vmatmul.mubr.bf16.gmra.mrb[0].mxu0 %v1613
    %v2167 = vpop.f32.mrb[0].mxu0
    %v2168 = vadd.f32 0.0, %v2167
    %v2169 = vpop.f32.mrb[0].mxu0
    %v2170 = vadd.f32 0.0, %v2169
    %v2171 = vpop.f32.mrb[0].mxu0
    %v2172 = vadd.f32 0.0, %v2171
    %v2173 = vpop.f32.mrb[0].mxu0
    %v2174 = vadd.f32 0.0, %v2173
    %2175 = vmatprep.mubr.bf16.mxu0 0
    %2176 = vmatmul.mubr.bf16.gmra.mrb[0].mxu0 %v1616
    %v2177 = vpop.f32.mrb[0].mxu0
    %v2178 = vadd.f32 0.0, %v2177
    %v2179 = vpop.f32.mrb[0].mxu0
    %v2180 = vadd.f32 0.0, %v2179
    %v2181 = vpop.f32.mrb[0].mxu0
    %v2182 = vadd.f32 0.0, %v2181
    %v2183 = vpop.f32.mrb[0].mxu0
    %v2184 = vadd.f32 0.0, %v2183
    %2185 = vmatprep.mubr.bf16.mxu0 0
    %2186 = vmatmul.mubr.bf16.gmra.mrb[0].mxu0 %v1619
    %v2187 = vpop.f32.mrb[0].mxu0
    %v2188 = vadd.f32 0.0, %v2187
    %v2189 = vpop.f32.mrb[0].mxu0
    %v2190 = vadd.f32 0.0, %v2189
    %v2191 = vpop.f32.mrb[0].mxu0
    %v2192 = vadd.f32 0.0, %v2191
    %v2193 = vpop.f32.mrb[0].mxu0
    %v2194 = vadd.f32 0.0, %v2193
    %2195 = vmatprep.mubr.bf16.mxu0 0
    %2196 = vmatmul.mubr.bf16.gmra.mrb[0].mxu0 %v1622
    %v2197 = vpop.f32.mrb[0].mxu0
    %v2198 = vadd.f32 0.0, %v2197
    %v2199 = vpop.f32.mrb[0].mxu0
    %v2200 = vadd.f32 0.0, %v2199
    %v2201 = vpop.f32.mrb[0].mxu0
    %v2202 = vadd.f32 0.0, %v2201
    %v2203 = vpop.f32.mrb[0].mxu0
    %v2204 = vadd.f32 0.0, %v2203
    %2205 = vmatprep.mubr.bf16.mxu0 0
    %2206 = vmatmul.mubr.bf16.gmra.mrb[0].mxu0 %v1625
    %v2207 = vpop.f32.mrb[0].mxu0
    %v2208 = vadd.f32 0.0, %v2207
    %v2209 = vpop.f32.mrb[0].mxu0
    %v2210 = vadd.f32 0.0, %v2209
    %v2211 = vpop.f32.mrb[0].mxu0
    %v2212 = vadd.f32 0.0, %v2211
    %v2213 = vpop.f32.mrb[0].mxu0
    %v2214 = vadd.f32 0.0, %v2213
    %2215 = vmatprep.mubr.bf16.mxu0 0
    %2216 = vmatmul.mubr.bf16.gmra.mrb[0].mxu0 %v1628
    %v2217 = vpop.f32.mrb[0].mxu0
    %v2218 = vadd.f32 0.0, %v2217
    %v2219 = vpop.f32.mrb[0].mxu0
    %v2220 = vadd.f32 0.0, %v2219
    %v2221 = vpop.f32.mrb[0].mxu0
    %v2222 = vadd.f32 0.0, %v2221
    %v2223 = vpop.f32.mrb[0].mxu0
    %v2224 = vadd.f32 0.0, %v2223
    %2225 = vmatprep.mubr.bf16.mxu0 0
    %2226 = vmatmul.mubr.bf16.gmra.mrb[0].mxu0 %v1631
    %v2227 = vpop.f32.mrb[0].mxu0
    %v2228 = vadd.f32 0.0, %v2227
    %v2229 = vpop.f32.mrb[0].mxu0
    %v2230 = vadd.f32 0.0, %v2229
    %v2231 = vpop.f32.mrb[0].mxu0
    %v2232 = vadd.f32 0.0, %v2231
    %v2233 = vpop.f32.mrb[0].mxu0
    %v2234 = vadd.f32 0.0, %v2233
    %2235 = vmatprep.mubr.bf16.mxu0 0
    %2236 = vmatmul.mubr.bf16.gmra.mrb[0].mxu0 %v1634
    %v2237 = vpop.f32.mrb[0].mxu0
    %v2238 = vadd.f32 0.0, %v2237
    %v2239 = vpop.f32.mrb[0].mxu0
    %v2240 = vadd.f32 0.0, %v2239
    %v2241 = vpop.f32.mrb[0].mxu0
    %v2242 = vadd.f32 0.0, %v2241
    %v2243 = vpop.f32.mrb[0].mxu0
    %v2244 = vadd.f32 0.0, %v2243
    %2245 = vmatprep.mubr.bf16.mxu0 0
    %2246 = vmatmul.mubr.bf16.gmra.mrb[0].mxu0 %v1637
    %v2247 = vpop.f32.mrb[0].mxu0
    %v2248 = vadd.f32 0.0, %v2247
    %v2249 = vpop.f32.mrb[0].mxu0
    %v2250 = vadd.f32 0.0, %v2249
    %v2251 = vpop.f32.mrb[0].mxu0
    %v2252 = vadd.f32 0.0, %v2251
    %v2253 = vpop.f32.mrb[0].mxu0
    %v2254 = vadd.f32 0.0, %v2253
    %2255 = vmatprep.mubr.bf16.mxu0 0
    %2256 = vmatmul.mubr.bf16.gmra.mrb[0].mxu0 %v1640
    %v2257 = vpop.f32.mrb[0].mxu0
    %v2258 = vadd.f32 0.0, %v2257
    %v2259 = vpop.f32.mrb[0].mxu0
    %v2260 = vadd.f32 0.0, %v2259
    %v2261 = vpop.f32.mrb[0].mxu0
    %v2262 = vadd.f32 0.0, %v2261
    %v2263 = vpop.f32.mrb[0].mxu0
    %v2264 = vadd.f32 0.0, %v2263
    %2265 = vmatprep.mubr.bf16.mxu0 0
    %2266 = vmatmul.mubr.bf16.gmra.mrb[0].mxu0 %v1643
    %v2267 = vpop.f32.mrb[0].mxu0
    %v2268 = vadd.f32 0.0, %v2267
    %v2269 = vpop.f32.mrb[0].mxu0
    %v2270 = vadd.f32 0.0, %v2269
    %v2271 = vpop.f32.mrb[0].mxu0
    %v2272 = vadd.f32 0.0, %v2271
    %v2273 = vpop.f32.mrb[0].mxu0
    %v2274 = vadd.f32 0.0, %v2273
    %2275 = vmatprep.mubr.bf16.mxu0 0
    %2276 = vmatmul.mubr.bf16.gmra.mrb[0].mxu0 %v1646
    %v2277 = vpop.f32.mrb[0].mxu0
    %v2278 = vadd.f32 0.0, %v2277
    %v2279 = vpop.f32.mrb[0].mxu0
    %v2280 = vadd.f32 0.0, %v2279
    %v2281 = vpop.f32.mrb[0].mxu0
    %v2282 = vadd.f32 0.0, %v2281
    %v2283 = vpop.f32.mrb[0].mxu0
    %v2284 = vadd.f32 0.0, %v2283
    %2285 = vmatprep.mubr.bf16.mxu0 0
    %2286 = vmatmul.mubr.bf16.gmra.mrb[0].mxu0 %v1649
    %v2287 = vpop.f32.mrb[0].mxu0
    %v2288 = vadd.f32 0.0, %v2287
    %v2289 = vpop.f32.mrb[0].mxu0
    %v2290 = vadd.f32 0.0, %v2289
    %v2291 = vpop.f32.mrb[0].mxu0
    %v2292 = vadd.f32 0.0, %v2291
    %v2293 = vpop.f32.mrb[0].mxu0
    %v2294 = vadd.f32 0.0, %v2293
    %2295 = vmatprep.mubr.bf16.mxu0 0
    %2296 = vmatmul.mubr.bf16.gmra.mrb[0].mxu0 %v1652
    %v2297 = vpop.f32.mrb[0].mxu0
    %v2298 = vadd.f32 0.0, %v2297
    %v2299 = vpop.f32.mrb[0].mxu0
    %v2300 = vadd.f32 0.0, %v2299
    %v2301 = vpop.f32.mrb[0].mxu0
    %v2302 = vadd.f32 0.0, %v2301
    %v2303 = vpop.f32.mrb[0].mxu0
    %v2304 = vadd.f32 0.0, %v2303
    %2305 = vmatprep.mubr.bf16.mxu0 0
    %2306 = vmatmul.mubr.bf16.gmra.mrb[0].mxu0 %v1655
    %v2307 = vpop.f32.mrb[0].mxu0
    %v2308 = vadd.f32 0.0, %v2307
    %v2309 = vpop.f32.mrb[0].mxu0
    %v2310 = vadd.f32 0.0, %v2309
    %v2311 = vpop.f32.mrb[0].mxu0
    %v2312 = vadd.f32 0.0, %v2311
    %v2313 = vpop.f32.mrb[0].mxu0
    %v2314 = vadd.f32 0.0, %v2313
    %2315 = vmatprep.mubr.bf16.mxu0 0
    %2316 = vmatmul.mubr.bf16.gmra.mrb[0].mxu0 %v1658
    %v2317 = vpop.f32.mrb[0].mxu0
    %v2318 = vadd.f32 0.0, %v2317
    %v2319 = vpop.f32.mrb[0].mxu0
    %v2320 = vadd.f32 0.0, %v2319
    %v2321 = vpop.f32.mrb[0].mxu0
    %v2322 = vadd.f32 0.0, %v2321
    %v2323 = vpop.f32.mrb[0].mxu0
    %v2324 = vadd.f32 0.0, %v2323
    %2325 = vmatprep.mubr.bf16.mxu0 0
    %2326 = vmatmul.mubr.bf16.gmra.mrb[0].mxu0 %v1661
    %v2327 = vpop.f32.mrb[0].mxu0
    %v2328 = vadd.f32 0.0, %v2327
    %v2329 = vpop.f32.mrb[0].mxu0
    %v2330 = vadd.f32 0.0, %v2329
    %v2331 = vpop.f32.mrb[0].mxu0
    %v2332 = vadd.f32 0.0, %v2331
    %v2333 = vpop.f32.mrb[0].mxu0
    %v2334 = vadd.f32 0.0, %v2333
    %2335 = vdwg.mxu0
    %v2336 = vmul.f32 %v934, %v1698
    %v2337 = vmul.f32 %v935, %v1702
    %v2338 = vmul.f32 %v936, %v1708
    %v2339 = vmul.f32 %v937, %v1712
    %v2340 = vmul.f32 %v938, %v1718
    %v2341 = vmul.f32 %v939, %v1722
    %v2342 = vmul.f32 %v940, %v1728
    %v2343 = vmul.f32 %v941, %v1732
    %v2344 = vmul.f32 %v942, %v1738
    %v2345 = vmul.f32 %v943, %v1742
    %v2346 = vmul.f32 %v944, %v1748
    %v2347 = vmul.f32 %v945, %v1752
    %v2348 = vmul.f32 %v946, %v1758
    %v2349 = vmul.f32 %v947, %v1762
    %v2350 = vmul.f32 %v948, %v1768
    %v2351 = vmul.f32 %v949, %v1772
    %v2352 = vmul.f32 %v950, %v1778
    %v2353 = vmul.f32 %v951, %v1782
    %v2354 = vmul.f32 %v952, %v1788
    %v2355 = vmul.f32 %v953, %v1792
    %v2356 = vmul.f32 %v954, %v1798
    %v2357 = vmul.f32 %v955, %v1802
    %v2358 = vmul.f32 %v956, %v1808
    %v2359 = vmul.f32 %v957, %v1812
    %v2360 = vmul.f32 %v958, %v1818
    %v2361 = vmul.f32 %v959, %v1822
    %v2362 = vmul.f32 %v960, %v1828
    %v2363 = vmul.f32 %v961, %v1832
    %v2364 = vmul.f32 %v962, %v1838
    %v2365 = vmul.f32 %v963, %v1842
    %v2366 = vmul.f32 %v964, %v1848
    %v2367 = vmul.f32 %v965, %v1852
    %v2368 = vmul.f32 %v966, %v1858
    %v2369 = vmul.f32 %v967, %v1862
    %v2370 = vmul.f32 %v968, %v1868
    %v2371 = vmul.f32 %v969, %v1872
    %v2372 = vmul.f32 %v970, %v1878
    %v2373 = vmul.f32 %v971, %v1882
    %v2374 = vmul.f32 %v972, %v1888
    %v2375 = vmul.f32 %v973, %v1892
    %v2376 = vmul.f32 %v974, %v1898
    %v2377 = vmul.f32 %v975, %v1902
    %v2378 = vmul.f32 %v976, %v1908
    %v2379 = vmul.f32 %v977, %v1912
    %v2380 = vmul.f32 %v978, %v1918
    %v2381 = vmul.f32 %v979, %v1922
    %v2382 = vmul.f32 %v980, %v1928
    %v2383 = vmul.f32 %v981, %v1932
    %v2384 = vmul.f32 %v982, %v1938
    %v2385 = vmul.f32 %v983, %v1942
    %v2386 = vmul.f32 %v984, %v1948
    %v2387 = vmul.f32 %v985, %v1952
    %v2388 = vmul.f32 %v986, %v1958
    %v2389 = vmul.f32 %v987, %v1962
    %v2390 = vmul.f32 %v988, %v1968
    %v2391 = vmul.f32 %v989, %v1972
    %v2392 = vmul.f32 %v990, %v1978
    %v2393 = vmul.f32 %v991, %v1982
    %v2394 = vmul.f32 %v992, %v1988
    %v2395 = vmul.f32 %v993, %v1992
    %v2396 = vmul.f32 %v994, %v1998
    %v2397 = vmul.f32 %v995, %v2002
    %v2398 = vmul.f32 %v996, %v2008
    %v2399 = vmul.f32 %v997, %v2012
    %v2400 = vmul.f32 %v934, %v2018
    %v2401 = vmul.f32 %v935, %v2022
    %v2402 = vmul.f32 %v936, %v2028
    %v2403 = vmul.f32 %v937, %v2032
    %v2404 = vmul.f32 %v938, %v2038
    %v2405 = vmul.f32 %v939, %v2042
    %v2406 = vmul.f32 %v940, %v2048
    %v2407 = vmul.f32 %v941, %v2052
    %v2408 = vmul.f32 %v942, %v2058
    %v2409 = vmul.f32 %v943, %v2062
    %v2410 = vmul.f32 %v944, %v2068
    %v2411 = vmul.f32 %v945, %v2072
    %v2412 = vmul.f32 %v946, %v2078
    %v2413 = vmul.f32 %v947, %v2082
    %v2414 = vmul.f32 %v948, %v2088
    %v2415 = vmul.f32 %v949, %v2092
    %v2416 = vmul.f32 %v950, %v2098
    %v2417 = vmul.f32 %v951, %v2102
    %v2418 = vmul.f32 %v952, %v2108
    %v2419 = vmul.f32 %v953, %v2112
    %v2420 = vmul.f32 %v954, %v2118
    %v2421 = vmul.f32 %v955, %v2122
    %v2422 = vmul.f32 %v956, %v2128
    %v2423 = vmul.f32 %v957, %v2132
    %v2424 = vmul.f32 %v958, %v2138
    %v2425 = vmul.f32 %v959, %v2142
    %v2426 = vmul.f32 %v960, %v2148
    %v2427 = vmul.f32 %v961, %v2152
    %v2428 = vmul.f32 %v962, %v2158
    %v2429 = vmul.f32 %v963, %v2162
    %v2430 = vmul.f32 %v964, %v2168
    %v2431 = vmul.f32 %v965, %v2172
    %v2432 = vmul.f32 %v966, %v2178
    %v2433 = vmul.f32 %v967, %v2182
    %v2434 = vmul.f32 %v968, %v2188
    %v2435 = vmul.f32 %v969, %v2192
    %v2436 = vmul.f32 %v970, %v2198
    %v2437 = vmul.f32 %v971, %v2202
    %v2438 = vmul.f32 %v972, %v2208
    %v2439 = vmul.f32 %v973, %v2212
    %v2440 = vmul.f32 %v974, %v2218
    %v2441 = vmul.f32 %v975, %v2222
    %v2442 = vmul.f32 %v976, %v2228
    %v2443 = vmul.f32 %v977, %v2232
    %v2444 = vmul.f32 %v978, %v2238
    %v2445 = vmul.f32 %v979, %v2242
    %v2446 = vmul.f32 %v980, %v2248
    %v2447 = vmul.f32 %v981, %v2252
    %v2448 = vmul.f32 %v982, %v2258
    %v2449 = vmul.f32 %v983, %v2262
    %v2450 = vmul.f32 %v984, %v2268
    %v2451 = vmul.f32 %v985, %v2272
    %v2452 = vmul.f32 %v986, %v2278
    %v2453 = vmul.f32 %v987, %v2282
    %v2454 = vmul.f32 %v988, %v2288
    %v2455 = vmul.f32 %v989, %v2292
    %v2456 = vmul.f32 %v990, %v2298
    %v2457 = vmul.f32 %v991, %v2302
    %v2458 = vmul.f32 %v992, %v2308
    %v2459 = vmul.f32 %v993, %v2312
    %v2460 = vmul.f32 %v994, %v2318
    %v2461 = vmul.f32 %v995, %v2322
    %v2462 = vmul.f32 %v996, %v2328
    %v2463 = vmul.f32 %v997, %v2332
    %v2464 = vld [vmem:[%s6] sm:$0xff]
    %v2465 = vld [vmem:[%s6 + $0x8] sm:$0xff]
    %v2466 = vld [vmem:[%s6 + $0x10] sm:$0xff]
    %v2467 = vld [vmem:[%s6 + $0x18] sm:$0xff]
    %v2468 = vld [vmem:[%s6 + $0x20] sm:$0xff]
    %v2469 = vld [vmem:[%s6 + $0x28] sm:$0xff]
    %v2470 = vld [vmem:[%s6 + $0x30] sm:$0xff]
    %v2471 = vld [vmem:[%s6 + $0x38] sm:$0xff]
    %v2472 = vld [vmem:[%s6 + $0x40] sm:$0xff]
    %v2473 = vld [vmem:[%s6 + $0x48] sm:$0xff]
    %v2474 = vld [vmem:[%s6 + $0x50] sm:$0xff]
    %v2475 = vld [vmem:[%s6 + $0x58] sm:$0xff]
    %v2476 = vld [vmem:[%s6 + $0x60] sm:$0xff]
    %v2477 = vld [vmem:[%s6 + $0x68] sm:$0xff]
    %v2478 = vld [vmem:[%s6 + $0x70] sm:$0xff]
    %v2479 = vld [vmem:[%s6 + $0x78] sm:$0xff]
    %2480 = vmatprep.subr.mxu0 0.0
    %2481 = vmatpush1.msra.mxu0 %v2464
    %2482 = vmatprep.subr.mxu0 0.0
    %2483 = vmatpush1.msra.mxu0 %v2465
    %2484 = vmatprep.subr.mxu0 0.0
    %2485 = vmatpush1.msra.mxu0 %v2466
    %2486 = vmatprep.subr.mxu0 0.0
    %2487 = vmatpush1.msra.mxu0 %v2467
    %2488 = vmatprep.subr.mxu0 0.0
    %2489 = vmatpush1.msra.mxu0 %v2468
    %2490 = vmatprep.subr.mxu0 0.0
    %2491 = vmatpush1.msra.mxu0 %v2469
    %2492 = vmatprep.subr.mxu0 0.0
    %2493 = vmatpush1.msra.mxu0 %v2470
    %2494 = vmatprep.subr.mxu0 0.0
    %2495 = vmatpush1.msra.mxu0 %v2471
    %2496 = vmatprep.subr.mxu0 0.0
    %2497 = vmatpush1.msra.mxu0 %v2472
    %2498 = vmatprep.subr.mxu0 0.0
    %2499 = vmatpush1.msra.mxu0 %v2473
    %2500 = vmatprep.subr.mxu0 0.0
    %2501 = vmatpush1.msra.mxu0 %v2474
    %2502 = vmatprep.subr.mxu0 0.0
    %2503 = vmatpush1.msra.mxu0 %v2475
    %2504 = vmatprep.subr.mxu0 0.0
    %2505 = vmatpush1.msra.mxu0 %v2476
    %2506 = vmatprep.subr.mxu0 0.0
    %2507 = vmatpush1.msra.mxu0 %v2477
    %2508 = vmatprep.subr.mxu0 0.0
    %2509 = vmatpush1.msra.mxu0 %v2478
    %2510 = vmatprep.subr.mxu0 0.0
    %2511 = vmatpush1.msra.mxu0 %v2479
    %2512 = vmatprep.subr.mxu0 0.0
    %2513 = vmatpush1.msra.mxu0 0.0
    %2514 = vmatprep.subr.mxu0 0.0
    %2515 = vmatpush1.msra.mxu0 0.0
    %2516 = vmatprep.subr.mxu0 0.0
    %2517 = vmatpush1.msra.mxu0 0.0
    %2518 = vmatprep.subr.mxu0 0.0
    %2519 = vmatpush1.msra.mxu0 0.0
    %2520 = vmatprep.subr.mxu0 0.0
    %2521 = vmatpush1.msra.mxu0 0.0
    %2522 = vmatprep.subr.mxu0 0.0
    %2523 = vmatpush1.msra.mxu0 0.0
    %2524 = vmatprep.subr.mxu0 0.0
    %2525 = vmatpush1.msra.mxu0 0.0
    %2526 = vmatprep.subr.mxu0 0.0
    %2527 = vmatpush1.msra.mxu0 0.0
    %2528 = vmatprep.subr.mxu0 0.0
    %2529 = vmatpush1.msra.mxu0 0.0
    %2530 = vmatprep.subr.mxu0 0.0
    %2531 = vmatpush1.msra.mxu0 0.0
    %2532 = vmatprep.subr.mxu0 0.0
    %2533 = vmatpush1.msra.mxu0 0.0
    %2534 = vmatprep.subr.mxu0 0.0
    %2535 = vmatpush1.msra.mxu0 0.0
    %2536 = vmatprep.subr.mxu0 0.0
    %2537 = vmatpush1.msra.mxu0 0.0
    %2538 = vmatprep.subr.mxu0 0.0
    %2539 = vmatpush1.msra.mxu0 0.0
    %2540 = vmatprep.subr.mxu0 0.0
    %2541 = vmatpush1.msra.mxu0 0.0
    %2542 = vmatprep.subr.mxu0 0.0
    %2543 = vmatpush1.msra.mxu0 0.0
    %2544 = vmatprep.mubr.f32.mxu0 0.0
    %2545 = vmatmul.mubr.f32.gmra.mrb[0].mxu0 %v2336
    %v2546 = vpop.f32.mrb[0].mxu0
    %v2547 = vadd.f32 0.0, %v2546
    %v2548 = vpop.f32.mrb[0].mxu0
    %2549 = vmatprep.mubr.f32.mxu0 0.0
    %2550 = vmatmul.mubr.f32.gmra.mrb[0].mxu0 %v2337
    %v2551 = vpop.f32.mrb[0].mxu0
    %v2552 = vadd.f32 0.0, %v2551
    %v2553 = vpop.f32.mrb[0].mxu0
    %2554 = vmatprep.mubr.f32.mxu0 0.0
    %2555 = vmatmul.mubr.f32.gmra.mrb[0].mxu0 %v2338
    %v2556 = vpop.f32.mrb[0].mxu0
    %v2557 = vadd.f32 0.0, %v2556
    %v2558 = vpop.f32.mrb[0].mxu0
    %2559 = vmatprep.mubr.f32.mxu0 0.0
    %2560 = vmatmul.mubr.f32.gmra.mrb[0].mxu0 %v2339
    %v2561 = vpop.f32.mrb[0].mxu0
    %v2562 = vadd.f32 0.0, %v2561
    %v2563 = vpop.f32.mrb[0].mxu0
    %2564 = vmatprep.mubr.f32.mxu0 0.0
    %2565 = vmatmul.mubr.f32.gmra.mrb[0].mxu0 %v2340
    %v2566 = vpop.f32.mrb[0].mxu0
    %v2567 = vadd.f32 0.0, %v2566
    %v2568 = vpop.f32.mrb[0].mxu0
    %2569 = vmatprep.mubr.f32.mxu0 0.0
    %2570 = vmatmul.mubr.f32.gmra.mrb[0].mxu0 %v2341
    %v2571 = vpop.f32.mrb[0].mxu0
    %v2572 = vadd.f32 0.0, %v2571
    %v2573 = vpop.f32.mrb[0].mxu0
    %2574 = vmatprep.mubr.f32.mxu0 0.0
    %2575 = vmatmul.mubr.f32.gmra.mrb[0].mxu0 %v2342
    %v2576 = vpop.f32.mrb[0].mxu0
    %v2577 = vadd.f32 0.0, %v2576
    %v2578 = vpop.f32.mrb[0].mxu0
    %2579 = vmatprep.mubr.f32.mxu0 0.0
    %2580 = vmatmul.mubr.f32.gmra.mrb[0].mxu0 %v2343
    %v2581 = vpop.f32.mrb[0].mxu0
    %v2582 = vadd.f32 0.0, %v2581
    %v2583 = vpop.f32.mrb[0].mxu0
    %2584 = vmatprep.mubr.f32.mxu0 0.0
    %2585 = vmatmul.mubr.f32.gmra.mrb[0].mxu0 %v2344
    %v2586 = vpop.f32.mrb[0].mxu0
    %v2587 = vadd.f32 0.0, %v2586
    %v2588 = vpop.f32.mrb[0].mxu0
    %2589 = vmatprep.mubr.f32.mxu0 0.0
    %2590 = vmatmul.mubr.f32.gmra.mrb[0].mxu0 %v2345
    %v2591 = vpop.f32.mrb[0].mxu0
    %v2592 = vadd.f32 0.0, %v2591
    %v2593 = vpop.f32.mrb[0].mxu0
    %2594 = vmatprep.mubr.f32.mxu0 0.0
    %2595 = vmatmul.mubr.f32.gmra.mrb[0].mxu0 %v2346
    %v2596 = vpop.f32.mrb[0].mxu0
    %v2597 = vadd.f32 0.0, %v2596
    %v2598 = vpop.f32.mrb[0].mxu0
    %2599 = vmatprep.mubr.f32.mxu0 0.0
    %2600 = vmatmul.mubr.f32.gmra.mrb[0].mxu0 %v2347
    %v2601 = vpop.f32.mrb[0].mxu0
    %v2602 = vadd.f32 0.0, %v2601
    %v2603 = vpop.f32.mrb[0].mxu0
    %2604 = vmatprep.mubr.f32.mxu0 0.0
    %2605 = vmatmul.mubr.f32.gmra.mrb[0].mxu0 %v2348
    %v2606 = vpop.f32.mrb[0].mxu0
    %v2607 = vadd.f32 0.0, %v2606
    %v2608 = vpop.f32.mrb[0].mxu0
    %2609 = vmatprep.mubr.f32.mxu0 0.0
    %2610 = vmatmul.mubr.f32.gmra.mrb[0].mxu0 %v2349
    %v2611 = vpop.f32.mrb[0].mxu0
    %v2612 = vadd.f32 0.0, %v2611
    %v2613 = vpop.f32.mrb[0].mxu0
    %2614 = vmatprep.mubr.f32.mxu0 0.0
    %2615 = vmatmul.mubr.f32.gmra.mrb[0].mxu0 %v2350
    %v2616 = vpop.f32.mrb[0].mxu0
    %v2617 = vadd.f32 0.0, %v2616
    %v2618 = vpop.f32.mrb[0].mxu0
    %2619 = vmatprep.mubr.f32.mxu0 0.0
    %2620 = vmatmul.mubr.f32.gmra.mrb[0].mxu0 %v2351
    %v2621 = vpop.f32.mrb[0].mxu0
    %v2622 = vadd.f32 0.0, %v2621
    %v2623 = vpop.f32.mrb[0].mxu0
    %2624 = vmatprep.mubr.f32.mxu0 0.0
    %2625 = vmatmul.mubr.f32.gmra.mrb[0].mxu0 %v2352
    %v2626 = vpop.f32.mrb[0].mxu0
    %v2627 = vadd.f32 0.0, %v2626
    %v2628 = vpop.f32.mrb[0].mxu0
    %2629 = vmatprep.mubr.f32.mxu0 0.0
    %2630 = vmatmul.mubr.f32.gmra.mrb[0].mxu0 %v2353
    %v2631 = vpop.f32.mrb[0].mxu0
    %v2632 = vadd.f32 0.0, %v2631
    %v2633 = vpop.f32.mrb[0].mxu0
    %2634 = vmatprep.mubr.f32.mxu0 0.0
    %2635 = vmatmul.mubr.f32.gmra.mrb[0].mxu0 %v2354
    %v2636 = vpop.f32.mrb[0].mxu0
    %v2637 = vadd.f32 0.0, %v2636
    %v2638 = vpop.f32.mrb[0].mxu0
    %2639 = vmatprep.mubr.f32.mxu0 0.0
    %2640 = vmatmul.mubr.f32.gmra.mrb[0].mxu0 %v2355
    %v2641 = vpop.f32.mrb[0].mxu0
    %v2642 = vadd.f32 0.0, %v2641
    %v2643 = vpop.f32.mrb[0].mxu0
    %2644 = vmatprep.mubr.f32.mxu0 0.0
    %2645 = vmatmul.mubr.f32.gmra.mrb[0].mxu0 %v2356
    %v2646 = vpop.f32.mrb[0].mxu0
    %v2647 = vadd.f32 0.0, %v2646
    %v2648 = vpop.f32.mrb[0].mxu0
    %2649 = vmatprep.mubr.f32.mxu0 0.0
    %2650 = vmatmul.mubr.f32.gmra.mrb[0].mxu0 %v2357
    %v2651 = vpop.f32.mrb[0].mxu0
    %v2652 = vadd.f32 0.0, %v2651
    %v2653 = vpop.f32.mrb[0].mxu0
    %2654 = vmatprep.mubr.f32.mxu0 0.0
    %2655 = vmatmul.mubr.f32.gmra.mrb[0].mxu0 %v2358
    %v2656 = vpop.f32.mrb[0].mxu0
    %v2657 = vadd.f32 0.0, %v2656
    %v2658 = vpop.f32.mrb[0].mxu0
    %2659 = vmatprep.mubr.f32.mxu0 0.0
    %2660 = vmatmul.mubr.f32.gmra.mrb[0].mxu0 %v2359
    %v2661 = vpop.f32.mrb[0].mxu0
    %v2662 = vadd.f32 0.0, %v2661
    %v2663 = vpop.f32.mrb[0].mxu0
    %2664 = vmatprep.mubr.f32.mxu0 0.0
    %2665 = vmatmul.mubr.f32.gmra.mrb[0].mxu0 %v2360
    %v2666 = vpop.f32.mrb[0].mxu0
    %v2667 = vadd.f32 0.0, %v2666
    %v2668 = vpop.f32.mrb[0].mxu0
    %2669 = vmatprep.mubr.f32.mxu0 0.0
    %2670 = vmatmul.mubr.f32.gmra.mrb[0].mxu0 %v2361
    %v2671 = vpop.f32.mrb[0].mxu0
    %v2672 = vadd.f32 0.0, %v2671
    %v2673 = vpop.f32.mrb[0].mxu0
    %2674 = vmatprep.mubr.f32.mxu0 0.0
    %2675 = vmatmul.mubr.f32.gmra.mrb[0].mxu0 %v2362
    %v2676 = vpop.f32.mrb[0].mxu0
    %v2677 = vadd.f32 0.0, %v2676
    %v2678 = vpop.f32.mrb[0].mxu0
    %2679 = vmatprep.mubr.f32.mxu0 0.0
    %2680 = vmatmul.mubr.f32.gmra.mrb[0].mxu0 %v2363
    %v2681 = vpop.f32.mrb[0].mxu0
    %v2682 = vadd.f32 0.0, %v2681
    %v2683 = vpop.f32.mrb[0].mxu0
    %2684 = vmatprep.mubr.f32.mxu0 0.0
    %2685 = vmatmul.mubr.f32.gmra.mrb[0].mxu0 %v2364
    %v2686 = vpop.f32.mrb[0].mxu0
    %v2687 = vadd.f32 0.0, %v2686
    %v2688 = vpop.f32.mrb[0].mxu0
    %2689 = vmatprep.mubr.f32.mxu0 0.0
    %2690 = vmatmul.mubr.f32.gmra.mrb[0].mxu0 %v2365
    %v2691 = vpop.f32.mrb[0].mxu0
    %v2692 = vadd.f32 0.0, %v2691
    %v2693 = vpop.f32.mrb[0].mxu0
    %2694 = vmatprep.mubr.f32.mxu0 0.0
    %2695 = vmatmul.mubr.f32.gmra.mrb[0].mxu0 %v2366
    %v2696 = vpop.f32.mrb[0].mxu0
    %v2697 = vadd.f32 0.0, %v2696
    %v2698 = vpop.f32.mrb[0].mxu0
    %2699 = vmatprep.mubr.f32.mxu0 0.0
    %2700 = vmatmul.mubr.f32.gmra.mrb[0].mxu0 %v2367
    %v2701 = vpop.f32.mrb[0].mxu0
    %v2702 = vadd.f32 0.0, %v2701
    %v2703 = vpop.f32.mrb[0].mxu0
    %2704 = vmatprep.mubr.f32.mxu0 0.0
    %2705 = vmatmul.mubr.f32.gmra.mrb[0].mxu0 %v2368
    %v2706 = vpop.f32.mrb[0].mxu0
    %v2707 = vadd.f32 0.0, %v2706
    %v2708 = vpop.f32.mrb[0].mxu0
    %2709 = vmatprep.mubr.f32.mxu0 0.0
    %2710 = vmatmul.mubr.f32.gmra.mrb[0].mxu0 %v2369
    %v2711 = vpop.f32.mrb[0].mxu0
    %v2712 = vadd.f32 0.0, %v2711
    %v2713 = vpop.f32.mrb[0].mxu0
    %2714 = vmatprep.mubr.f32.mxu0 0.0
    %2715 = vmatmul.mubr.f32.gmra.mrb[0].mxu0 %v2370
    %v2716 = vpop.f32.mrb[0].mxu0
    %v2717 = vadd.f32 0.0, %v2716
    %v2718 = vpop.f32.mrb[0].mxu0
    %2719 = vmatprep.mubr.f32.mxu0 0.0
    %2720 = vmatmul.mubr.f32.gmra.mrb[0].mxu0 %v2371
    %v2721 = vpop.f32.mrb[0].mxu0
    %v2722 = vadd.f32 0.0, %v2721
    %v2723 = vpop.f32.mrb[0].mxu0
    %2724 = vmatprep.mubr.f32.mxu0 0.0
    %2725 = vmatmul.mubr.f32.gmra.mrb[0].mxu0 %v2372
    %v2726 = vpop.f32.mrb[0].mxu0
    %v2727 = vadd.f32 0.0, %v2726
    %v2728 = vpop.f32.mrb[0].mxu0
    %2729 = vmatprep.mubr.f32.mxu0 0.0
    %2730 = vmatmul.mubr.f32.gmra.mrb[0].mxu0 %v2373
    %v2731 = vpop.f32.mrb[0].mxu0
    %v2732 = vadd.f32 0.0, %v2731
    %v2733 = vpop.f32.mrb[0].mxu0
    %2734 = vmatprep.mubr.f32.mxu0 0.0
    %2735 = vmatmul.mubr.f32.gmra.mrb[0].mxu0 %v2374
    %v2736 = vpop.f32.mrb[0].mxu0
    %v2737 = vadd.f32 0.0, %v2736
    %v2738 = vpop.f32.mrb[0].mxu0
    %2739 = vmatprep.mubr.f32.mxu0 0.0
    %2740 = vmatmul.mubr.f32.gmra.mrb[0].mxu0 %v2375
    %v2741 = vpop.f32.mrb[0].mxu0
    %v2742 = vadd.f32 0.0, %v2741
    %v2743 = vpop.f32.mrb[0].mxu0
    %2744 = vmatprep.mubr.f32.mxu0 0.0
    %2745 = vmatmul.mubr.f32.gmra.mrb[0].mxu0 %v2376
    %v2746 = vpop.f32.mrb[0].mxu0
    %v2747 = vadd.f32 0.0, %v2746
    %v2748 = vpop.f32.mrb[0].mxu0
    %2749 = vmatprep.mubr.f32.mxu0 0.0
    %2750 = vmatmul.mubr.f32.gmra.mrb[0].mxu0 %v2377
    %v2751 = vpop.f32.mrb[0].mxu0
    %v2752 = vadd.f32 0.0, %v2751
    %v2753 = vpop.f32.mrb[0].mxu0
    %2754 = vmatprep.mubr.f32.mxu0 0.0
    %2755 = vmatmul.mubr.f32.gmra.mrb[0].mxu0 %v2378
    %v2756 = vpop.f32.mrb[0].mxu0
    %v2757 = vadd.f32 0.0, %v2756
    %v2758 = vpop.f32.mrb[0].mxu0
    %2759 = vmatprep.mubr.f32.mxu0 0.0
    %2760 = vmatmul.mubr.f32.gmra.mrb[0].mxu0 %v2379
    %v2761 = vpop.f32.mrb[0].mxu0
    %v2762 = vadd.f32 0.0, %v2761
    %v2763 = vpop.f32.mrb[0].mxu0
    %2764 = vmatprep.mubr.f32.mxu0 0.0
    %2765 = vmatmul.mubr.f32.gmra.mrb[0].mxu0 %v2380
    %v2766 = vpop.f32.mrb[0].mxu0
    %v2767 = vadd.f32 0.0, %v2766
    %v2768 = vpop.f32.mrb[0].mxu0
    %2769 = vmatprep.mubr.f32.mxu0 0.0
    %2770 = vmatmul.mubr.f32.gmra.mrb[0].mxu0 %v2381
    %v2771 = vpop.f32.mrb[0].mxu0
    %v2772 = vadd.f32 0.0, %v2771
    %v2773 = vpop.f32.mrb[0].mxu0
    %2774 = vmatprep.mubr.f32.mxu0 0.0
    %2775 = vmatmul.mubr.f32.gmra.mrb[0].mxu0 %v2382
    %v2776 = vpop.f32.mrb[0].mxu0
    %v2777 = vadd.f32 0.0, %v2776
    %v2778 = vpop.f32.mrb[0].mxu0
    %2779 = vmatprep.mubr.f32.mxu0 0.0
    %2780 = vmatmul.mubr.f32.gmra.mrb[0].mxu0 %v2383
    %v2781 = vpop.f32.mrb[0].mxu0
    %v2782 = vadd.f32 0.0, %v2781
    %v2783 = vpop.f32.mrb[0].mxu0
    %2784 = vmatprep.mubr.f32.mxu0 0.0
    %2785 = vmatmul.mubr.f32.gmra.mrb[0].mxu0 %v2384
    %v2786 = vpop.f32.mrb[0].mxu0
    %v2787 = vadd.f32 0.0, %v2786
    %v2788 = vpop.f32.mrb[0].mxu0
    %2789 = vmatprep.mubr.f32.mxu0 0.0
    %2790 = vmatmul.mubr.f32.gmra.mrb[0].mxu0 %v2385
    %v2791 = vpop.f32.mrb[0].mxu0
    %v2792 = vadd.f32 0.0, %v2791
    %v2793 = vpop.f32.mrb[0].mxu0
    %2794 = vmatprep.mubr.f32.mxu0 0.0
    %2795 = vmatmul.mubr.f32.gmra.mrb[0].mxu0 %v2386
    %v2796 = vpop.f32.mrb[0].mxu0
    %v2797 = vadd.f32 0.0, %v2796
    %v2798 = vpop.f32.mrb[0].mxu0
    %2799 = vmatprep.mubr.f32.mxu0 0.0
    %2800 = vmatmul.mubr.f32.gmra.mrb[0].mxu0 %v2387
    %v2801 = vpop.f32.mrb[0].mxu0
    %v2802 = vadd.f32 0.0, %v2801
    %v2803 = vpop.f32.mrb[0].mxu0
    %2804 = vmatprep.mubr.f32.mxu0 0.0
    %2805 = vmatmul.mubr.f32.gmra.mrb[0].mxu0 %v2388
    %v2806 = vpop.f32.mrb[0].mxu0
    %v2807 = vadd.f32 0.0, %v2806
    %v2808 = vpop.f32.mrb[0].mxu0
    %2809 = vmatprep.mubr.f32.mxu0 0.0
    %2810 = vmatmul.mubr.f32.gmra.mrb[0].mxu0 %v2389
    %v2811 = vpop.f32.mrb[0].mxu0
    %v2812 = vadd.f32 0.0, %v2811
    %v2813 = vpop.f32.mrb[0].mxu0
    %2814 = vmatprep.mubr.f32.mxu0 0.0
    %2815 = vmatmul.mubr.f32.gmra.mrb[0].mxu0 %v2390
    %v2816 = vpop.f32.mrb[0].mxu0
    %v2817 = vadd.f32 0.0, %v2816
    %v2818 = vpop.f32.mrb[0].mxu0
    %2819 = vmatprep.mubr.f32.mxu0 0.0
    %2820 = vmatmul.mubr.f32.gmra.mrb[0].mxu0 %v2391
    %v2821 = vpop.f32.mrb[0].mxu0
    %v2822 = vadd.f32 0.0, %v2821
    %v2823 = vpop.f32.mrb[0].mxu0
    %2824 = vmatprep.mubr.f32.mxu0 0.0
    %2825 = vmatmul.mubr.f32.gmra.mrb[0].mxu0 %v2392
    %v2826 = vpop.f32.mrb[0].mxu0
    %v2827 = vadd.f32 0.0, %v2826
    %v2828 = vpop.f32.mrb[0].mxu0
    %2829 = vmatprep.mubr.f32.mxu0 0.0
    %2830 = vmatmul.mubr.f32.gmra.mrb[0].mxu0 %v2393
    %v2831 = vpop.f32.mrb[0].mxu0
    %v2832 = vadd.f32 0.0, %v2831
    %v2833 = vpop.f32.mrb[0].mxu0
    %2834 = vmatprep.mubr.f32.mxu0 0.0
    %2835 = vmatmul.mubr.f32.gmra.mrb[0].mxu0 %v2394
    %v2836 = vpop.f32.mrb[0].mxu0
    %v2837 = vadd.f32 0.0, %v2836
    %v2838 = vpop.f32.mrb[0].mxu0
    %2839 = vmatprep.mubr.f32.mxu0 0.0
    %2840 = vmatmul.mubr.f32.gmra.mrb[0].mxu0 %v2395
    %v2841 = vpop.f32.mrb[0].mxu0
    %v2842 = vadd.f32 0.0, %v2841
    %v2843 = vpop.f32.mrb[0].mxu0
    %2844 = vmatprep.mubr.f32.mxu0 0.0
    %2845 = vmatmul.mubr.f32.gmra.mrb[0].mxu0 %v2396
    %v2846 = vpop.f32.mrb[0].mxu0
    %v2847 = vadd.f32 0.0, %v2846
    %v2848 = vpop.f32.mrb[0].mxu0
    %2849 = vmatprep.mubr.f32.mxu0 0.0
    %2850 = vmatmul.mubr.f32.gmra.mrb[0].mxu0 %v2397
    %v2851 = vpop.f32.mrb[0].mxu0
    %v2852 = vadd.f32 0.0, %v2851
    %v2853 = vpop.f32.mrb[0].mxu0
    %2854 = vmatprep.mubr.f32.mxu0 0.0
    %2855 = vmatmul.mubr.f32.gmra.mrb[0].mxu0 %v2398
    %v2856 = vpop.f32.mrb[0].mxu0
    %v2857 = vadd.f32 0.0, %v2856
    %v2858 = vpop.f32.mrb[0].mxu0
    %2859 = vmatprep.mubr.f32.mxu0 0.0
    %2860 = vmatmul.mubr.f32.gmra.mrb[0].mxu0 %v2399
    %v2861 = vpop.f32.mrb[0].mxu0
    %v2862 = vadd.f32 0.0, %v2861
    %v2863 = vpop.f32.mrb[0].mxu0
    %2864 = vmatprep.mubr.f32.mxu0 0.0
    %2865 = vmatmul.mubr.f32.gmra.mrb[0].mxu0 %v2400
    %v2866 = vpop.f32.mrb[0].mxu0
    %v2867 = vadd.f32 0.0, %v2866
    %v2868 = vpop.f32.mrb[0].mxu0
    %2869 = vmatprep.mubr.f32.mxu0 0.0
    %2870 = vmatmul.mubr.f32.gmra.mrb[0].mxu0 %v2401
    %v2871 = vpop.f32.mrb[0].mxu0
    %v2872 = vadd.f32 0.0, %v2871
    %v2873 = vpop.f32.mrb[0].mxu0
    %2874 = vmatprep.mubr.f32.mxu0 0.0
    %2875 = vmatmul.mubr.f32.gmra.mrb[0].mxu0 %v2402
    %v2876 = vpop.f32.mrb[0].mxu0
    %v2877 = vadd.f32 0.0, %v2876
    %v2878 = vpop.f32.mrb[0].mxu0
    %2879 = vmatprep.mubr.f32.mxu0 0.0
    %2880 = vmatmul.mubr.f32.gmra.mrb[0].mxu0 %v2403
    %v2881 = vpop.f32.mrb[0].mxu0
    %v2882 = vadd.f32 0.0, %v2881
    %v2883 = vpop.f32.mrb[0].mxu0
    %2884 = vmatprep.mubr.f32.mxu0 0.0
    %2885 = vmatmul.mubr.f32.gmra.mrb[0].mxu0 %v2404
    %v2886 = vpop.f32.mrb[0].mxu0
    %v2887 = vadd.f32 0.0, %v2886
    %v2888 = vpop.f32.mrb[0].mxu0
    %2889 = vmatprep.mubr.f32.mxu0 0.0
    %2890 = vmatmul.mubr.f32.gmra.mrb[0].mxu0 %v2405
    %v2891 = vpop.f32.mrb[0].mxu0
    %v2892 = vadd.f32 0.0, %v2891
    %v2893 = vpop.f32.mrb[0].mxu0
    %2894 = vmatprep.mubr.f32.mxu0 0.0
    %2895 = vmatmul.mubr.f32.gmra.mrb[0].mxu0 %v2406
    %v2896 = vpop.f32.mrb[0].mxu0
    %v2897 = vadd.f32 0.0, %v2896
    %v2898 = vpop.f32.mrb[0].mxu0
    %2899 = vmatprep.mubr.f32.mxu0 0.0
    %2900 = vmatmul.mubr.f32.gmra.mrb[0].mxu0 %v2407
    %v2901 = vpop.f32.mrb[0].mxu0
    %v2902 = vadd.f32 0.0, %v2901
    %v2903 = vpop.f32.mrb[0].mxu0
    %2904 = vmatprep.mubr.f32.mxu0 0.0
    %2905 = vmatmul.mubr.f32.gmra.mrb[0].mxu0 %v2408
    %v2906 = vpop.f32.mrb[0].mxu0
    %v2907 = vadd.f32 0.0, %v2906
    %v2908 = vpop.f32.mrb[0].mxu0
    %2909 = vmatprep.mubr.f32.mxu0 0.0
    %2910 = vmatmul.mubr.f32.gmra.mrb[0].mxu0 %v2409
    %v2911 = vpop.f32.mrb[0].mxu0
    %v2912 = vadd.f32 0.0, %v2911
    %v2913 = vpop.f32.mrb[0].mxu0
    %2914 = vmatprep.mubr.f32.mxu0 0.0
    %2915 = vmatmul.mubr.f32.gmra.mrb[0].mxu0 %v2410
    %v2916 = vpop.f32.mrb[0].mxu0
    %v2917 = vadd.f32 0.0, %v2916
    %v2918 = vpop.f32.mrb[0].mxu0
    %2919 = vmatprep.mubr.f32.mxu0 0.0
    %2920 = vmatmul.mubr.f32.gmra.mrb[0].mxu0 %v2411
    %v2921 = vpop.f32.mrb[0].mxu0
    %v2922 = vadd.f32 0.0, %v2921
    %v2923 = vpop.f32.mrb[0].mxu0
    %2924 = vmatprep.mubr.f32.mxu0 0.0
    %2925 = vmatmul.mubr.f32.gmra.mrb[0].mxu0 %v2412
    %v2926 = vpop.f32.mrb[0].mxu0
    %v2927 = vadd.f32 0.0, %v2926
    %v2928 = vpop.f32.mrb[0].mxu0
    %2929 = vmatprep.mubr.f32.mxu0 0.0
    %2930 = vmatmul.mubr.f32.gmra.mrb[0].mxu0 %v2413
    %v2931 = vpop.f32.mrb[0].mxu0
    %v2932 = vadd.f32 0.0, %v2931
    %v2933 = vpop.f32.mrb[0].mxu0
    %2934 = vmatprep.mubr.f32.mxu0 0.0
    %2935 = vmatmul.mubr.f32.gmra.mrb[0].mxu0 %v2414
    %v2936 = vpop.f32.mrb[0].mxu0
    %v2937 = vadd.f32 0.0, %v2936
    %v2938 = vpop.f32.mrb[0].mxu0
    %2939 = vmatprep.mubr.f32.mxu0 0.0
    %2940 = vmatmul.mubr.f32.gmra.mrb[0].mxu0 %v2415
    %v2941 = vpop.f32.mrb[0].mxu0
    %v2942 = vadd.f32 0.0, %v2941
    %v2943 = vpop.f32.mrb[0].mxu0
    %2944 = vmatprep.mubr.f32.mxu0 0.0
    %2945 = vmatmul.mubr.f32.gmra.mrb[0].mxu0 %v2416
    %v2946 = vpop.f32.mrb[0].mxu0
    %v2947 = vadd.f32 0.0, %v2946
    %v2948 = vpop.f32.mrb[0].mxu0
    %2949 = vmatprep.mubr.f32.mxu0 0.0
    %2950 = vmatmul.mubr.f32.gmra.mrb[0].mxu0 %v2417
    %v2951 = vpop.f32.mrb[0].mxu0
    %v2952 = vadd.f32 0.0, %v2951
    %v2953 = vpop.f32.mrb[0].mxu0
    %2954 = vmatprep.mubr.f32.mxu0 0.0
    %2955 = vmatmul.mubr.f32.gmra.mrb[0].mxu0 %v2418
    %v2956 = vpop.f32.mrb[0].mxu0
    %v2957 = vadd.f32 0.0, %v2956
    %v2958 = vpop.f32.mrb[0].mxu0
    %2959 = vmatprep.mubr.f32.mxu0 0.0
    %2960 = vmatmul.mubr.f32.gmra.mrb[0].mxu0 %v2419
    %v2961 = vpop.f32.mrb[0].mxu0
    %v2962 = vadd.f32 0.0, %v2961
    %v2963 = vpop.f32.mrb[0].mxu0
    %2964 = vmatprep.mubr.f32.mxu0 0.0
    %2965 = vmatmul.mubr.f32.gmra.mrb[0].mxu0 %v2420
    %v2966 = vpop.f32.mrb[0].mxu0
    %v2967 = vadd.f32 0.0, %v2966
    %v2968 = vpop.f32.mrb[0].mxu0
    %2969 = vmatprep.mubr.f32.mxu0 0.0
    %2970 = vmatmul.mubr.f32.gmra.mrb[0].mxu0 %v2421
    %v2971 = vpop.f32.mrb[0].mxu0
    %v2972 = vadd.f32 0.0, %v2971
    %v2973 = vpop.f32.mrb[0].mxu0
    %2974 = vmatprep.mubr.f32.mxu0 0.0
    %2975 = vmatmul.mubr.f32.gmra.mrb[0].mxu0 %v2422
    %v2976 = vpop.f32.mrb[0].mxu0
    %v2977 = vadd.f32 0.0, %v2976
    %v2978 = vpop.f32.mrb[0].mxu0
    %2979 = vmatprep.mubr.f32.mxu0 0.0
    %2980 = vmatmul.mubr.f32.gmra.mrb[0].mxu0 %v2423
    %v2981 = vpop.f32.mrb[0].mxu0
    %v2982 = vadd.f32 0.0, %v2981
    %v2983 = vpop.f32.mrb[0].mxu0
    %2984 = vmatprep.mubr.f32.mxu0 0.0
    %2985 = vmatmul.mubr.f32.gmra.mrb[0].mxu0 %v2424
    %v2986 = vpop.f32.mrb[0].mxu0
    %v2987 = vadd.f32 0.0, %v2986
    %v2988 = vpop.f32.mrb[0].mxu0
    %2989 = vmatprep.mubr.f32.mxu0 0.0
    %2990 = vmatmul.mubr.f32.gmra.mrb[0].mxu0 %v2425
    %v2991 = vpop.f32.mrb[0].mxu0
    %v2992 = vadd.f32 0.0, %v2991
    %v2993 = vpop.f32.mrb[0].mxu0
    %2994 = vmatprep.mubr.f32.mxu0 0.0
    %2995 = vmatmul.mubr.f32.gmra.mrb[0].mxu0 %v2426
    %v2996 = vpop.f32.mrb[0].mxu0
    %v2997 = vadd.f32 0.0, %v2996
    %v2998 = vpop.f32.mrb[0].mxu0
    %2999 = vmatprep.mubr.f32.mxu0 0.0
    %3000 = vmatmul.mubr.f32.gmra.mrb[0].mxu0 %v2427
    %v3001 = vpop.f32.mrb[0].mxu0
    %v3002 = vadd.f32 0.0, %v3001
    %v3003 = vpop.f32.mrb[0].mxu0
    %3004 = vmatprep.mubr.f32.mxu0 0.0
    %3005 = vmatmul.mubr.f32.gmra.mrb[0].mxu0 %v2428
    %v3006 = vpop.f32.mrb[0].mxu0
    %v3007 = vadd.f32 0.0, %v3006
    %v3008 = vpop.f32.mrb[0].mxu0
    %3009 = vmatprep.mubr.f32.mxu0 0.0
    %3010 = vmatmul.mubr.f32.gmra.mrb[0].mxu0 %v2429
    %v3011 = vpop.f32.mrb[0].mxu0
    %v3012 = vadd.f32 0.0, %v3011
    %v3013 = vpop.f32.mrb[0].mxu0
    %3014 = vmatprep.mubr.f32.mxu0 0.0
    %3015 = vmatmul.mubr.f32.gmra.mrb[0].mxu0 %v2430
    %v3016 = vpop.f32.mrb[0].mxu0
    %v3017 = vadd.f32 0.0, %v3016
    %v3018 = vpop.f32.mrb[0].mxu0
    %3019 = vmatprep.mubr.f32.mxu0 0.0
    %3020 = vmatmul.mubr.f32.gmra.mrb[0].mxu0 %v2431
    %v3021 = vpop.f32.mrb[0].mxu0
    %v3022 = vadd.f32 0.0, %v3021
    %v3023 = vpop.f32.mrb[0].mxu0
    %3024 = vmatprep.mubr.f32.mxu0 0.0
    %3025 = vmatmul.mubr.f32.gmra.mrb[0].mxu0 %v2432
    %v3026 = vpop.f32.mrb[0].mxu0
    %v3027 = vadd.f32 0.0, %v3026
    %v3028 = vpop.f32.mrb[0].mxu0
    %3029 = vmatprep.mubr.f32.mxu0 0.0
    %3030 = vmatmul.mubr.f32.gmra.mrb[0].mxu0 %v2433
    %v3031 = vpop.f32.mrb[0].mxu0
    %v3032 = vadd.f32 0.0, %v3031
    %v3033 = vpop.f32.mrb[0].mxu0
    %3034 = vmatprep.mubr.f32.mxu0 0.0
    %3035 = vmatmul.mubr.f32.gmra.mrb[0].mxu0 %v2434
    %v3036 = vpop.f32.mrb[0].mxu0
    %v3037 = vadd.f32 0.0, %v3036
    %v3038 = vpop.f32.mrb[0].mxu0
    %3039 = vmatprep.mubr.f32.mxu0 0.0
    %3040 = vmatmul.mubr.f32.gmra.mrb[0].mxu0 %v2435
    %v3041 = vpop.f32.mrb[0].mxu0
    %v3042 = vadd.f32 0.0, %v3041
    %v3043 = vpop.f32.mrb[0].mxu0
    %3044 = vmatprep.mubr.f32.mxu0 0.0
    %3045 = vmatmul.mubr.f32.gmra.mrb[0].mxu0 %v2436
    %v3046 = vpop.f32.mrb[0].mxu0
    %v3047 = vadd.f32 0.0, %v3046
    %v3048 = vpop.f32.mrb[0].mxu0
    %3049 = vmatprep.mubr.f32.mxu0 0.0
    %3050 = vmatmul.mubr.f32.gmra.mrb[0].mxu0 %v2437
    %v3051 = vpop.f32.mrb[0].mxu0
    %v3052 = vadd.f32 0.0, %v3051
    %v3053 = vpop.f32.mrb[0].mxu0
    %3054 = vmatprep.mubr.f32.mxu0 0.0
    %3055 = vmatmul.mubr.f32.gmra.mrb[0].mxu0 %v2438
    %v3056 = vpop.f32.mrb[0].mxu0
    %v3057 = vadd.f32 0.0, %v3056
    %v3058 = vpop.f32.mrb[0].mxu0
    %3059 = vmatprep.mubr.f32.mxu0 0.0
    %3060 = vmatmul.mubr.f32.gmra.mrb[0].mxu0 %v2439
    %v3061 = vpop.f32.mrb[0].mxu0
    %v3062 = vadd.f32 0.0, %v3061
    %v3063 = vpop.f32.mrb[0].mxu0
    %3064 = vmatprep.mubr.f32.mxu0 0.0
    %3065 = vmatmul.mubr.f32.gmra.mrb[0].mxu0 %v2440
    %v3066 = vpop.f32.mrb[0].mxu0
    %v3067 = vadd.f32 0.0, %v3066
    %v3068 = vpop.f32.mrb[0].mxu0
    %3069 = vmatprep.mubr.f32.mxu0 0.0
    %3070 = vmatmul.mubr.f32.gmra.mrb[0].mxu0 %v2441
    %v3071 = vpop.f32.mrb[0].mxu0
    %v3072 = vadd.f32 0.0, %v3071
    %v3073 = vpop.f32.mrb[0].mxu0
    %3074 = vmatprep.mubr.f32.mxu0 0.0
    %3075 = vmatmul.mubr.f32.gmra.mrb[0].mxu0 %v2442
    %v3076 = vpop.f32.mrb[0].mxu0
    %v3077 = vadd.f32 0.0, %v3076
    %v3078 = vpop.f32.mrb[0].mxu0
    %3079 = vmatprep.mubr.f32.mxu0 0.0
    %3080 = vmatmul.mubr.f32.gmra.mrb[0].mxu0 %v2443
    %v3081 = vpop.f32.mrb[0].mxu0
    %v3082 = vadd.f32 0.0, %v3081
    %v3083 = vpop.f32.mrb[0].mxu0
    %3084 = vmatprep.mubr.f32.mxu0 0.0
    %3085 = vmatmul.mubr.f32.gmra.mrb[0].mxu0 %v2444
    %v3086 = vpop.f32.mrb[0].mxu0
    %v3087 = vadd.f32 0.0, %v3086
    %v3088 = vpop.f32.mrb[0].mxu0
    %3089 = vmatprep.mubr.f32.mxu0 0.0
    %3090 = vmatmul.mubr.f32.gmra.mrb[0].mxu0 %v2445
    %v3091 = vpop.f32.mrb[0].mxu0
    %v3092 = vadd.f32 0.0, %v3091
    %v3093 = vpop.f32.mrb[0].mxu0
    %3094 = vmatprep.mubr.f32.mxu0 0.0
    %3095 = vmatmul.mubr.f32.gmra.mrb[0].mxu0 %v2446
    %v3096 = vpop.f32.mrb[0].mxu0
    %v3097 = vadd.f32 0.0, %v3096
    %v3098 = vpop.f32.mrb[0].mxu0
    %3099 = vmatprep.mubr.f32.mxu0 0.0
    %3100 = vmatmul.mubr.f32.gmra.mrb[0].mxu0 %v2447
    %v3101 = vpop.f32.mrb[0].mxu0
    %v3102 = vadd.f32 0.0, %v3101
    %v3103 = vpop.f32.mrb[0].mxu0
    %3104 = vmatprep.mubr.f32.mxu0 0.0
    %3105 = vmatmul.mubr.f32.gmra.mrb[0].mxu0 %v2448
    %v3106 = vpop.f32.mrb[0].mxu0
    %v3107 = vadd.f32 0.0, %v3106
    %v3108 = vpop.f32.mrb[0].mxu0
    %3109 = vmatprep.mubr.f32.mxu0 0.0
    %3110 = vmatmul.mubr.f32.gmra.mrb[0].mxu0 %v2449
    %v3111 = vpop.f32.mrb[0].mxu0
    %v3112 = vadd.f32 0.0, %v3111
    %v3113 = vpop.f32.mrb[0].mxu0
    %3114 = vmatprep.mubr.f32.mxu0 0.0
    %3115 = vmatmul.mubr.f32.gmra.mrb[0].mxu0 %v2450
    %v3116 = vpop.f32.mrb[0].mxu0
    %v3117 = vadd.f32 0.0, %v3116
    %v3118 = vpop.f32.mrb[0].mxu0
    %3119 = vmatprep.mubr.f32.mxu0 0.0
    %3120 = vmatmul.mubr.f32.gmra.mrb[0].mxu0 %v2451
    %v3121 = vpop.f32.mrb[0].mxu0
    %v3122 = vadd.f32 0.0, %v3121
    %v3123 = vpop.f32.mrb[0].mxu0
    %3124 = vmatprep.mubr.f32.mxu0 0.0
    %3125 = vmatmul.mubr.f32.gmra.mrb[0].mxu0 %v2452
    %v3126 = vpop.f32.mrb[0].mxu0
    %v3127 = vadd.f32 0.0, %v3126
    %v3128 = vpop.f32.mrb[0].mxu0
    %3129 = vmatprep.mubr.f32.mxu0 0.0
    %3130 = vmatmul.mubr.f32.gmra.mrb[0].mxu0 %v2453
    %v3131 = vpop.f32.mrb[0].mxu0
    %v3132 = vadd.f32 0.0, %v3131
    %v3133 = vpop.f32.mrb[0].mxu0
    %3134 = vmatprep.mubr.f32.mxu0 0.0
    %3135 = vmatmul.mubr.f32.gmra.mrb[0].mxu0 %v2454
    %v3136 = vpop.f32.mrb[0].mxu0
    %v3137 = vadd.f32 0.0, %v3136
    %v3138 = vpop.f32.mrb[0].mxu0
    %3139 = vmatprep.mubr.f32.mxu0 0.0
    %3140 = vmatmul.mubr.f32.gmra.mrb[0].mxu0 %v2455
    %v3141 = vpop.f32.mrb[0].mxu0
    %v3142 = vadd.f32 0.0, %v3141
    %v3143 = vpop.f32.mrb[0].mxu0
    %3144 = vmatprep.mubr.f32.mxu0 0.0
    %3145 = vmatmul.mubr.f32.gmra.mrb[0].mxu0 %v2456
    %v3146 = vpop.f32.mrb[0].mxu0
    %v3147 = vadd.f32 0.0, %v3146
    %v3148 = vpop.f32.mrb[0].mxu0
    %3149 = vmatprep.mubr.f32.mxu0 0.0
    %3150 = vmatmul.mubr.f32.gmra.mrb[0].mxu0 %v2457
    %v3151 = vpop.f32.mrb[0].mxu0
    %v3152 = vadd.f32 0.0, %v3151
    %v3153 = vpop.f32.mrb[0].mxu0
    %3154 = vmatprep.mubr.f32.mxu0 0.0
    %3155 = vmatmul.mubr.f32.gmra.mrb[0].mxu0 %v2458
    %v3156 = vpop.f32.mrb[0].mxu0
    %v3157 = vadd.f32 0.0, %v3156
    %v3158 = vpop.f32.mrb[0].mxu0
    %3159 = vmatprep.mubr.f32.mxu0 0.0
    %3160 = vmatmul.mubr.f32.gmra.mrb[0].mxu0 %v2459
    %v3161 = vpop.f32.mrb[0].mxu0
    %v3162 = vadd.f32 0.0, %v3161
    %v3163 = vpop.f32.mrb[0].mxu0
    %3164 = vmatprep.mubr.f32.mxu0 0.0
    %3165 = vmatmul.mubr.f32.gmra.mrb[0].mxu0 %v2460
    %v3166 = vpop.f32.mrb[0].mxu0
    %v3167 = vadd.f32 0.0, %v3166
    %v3168 = vpop.f32.mrb[0].mxu0
    %3169 = vmatprep.mubr.f32.mxu0 0.0
    %3170 = vmatmul.mubr.f32.gmra.mrb[0].mxu0 %v2461
    %v3171 = vpop.f32.mrb[0].mxu0
    %v3172 = vadd.f32 0.0, %v3171
    %v3173 = vpop.f32.mrb[0].mxu0
    %3174 = vmatprep.mubr.f32.mxu0 0.0
    %3175 = vmatmul.mubr.f32.gmra.mrb[0].mxu0 %v2462
    %v3176 = vpop.f32.mrb[0].mxu0
    %v3177 = vadd.f32 0.0, %v3176
    %v3178 = vpop.f32.mrb[0].mxu0
    %3179 = vmatprep.mubr.f32.mxu0 0.0
    %3180 = vmatmul.mubr.f32.gmra.mrb[0].mxu0 %v2463
    %v3181 = vpop.f32.mrb[0].mxu0
    %v3182 = vadd.f32 0.0, %v3181
    %v3183 = vpop.f32.mrb[0].mxu0
    %3184 = vdwg.mxu0
    %v3185 = vld [vmem:[%s2] sm:$0xff]
    %v3186 = vld [vmem:[%s2 + $0x8] sm:$0xff]
    %v3187 = vld [vmem:[%s2 + $0x10] sm:$0xff]
    %v3188 = vld [vmem:[%s2 + $0x18] sm:$0xff]
    %v3189 = vld [vmem:[%s2 + $0x20] sm:$0xff]
    %v3190 = vld [vmem:[%s2 + $0x28] sm:$0xff]
    %v3191 = vld [vmem:[%s2 + $0x30] sm:$0xff]
    %v3192 = vld [vmem:[%s2 + $0x38] sm:$0xff]
    %v3193 = vld [vmem:[%s2 + $0x40] sm:$0xff]
    %v3194 = vld [vmem:[%s2 + $0x48] sm:$0xff]
    %v3195 = vld [vmem:[%s2 + $0x50] sm:$0xff]
    %v3196 = vld [vmem:[%s2 + $0x58] sm:$0xff]
    %v3197 = vld [vmem:[%s2 + $0x60] sm:$0xff]
    %v3198 = vld [vmem:[%s2 + $0x68] sm:$0xff]
    %v3199 = vld [vmem:[%s2 + $0x70] sm:$0xff]
    %v3200 = vld [vmem:[%s2 + $0x78] sm:$0xff]
    %v3201 = vld [vmem:[%s2 + $0x80] sm:$0xff]
    %v3202 = vld [vmem:[%s2 + $0x88] sm:$0xff]
    %v3203 = vld [vmem:[%s2 + $0x90] sm:$0xff]
    %v3204 = vld [vmem:[%s2 + $0x98] sm:$0xff]
    %v3205 = vld [vmem:[%s2 + $0xa0] sm:$0xff]
    %v3206 = vld [vmem:[%s2 + $0xa8] sm:$0xff]
    %v3207 = vld [vmem:[%s2 + $0xb0] sm:$0xff]
    %v3208 = vld [vmem:[%s2 + $0xb8] sm:$0xff]
    %v3209 = vld [vmem:[%s2 + $0xc0] sm:$0xff]
    %v3210 = vld [vmem:[%s2 + $0xc8] sm:$0xff]
    %v3211 = vld [vmem:[%s2 + $0xd0] sm:$0xff]
    %v3212 = vld [vmem:[%s2 + $0xd8] sm:$0xff]
    %v3213 = vld [vmem:[%s2 + $0xe0] sm:$0xff]
    %v3214 = vld [vmem:[%s2 + $0xe8] sm:$0xff]
    %v3215 = vld [vmem:[%s2 + $0xf0] sm:$0xff]
    %v3216 = vld [vmem:[%s2 + $0xf8] sm:$0xff]
    %v3217 = vld [vmem:[%s2 + $0x100] sm:$0xff]
    %v3218 = vld [vmem:[%s2 + $0x108] sm:$0xff]
    %v3219 = vld [vmem:[%s2 + $0x110] sm:$0xff]
    %v3220 = vld [vmem:[%s2 + $0x118] sm:$0xff]
    %v3221 = vld [vmem:[%s2 + $0x120] sm:$0xff]
    %v3222 = vld [vmem:[%s2 + $0x128] sm:$0xff]
    %v3223 = vld [vmem:[%s2 + $0x130] sm:$0xff]
    %v3224 = vld [vmem:[%s2 + $0x138] sm:$0xff]
    %v3225 = vld [vmem:[%s2 + $0x140] sm:$0xff]
    %v3226 = vld [vmem:[%s2 + $0x148] sm:$0xff]
    %v3227 = vld [vmem:[%s2 + $0x150] sm:$0xff]
    %v3228 = vld [vmem:[%s2 + $0x158] sm:$0xff]
    %v3229 = vld [vmem:[%s2 + $0x160] sm:$0xff]
    %v3230 = vld [vmem:[%s2 + $0x168] sm:$0xff]
    %v3231 = vld [vmem:[%s2 + $0x170] sm:$0xff]
    %v3232 = vld [vmem:[%s2 + $0x178] sm:$0xff]
    %v3233 = vld [vmem:[%s2 + $0x180] sm:$0xff]
    %v3234 = vld [vmem:[%s2 + $0x188] sm:$0xff]
    %v3235 = vld [vmem:[%s2 + $0x190] sm:$0xff]
    %v3236 = vld [vmem:[%s2 + $0x198] sm:$0xff]
    %v3237 = vld [vmem:[%s2 + $0x1a0] sm:$0xff]
    %v3238 = vld [vmem:[%s2 + $0x1a8] sm:$0xff]
    %v3239 = vld [vmem:[%s2 + $0x1b0] sm:$0xff]
    %v3240 = vld [vmem:[%s2 + $0x1b8] sm:$0xff]
    %v3241 = vld [vmem:[%s2 + $0x1c0] sm:$0xff]
    %v3242 = vld [vmem:[%s2 + $0x1c8] sm:$0xff]
    %v3243 = vld [vmem:[%s2 + $0x1d0] sm:$0xff]
    %v3244 = vld [vmem:[%s2 + $0x1d8] sm:$0xff]
    %v3245 = vld [vmem:[%s2 + $0x1e0] sm:$0xff]
    %v3246 = vld [vmem:[%s2 + $0x1e8] sm:$0xff]
    %v3247 = vld [vmem:[%s2 + $0x1f0] sm:$0xff]
    %v3248 = vld [vmem:[%s2 + $0x1f8] sm:$0xff]
    %v3249 = vld [vmem:[%s2 + $0x200] sm:$0xff]
    %v3250 = vld [vmem:[%s2 + $0x208] sm:$0xff]
    %v3251 = vld [vmem:[%s2 + $0x210] sm:$0xff]
    %v3252 = vld [vmem:[%s2 + $0x218] sm:$0xff]
    %v3253 = vld [vmem:[%s2 + $0x220] sm:$0xff]
    %v3254 = vld [vmem:[%s2 + $0x228] sm:$0xff]
    %v3255 = vld [vmem:[%s2 + $0x230] sm:$0xff]
    %v3256 = vld [vmem:[%s2 + $0x238] sm:$0xff]
    %v3257 = vld [vmem:[%s2 + $0x240] sm:$0xff]
    %v3258 = vld [vmem:[%s2 + $0x248] sm:$0xff]
    %v3259 = vld [vmem:[%s2 + $0x250] sm:$0xff]
    %v3260 = vld [vmem:[%s2 + $0x258] sm:$0xff]
    %v3261 = vld [vmem:[%s2 + $0x260] sm:$0xff]
    %v3262 = vld [vmem:[%s2 + $0x268] sm:$0xff]
    %v3263 = vld [vmem:[%s2 + $0x270] sm:$0xff]
    %v3264 = vld [vmem:[%s2 + $0x278] sm:$0xff]
    %v3265 = vld [vmem:[%s2 + $0x280] sm:$0xff]
    %v3266 = vld [vmem:[%s2 + $0x288] sm:$0xff]
    %v3267 = vld [vmem:[%s2 + $0x290] sm:$0xff]
    %v3268 = vld [vmem:[%s2 + $0x298] sm:$0xff]
    %v3269 = vld [vmem:[%s2 + $0x2a0] sm:$0xff]
    %v3270 = vld [vmem:[%s2 + $0x2a8] sm:$0xff]
    %v3271 = vld [vmem:[%s2 + $0x2b0] sm:$0xff]
    %v3272 = vld [vmem:[%s2 + $0x2b8] sm:$0xff]
    %v3273 = vld [vmem:[%s2 + $0x2c0] sm:$0xff]
    %v3274 = vld [vmem:[%s2 + $0x2c8] sm:$0xff]
    %v3275 = vld [vmem:[%s2 + $0x2d0] sm:$0xff]
    %v3276 = vld [vmem:[%s2 + $0x2d8] sm:$0xff]
    %v3277 = vld [vmem:[%s2 + $0x2e0] sm:$0xff]
    %v3278 = vld [vmem:[%s2 + $0x2e8] sm:$0xff]
    %v3279 = vld [vmem:[%s2 + $0x2f0] sm:$0xff]
    %v3280 = vld [vmem:[%s2 + $0x2f8] sm:$0xff]
    %v3281 = vld [vmem:[%s2 + $0x300] sm:$0xff]
    %v3282 = vld [vmem:[%s2 + $0x308] sm:$0xff]
    %v3283 = vld [vmem:[%s2 + $0x310] sm:$0xff]
    %v3284 = vld [vmem:[%s2 + $0x318] sm:$0xff]
    %v3285 = vld [vmem:[%s2 + $0x320] sm:$0xff]
    %v3286 = vld [vmem:[%s2 + $0x328] sm:$0xff]
    %v3287 = vld [vmem:[%s2 + $0x330] sm:$0xff]
    %v3288 = vld [vmem:[%s2 + $0x338] sm:$0xff]
    %v3289 = vld [vmem:[%s2 + $0x340] sm:$0xff]
    %v3290 = vld [vmem:[%s2 + $0x348] sm:$0xff]
    %v3291 = vld [vmem:[%s2 + $0x350] sm:$0xff]
    %v3292 = vld [vmem:[%s2 + $0x358] sm:$0xff]
    %v3293 = vld [vmem:[%s2 + $0x360] sm:$0xff]
    %v3294 = vld [vmem:[%s2 + $0x368] sm:$0xff]
    %v3295 = vld [vmem:[%s2 + $0x370] sm:$0xff]
    %v3296 = vld [vmem:[%s2 + $0x378] sm:$0xff]
    %v3297 = vld [vmem:[%s2 + $0x380] sm:$0xff]
    %v3298 = vld [vmem:[%s2 + $0x388] sm:$0xff]
    %v3299 = vld [vmem:[%s2 + $0x390] sm:$0xff]
    %v3300 = vld [vmem:[%s2 + $0x398] sm:$0xff]
    %v3301 = vld [vmem:[%s2 + $0x3a0] sm:$0xff]
    %v3302 = vld [vmem:[%s2 + $0x3a8] sm:$0xff]
    %v3303 = vld [vmem:[%s2 + $0x3b0] sm:$0xff]
    %v3304 = vld [vmem:[%s2 + $0x3b8] sm:$0xff]
    %v3305 = vld [vmem:[%s2 + $0x3c0] sm:$0xff]
    %v3306 = vld [vmem:[%s2 + $0x3c8] sm:$0xff]
    %v3307 = vld [vmem:[%s2 + $0x3d0] sm:$0xff]
    %v3308 = vld [vmem:[%s2 + $0x3d8] sm:$0xff]
    %v3309 = vld [vmem:[%s2 + $0x3e0] sm:$0xff]
    %v3310 = vld [vmem:[%s2 + $0x3e8] sm:$0xff]
    %v3311 = vld [vmem:[%s2 + $0x3f0] sm:$0xff]
    %v3312 = vld [vmem:[%s2 + $0x3f8] sm:$0xff]
    %3314 = vset.pattern.permute.xlu0 0
    %3315 = vperm.xlu0 %3314, %v3185
    %v3316 = vpop.permute.xlu0 %3315
    %3319 = vset.pattern.permute.xlu0 0
    %3320 = vperm.xlu0 %3319, %v3186
    %v3321 = vpop.permute.xlu0 %3320
    %3324 = vset.pattern.permute.xlu0 0
    %3325 = vperm.xlu0 %3324, %v3187
    %v3326 = vpop.permute.xlu0 %3325
    %3329 = vset.pattern.permute.xlu0 0
    %3330 = vperm.xlu0 %3329, %v3188
    %v3331 = vpop.permute.xlu0 %3330
    %3334 = vset.pattern.permute.xlu0 0
    %3335 = vperm.xlu0 %3334, %v3189
    %v3336 = vpop.permute.xlu0 %3335
    %3339 = vset.pattern.permute.xlu0 0
    %3340 = vperm.xlu0 %3339, %v3190
    %v3341 = vpop.permute.xlu0 %3340
    %3344 = vset.pattern.permute.xlu0 0
    %3345 = vperm.xlu0 %3344, %v3191
    %v3346 = vpop.permute.xlu0 %3345
    %3349 = vset.pattern.permute.xlu0 0
    %3350 = vperm.xlu0 %3349, %v3192
    %v3351 = vpop.permute.xlu0 %3350
    %3354 = vset.pattern.permute.xlu0 0
    %3355 = vperm.xlu0 %3354, %v3193
    %v3356 = vpop.permute.xlu0 %3355
    %3359 = vset.pattern.permute.xlu0 0
    %3360 = vperm.xlu0 %3359, %v3194
    %v3361 = vpop.permute.xlu0 %3360
    %3364 = vset.pattern.permute.xlu0 0
    %3365 = vperm.xlu0 %3364, %v3195
    %v3366 = vpop.permute.xlu0 %3365
    %3369 = vset.pattern.permute.xlu0 0
    %3370 = vperm.xlu0 %3369, %v3196
    %v3371 = vpop.permute.xlu0 %3370
    %3374 = vset.pattern.permute.xlu0 0
    %3375 = vperm.xlu0 %3374, %v3197
    %v3376 = vpop.permute.xlu0 %3375
    %3379 = vset.pattern.permute.xlu0 0
    %3380 = vperm.xlu0 %3379, %v3198
    %v3381 = vpop.permute.xlu0 %3380
    %3384 = vset.pattern.permute.xlu0 0
    %3385 = vperm.xlu0 %3384, %v3199
    %v3386 = vpop.permute.xlu0 %3385
    %3389 = vset.pattern.permute.xlu0 0
    %3390 = vperm.xlu0 %3389, %v3200
    %v3391 = vpop.permute.xlu0 %3390
    %3394 = vset.pattern.permute.xlu0 0
    %3395 = vperm.xlu0 %3394, %v3201
    %v3396 = vpop.permute.xlu0 %3395
    %3399 = vset.pattern.permute.xlu0 0
    %3400 = vperm.xlu0 %3399, %v3202
    %v3401 = vpop.permute.xlu0 %3400
    %3404 = vset.pattern.permute.xlu0 0
    %3405 = vperm.xlu0 %3404, %v3203
    %v3406 = vpop.permute.xlu0 %3405
    %3409 = vset.pattern.permute.xlu0 0
    %3410 = vperm.xlu0 %3409, %v3204
    %v3411 = vpop.permute.xlu0 %3410
    %3414 = vset.pattern.permute.xlu0 0
    %3415 = vperm.xlu0 %3414, %v3205
    %v3416 = vpop.permute.xlu0 %3415
    %3419 = vset.pattern.permute.xlu0 0
    %3420 = vperm.xlu0 %3419, %v3206
    %v3421 = vpop.permute.xlu0 %3420
    %3424 = vset.pattern.permute.xlu0 0
    %3425 = vperm.xlu0 %3424, %v3207
    %v3426 = vpop.permute.xlu0 %3425
    %3429 = vset.pattern.permute.xlu0 0
    %3430 = vperm.xlu0 %3429, %v3208
    %v3431 = vpop.permute.xlu0 %3430
    %3434 = vset.pattern.permute.xlu0 0
    %3435 = vperm.xlu0 %3434, %v3209
    %v3436 = vpop.permute.xlu0 %3435
    %3439 = vset.pattern.permute.xlu0 0
    %3440 = vperm.xlu0 %3439, %v3210
    %v3441 = vpop.permute.xlu0 %3440
    %3444 = vset.pattern.permute.xlu0 0
    %3445 = vperm.xlu0 %3444, %v3211
    %v3446 = vpop.permute.xlu0 %3445
    %3449 = vset.pattern.permute.xlu0 0
    %3450 = vperm.xlu0 %3449, %v3212
    %v3451 = vpop.permute.xlu0 %3450
    %3454 = vset.pattern.permute.xlu0 0
    %3455 = vperm.xlu0 %3454, %v3213
    %v3456 = vpop.permute.xlu0 %3455
    %3459 = vset.pattern.permute.xlu0 0
    %3460 = vperm.xlu0 %3459, %v3214
    %v3461 = vpop.permute.xlu0 %3460
    %3464 = vset.pattern.permute.xlu0 0
    %3465 = vperm.xlu0 %3464, %v3215
    %v3466 = vpop.permute.xlu0 %3465
    %3469 = vset.pattern.permute.xlu0 0
    %3470 = vperm.xlu0 %3469, %v3216
    %v3471 = vpop.permute.xlu0 %3470
    %3474 = vset.pattern.permute.xlu0 0
    %3475 = vperm.xlu0 %3474, %v3217
    %v3476 = vpop.permute.xlu0 %3475
    %3479 = vset.pattern.permute.xlu0 0
    %3480 = vperm.xlu0 %3479, %v3218
    %v3481 = vpop.permute.xlu0 %3480
    %3484 = vset.pattern.permute.xlu0 0
    %3485 = vperm.xlu0 %3484, %v3219
    %v3486 = vpop.permute.xlu0 %3485
    %3489 = vset.pattern.permute.xlu0 0
    %3490 = vperm.xlu0 %3489, %v3220
    %v3491 = vpop.permute.xlu0 %3490
    %3494 = vset.pattern.permute.xlu0 0
    %3495 = vperm.xlu0 %3494, %v3221
    %v3496 = vpop.permute.xlu0 %3495
    %3499 = vset.pattern.permute.xlu0 0
    %3500 = vperm.xlu0 %3499, %v3222
    %v3501 = vpop.permute.xlu0 %3500
    %3504 = vset.pattern.permute.xlu0 0
    %3505 = vperm.xlu0 %3504, %v3223
    %v3506 = vpop.permute.xlu0 %3505
    %3509 = vset.pattern.permute.xlu0 0
    %3510 = vperm.xlu0 %3509, %v3224
    %v3511 = vpop.permute.xlu0 %3510
    %3514 = vset.pattern.permute.xlu0 0
    %3515 = vperm.xlu0 %3514, %v3225
    %v3516 = vpop.permute.xlu0 %3515
    %3519 = vset.pattern.permute.xlu0 0
    %3520 = vperm.xlu0 %3519, %v3226
    %v3521 = vpop.permute.xlu0 %3520
    %3524 = vset.pattern.permute.xlu0 0
    %3525 = vperm.xlu0 %3524, %v3227
    %v3526 = vpop.permute.xlu0 %3525
    %3529 = vset.pattern.permute.xlu0 0
    %3530 = vperm.xlu0 %3529, %v3228
    %v3531 = vpop.permute.xlu0 %3530
    %3534 = vset.pattern.permute.xlu0 0
    %3535 = vperm.xlu0 %3534, %v3229
    %v3536 = vpop.permute.xlu0 %3535
    %3539 = vset.pattern.permute.xlu0 0
    %3540 = vperm.xlu0 %3539, %v3230
    %v3541 = vpop.permute.xlu0 %3540
    %3544 = vset.pattern.permute.xlu0 0
    %3545 = vperm.xlu0 %3544, %v3231
    %v3546 = vpop.permute.xlu0 %3545
    %3549 = vset.pattern.permute.xlu0 0
    %3550 = vperm.xlu0 %3549, %v3232
    %v3551 = vpop.permute.xlu0 %3550
    %3554 = vset.pattern.permute.xlu0 0
    %3555 = vperm.xlu0 %3554, %v3233
    %v3556 = vpop.permute.xlu0 %3555
    %3559 = vset.pattern.permute.xlu0 0
    %3560 = vperm.xlu0 %3559, %v3234
    %v3561 = vpop.permute.xlu0 %3560
    %3564 = vset.pattern.permute.xlu0 0
    %3565 = vperm.xlu0 %3564, %v3235
    %v3566 = vpop.permute.xlu0 %3565
    %3569 = vset.pattern.permute.xlu0 0
    %3570 = vperm.xlu0 %3569, %v3236
    %v3571 = vpop.permute.xlu0 %3570
    %3574 = vset.pattern.permute.xlu0 0
    %3575 = vperm.xlu0 %3574, %v3237
    %v3576 = vpop.permute.xlu0 %3575
    %3579 = vset.pattern.permute.xlu0 0
    %3580 = vperm.xlu0 %3579, %v3238
    %v3581 = vpop.permute.xlu0 %3580
    %3584 = vset.pattern.permute.xlu0 0
    %3585 = vperm.xlu0 %3584, %v3239
    %v3586 = vpop.permute.xlu0 %3585
    %3589 = vset.pattern.permute.xlu0 0
    %3590 = vperm.xlu0 %3589, %v3240
    %v3591 = vpop.permute.xlu0 %3590
    %3594 = vset.pattern.permute.xlu0 0
    %3595 = vperm.xlu0 %3594, %v3241
    %v3596 = vpop.permute.xlu0 %3595
    %3599 = vset.pattern.permute.xlu0 0
    %3600 = vperm.xlu0 %3599, %v3242
    %v3601 = vpop.permute.xlu0 %3600
    %3604 = vset.pattern.permute.xlu0 0
    %3605 = vperm.xlu0 %3604, %v3243
    %v3606 = vpop.permute.xlu0 %3605
    %3609 = vset.pattern.permute.xlu0 0
    %3610 = vperm.xlu0 %3609, %v3244
    %v3611 = vpop.permute.xlu0 %3610
    %3614 = vset.pattern.permute.xlu0 0
    %3615 = vperm.xlu0 %3614, %v3245
    %v3616 = vpop.permute.xlu0 %3615
    %3619 = vset.pattern.permute.xlu0 0
    %3620 = vperm.xlu0 %3619, %v3246
    %v3621 = vpop.permute.xlu0 %3620
    %3624 = vset.pattern.permute.xlu0 0
    %3625 = vperm.xlu0 %3624, %v3247
    %v3626 = vpop.permute.xlu0 %3625
    %3629 = vset.pattern.permute.xlu0 0
    %3630 = vperm.xlu0 %3629, %v3248
    %v3631 = vpop.permute.xlu0 %3630
    %3634 = vset.pattern.permute.xlu0 0
    %3635 = vperm.xlu0 %3634, %v3249
    %v3636 = vpop.permute.xlu0 %3635
    %3639 = vset.pattern.permute.xlu0 0
    %3640 = vperm.xlu0 %3639, %v3250
    %v3641 = vpop.permute.xlu0 %3640
    %3644 = vset.pattern.permute.xlu0 0
    %3645 = vperm.xlu0 %3644, %v3251
    %v3646 = vpop.permute.xlu0 %3645
    %3649 = vset.pattern.permute.xlu0 0
    %3650 = vperm.xlu0 %3649, %v3252
    %v3651 = vpop.permute.xlu0 %3650
    %3654 = vset.pattern.permute.xlu0 0
    %3655 = vperm.xlu0 %3654, %v3253
    %v3656 = vpop.permute.xlu0 %3655
    %3659 = vset.pattern.permute.xlu0 0
    %3660 = vperm.xlu0 %3659, %v3254
    %v3661 = vpop.permute.xlu0 %3660
    %3664 = vset.pattern.permute.xlu0 0
    %3665 = vperm.xlu0 %3664, %v3255
    %v3666 = vpop.permute.xlu0 %3665
    %3669 = vset.pattern.permute.xlu0 0
    %3670 = vperm.xlu0 %3669, %v3256
    %v3671 = vpop.permute.xlu0 %3670
    %3674 = vset.pattern.permute.xlu0 0
    %3675 = vperm.xlu0 %3674, %v3257
    %v3676 = vpop.permute.xlu0 %3675
    %3679 = vset.pattern.permute.xlu0 0
    %3680 = vperm.xlu0 %3679, %v3258
    %v3681 = vpop.permute.xlu0 %3680
    %3684 = vset.pattern.permute.xlu0 0
    %3685 = vperm.xlu0 %3684, %v3259
    %v3686 = vpop.permute.xlu0 %3685
    %3689 = vset.pattern.permute.xlu0 0
    %3690 = vperm.xlu0 %3689, %v3260
    %v3691 = vpop.permute.xlu0 %3690
    %3694 = vset.pattern.permute.xlu0 0
    %3695 = vperm.xlu0 %3694, %v3261
    %v3696 = vpop.permute.xlu0 %3695
    %3699 = vset.pattern.permute.xlu0 0
    %3700 = vperm.xlu0 %3699, %v3262
    %v3701 = vpop.permute.xlu0 %3700
    %3704 = vset.pattern.permute.xlu0 0
    %3705 = vperm.xlu0 %3704, %v3263
    %v3706 = vpop.permute.xlu0 %3705
    %3709 = vset.pattern.permute.xlu0 0
    %3710 = vperm.xlu0 %3709, %v3264
    %v3711 = vpop.permute.xlu0 %3710
    %3714 = vset.pattern.permute.xlu0 0
    %3715 = vperm.xlu0 %3714, %v3265
    %v3716 = vpop.permute.xlu0 %3715
    %3719 = vset.pattern.permute.xlu0 0
    %3720 = vperm.xlu0 %3719, %v3266
    %v3721 = vpop.permute.xlu0 %3720
    %3724 = vset.pattern.permute.xlu0 0
    %3725 = vperm.xlu0 %3724, %v3267
    %v3726 = vpop.permute.xlu0 %3725
    %3729 = vset.pattern.permute.xlu0 0
    %3730 = vperm.xlu0 %3729, %v3268
    %v3731 = vpop.permute.xlu0 %3730
    %3734 = vset.pattern.permute.xlu0 0
    %3735 = vperm.xlu0 %3734, %v3269
    %v3736 = vpop.permute.xlu0 %3735
    %3739 = vset.pattern.permute.xlu0 0
    %3740 = vperm.xlu0 %3739, %v3270
    %v3741 = vpop.permute.xlu0 %3740
    %3744 = vset.pattern.permute.xlu0 0
    %3745 = vperm.xlu0 %3744, %v3271
    %v3746 = vpop.permute.xlu0 %3745
    %3749 = vset.pattern.permute.xlu0 0
    %3750 = vperm.xlu0 %3749, %v3272
    %v3751 = vpop.permute.xlu0 %3750
    %3754 = vset.pattern.permute.xlu0 0
    %3755 = vperm.xlu0 %3754, %v3273
    %v3756 = vpop.permute.xlu0 %3755
    %3759 = vset.pattern.permute.xlu0 0
    %3760 = vperm.xlu0 %3759, %v3274
    %v3761 = vpop.permute.xlu0 %3760
    %3764 = vset.pattern.permute.xlu0 0
    %3765 = vperm.xlu0 %3764, %v3275
    %v3766 = vpop.permute.xlu0 %3765
    %3769 = vset.pattern.permute.xlu0 0
    %3770 = vperm.xlu0 %3769, %v3276
    %v3771 = vpop.permute.xlu0 %3770
    %3774 = vset.pattern.permute.xlu0 0
    %3775 = vperm.xlu0 %3774, %v3277
    %v3776 = vpop.permute.xlu0 %3775
    %3779 = vset.pattern.permute.xlu0 0
    %3780 = vperm.xlu0 %3779, %v3278
    %v3781 = vpop.permute.xlu0 %3780
    %3784 = vset.pattern.permute.xlu0 0
    %3785 = vperm.xlu0 %3784, %v3279
    %v3786 = vpop.permute.xlu0 %3785
    %3789 = vset.pattern.permute.xlu0 0
    %3790 = vperm.xlu0 %3789, %v3280
    %v3791 = vpop.permute.xlu0 %3790
    %3794 = vset.pattern.permute.xlu0 0
    %3795 = vperm.xlu0 %3794, %v3281
    %v3796 = vpop.permute.xlu0 %3795
    %3799 = vset.pattern.permute.xlu0 0
    %3800 = vperm.xlu0 %3799, %v3282
    %v3801 = vpop.permute.xlu0 %3800
    %3804 = vset.pattern.permute.xlu0 0
    %3805 = vperm.xlu0 %3804, %v3283
    %v3806 = vpop.permute.xlu0 %3805
    %3809 = vset.pattern.permute.xlu0 0
    %3810 = vperm.xlu0 %3809, %v3284
    %v3811 = vpop.permute.xlu0 %3810
    %3814 = vset.pattern.permute.xlu0 0
    %3815 = vperm.xlu0 %3814, %v3285
    %v3816 = vpop.permute.xlu0 %3815
    %3819 = vset.pattern.permute.xlu0 0
    %3820 = vperm.xlu0 %3819, %v3286
    %v3821 = vpop.permute.xlu0 %3820
    %3824 = vset.pattern.permute.xlu0 0
    %3825 = vperm.xlu0 %3824, %v3287
    %v3826 = vpop.permute.xlu0 %3825
    %3829 = vset.pattern.permute.xlu0 0
    %3830 = vperm.xlu0 %3829, %v3288
    %v3831 = vpop.permute.xlu0 %3830
    %3834 = vset.pattern.permute.xlu0 0
    %3835 = vperm.xlu0 %3834, %v3289
    %v3836 = vpop.permute.xlu0 %3835
    %3839 = vset.pattern.permute.xlu0 0
    %3840 = vperm.xlu0 %3839, %v3290
    %v3841 = vpop.permute.xlu0 %3840
    %3844 = vset.pattern.permute.xlu0 0
    %3845 = vperm.xlu0 %3844, %v3291
    %v3846 = vpop.permute.xlu0 %3845
    %3849 = vset.pattern.permute.xlu0 0
    %3850 = vperm.xlu0 %3849, %v3292
    %v3851 = vpop.permute.xlu0 %3850
    %3854 = vset.pattern.permute.xlu0 0
    %3855 = vperm.xlu0 %3854, %v3293
    %v3856 = vpop.permute.xlu0 %3855
    %3859 = vset.pattern.permute.xlu0 0
    %3860 = vperm.xlu0 %3859, %v3294
    %v3861 = vpop.permute.xlu0 %3860
    %3864 = vset.pattern.permute.xlu0 0
    %3865 = vperm.xlu0 %3864, %v3295
    %v3866 = vpop.permute.xlu0 %3865
    %3869 = vset.pattern.permute.xlu0 0
    %3870 = vperm.xlu0 %3869, %v3296
    %v3871 = vpop.permute.xlu0 %3870
    %3874 = vset.pattern.permute.xlu0 0
    %3875 = vperm.xlu0 %3874, %v3297
    %v3876 = vpop.permute.xlu0 %3875
    %3879 = vset.pattern.permute.xlu0 0
    %3880 = vperm.xlu0 %3879, %v3298
    %v3881 = vpop.permute.xlu0 %3880
    %3884 = vset.pattern.permute.xlu0 0
    %3885 = vperm.xlu0 %3884, %v3299
    %v3886 = vpop.permute.xlu0 %3885
    %3889 = vset.pattern.permute.xlu0 0
    %3890 = vperm.xlu0 %3889, %v3300
    %v3891 = vpop.permute.xlu0 %3890
    %3894 = vset.pattern.permute.xlu0 0
    %3895 = vperm.xlu0 %3894, %v3301
    %v3896 = vpop.permute.xlu0 %3895
    %3899 = vset.pattern.permute.xlu0 0
    %3900 = vperm.xlu0 %3899, %v3302
    %v3901 = vpop.permute.xlu0 %3900
    %3904 = vset.pattern.permute.xlu0 0
    %3905 = vperm.xlu0 %3904, %v3303
    %v3906 = vpop.permute.xlu0 %3905
    %3909 = vset.pattern.permute.xlu0 0
    %3910 = vperm.xlu0 %3909, %v3304
    %v3911 = vpop.permute.xlu0 %3910
    %3914 = vset.pattern.permute.xlu0 0
    %3915 = vperm.xlu0 %3914, %v3305
    %v3916 = vpop.permute.xlu0 %3915
    %3919 = vset.pattern.permute.xlu0 0
    %3920 = vperm.xlu0 %3919, %v3306
    %v3921 = vpop.permute.xlu0 %3920
    %3924 = vset.pattern.permute.xlu0 0
    %3925 = vperm.xlu0 %3924, %v3307
    %v3926 = vpop.permute.xlu0 %3925
    %3929 = vset.pattern.permute.xlu0 0
    %3930 = vperm.xlu0 %3929, %v3308
    %v3931 = vpop.permute.xlu0 %3930
    %3934 = vset.pattern.permute.xlu0 0
    %3935 = vperm.xlu0 %3934, %v3309
    %v3936 = vpop.permute.xlu0 %3935
    %3939 = vset.pattern.permute.xlu0 0
    %3940 = vperm.xlu0 %3939, %v3310
    %v3941 = vpop.permute.xlu0 %3940
    %3944 = vset.pattern.permute.xlu0 0
    %3945 = vperm.xlu0 %3944, %v3311
    %v3946 = vpop.permute.xlu0 %3945
    %3949 = vset.pattern.permute.xlu0 0
    %3950 = vperm.xlu0 %3949, %v3312
    %v3951 = vpop.permute.xlu0 %3950
    %v3953 = vadd.f32 %v2547, %v3316
    %v3954 = vadd.f32 %v2552, %v3321
    %v3955 = vadd.f32 %v2557, %v3326
    %v3956 = vadd.f32 %v2562, %v3331
    %v3957 = vadd.f32 %v2567, %v3336
    %v3958 = vadd.f32 %v2572, %v3341
    %v3959 = vadd.f32 %v2577, %v3346
    %v3960 = vadd.f32 %v2582, %v3351
    %v3961 = vadd.f32 %v2587, %v3356
    %v3962 = vadd.f32 %v2592, %v3361
    %v3963 = vadd.f32 %v2597, %v3366
    %v3964 = vadd.f32 %v2602, %v3371
    %v3965 = vadd.f32 %v2607, %v3376
    %v3966 = vadd.f32 %v2612, %v3381
    %v3967 = vadd.f32 %v2617, %v3386
    %v3968 = vadd.f32 %v2622, %v3391
    %v3969 = vadd.f32 %v2627, %v3396
    %v3970 = vadd.f32 %v2632, %v3401
    %v3971 = vadd.f32 %v2637, %v3406
    %v3972 = vadd.f32 %v2642, %v3411
    %v3973 = vadd.f32 %v2647, %v3416
    %v3974 = vadd.f32 %v2652, %v3421
    %v3975 = vadd.f32 %v2657, %v3426
    %v3976 = vadd.f32 %v2662, %v3431
    %v3977 = vadd.f32 %v2667, %v3436
    %v3978 = vadd.f32 %v2672, %v3441
    %v3979 = vadd.f32 %v2677, %v3446
    %v3980 = vadd.f32 %v2682, %v3451
    %v3981 = vadd.f32 %v2687, %v3456
    %v3982 = vadd.f32 %v2692, %v3461
    %v3983 = vadd.f32 %v2697, %v3466
    %v3984 = vadd.f32 %v2702, %v3471
    %v3985 = vadd.f32 %v2707, %v3476
    %v3986 = vadd.f32 %v2712, %v3481
    %v3987 = vadd.f32 %v2717, %v3486
    %v3988 = vadd.f32 %v2722, %v3491
    %v3989 = vadd.f32 %v2727, %v3496
    %v3990 = vadd.f32 %v2732, %v3501
    %v3991 = vadd.f32 %v2737, %v3506
    %v3992 = vadd.f32 %v2742, %v3511
    %v3993 = vadd.f32 %v2747, %v3516
    %v3994 = vadd.f32 %v2752, %v3521
    %v3995 = vadd.f32 %v2757, %v3526
    %v3996 = vadd.f32 %v2762, %v3531
    %v3997 = vadd.f32 %v2767, %v3536
    %v3998 = vadd.f32 %v2772, %v3541
    %v3999 = vadd.f32 %v2777, %v3546
    %v4000 = vadd.f32 %v2782, %v3551
    %v4001 = vadd.f32 %v2787, %v3556
    %v4002 = vadd.f32 %v2792, %v3561
    %v4003 = vadd.f32 %v2797, %v3566
    %v4004 = vadd.f32 %v2802, %v3571
    %v4005 = vadd.f32 %v2807, %v3576
    %v4006 = vadd.f32 %v2812, %v3581
    %v4007 = vadd.f32 %v2817, %v3586
    %v4008 = vadd.f32 %v2822, %v3591
    %v4009 = vadd.f32 %v2827, %v3596
    %v4010 = vadd.f32 %v2832, %v3601
    %v4011 = vadd.f32 %v2837, %v3606
    %v4012 = vadd.f32 %v2842, %v3611
    %v4013 = vadd.f32 %v2847, %v3616
    %v4014 = vadd.f32 %v2852, %v3621
    %v4015 = vadd.f32 %v2857, %v3626
    %v4016 = vadd.f32 %v2862, %v3631
    %v4017 = vadd.f32 %v2867, %v3636
    %v4018 = vadd.f32 %v2872, %v3641
    %v4019 = vadd.f32 %v2877, %v3646
    %v4020 = vadd.f32 %v2882, %v3651
    %v4021 = vadd.f32 %v2887, %v3656
    %v4022 = vadd.f32 %v2892, %v3661
    %v4023 = vadd.f32 %v2897, %v3666
    %v4024 = vadd.f32 %v2902, %v3671
    %v4025 = vadd.f32 %v2907, %v3676
    %v4026 = vadd.f32 %v2912, %v3681
    %v4027 = vadd.f32 %v2917, %v3686
    %v4028 = vadd.f32 %v2922, %v3691
    %v4029 = vadd.f32 %v2927, %v3696
    %v4030 = vadd.f32 %v2932, %v3701
    %v4031 = vadd.f32 %v2937, %v3706
    %v4032 = vadd.f32 %v2942, %v3711
    %v4033 = vadd.f32 %v2947, %v3716
    %v4034 = vadd.f32 %v2952, %v3721
    %v4035 = vadd.f32 %v2957, %v3726
    %v4036 = vadd.f32 %v2962, %v3731
    %v4037 = vadd.f32 %v2967, %v3736
    %v4038 = vadd.f32 %v2972, %v3741
    %v4039 = vadd.f32 %v2977, %v3746
    %v4040 = vadd.f32 %v2982, %v3751
    %v4041 = vadd.f32 %v2987, %v3756
    %v4042 = vadd.f32 %v2992, %v3761
    %v4043 = vadd.f32 %v2997, %v3766
    %v4044 = vadd.f32 %v3002, %v3771
    %v4045 = vadd.f32 %v3007, %v3776
    %v4046 = vadd.f32 %v3012, %v3781
    %v4047 = vadd.f32 %v3017, %v3786
    %v4048 = vadd.f32 %v3022, %v3791
    %v4049 = vadd.f32 %v3027, %v3796
    %v4050 = vadd.f32 %v3032, %v3801
    %v4051 = vadd.f32 %v3037, %v3806
    %v4052 = vadd.f32 %v3042, %v3811
    %v4053 = vadd.f32 %v3047, %v3816
    %v4054 = vadd.f32 %v3052, %v3821
    %v4055 = vadd.f32 %v3057, %v3826
    %v4056 = vadd.f32 %v3062, %v3831
    %v4057 = vadd.f32 %v3067, %v3836
    %v4058 = vadd.f32 %v3072, %v3841
    %v4059 = vadd.f32 %v3077, %v3846
    %v4060 = vadd.f32 %v3082, %v3851
    %v4061 = vadd.f32 %v3087, %v3856
    %v4062 = vadd.f32 %v3092, %v3861
    %v4063 = vadd.f32 %v3097, %v3866
    %v4064 = vadd.f32 %v3102, %v3871
    %v4065 = vadd.f32 %v3107, %v3876
    %v4066 = vadd.f32 %v3112, %v3881
    %v4067 = vadd.f32 %v3117, %v3886
    %v4068 = vadd.f32 %v3122, %v3891
    %v4069 = vadd.f32 %v3127, %v3896
    %v4070 = vadd.f32 %v3132, %v3901
    %v4071 = vadd.f32 %v3137, %v3906
    %v4072 = vadd.f32 %v3142, %v3911
    %v4073 = vadd.f32 %v3147, %v3916
    %v4074 = vadd.f32 %v3152, %v3921
    %v4075 = vadd.f32 %v3157, %v3926
    %v4076 = vadd.f32 %v3162, %v3931
    %v4077 = vadd.f32 %v3167, %v3936
    %v4078 = vadd.f32 %v3172, %v3941
    %v4079 = vadd.f32 %v3177, %v3946
    %v4080 = vadd.f32 %v3182, %v3951
    %v4081 = vmax.f32 %v3953, %v4017
    %v4082 = vmax.f32 %v3954, %v4018
    %v4083 = vmax.f32 %v3955, %v4019
    %v4084 = vmax.f32 %v3956, %v4020
    %v4085 = vmax.f32 %v3957, %v4021
    %v4086 = vmax.f32 %v3958, %v4022
    %v4087 = vmax.f32 %v3959, %v4023
    %v4088 = vmax.f32 %v3960, %v4024
    %v4089 = vmax.f32 %v3961, %v4025
    %v4090 = vmax.f32 %v3962, %v4026
    %v4091 = vmax.f32 %v3963, %v4027
    %v4092 = vmax.f32 %v3964, %v4028
    %v4093 = vmax.f32 %v3965, %v4029
    %v4094 = vmax.f32 %v3966, %v4030
    %v4095 = vmax.f32 %v3967, %v4031
    %v4096 = vmax.f32 %v3968, %v4032
    %v4097 = vmax.f32 %v3969, %v4033
    %v4098 = vmax.f32 %v3970, %v4034
    %v4099 = vmax.f32 %v3971, %v4035
    %v4100 = vmax.f32 %v3972, %v4036
    %v4101 = vmax.f32 %v3973, %v4037
    %v4102 = vmax.f32 %v3974, %v4038
    %v4103 = vmax.f32 %v3975, %v4039
    %v4104 = vmax.f32 %v3976, %v4040
    %v4105 = vmax.f32 %v3977, %v4041
    %v4106 = vmax.f32 %v3978, %v4042
    %v4107 = vmax.f32 %v3979, %v4043
    %v4108 = vmax.f32 %v3980, %v4044
    %v4109 = vmax.f32 %v3981, %v4045
    %v4110 = vmax.f32 %v3982, %v4046
    %v4111 = vmax.f32 %v3983, %v4047
    %v4112 = vmax.f32 %v3984, %v4048
    %v4113 = vmax.f32 %v3985, %v4049
    %v4114 = vmax.f32 %v3986, %v4050
    %v4115 = vmax.f32 %v3987, %v4051
    %v4116 = vmax.f32 %v3988, %v4052
    %v4117 = vmax.f32 %v3989, %v4053
    %v4118 = vmax.f32 %v3990, %v4054
    %v4119 = vmax.f32 %v3991, %v4055
    %v4120 = vmax.f32 %v3992, %v4056
    %v4121 = vmax.f32 %v3993, %v4057
    %v4122 = vmax.f32 %v3994, %v4058
    %v4123 = vmax.f32 %v3995, %v4059
    %v4124 = vmax.f32 %v3996, %v4060
    %v4125 = vmax.f32 %v3997, %v4061
    %v4126 = vmax.f32 %v3998, %v4062
    %v4127 = vmax.f32 %v3999, %v4063
    %v4128 = vmax.f32 %v4000, %v4064
    %v4129 = vmax.f32 %v4001, %v4065
    %v4130 = vmax.f32 %v4002, %v4066
    %v4131 = vmax.f32 %v4003, %v4067
    %v4132 = vmax.f32 %v4004, %v4068
    %v4133 = vmax.f32 %v4005, %v4069
    %v4134 = vmax.f32 %v4006, %v4070
    %v4135 = vmax.f32 %v4007, %v4071
    %v4136 = vmax.f32 %v4008, %v4072
    %v4137 = vmax.f32 %v4009, %v4073
    %v4138 = vmax.f32 %v4010, %v4074
    %v4139 = vmax.f32 %v4011, %v4075
    %v4140 = vmax.f32 %v4012, %v4076
    %v4141 = vmax.f32 %v4013, %v4077
    %v4142 = vmax.f32 %v4014, %v4078
    %v4143 = vmax.f32 %v4015, %v4079
    %v4144 = vmax.f32 %v4016, %v4080
    %v4145 = vld [vmem:[#allocation3] sm:$0xff]
    %v4146 = vld [vmem:[#allocation3 + $0x8] sm:$0xff]
    %v4147 = vld [vmem:[#allocation3 + $0x10] sm:$0xff]
    %v4148 = vld [vmem:[#allocation3 + $0x18] sm:$0xff]
    %v4149 = vld [vmem:[#allocation3 + $0x20] sm:$0xff]
    %v4150 = vld [vmem:[#allocation3 + $0x28] sm:$0xff]
    %v4151 = vld [vmem:[#allocation3 + $0x30] sm:$0xff]
    %v4152 = vld [vmem:[#allocation3 + $0x38] sm:$0xff]
    %v4153 = vld [vmem:[#allocation3 + $0x40] sm:$0xff]
    %v4154 = vld [vmem:[#allocation3 + $0x48] sm:$0xff]
    %v4155 = vld [vmem:[#allocation3 + $0x50] sm:$0xff]
    %v4156 = vld [vmem:[#allocation3 + $0x58] sm:$0xff]
    %v4157 = vld [vmem:[#allocation3 + $0x60] sm:$0xff]
    %v4158 = vld [vmem:[#allocation3 + $0x68] sm:$0xff]
    %v4159 = vld [vmem:[#allocation3 + $0x70] sm:$0xff]
    %v4160 = vld [vmem:[#allocation3 + $0x78] sm:$0xff]
    %v4161 = vld [vmem:[#allocation3 + $0x80] sm:$0xff]
    %v4162 = vld [vmem:[#allocation3 + $0x88] sm:$0xff]
    %v4163 = vld [vmem:[#allocation3 + $0x90] sm:$0xff]
    %v4164 = vld [vmem:[#allocation3 + $0x98] sm:$0xff]
    %v4165 = vld [vmem:[#allocation3 + $0xa0] sm:$0xff]
    %v4166 = vld [vmem:[#allocation3 + $0xa8] sm:$0xff]
    %v4167 = vld [vmem:[#allocation3 + $0xb0] sm:$0xff]
    %v4168 = vld [vmem:[#allocation3 + $0xb8] sm:$0xff]
    %v4169 = vld [vmem:[#allocation3 + $0xc0] sm:$0xff]
    %v4170 = vld [vmem:[#allocation3 + $0xc8] sm:$0xff]
    %v4171 = vld [vmem:[#allocation3 + $0xd0] sm:$0xff]
    %v4172 = vld [vmem:[#allocation3 + $0xd8] sm:$0xff]
    %v4173 = vld [vmem:[#allocation3 + $0xe0] sm:$0xff]
    %v4174 = vld [vmem:[#allocation3 + $0xe8] sm:$0xff]
    %v4175 = vld [vmem:[#allocation3 + $0xf0] sm:$0xff]
    %v4176 = vld [vmem:[#allocation3 + $0xf8] sm:$0xff]
    %v4177 = vld [vmem:[#allocation3 + $0x100] sm:$0xff]
    %v4178 = vld [vmem:[#allocation3 + $0x108] sm:$0xff]
    %v4179 = vld [vmem:[#allocation3 + $0x110] sm:$0xff]
    %v4180 = vld [vmem:[#allocation3 + $0x118] sm:$0xff]
    %v4181 = vld [vmem:[#allocation3 + $0x120] sm:$0xff]
    %v4182 = vld [vmem:[#allocation3 + $0x128] sm:$0xff]
    %v4183 = vld [vmem:[#allocation3 + $0x130] sm:$0xff]
    %v4184 = vld [vmem:[#allocation3 + $0x138] sm:$0xff]
    %v4185 = vld [vmem:[#allocation3 + $0x140] sm:$0xff]
    %v4186 = vld [vmem:[#allocation3 + $0x148] sm:$0xff]
    %v4187 = vld [vmem:[#allocation3 + $0x150] sm:$0xff]
    %v4188 = vld [vmem:[#allocation3 + $0x158] sm:$0xff]
    %v4189 = vld [vmem:[#allocation3 + $0x160] sm:$0xff]
    %v4190 = vld [vmem:[#allocation3 + $0x168] sm:$0xff]
    %v4191 = vld [vmem:[#allocation3 + $0x170] sm:$0xff]
    %v4192 = vld [vmem:[#allocation3 + $0x178] sm:$0xff]
    %v4193 = vld [vmem:[#allocation3 + $0x180] sm:$0xff]
    %v4194 = vld [vmem:[#allocation3 + $0x188] sm:$0xff]
    %v4195 = vld [vmem:[#allocation3 + $0x190] sm:$0xff]
    %v4196 = vld [vmem:[#allocation3 + $0x198] sm:$0xff]
    %v4197 = vld [vmem:[#allocation3 + $0x1a0] sm:$0xff]
    %v4198 = vld [vmem:[#allocation3 + $0x1a8] sm:$0xff]
    %v4199 = vld [vmem:[#allocation3 + $0x1b0] sm:$0xff]
    %v4200 = vld [vmem:[#allocation3 + $0x1b8] sm:$0xff]
    %v4201 = vld [vmem:[#allocation3 + $0x1c0] sm:$0xff]
    %v4202 = vld [vmem:[#allocation3 + $0x1c8] sm:$0xff]
    %v4203 = vld [vmem:[#allocation3 + $0x1d0] sm:$0xff]
    %v4204 = vld [vmem:[#allocation3 + $0x1d8] sm:$0xff]
    %v4205 = vld [vmem:[#allocation3 + $0x1e0] sm:$0xff]
    %v4206 = vld [vmem:[#allocation3 + $0x1e8] sm:$0xff]
    %v4207 = vld [vmem:[#allocation3 + $0x1f0] sm:$0xff]
    %v4208 = vld [vmem:[#allocation3 + $0x1f8] sm:$0xff]
    %v4209 = vmax.f32 %v4145, %v4081
    %v4210 = vmax.f32 %v4146, %v4082
    %v4211 = vmax.f32 %v4147, %v4083
    %v4212 = vmax.f32 %v4148, %v4084
    %v4213 = vmax.f32 %v4149, %v4085
    %v4214 = vmax.f32 %v4150, %v4086
    %v4215 = vmax.f32 %v4151, %v4087
    %v4216 = vmax.f32 %v4152, %v4088
    %v4217 = vmax.f32 %v4153, %v4089
    %v4218 = vmax.f32 %v4154, %v4090
    %v4219 = vmax.f32 %v4155, %v4091
    %v4220 = vmax.f32 %v4156, %v4092
    %v4221 = vmax.f32 %v4157, %v4093
    %v4222 = vmax.f32 %v4158, %v4094
    %v4223 = vmax.f32 %v4159, %v4095
    %v4224 = vmax.f32 %v4160, %v4096
    %v4225 = vmax.f32 %v4161, %v4097
    %v4226 = vmax.f32 %v4162, %v4098
    %v4227 = vmax.f32 %v4163, %v4099
    %v4228 = vmax.f32 %v4164, %v4100
    %v4229 = vmax.f32 %v4165, %v4101
    %v4230 = vmax.f32 %v4166, %v4102
    %v4231 = vmax.f32 %v4167, %v4103
    %v4232 = vmax.f32 %v4168, %v4104
    %v4233 = vmax.f32 %v4169, %v4105
    %v4234 = vmax.f32 %v4170, %v4106
    %v4235 = vmax.f32 %v4171, %v4107
    %v4236 = vmax.f32 %v4172, %v4108
    %v4237 = vmax.f32 %v4173, %v4109
    %v4238 = vmax.f32 %v4174, %v4110
    %v4239 = vmax.f32 %v4175, %v4111
    %v4240 = vmax.f32 %v4176, %v4112
    %v4241 = vmax.f32 %v4177, %v4113
    %v4242 = vmax.f32 %v4178, %v4114
    %v4243 = vmax.f32 %v4179, %v4115
    %v4244 = vmax.f32 %v4180, %v4116
    %v4245 = vmax.f32 %v4181, %v4117
    %v4246 = vmax.f32 %v4182, %v4118
    %v4247 = vmax.f32 %v4183, %v4119
    %v4248 = vmax.f32 %v4184, %v4120
    %v4249 = vmax.f32 %v4185, %v4121
    %v4250 = vmax.f32 %v4186, %v4122
    %v4251 = vmax.f32 %v4187, %v4123
    %v4252 = vmax.f32 %v4188, %v4124
    %v4253 = vmax.f32 %v4189, %v4125
    %v4254 = vmax.f32 %v4190, %v4126
    %v4255 = vmax.f32 %v4191, %v4127
    %v4256 = vmax.f32 %v4192, %v4128
    %v4257 = vmax.f32 %v4193, %v4129
    %v4258 = vmax.f32 %v4194, %v4130
    %v4259 = vmax.f32 %v4195, %v4131
    %v4260 = vmax.f32 %v4196, %v4132
    %v4261 = vmax.f32 %v4197, %v4133
    %v4262 = vmax.f32 %v4198, %v4134
    %v4263 = vmax.f32 %v4199, %v4135
    %v4264 = vmax.f32 %v4200, %v4136
    %v4265 = vmax.f32 %v4201, %v4137
    %v4266 = vmax.f32 %v4202, %v4138
    %v4267 = vmax.f32 %v4203, %v4139
    %v4268 = vmax.f32 %v4204, %v4140
    %v4269 = vmax.f32 %v4205, %v4141
    %v4270 = vmax.f32 %v4206, %v4142
    %v4271 = vmax.f32 %v4207, %v4143
    %v4272 = vmax.f32 %v4208, %v4144
    %v4273 = vsub.f32 %v3953, %v4209
    %v4274 = vsub.f32 %v3954, %v4210
    %v4275 = vsub.f32 %v3955, %v4211
    %v4276 = vsub.f32 %v3956, %v4212
    %v4277 = vsub.f32 %v3957, %v4213
    %v4278 = vsub.f32 %v3958, %v4214
    %v4279 = vsub.f32 %v3959, %v4215
    %v4280 = vsub.f32 %v3960, %v4216
    %v4281 = vsub.f32 %v3961, %v4217
    %v4282 = vsub.f32 %v3962, %v4218
    %v4283 = vsub.f32 %v3963, %v4219
    %v4284 = vsub.f32 %v3964, %v4220
    %v4285 = vsub.f32 %v3965, %v4221
    %v4286 = vsub.f32 %v3966, %v4222
    %v4287 = vsub.f32 %v3967, %v4223
    %v4288 = vsub.f32 %v3968, %v4224
    %v4289 = vsub.f32 %v3969, %v4225
    %v4290 = vsub.f32 %v3970, %v4226
    %v4291 = vsub.f32 %v3971, %v4227
    %v4292 = vsub.f32 %v3972, %v4228
    %v4293 = vsub.f32 %v3973, %v4229
    %v4294 = vsub.f32 %v3974, %v4230
    %v4295 = vsub.f32 %v3975, %v4231
    %v4296 = vsub.f32 %v3976, %v4232
    %v4297 = vsub.f32 %v3977, %v4233
    %v4298 = vsub.f32 %v3978, %v4234
    %v4299 = vsub.f32 %v3979, %v4235
    %v4300 = vsub.f32 %v3980, %v4236
    %v4301 = vsub.f32 %v3981, %v4237
    %v4302 = vsub.f32 %v3982, %v4238
    %v4303 = vsub.f32 %v3983, %v4239
    %v4304 = vsub.f32 %v3984, %v4240
    %v4305 = vsub.f32 %v3985, %v4241
    %v4306 = vsub.f32 %v3986, %v4242
    %v4307 = vsub.f32 %v3987, %v4243
    %v4308 = vsub.f32 %v3988, %v4244
    %v4309 = vsub.f32 %v3989, %v4245
    %v4310 = vsub.f32 %v3990, %v4246
    %v4311 = vsub.f32 %v3991, %v4247
    %v4312 = vsub.f32 %v3992, %v4248
    %v4313 = vsub.f32 %v3993, %v4249
    %v4314 = vsub.f32 %v3994, %v4250
    %v4315 = vsub.f32 %v3995, %v4251
    %v4316 = vsub.f32 %v3996, %v4252
    %v4317 = vsub.f32 %v3997, %v4253
    %v4318 = vsub.f32 %v3998, %v4254
    %v4319 = vsub.f32 %v3999, %v4255
    %v4320 = vsub.f32 %v4000, %v4256
    %v4321 = vsub.f32 %v4001, %v4257
    %v4322 = vsub.f32 %v4002, %v4258
    %v4323 = vsub.f32 %v4003, %v4259
    %v4324 = vsub.f32 %v4004, %v4260
    %v4325 = vsub.f32 %v4005, %v4261
    %v4326 = vsub.f32 %v4006, %v4262
    %v4327 = vsub.f32 %v4007, %v4263
    %v4328 = vsub.f32 %v4008, %v4264
    %v4329 = vsub.f32 %v4009, %v4265
    %v4330 = vsub.f32 %v4010, %v4266
    %v4331 = vsub.f32 %v4011, %v4267
    %v4332 = vsub.f32 %v4012, %v4268
    %v4333 = vsub.f32 %v4013, %v4269
    %v4334 = vsub.f32 %v4014, %v4270
    %v4335 = vsub.f32 %v4015, %v4271
    %v4336 = vsub.f32 %v4016, %v4272
    %v4337 = vmul.f32 %v4273, 1.442695
    %v4338 = vpow.pop %v4337
    %v4339 = vmul.f32 %v4274, 1.442695
    %v4340 = vpow.pop %v4339
    %v4341 = vmul.f32 %v4275, 1.442695
    %v4342 = vpow.pop %v4341
    %v4343 = vmul.f32 %v4276, 1.442695
    %v4344 = vpow.pop %v4343
    %v4345 = vmul.f32 %v4277, 1.442695
    %v4346 = vpow.pop %v4345
    %v4347 = vmul.f32 %v4278, 1.442695
    %v4348 = vpow.pop %v4347
    %v4349 = vmul.f32 %v4279, 1.442695
    %v4350 = vpow.pop %v4349
    %v4351 = vmul.f32 %v4280, 1.442695
    %v4352 = vpow.pop %v4351
    %v4353 = vmul.f32 %v4281, 1.442695
    %v4354 = vpow.pop %v4353
    %v4355 = vmul.f32 %v4282, 1.442695
    %v4356 = vpow.pop %v4355
    %v4357 = vmul.f32 %v4283, 1.442695
    %v4358 = vpow.pop %v4357
    %v4359 = vmul.f32 %v4284, 1.442695
    %v4360 = vpow.pop %v4359
    %v4361 = vmul.f32 %v4285, 1.442695
    %v4362 = vpow.pop %v4361
    %v4363 = vmul.f32 %v4286, 1.442695
    %v4364 = vpow.pop %v4363
    %v4365 = vmul.f32 %v4287, 1.442695
    %v4366 = vpow.pop %v4365
    %v4367 = vmul.f32 %v4288, 1.442695
    %v4368 = vpow.pop %v4367
    %v4369 = vmul.f32 %v4289, 1.442695
    %v4370 = vpow.pop %v4369
    %v4371 = vmul.f32 %v4290, 1.442695
    %v4372 = vpow.pop %v4371
    %v4373 = vmul.f32 %v4291, 1.442695
    %v4374 = vpow.pop %v4373
    %v4375 = vmul.f32 %v4292, 1.442695
    %v4376 = vpow.pop %v4375
    %v4377 = vmul.f32 %v4293, 1.442695
    %v4378 = vpow.pop %v4377
    %v4379 = vmul.f32 %v4294, 1.442695
    %v4380 = vpow.pop %v4379
    %v4381 = vmul.f32 %v4295, 1.442695
    %v4382 = vpow.pop %v4381
    %v4383 = vmul.f32 %v4296, 1.442695
    %v4384 = vpow.pop %v4383
    %v4385 = vmul.f32 %v4297, 1.442695
    %v4386 = vpow.pop %v4385
    %v4387 = vmul.f32 %v4298, 1.442695
    %v4388 = vpow.pop %v4387
    %v4389 = vmul.f32 %v4299, 1.442695
    %v4390 = vpow.pop %v4389
    %v4391 = vmul.f32 %v4300, 1.442695
    %v4392 = vpow.pop %v4391
    %v4393 = vmul.f32 %v4301, 1.442695
    %v4394 = vpow.pop %v4393
    %v4395 = vmul.f32 %v4302, 1.442695
    %v4396 = vpow.pop %v4395
    %v4397 = vmul.f32 %v4303, 1.442695
    %v4398 = vpow.pop %v4397
    %v4399 = vmul.f32 %v4304, 1.442695
    %v4400 = vpow.pop %v4399
    %v4401 = vmul.f32 %v4305, 1.442695
    %v4402 = vpow.pop %v4401
    %v4403 = vmul.f32 %v4306, 1.442695
    %v4404 = vpow.pop %v4403
    %v4405 = vmul.f32 %v4307, 1.442695
    %v4406 = vpow.pop %v4405
    %v4407 = vmul.f32 %v4308, 1.442695
    %v4408 = vpow.pop %v4407
    %v4409 = vmul.f32 %v4309, 1.442695
    %v4410 = vpow.pop %v4409
    %v4411 = vmul.f32 %v4310, 1.442695
    %v4412 = vpow.pop %v4411
    %v4413 = vmul.f32 %v4311, 1.442695
    %v4414 = vpow.pop %v4413
    %v4415 = vmul.f32 %v4312, 1.442695
    %v4416 = vpow.pop %v4415
    %v4417 = vmul.f32 %v4313, 1.442695
    %v4418 = vpow.pop %v4417
    %v4419 = vmul.f32 %v4314, 1.442695
    %v4420 = vpow.pop %v4419
    %v4421 = vmul.f32 %v4315, 1.442695
    %v4422 = vpow.pop %v4421
    %v4423 = vmul.f32 %v4316, 1.442695
    %v4424 = vpow.pop %v4423
    %v4425 = vmul.f32 %v4317, 1.442695
    %v4426 = vpow.pop %v4425
    %v4427 = vmul.f32 %v4318, 1.442695
    %v4428 = vpow.pop %v4427
    %v4429 = vmul.f32 %v4319, 1.442695
    %v4430 = vpow.pop %v4429
    %v4431 = vmul.f32 %v4320, 1.442695
    %v4432 = vpow.pop %v4431
    %v4433 = vmul.f32 %v4321, 1.442695
    %v4434 = vpow.pop %v4433
    %v4435 = vmul.f32 %v4322, 1.442695
    %v4436 = vpow.pop %v4435
    %v4437 = vmul.f32 %v4323, 1.442695
    %v4438 = vpow.pop %v4437
    %v4439 = vmul.f32 %v4324, 1.442695
    %v4440 = vpow.pop %v4439
    %v4441 = vmul.f32 %v4325, 1.442695
    %v4442 = vpow.pop %v4441
    %v4443 = vmul.f32 %v4326, 1.442695
    %v4444 = vpow.pop %v4443
    %v4445 = vmul.f32 %v4327, 1.442695
    %v4446 = vpow.pop %v4445
    %v4447 = vmul.f32 %v4328, 1.442695
    %v4448 = vpow.pop %v4447
    %v4449 = vmul.f32 %v4329, 1.442695
    %v4450 = vpow.pop %v4449
    %v4451 = vmul.f32 %v4330, 1.442695
    %v4452 = vpow.pop %v4451
    %v4453 = vmul.f32 %v4331, 1.442695
    %v4454 = vpow.pop %v4453
    %v4455 = vmul.f32 %v4332, 1.442695
    %v4456 = vpow.pop %v4455
    %v4457 = vmul.f32 %v4333, 1.442695
    %v4458 = vpow.pop %v4457
    %v4459 = vmul.f32 %v4334, 1.442695
    %v4460 = vpow.pop %v4459
    %v4461 = vmul.f32 %v4335, 1.442695
    %v4462 = vpow.pop %v4461
    %v4463 = vmul.f32 %v4336, 1.442695
    %v4464 = vpow.pop %v4463
    %v4465 = vmul.f32 %v4338, %v1700
    %v4466 = vmul.f32 %v4340, %v1704
    %v4467 = vmul.f32 %v4342, %v1710
    %v4468 = vmul.f32 %v4344, %v1714
    %v4469 = vmul.f32 %v4346, %v1720
    %v4470 = vmul.f32 %v4348, %v1724
    %v4471 = vmul.f32 %v4350, %v1730
    %v4472 = vmul.f32 %v4352, %v1734
    %v4473 = vmul.f32 %v4354, %v1740
    %v4474 = vmul.f32 %v4356, %v1744
    %v4475 = vmul.f32 %v4358, %v1750
    %v4476 = vmul.f32 %v4360, %v1754
    %v4477 = vmul.f32 %v4362, %v1760
    %v4478 = vmul.f32 %v4364, %v1764
    %v4479 = vmul.f32 %v4366, %v1770
    %v4480 = vmul.f32 %v4368, %v1774
    %v4481 = vmul.f32 %v4370, %v1780
    %v4482 = vmul.f32 %v4372, %v1784
    %v4483 = vmul.f32 %v4374, %v1790
    %v4484 = vmul.f32 %v4376, %v1794
    %v4485 = vmul.f32 %v4378, %v1800
    %v4486 = vmul.f32 %v4380, %v1804
    %v4487 = vmul.f32 %v4382, %v1810
    %v4488 = vmul.f32 %v4384, %v1814
    %v4489 = vmul.f32 %v4386, %v1820
    %v4490 = vmul.f32 %v4388, %v1824
    %v4491 = vmul.f32 %v4390, %v1830
    %v4492 = vmul.f32 %v4392, %v1834
    %v4493 = vmul.f32 %v4394, %v1840
    %v4494 = vmul.f32 %v4396, %v1844
    %v4495 = vmul.f32 %v4398, %v1850
    %v4496 = vmul.f32 %v4400, %v1854
    %v4497 = vmul.f32 %v4402, %v1860
    %v4498 = vmul.f32 %v4404, %v1864
    %v4499 = vmul.f32 %v4406, %v1870
    %v4500 = vmul.f32 %v4408, %v1874
    %v4501 = vmul.f32 %v4410, %v1880
    %v4502 = vmul.f32 %v4412, %v1884
    %v4503 = vmul.f32 %v4414, %v1890
    %v4504 = vmul.f32 %v4416, %v1894
    %v4505 = vmul.f32 %v4418, %v1900
    %v4506 = vmul.f32 %v4420, %v1904
    %v4507 = vmul.f32 %v4422, %v1910
    %v4508 = vmul.f32 %v4424, %v1914
    %v4509 = vmul.f32 %v4426, %v1920
    %v4510 = vmul.f32 %v4428, %v1924
    %v4511 = vmul.f32 %v4430, %v1930
    %v4512 = vmul.f32 %v4432, %v1934
    %v4513 = vmul.f32 %v4434, %v1940
    %v4514 = vmul.f32 %v4436, %v1944
    %v4515 = vmul.f32 %v4438, %v1950
    %v4516 = vmul.f32 %v4440, %v1954
    %v4517 = vmul.f32 %v4442, %v1960
    %v4518 = vmul.f32 %v4444, %v1964
    %v4519 = vmul.f32 %v4446, %v1970
    %v4520 = vmul.f32 %v4448, %v1974
    %v4521 = vmul.f32 %v4450, %v1980
    %v4522 = vmul.f32 %v4452, %v1984
    %v4523 = vmul.f32 %v4454, %v1990
    %v4524 = vmul.f32 %v4456, %v1994
    %v4525 = vmul.f32 %v4458, %v2000
    %v4526 = vmul.f32 %v4460, %v2004
    %v4527 = vmul.f32 %v4462, %v2010
    %v4528 = vmul.f32 %v4464, %v2014
    %v4529 = vsub.f32 %v4017, %v4209
    %v4530 = vsub.f32 %v4018, %v4210
    %v4531 = vsub.f32 %v4019, %v4211
    %v4532 = vsub.f32 %v4020, %v4212
    %v4533 = vsub.f32 %v4021, %v4213
    %v4534 = vsub.f32 %v4022, %v4214
    %v4535 = vsub.f32 %v4023, %v4215
    %v4536 = vsub.f32 %v4024, %v4216
    %v4537 = vsub.f32 %v4025, %v4217
    %v4538 = vsub.f32 %v4026, %v4218
    %v4539 = vsub.f32 %v4027, %v4219
    %v4540 = vsub.f32 %v4028, %v4220
    %v4541 = vsub.f32 %v4029, %v4221
    %v4542 = vsub.f32 %v4030, %v4222
    %v4543 = vsub.f32 %v4031, %v4223
    %v4544 = vsub.f32 %v4032, %v4224
    %v4545 = vsub.f32 %v4033, %v4225
    %v4546 = vsub.f32 %v4034, %v4226
    %v4547 = vsub.f32 %v4035, %v4227
    %v4548 = vsub.f32 %v4036, %v4228
    %v4549 = vsub.f32 %v4037, %v4229
    %v4550 = vsub.f32 %v4038, %v4230
    %v4551 = vsub.f32 %v4039, %v4231
    %v4552 = vsub.f32 %v4040, %v4232
    %v4553 = vsub.f32 %v4041, %v4233
    %v4554 = vsub.f32 %v4042, %v4234
    %v4555 = vsub.f32 %v4043, %v4235
    %v4556 = vsub.f32 %v4044, %v4236
    %v4557 = vsub.f32 %v4045, %v4237
    %v4558 = vsub.f32 %v4046, %v4238
    %v4559 = vsub.f32 %v4047, %v4239
    %v4560 = vsub.f32 %v4048, %v4240
    %v4561 = vsub.f32 %v4049, %v4241
    %v4562 = vsub.f32 %v4050, %v4242
    %v4563 = vsub.f32 %v4051, %v4243
    %v4564 = vsub.f32 %v4052, %v4244
    %v4565 = vsub.f32 %v4053, %v4245
    %v4566 = vsub.f32 %v4054, %v4246
    %v4567 = vsub.f32 %v4055, %v4247
    %v4568 = vsub.f32 %v4056, %v4248
    %v4569 = vsub.f32 %v4057, %v4249
    %v4570 = vsub.f32 %v4058, %v4250
    %v4571 = vsub.f32 %v4059, %v4251
    %v4572 = vsub.f32 %v4060, %v4252
    %v4573 = vsub.f32 %v4061, %v4253
    %v4574 = vsub.f32 %v4062, %v4254
    %v4575 = vsub.f32 %v4063, %v4255
    %v4576 = vsub.f32 %v4064, %v4256
    %v4577 = vsub.f32 %v4065, %v4257
    %v4578 = vsub.f32 %v4066, %v4258
    %v4579 = vsub.f32 %v4067, %v4259
    %v4580 = vsub.f32 %v4068, %v4260
    %v4581 = vsub.f32 %v4069, %v4261
    %v4582 = vsub.f32 %v4070, %v4262
    %v4583 = vsub.f32 %v4071, %v4263
    %v4584 = vsub.f32 %v4072, %v4264
    %v4585 = vsub.f32 %v4073, %v4265
    %v4586 = vsub.f32 %v4074, %v4266
    %v4587 = vsub.f32 %v4075, %v4267
    %v4588 = vsub.f32 %v4076, %v4268
    %v4589 = vsub.f32 %v4077, %v4269
    %v4590 = vsub.f32 %v4078, %v4270
    %v4591 = vsub.f32 %v4079, %v4271
    %v4592 = vsub.f32 %v4080, %v4272
    %v4593 = vmul.f32 %v4529, 1.442695
    %v4594 = vpow.pop %v4593
    %v4595 = vmul.f32 %v4530, 1.442695
    %v4596 = vpow.pop %v4595
    %v4597 = vmul.f32 %v4531, 1.442695
    %v4598 = vpow.pop %v4597
    %v4599 = vmul.f32 %v4532, 1.442695
    %v4600 = vpow.pop %v4599
    %v4601 = vmul.f32 %v4533, 1.442695
    %v4602 = vpow.pop %v4601
    %v4603 = vmul.f32 %v4534, 1.442695
    %v4604 = vpow.pop %v4603
    %v4605 = vmul.f32 %v4535, 1.442695
    %v4606 = vpow.pop %v4605
    %v4607 = vmul.f32 %v4536, 1.442695
    %v4608 = vpow.pop %v4607
    %v4609 = vmul.f32 %v4537, 1.442695
    %v4610 = vpow.pop %v4609
    %v4611 = vmul.f32 %v4538, 1.442695
    %v4612 = vpow.pop %v4611
    %v4613 = vmul.f32 %v4539, 1.442695
    %v4614 = vpow.pop %v4613
    %v4615 = vmul.f32 %v4540, 1.442695
    %v4616 = vpow.pop %v4615
    %v4617 = vmul.f32 %v4541, 1.442695
    %v4618 = vpow.pop %v4617
    %v4619 = vmul.f32 %v4542, 1.442695
    %v4620 = vpow.pop %v4619
    %v4621 = vmul.f32 %v4543, 1.442695
    %v4622 = vpow.pop %v4621
    %v4623 = vmul.f32 %v4544, 1.442695
    %v4624 = vpow.pop %v4623
    %v4625 = vmul.f32 %v4545, 1.442695
    %v4626 = vpow.pop %v4625
    %v4627 = vmul.f32 %v4546, 1.442695
    %v4628 = vpow.pop %v4627
    %v4629 = vmul.f32 %v4547, 1.442695
    %v4630 = vpow.pop %v4629
    %v4631 = vmul.f32 %v4548, 1.442695
    %v4632 = vpow.pop %v4631
    %v4633 = vmul.f32 %v4549, 1.442695
    %v4634 = vpow.pop %v4633
    %v4635 = vmul.f32 %v4550, 1.442695
    %v4636 = vpow.pop %v4635
    %v4637 = vmul.f32 %v4551, 1.442695
    %v4638 = vpow.pop %v4637
    %v4639 = vmul.f32 %v4552, 1.442695
    %v4640 = vpow.pop %v4639
    %v4641 = vmul.f32 %v4553, 1.442695
    %v4642 = vpow.pop %v4641
    %v4643 = vmul.f32 %v4554, 1.442695
    %v4644 = vpow.pop %v4643
    %v4645 = vmul.f32 %v4555, 1.442695
    %v4646 = vpow.pop %v4645
    %v4647 = vmul.f32 %v4556, 1.442695
    %v4648 = vpow.pop %v4647
    %v4649 = vmul.f32 %v4557, 1.442695
    %v4650 = vpow.pop %v4649
    %v4651 = vmul.f32 %v4558, 1.442695
    %v4652 = vpow.pop %v4651
    %v4653 = vmul.f32 %v4559, 1.442695
    %v4654 = vpow.pop %v4653
    %v4655 = vmul.f32 %v4560, 1.442695
    %v4656 = vpow.pop %v4655
    %v4657 = vmul.f32 %v4561, 1.442695
    %v4658 = vpow.pop %v4657
    %v4659 = vmul.f32 %v4562, 1.442695
    %v4660 = vpow.pop %v4659
    %v4661 = vmul.f32 %v4563, 1.442695
    %v4662 = vpow.pop %v4661
    %v4663 = vmul.f32 %v4564, 1.442695
    %v4664 = vpow.pop %v4663
    %v4665 = vmul.f32 %v4565, 1.442695
    %v4666 = vpow.pop %v4665
    %v4667 = vmul.f32 %v4566, 1.442695
    %v4668 = vpow.pop %v4667
    %v4669 = vmul.f32 %v4567, 1.442695
    %v4670 = vpow.pop %v4669
    %v4671 = vmul.f32 %v4568, 1.442695
    %v4672 = vpow.pop %v4671
    %v4673 = vmul.f32 %v4569, 1.442695
    %v4674 = vpow.pop %v4673
    %v4675 = vmul.f32 %v4570, 1.442695
    %v4676 = vpow.pop %v4675
    %v4677 = vmul.f32 %v4571, 1.442695
    %v4678 = vpow.pop %v4677
    %v4679 = vmul.f32 %v4572, 1.442695
    %v4680 = vpow.pop %v4679
    %v4681 = vmul.f32 %v4573, 1.442695
    %v4682 = vpow.pop %v4681
    %v4683 = vmul.f32 %v4574, 1.442695
    %v4684 = vpow.pop %v4683
    %v4685 = vmul.f32 %v4575, 1.442695
    %v4686 = vpow.pop %v4685
    %v4687 = vmul.f32 %v4576, 1.442695
    %v4688 = vpow.pop %v4687
    %v4689 = vmul.f32 %v4577, 1.442695
    %v4690 = vpow.pop %v4689
    %v4691 = vmul.f32 %v4578, 1.442695
    %v4692 = vpow.pop %v4691
    %v4693 = vmul.f32 %v4579, 1.442695
    %v4694 = vpow.pop %v4693
    %v4695 = vmul.f32 %v4580, 1.442695
    %v4696 = vpow.pop %v4695
    %v4697 = vmul.f32 %v4581, 1.442695
    %v4698 = vpow.pop %v4697
    %v4699 = vmul.f32 %v4582, 1.442695
    %v4700 = vpow.pop %v4699
    %v4701 = vmul.f32 %v4583, 1.442695
    %v4702 = vpow.pop %v4701
    %v4703 = vmul.f32 %v4584, 1.442695
    %v4704 = vpow.pop %v4703
    %v4705 = vmul.f32 %v4585, 1.442695
    %v4706 = vpow.pop %v4705
    %v4707 = vmul.f32 %v4586, 1.442695
    %v4708 = vpow.pop %v4707
    %v4709 = vmul.f32 %v4587, 1.442695
    %v4710 = vpow.pop %v4709
    %v4711 = vmul.f32 %v4588, 1.442695
    %v4712 = vpow.pop %v4711
    %v4713 = vmul.f32 %v4589, 1.442695
    %v4714 = vpow.pop %v4713
    %v4715 = vmul.f32 %v4590, 1.442695
    %v4716 = vpow.pop %v4715
    %v4717 = vmul.f32 %v4591, 1.442695
    %v4718 = vpow.pop %v4717
    %v4719 = vmul.f32 %v4592, 1.442695
    %v4720 = vpow.pop %v4719
    %v4721 = vadd.f32 %v4338, %v4594
    %v4722 = vadd.f32 %v4340, %v4596
    %v4723 = vadd.f32 %v4342, %v4598
    %v4724 = vadd.f32 %v4344, %v4600
    %v4725 = vadd.f32 %v4346, %v4602
    %v4726 = vadd.f32 %v4348, %v4604
    %v4727 = vadd.f32 %v4350, %v4606
    %v4728 = vadd.f32 %v4352, %v4608
    %v4729 = vadd.f32 %v4354, %v4610
    %v4730 = vadd.f32 %v4356, %v4612
    %v4731 = vadd.f32 %v4358, %v4614
    %v4732 = vadd.f32 %v4360, %v4616
    %v4733 = vadd.f32 %v4362, %v4618
    %v4734 = vadd.f32 %v4364, %v4620
    %v4735 = vadd.f32 %v4366, %v4622
    %v4736 = vadd.f32 %v4368, %v4624
    %v4737 = vadd.f32 %v4370, %v4626
    %v4738 = vadd.f32 %v4372, %v4628
    %v4739 = vadd.f32 %v4374, %v4630
    %v4740 = vadd.f32 %v4376, %v4632
    %v4741 = vadd.f32 %v4378, %v4634
    %v4742 = vadd.f32 %v4380, %v4636
    %v4743 = vadd.f32 %v4382, %v4638
    %v4744 = vadd.f32 %v4384, %v4640
    %v4745 = vadd.f32 %v4386, %v4642
    %v4746 = vadd.f32 %v4388, %v4644
    %v4747 = vadd.f32 %v4390, %v4646
    %v4748 = vadd.f32 %v4392, %v4648
    %v4749 = vadd.f32 %v4394, %v4650
    %v4750 = vadd.f32 %v4396, %v4652
    %v4751 = vadd.f32 %v4398, %v4654
    %v4752 = vadd.f32 %v4400, %v4656
    %v4753 = vadd.f32 %v4402, %v4658
    %v4754 = vadd.f32 %v4404, %v4660
    %v4755 = vadd.f32 %v4406, %v4662
    %v4756 = vadd.f32 %v4408, %v4664
    %v4757 = vadd.f32 %v4410, %v4666
    %v4758 = vadd.f32 %v4412, %v4668
    %v4759 = vadd.f32 %v4414, %v4670
    %v4760 = vadd.f32 %v4416, %v4672
    %v4761 = vadd.f32 %v4418, %v4674
    %v4762 = vadd.f32 %v4420, %v4676
    %v4763 = vadd.f32 %v4422, %v4678
    %v4764 = vadd.f32 %v4424, %v4680
    %v4765 = vadd.f32 %v4426, %v4682
    %v4766 = vadd.f32 %v4428, %v4684
    %v4767 = vadd.f32 %v4430, %v4686
    %v4768 = vadd.f32 %v4432, %v4688
    %v4769 = vadd.f32 %v4434, %v4690
    %v4770 = vadd.f32 %v4436, %v4692
    %v4771 = vadd.f32 %v4438, %v4694
    %v4772 = vadd.f32 %v4440, %v4696
    %v4773 = vadd.f32 %v4442, %v4698
    %v4774 = vadd.f32 %v4444, %v4700
    %v4775 = vadd.f32 %v4446, %v4702
    %v4776 = vadd.f32 %v4448, %v4704
    %v4777 = vadd.f32 %v4450, %v4706
    %v4778 = vadd.f32 %v4452, %v4708
    %v4779 = vadd.f32 %v4454, %v4710
    %v4780 = vadd.f32 %v4456, %v4712
    %v4781 = vadd.f32 %v4458, %v4714
    %v4782 = vadd.f32 %v4460, %v4716
    %v4783 = vadd.f32 %v4462, %v4718
    %v4784 = vadd.f32 %v4464, %v4720
    %v4785 = vmul.f32 %v4594, %v2020
    %v4786 = vmul.f32 %v4596, %v2024
    %v4787 = vmul.f32 %v4598, %v2030
    %v4788 = vmul.f32 %v4600, %v2034
    %v4789 = vmul.f32 %v4602, %v2040
    %v4790 = vmul.f32 %v4604, %v2044
    %v4791 = vmul.f32 %v4606, %v2050
    %v4792 = vmul.f32 %v4608, %v2054
    %v4793 = vmul.f32 %v4610, %v2060
    %v4794 = vmul.f32 %v4612, %v2064
    %v4795 = vmul.f32 %v4614, %v2070
    %v4796 = vmul.f32 %v4616, %v2074
    %v4797 = vmul.f32 %v4618, %v2080
    %v4798 = vmul.f32 %v4620, %v2084
    %v4799 = vmul.f32 %v4622, %v2090
    %v4800 = vmul.f32 %v4624, %v2094
    %v4801 = vmul.f32 %v4626, %v2100
    %v4802 = vmul.f32 %v4628, %v2104
    %v4803 = vmul.f32 %v4630, %v2110
    %v4804 = vmul.f32 %v4632, %v2114
    %v4805 = vmul.f32 %v4634, %v2120
    %v4806 = vmul.f32 %v4636, %v2124
    %v4807 = vmul.f32 %v4638, %v2130
    %v4808 = vmul.f32 %v4640, %v2134
    %v4809 = vmul.f32 %v4642, %v2140
    %v4810 = vmul.f32 %v4644, %v2144
    %v4811 = vmul.f32 %v4646, %v2150
    %v4812 = vmul.f32 %v4648, %v2154
    %v4813 = vmul.f32 %v4650, %v2160
    %v4814 = vmul.f32 %v4652, %v2164
    %v4815 = vmul.f32 %v4654, %v2170
    %v4816 = vmul.f32 %v4656, %v2174
    %v4817 = vmul.f32 %v4658, %v2180
    %v4818 = vmul.f32 %v4660, %v2184
    %v4819 = vmul.f32 %v4662, %v2190
    %v4820 = vmul.f32 %v4664, %v2194
    %v4821 = vmul.f32 %v4666, %v2200
    %v4822 = vmul.f32 %v4668, %v2204
    %v4823 = vmul.f32 %v4670, %v2210
    %v4824 = vmul.f32 %v4672, %v2214
    %v4825 = vmul.f32 %v4674, %v2220
    %v4826 = vmul.f32 %v4676, %v2224
    %v4827 = vmul.f32 %v4678, %v2230
    %v4828 = vmul.f32 %v4680, %v2234
    %v4829 = vmul.f32 %v4682, %v2240
    %v4830 = vmul.f32 %v4684, %v2244
    %v4831 = vmul.f32 %v4686, %v2250
    %v4832 = vmul.f32 %v4688, %v2254
    %v4833 = vmul.f32 %v4690, %v2260
    %v4834 = vmul.f32 %v4692, %v2264
    %v4835 = vmul.f32 %v4694, %v2270
    %v4836 = vmul.f32 %v4696, %v2274
    %v4837 = vmul.f32 %v4698, %v2280
    %v4838 = vmul.f32 %v4700, %v2284
    %v4839 = vmul.f32 %v4702, %v2290
    %v4840 = vmul.f32 %v4704, %v2294
    %v4841 = vmul.f32 %v4706, %v2300
    %v4842 = vmul.f32 %v4708, %v2304
    %v4843 = vmul.f32 %v4710, %v2310
    %v4844 = vmul.f32 %v4712, %v2314
    %v4845 = vmul.f32 %v4714, %v2320
    %v4846 = vmul.f32 %v4716, %v2324
    %v4847 = vmul.f32 %v4718, %v2330
    %v4848 = vmul.f32 %v4720, %v2334
    %v4849 = vadd.f32 %v4465, %v4785
    %v4850 = vadd.f32 %v4466, %v4786
    %v4851 = vadd.f32 %v4467, %v4787
    %v4852 = vadd.f32 %v4468, %v4788
    %v4853 = vadd.f32 %v4469, %v4789
    %v4854 = vadd.f32 %v4470, %v4790
    %v4855 = vadd.f32 %v4471, %v4791
    %v4856 = vadd.f32 %v4472, %v4792
    %v4857 = vadd.f32 %v4473, %v4793
    %v4858 = vadd.f32 %v4474, %v4794
    %v4859 = vadd.f32 %v4475, %v4795
    %v4860 = vadd.f32 %v4476, %v4796
    %v4861 = vadd.f32 %v4477, %v4797
    %v4862 = vadd.f32 %v4478, %v4798
    %v4863 = vadd.f32 %v4479, %v4799
    %v4864 = vadd.f32 %v4480, %v4800
    %v4865 = vadd.f32 %v4481, %v4801
    %v4866 = vadd.f32 %v4482, %v4802
    %v4867 = vadd.f32 %v4483, %v4803
    %v4868 = vadd.f32 %v4484, %v4804
    %v4869 = vadd.f32 %v4485, %v4805
    %v4870 = vadd.f32 %v4486, %v4806
    %v4871 = vadd.f32 %v4487, %v4807
    %v4872 = vadd.f32 %v4488, %v4808
    %v4873 = vadd.f32 %v4489, %v4809
    %v4874 = vadd.f32 %v4490, %v4810
    %v4875 = vadd.f32 %v4491, %v4811
    %v4876 = vadd.f32 %v4492, %v4812
    %v4877 = vadd.f32 %v4493, %v4813
    %v4878 = vadd.f32 %v4494, %v4814
    %v4879 = vadd.f32 %v4495, %v4815
    %v4880 = vadd.f32 %v4496, %v4816
    %v4881 = vadd.f32 %v4497, %v4817
    %v4882 = vadd.f32 %v4498, %v4818
    %v4883 = vadd.f32 %v4499, %v4819
    %v4884 = vadd.f32 %v4500, %v4820
    %v4885 = vadd.f32 %v4501, %v4821
    %v4886 = vadd.f32 %v4502, %v4822
    %v4887 = vadd.f32 %v4503, %v4823
    %v4888 = vadd.f32 %v4504, %v4824
    %v4889 = vadd.f32 %v4505, %v4825
    %v4890 = vadd.f32 %v4506, %v4826
    %v4891 = vadd.f32 %v4507, %v4827
    %v4892 = vadd.f32 %v4508, %v4828
    %v4893 = vadd.f32 %v4509, %v4829
    %v4894 = vadd.f32 %v4510, %v4830
    %v4895 = vadd.f32 %v4511, %v4831
    %v4896 = vadd.f32 %v4512, %v4832
    %v4897 = vadd.f32 %v4513, %v4833
    %v4898 = vadd.f32 %v4514, %v4834
    %v4899 = vadd.f32 %v4515, %v4835
    %v4900 = vadd.f32 %v4516, %v4836
    %v4901 = vadd.f32 %v4517, %v4837
    %v4902 = vadd.f32 %v4518, %v4838
    %v4903 = vadd.f32 %v4519, %v4839
    %v4904 = vadd.f32 %v4520, %v4840
    %v4905 = vadd.f32 %v4521, %v4841
    %v4906 = vadd.f32 %v4522, %v4842
    %v4907 = vadd.f32 %v4523, %v4843
    %v4908 = vadd.f32 %v4524, %v4844
    %v4909 = vadd.f32 %v4525, %v4845
    %v4910 = vadd.f32 %v4526, %v4846
    %v4911 = vadd.f32 %v4527, %v4847
    %v4912 = vadd.f32 %v4528, %v4848
    %v4913 = vsub.f32 %v4145, %v4209
    %v4914 = vsub.f32 %v4146, %v4210
    %v4915 = vsub.f32 %v4147, %v4211
    %v4916 = vsub.f32 %v4148, %v4212
    %v4917 = vsub.f32 %v4149, %v4213
    %v4918 = vsub.f32 %v4150, %v4214
    %v4919 = vsub.f32 %v4151, %v4215
    %v4920 = vsub.f32 %v4152, %v4216
    %v4921 = vsub.f32 %v4153, %v4217
    %v4922 = vsub.f32 %v4154, %v4218
    %v4923 = vsub.f32 %v4155, %v4219
    %v4924 = vsub.f32 %v4156, %v4220
    %v4925 = vsub.f32 %v4157, %v4221
    %v4926 = vsub.f32 %v4158, %v4222
    %v4927 = vsub.f32 %v4159, %v4223
    %v4928 = vsub.f32 %v4160, %v4224
    %v4929 = vsub.f32 %v4161, %v4225
    %v4930 = vsub.f32 %v4162, %v4226
    %v4931 = vsub.f32 %v4163, %v4227
    %v4932 = vsub.f32 %v4164, %v4228
    %v4933 = vsub.f32 %v4165, %v4229
    %v4934 = vsub.f32 %v4166, %v4230
    %v4935 = vsub.f32 %v4167, %v4231
    %v4936 = vsub.f32 %v4168, %v4232
    %v4937 = vsub.f32 %v4169, %v4233
    %v4938 = vsub.f32 %v4170, %v4234
    %v4939 = vsub.f32 %v4171, %v4235
    %v4940 = vsub.f32 %v4172, %v4236
    %v4941 = vsub.f32 %v4173, %v4237
    %v4942 = vsub.f32 %v4174, %v4238
    %v4943 = vsub.f32 %v4175, %v4239
    %v4944 = vsub.f32 %v4176, %v4240
    %v4945 = vsub.f32 %v4177, %v4241
    %v4946 = vsub.f32 %v4178, %v4242
    %v4947 = vsub.f32 %v4179, %v4243
    %v4948 = vsub.f32 %v4180, %v4244
    %v4949 = vsub.f32 %v4181, %v4245
    %v4950 = vsub.f32 %v4182, %v4246
    %v4951 = vsub.f32 %v4183, %v4247
    %v4952 = vsub.f32 %v4184, %v4248
    %v4953 = vsub.f32 %v4185, %v4249
    %v4954 = vsub.f32 %v4186, %v4250
    %v4955 = vsub.f32 %v4187, %v4251
    %v4956 = vsub.f32 %v4188, %v4252
    %v4957 = vsub.f32 %v4189, %v4253
    %v4958 = vsub.f32 %v4190, %v4254
    %v4959 = vsub.f32 %v4191, %v4255
    %v4960 = vsub.f32 %v4192, %v4256
    %v4961 = vsub.f32 %v4193, %v4257
    %v4962 = vsub.f32 %v4194, %v4258
    %v4963 = vsub.f32 %v4195, %v4259
    %v4964 = vsub.f32 %v4196, %v4260
    %v4965 = vsub.f32 %v4197, %v4261
    %v4966 = vsub.f32 %v4198, %v4262
    %v4967 = vsub.f32 %v4199, %v4263
    %v4968 = vsub.f32 %v4200, %v4264
    %v4969 = vsub.f32 %v4201, %v4265
    %v4970 = vsub.f32 %v4202, %v4266
    %v4971 = vsub.f32 %v4203, %v4267
    %v4972 = vsub.f32 %v4204, %v4268
    %v4973 = vsub.f32 %v4205, %v4269
    %v4974 = vsub.f32 %v4206, %v4270
    %v4975 = vsub.f32 %v4207, %v4271
    %v4976 = vsub.f32 %v4208, %v4272
    %v4977 = vmul.f32 %v4913, 1.442695
    %v4978 = vpow.pop %v4977
    %v4979 = vmul.f32 %v4914, 1.442695
    %v4980 = vpow.pop %v4979
    %v4981 = vmul.f32 %v4915, 1.442695
    %v4982 = vpow.pop %v4981
    %v4983 = vmul.f32 %v4916, 1.442695
    %v4984 = vpow.pop %v4983
    %v4985 = vmul.f32 %v4917, 1.442695
    %v4986 = vpow.pop %v4985
    %v4987 = vmul.f32 %v4918, 1.442695
    %v4988 = vpow.pop %v4987
    %v4989 = vmul.f32 %v4919, 1.442695
    %v4990 = vpow.pop %v4989
    %v4991 = vmul.f32 %v4920, 1.442695
    %v4992 = vpow.pop %v4991
    %v4993 = vmul.f32 %v4921, 1.442695
    %v4994 = vpow.pop %v4993
    %v4995 = vmul.f32 %v4922, 1.442695
    %v4996 = vpow.pop %v4995
    %v4997 = vmul.f32 %v4923, 1.442695
    %v4998 = vpow.pop %v4997
    %v4999 = vmul.f32 %v4924, 1.442695
    %v5000 = vpow.pop %v4999
    %v5001 = vmul.f32 %v4925, 1.442695
    %v5002 = vpow.pop %v5001
    %v5003 = vmul.f32 %v4926, 1.442695
    %v5004 = vpow.pop %v5003
    %v5005 = vmul.f32 %v4927, 1.442695
    %v5006 = vpow.pop %v5005
    %v5007 = vmul.f32 %v4928, 1.442695
    %v5008 = vpow.pop %v5007
    %v5009 = vmul.f32 %v4929, 1.442695
    %v5010 = vpow.pop %v5009
    %v5011 = vmul.f32 %v4930, 1.442695
    %v5012 = vpow.pop %v5011
    %v5013 = vmul.f32 %v4931, 1.442695
    %v5014 = vpow.pop %v5013
    %v5015 = vmul.f32 %v4932, 1.442695
    %v5016 = vpow.pop %v5015
    %v5017 = vmul.f32 %v4933, 1.442695
    %v5018 = vpow.pop %v5017
    %v5019 = vmul.f32 %v4934, 1.442695
    %v5020 = vpow.pop %v5019
    %v5021 = vmul.f32 %v4935, 1.442695
    %v5022 = vpow.pop %v5021
    %v5023 = vmul.f32 %v4936, 1.442695
    %v5024 = vpow.pop %v5023
    %v5025 = vmul.f32 %v4937, 1.442695
    %v5026 = vpow.pop %v5025
    %v5027 = vmul.f32 %v4938, 1.442695
    %v5028 = vpow.pop %v5027
    %v5029 = vmul.f32 %v4939, 1.442695
    %v5030 = vpow.pop %v5029
    %v5031 = vmul.f32 %v4940, 1.442695
    %v5032 = vpow.pop %v5031
    %v5033 = vmul.f32 %v4941, 1.442695
    %v5034 = vpow.pop %v5033
    %v5035 = vmul.f32 %v4942, 1.442695
    %v5036 = vpow.pop %v5035
    %v5037 = vmul.f32 %v4943, 1.442695
    %v5038 = vpow.pop %v5037
    %v5039 = vmul.f32 %v4944, 1.442695
    %v5040 = vpow.pop %v5039
    %v5041 = vmul.f32 %v4945, 1.442695
    %v5042 = vpow.pop %v5041
    %v5043 = vmul.f32 %v4946, 1.442695
    %v5044 = vpow.pop %v5043
    %v5045 = vmul.f32 %v4947, 1.442695
    %v5046 = vpow.pop %v5045
    %v5047 = vmul.f32 %v4948, 1.442695
    %v5048 = vpow.pop %v5047
    %v5049 = vmul.f32 %v4949, 1.442695
    %v5050 = vpow.pop %v5049
    %v5051 = vmul.f32 %v4950, 1.442695
    %v5052 = vpow.pop %v5051
    %v5053 = vmul.f32 %v4951, 1.442695
    %v5054 = vpow.pop %v5053
    %v5055 = vmul.f32 %v4952, 1.442695
    %v5056 = vpow.pop %v5055
    %v5057 = vmul.f32 %v4953, 1.442695
    %v5058 = vpow.pop %v5057
    %v5059 = vmul.f32 %v4954, 1.442695
    %v5060 = vpow.pop %v5059
    %v5061 = vmul.f32 %v4955, 1.442695
    %v5062 = vpow.pop %v5061
    %v5063 = vmul.f32 %v4956, 1.442695
    %v5064 = vpow.pop %v5063
    %v5065 = vmul.f32 %v4957, 1.442695
    %v5066 = vpow.pop %v5065
    %v5067 = vmul.f32 %v4958, 1.442695
    %v5068 = vpow.pop %v5067
    %v5069 = vmul.f32 %v4959, 1.442695
    %v5070 = vpow.pop %v5069
    %v5071 = vmul.f32 %v4960, 1.442695
    %v5072 = vpow.pop %v5071
    %v5073 = vmul.f32 %v4961, 1.442695
    %v5074 = vpow.pop %v5073
    %v5075 = vmul.f32 %v4962, 1.442695
    %v5076 = vpow.pop %v5075
    %v5077 = vmul.f32 %v4963, 1.442695
    %v5078 = vpow.pop %v5077
    %v5079 = vmul.f32 %v4964, 1.442695
    %v5080 = vpow.pop %v5079
    %v5081 = vmul.f32 %v4965, 1.442695
    %v5082 = vpow.pop %v5081
    %v5083 = vmul.f32 %v4966, 1.442695
    %v5084 = vpow.pop %v5083
    %v5085 = vmul.f32 %v4967, 1.442695
    %v5086 = vpow.pop %v5085
    %v5087 = vmul.f32 %v4968, 1.442695
    %v5088 = vpow.pop %v5087
    %v5089 = vmul.f32 %v4969, 1.442695
    %v5090 = vpow.pop %v5089
    %v5091 = vmul.f32 %v4970, 1.442695
    %v5092 = vpow.pop %v5091
    %v5093 = vmul.f32 %v4971, 1.442695
    %v5094 = vpow.pop %v5093
    %v5095 = vmul.f32 %v4972, 1.442695
    %v5096 = vpow.pop %v5095
    %v5097 = vmul.f32 %v4973, 1.442695
    %v5098 = vpow.pop %v5097
    %v5099 = vmul.f32 %v4974, 1.442695
    %v5100 = vpow.pop %v5099
    %v5101 = vmul.f32 %v4975, 1.442695
    %v5102 = vpow.pop %v5101
    %v5103 = vmul.f32 %v4976, 1.442695
    %v5104 = vpow.pop %v5103
    %v5105 = vld [vmem:[#allocation4] sm:$0xff]
    %v5106 = vld [vmem:[#allocation4 + $0x8] sm:$0xff]
    %v5107 = vld [vmem:[#allocation4 + $0x10] sm:$0xff]
    %v5108 = vld [vmem:[#allocation4 + $0x18] sm:$0xff]
    %v5109 = vld [vmem:[#allocation4 + $0x20] sm:$0xff]
    %v5110 = vld [vmem:[#allocation4 + $0x28] sm:$0xff]
    %v5111 = vld [vmem:[#allocation4 + $0x30] sm:$0xff]
    %v5112 = vld [vmem:[#allocation4 + $0x38] sm:$0xff]
    %v5113 = vld [vmem:[#allocation4 + $0x40] sm:$0xff]
    %v5114 = vld [vmem:[#allocation4 + $0x48] sm:$0xff]
    %v5115 = vld [vmem:[#allocation4 + $0x50] sm:$0xff]
    %v5116 = vld [vmem:[#allocation4 + $0x58] sm:$0xff]
    %v5117 = vld [vmem:[#allocation4 + $0x60] sm:$0xff]
    %v5118 = vld [vmem:[#allocation4 + $0x68] sm:$0xff]
    %v5119 = vld [vmem:[#allocation4 + $0x70] sm:$0xff]
    %v5120 = vld [vmem:[#allocation4 + $0x78] sm:$0xff]
    %v5121 = vld [vmem:[#allocation4 + $0x80] sm:$0xff]
    %v5122 = vld [vmem:[#allocation4 + $0x88] sm:$0xff]
    %v5123 = vld [vmem:[#allocation4 + $0x90] sm:$0xff]
    %v5124 = vld [vmem:[#allocation4 + $0x98] sm:$0xff]
    %v5125 = vld [vmem:[#allocation4 + $0xa0] sm:$0xff]
    %v5126 = vld [vmem:[#allocation4 + $0xa8] sm:$0xff]
    %v5127 = vld [vmem:[#allocation4 + $0xb0] sm:$0xff]
    %v5128 = vld [vmem:[#allocation4 + $0xb8] sm:$0xff]
    %v5129 = vld [vmem:[#allocation4 + $0xc0] sm:$0xff]
    %v5130 = vld [vmem:[#allocation4 + $0xc8] sm:$0xff]
    %v5131 = vld [vmem:[#allocation4 + $0xd0] sm:$0xff]
    %v5132 = vld [vmem:[#allocation4 + $0xd8] sm:$0xff]
    %v5133 = vld [vmem:[#allocation4 + $0xe0] sm:$0xff]
    %v5134 = vld [vmem:[#allocation4 + $0xe8] sm:$0xff]
    %v5135 = vld [vmem:[#allocation4 + $0xf0] sm:$0xff]
    %v5136 = vld [vmem:[#allocation4 + $0xf8] sm:$0xff]
    %v5137 = vld [vmem:[#allocation4 + $0x100] sm:$0xff]
    %v5138 = vld [vmem:[#allocation4 + $0x108] sm:$0xff]
    %v5139 = vld [vmem:[#allocation4 + $0x110] sm:$0xff]
    %v5140 = vld [vmem:[#allocation4 + $0x118] sm:$0xff]
    %v5141 = vld [vmem:[#allocation4 + $0x120] sm:$0xff]
    %v5142 = vld [vmem:[#allocation4 + $0x128] sm:$0xff]
    %v5143 = vld [vmem:[#allocation4 + $0x130] sm:$0xff]
    %v5144 = vld [vmem:[#allocation4 + $0x138] sm:$0xff]
    %v5145 = vld [vmem:[#allocation4 + $0x140] sm:$0xff]
    %v5146 = vld [vmem:[#allocation4 + $0x148] sm:$0xff]
    %v5147 = vld [vmem:[#allocation4 + $0x150] sm:$0xff]
    %v5148 = vld [vmem:[#allocation4 + $0x158] sm:$0xff]
    %v5149 = vld [vmem:[#allocation4 + $0x160] sm:$0xff]
    %v5150 = vld [vmem:[#allocation4 + $0x168] sm:$0xff]
    %v5151 = vld [vmem:[#allocation4 + $0x170] sm:$0xff]
    %v5152 = vld [vmem:[#allocation4 + $0x178] sm:$0xff]
    %v5153 = vld [vmem:[#allocation4 + $0x180] sm:$0xff]
    %v5154 = vld [vmem:[#allocation4 + $0x188] sm:$0xff]
    %v5155 = vld [vmem:[#allocation4 + $0x190] sm:$0xff]
    %v5156 = vld [vmem:[#allocation4 + $0x198] sm:$0xff]
    %v5157 = vld [vmem:[#allocation4 + $0x1a0] sm:$0xff]
    %v5158 = vld [vmem:[#allocation4 + $0x1a8] sm:$0xff]
    %v5159 = vld [vmem:[#allocation4 + $0x1b0] sm:$0xff]
    %v5160 = vld [vmem:[#allocation4 + $0x1b8] sm:$0xff]
    %v5161 = vld [vmem:[#allocation4 + $0x1c0] sm:$0xff]
    %v5162 = vld [vmem:[#allocation4 + $0x1c8] sm:$0xff]
    %v5163 = vld [vmem:[#allocation4 + $0x1d0] sm:$0xff]
    %v5164 = vld [vmem:[#allocation4 + $0x1d8] sm:$0xff]
    %v5165 = vld [vmem:[#allocation4 + $0x1e0] sm:$0xff]
    %v5166 = vld [vmem:[#allocation4 + $0x1e8] sm:$0xff]
    %v5167 = vld [vmem:[#allocation4 + $0x1f0] sm:$0xff]
    %v5168 = vld [vmem:[#allocation4 + $0x1f8] sm:$0xff]
    %v5169 = vmul.f32 %v4978, %v5105
    %v5170 = vmul.f32 %v4980, %v5106
    %v5171 = vmul.f32 %v4982, %v5107
    %v5172 = vmul.f32 %v4984, %v5108
    %v5173 = vmul.f32 %v4986, %v5109
    %v5174 = vmul.f32 %v4988, %v5110
    %v5175 = vmul.f32 %v4990, %v5111
    %v5176 = vmul.f32 %v4992, %v5112
    %v5177 = vmul.f32 %v4994, %v5113
    %v5178 = vmul.f32 %v4996, %v5114
    %v5179 = vmul.f32 %v4998, %v5115
    %v5180 = vmul.f32 %v5000, %v5116
    %v5181 = vmul.f32 %v5002, %v5117
    %v5182 = vmul.f32 %v5004, %v5118
    %v5183 = vmul.f32 %v5006, %v5119
    %v5184 = vmul.f32 %v5008, %v5120
    %v5185 = vmul.f32 %v5010, %v5121
    %v5186 = vmul.f32 %v5012, %v5122
    %v5187 = vmul.f32 %v5014, %v5123
    %v5188 = vmul.f32 %v5016, %v5124
    %v5189 = vmul.f32 %v5018, %v5125
    %v5190 = vmul.f32 %v5020, %v5126
    %v5191 = vmul.f32 %v5022, %v5127
    %v5192 = vmul.f32 %v5024, %v5128
    %v5193 = vmul.f32 %v5026, %v5129
    %v5194 = vmul.f32 %v5028, %v5130
    %v5195 = vmul.f32 %v5030, %v5131
    %v5196 = vmul.f32 %v5032, %v5132
    %v5197 = vmul.f32 %v5034, %v5133
    %v5198 = vmul.f32 %v5036, %v5134
    %v5199 = vmul.f32 %v5038, %v5135
    %v5200 = vmul.f32 %v5040, %v5136
    %v5201 = vmul.f32 %v5042, %v5137
    %v5202 = vmul.f32 %v5044, %v5138
    %v5203 = vmul.f32 %v5046, %v5139
    %v5204 = vmul.f32 %v5048, %v5140
    %v5205 = vmul.f32 %v5050, %v5141
    %v5206 = vmul.f32 %v5052, %v5142
    %v5207 = vmul.f32 %v5054, %v5143
    %v5208 = vmul.f32 %v5056, %v5144
    %v5209 = vmul.f32 %v5058, %v5145
    %v5210 = vmul.f32 %v5060, %v5146
    %v5211 = vmul.f32 %v5062, %v5147
    %v5212 = vmul.f32 %v5064, %v5148
    %v5213 = vmul.f32 %v5066, %v5149
    %v5214 = vmul.f32 %v5068, %v5150
    %v5215 = vmul.f32 %v5070, %v5151
    %v5216 = vmul.f32 %v5072, %v5152
    %v5217 = vmul.f32 %v5074, %v5153
    %v5218 = vmul.f32 %v5076, %v5154
    %v5219 = vmul.f32 %v5078, %v5155
    %v5220 = vmul.f32 %v5080, %v5156
    %v5221 = vmul.f32 %v5082, %v5157
    %v5222 = vmul.f32 %v5084, %v5158
    %v5223 = vmul.f32 %v5086, %v5159
    %v5224 = vmul.f32 %v5088, %v5160
    %v5225 = vmul.f32 %v5090, %v5161
    %v5226 = vmul.f32 %v5092, %v5162
    %v5227 = vmul.f32 %v5094, %v5163
    %v5228 = vmul.f32 %v5096, %v5164
    %v5229 = vmul.f32 %v5098, %v5165
    %v5230 = vmul.f32 %v5100, %v5166
    %v5231 = vmul.f32 %v5102, %v5167
    %v5232 = vmul.f32 %v5104, %v5168
    %v5233 = vadd.f32 %v5169, %v4721
    %v5234 = vadd.f32 %v5170, %v4722
    %v5235 = vadd.f32 %v5171, %v4723
    %v5236 = vadd.f32 %v5172, %v4724
    %v5237 = vadd.f32 %v5173, %v4725
    %v5238 = vadd.f32 %v5174, %v4726
    %v5239 = vadd.f32 %v5175, %v4727
    %v5240 = vadd.f32 %v5176, %v4728
    %v5241 = vadd.f32 %v5177, %v4729
    %v5242 = vadd.f32 %v5178, %v4730
    %v5243 = vadd.f32 %v5179, %v4731
    %v5244 = vadd.f32 %v5180, %v4732
    %v5245 = vadd.f32 %v5181, %v4733
    %v5246 = vadd.f32 %v5182, %v4734
    %v5247 = vadd.f32 %v5183, %v4735
    %v5248 = vadd.f32 %v5184, %v4736
    %v5249 = vadd.f32 %v5185, %v4737
    %v5250 = vadd.f32 %v5186, %v4738
    %v5251 = vadd.f32 %v5187, %v4739
    %v5252 = vadd.f32 %v5188, %v4740
    %v5253 = vadd.f32 %v5189, %v4741
    %v5254 = vadd.f32 %v5190, %v4742
    %v5255 = vadd.f32 %v5191, %v4743
    %v5256 = vadd.f32 %v5192, %v4744
    %v5257 = vadd.f32 %v5193, %v4745
    %v5258 = vadd.f32 %v5194, %v4746
    %v5259 = vadd.f32 %v5195, %v4747
    %v5260 = vadd.f32 %v5196, %v4748
    %v5261 = vadd.f32 %v5197, %v4749
    %v5262 = vadd.f32 %v5198, %v4750
    %v5263 = vadd.f32 %v5199, %v4751
    %v5264 = vadd.f32 %v5200, %v4752
    %v5265 = vadd.f32 %v5201, %v4753
    %v5266 = vadd.f32 %v5202, %v4754
    %v5267 = vadd.f32 %v5203, %v4755
    %v5268 = vadd.f32 %v5204, %v4756
    %v5269 = vadd.f32 %v5205, %v4757
    %v5270 = vadd.f32 %v5206, %v4758
    %v5271 = vadd.f32 %v5207, %v4759
    %v5272 = vadd.f32 %v5208, %v4760
    %v5273 = vadd.f32 %v5209, %v4761
    %v5274 = vadd.f32 %v5210, %v4762
    %v5275 = vadd.f32 %v5211, %v4763
    %v5276 = vadd.f32 %v5212, %v4764
    %v5277 = vadd.f32 %v5213, %v4765
    %v5278 = vadd.f32 %v5214, %v4766
    %v5279 = vadd.f32 %v5215, %v4767
    %v5280 = vadd.f32 %v5216, %v4768
    %v5281 = vadd.f32 %v5217, %v4769
    %v5282 = vadd.f32 %v5218, %v4770
    %v5283 = vadd.f32 %v5219, %v4771
    %v5284 = vadd.f32 %v5220, %v4772
    %v5285 = vadd.f32 %v5221, %v4773
    %v5286 = vadd.f32 %v5222, %v4774
    %v5287 = vadd.f32 %v5223, %v4775
    %v5288 = vadd.f32 %v5224, %v4776
    %v5289 = vadd.f32 %v5225, %v4777
    %v5290 = vadd.f32 %v5226, %v4778
    %v5291 = vadd.f32 %v5227, %v4779
    %v5292 = vadd.f32 %v5228, %v4780
    %v5293 = vadd.f32 %v5229, %v4781
    %v5294 = vadd.f32 %v5230, %v4782
    %v5295 = vadd.f32 %v5231, %v4783
    %v5296 = vadd.f32 %v5232, %v4784
    %5297 = vst [vmem:[#allocation4] sm:$0xff] %v5233
    %5298 = vst [vmem:[#allocation4 + $0x8] sm:$0xff] %v5234
    %5299 = vst [vmem:[#allocation4 + $0x10] sm:$0xff] %v5235
    %5300 = vst [vmem:[#allocation4 + $0x18] sm:$0xff] %v5236
    %5301 = vst [vmem:[#allocation4 + $0x20] sm:$0xff] %v5237
    %5302 = vst [vmem:[#allocation4 + $0x28] sm:$0xff] %v5238
    %5303 = vst [vmem:[#allocation4 + $0x30] sm:$0xff] %v5239
    %5304 = vst [vmem:[#allocation4 + $0x38] sm:$0xff] %v5240
    %5305 = vst [vmem:[#allocation4 + $0x40] sm:$0xff] %v5241
    %5306 = vst [vmem:[#allocation4 + $0x48] sm:$0xff] %v5242
    %5307 = vst [vmem:[#allocation4 + $0x50] sm:$0xff] %v5243
    %5308 = vst [vmem:[#allocation4 + $0x58] sm:$0xff] %v5244
    %5309 = vst [vmem:[#allocation4 + $0x60] sm:$0xff] %v5245
    %5310 = vst [vmem:[#allocation4 + $0x68] sm:$0xff] %v5246
    %5311 = vst [vmem:[#allocation4 + $0x70] sm:$0xff] %v5247
    %5312 = vst [vmem:[#allocation4 + $0x78] sm:$0xff] %v5248
    %5313 = vst [vmem:[#allocation4 + $0x80] sm:$0xff] %v5249
    %5314 = vst [vmem:[#allocation4 + $0x88] sm:$0xff] %v5250
    %5315 = vst [vmem:[#allocation4 + $0x90] sm:$0xff] %v5251
    %5316 = vst [vmem:[#allocation4 + $0x98] sm:$0xff] %v5252
    %5317 = vst [vmem:[#allocation4 + $0xa0] sm:$0xff] %v5253
    %5318 = vst [vmem:[#allocation4 + $0xa8] sm:$0xff] %v5254
    %5319 = vst [vmem:[#allocation4 + $0xb0] sm:$0xff] %v5255
    %5320 = vst [vmem:[#allocation4 + $0xb8] sm:$0xff] %v5256
    %5321 = vst [vmem:[#allocation4 + $0xc0] sm:$0xff] %v5257
    %5322 = vst [vmem:[#allocation4 + $0xc8] sm:$0xff] %v5258
    %5323 = vst [vmem:[#allocation4 + $0xd0] sm:$0xff] %v5259
    %5324 = vst [vmem:[#allocation4 + $0xd8] sm:$0xff] %v5260
    %5325 = vst [vmem:[#allocation4 + $0xe0] sm:$0xff] %v5261
    %5326 = vst [vmem:[#allocation4 + $0xe8] sm:$0xff] %v5262
    %5327 = vst [vmem:[#allocation4 + $0xf0] sm:$0xff] %v5263
    %5328 = vst [vmem:[#allocation4 + $0xf8] sm:$0xff] %v5264
    %5329 = vst [vmem:[#allocation4 + $0x100] sm:$0xff] %v5265
    %5330 = vst [vmem:[#allocation4 + $0x108] sm:$0xff] %v5266
    %5331 = vst [vmem:[#allocation4 + $0x110] sm:$0xff] %v5267
    %5332 = vst [vmem:[#allocation4 + $0x118] sm:$0xff] %v5268
    %5333 = vst [vmem:[#allocation4 + $0x120] sm:$0xff] %v5269
    %5334 = vst [vmem:[#allocation4 + $0x128] sm:$0xff] %v5270
    %5335 = vst [vmem:[#allocation4 + $0x130] sm:$0xff] %v5271
    %5336 = vst [vmem:[#allocation4 + $0x138] sm:$0xff] %v5272
    %5337 = vst [vmem:[#allocation4 + $0x140] sm:$0xff] %v5273
    %5338 = vst [vmem:[#allocation4 + $0x148] sm:$0xff] %v5274
    %5339 = vst [vmem:[#allocation4 + $0x150] sm:$0xff] %v5275
    %5340 = vst [vmem:[#allocation4 + $0x158] sm:$0xff] %v5276
    %5341 = vst [vmem:[#allocation4 + $0x160] sm:$0xff] %v5277
    %5342 = vst [vmem:[#allocation4 + $0x168] sm:$0xff] %v5278
    %5343 = vst [vmem:[#allocation4 + $0x170] sm:$0xff] %v5279
    %5344 = vst [vmem:[#allocation4 + $0x178] sm:$0xff] %v5280
    %5345 = vst [vmem:[#allocation4 + $0x180] sm:$0xff] %v5281
    %5346 = vst [vmem:[#allocation4 + $0x188] sm:$0xff] %v5282
    %5347 = vst [vmem:[#allocation4 + $0x190] sm:$0xff] %v5283
    %5348 = vst [vmem:[#allocation4 + $0x198] sm:$0xff] %v5284
    %5349 = vst [vmem:[#allocation4 + $0x1a0] sm:$0xff] %v5285
    %5350 = vst [vmem:[#allocation4 + $0x1a8] sm:$0xff] %v5286
    %5351 = vst [vmem:[#allocation4 + $0x1b0] sm:$0xff] %v5287
    %5352 = vst [vmem:[#allocation4 + $0x1b8] sm:$0xff] %v5288
    %5353 = vst [vmem:[#allocation4 + $0x1c0] sm:$0xff] %v5289
    %5354 = vst [vmem:[#allocation4 + $0x1c8] sm:$0xff] %v5290
    %5355 = vst [vmem:[#allocation4 + $0x1d0] sm:$0xff] %v5291
    %5356 = vst [vmem:[#allocation4 + $0x1d8] sm:$0xff] %v5292
    %5357 = vst [vmem:[#allocation4 + $0x1e0] sm:$0xff] %v5293
    %5358 = vst [vmem:[#allocation4 + $0x1e8] sm:$0xff] %v5294
    %5359 = vst [vmem:[#allocation4 + $0x1f0] sm:$0xff] %v5295
    %5360 = vst [vmem:[#allocation4 + $0x1f8] sm:$0xff] %v5296
    %v5361 = vld [vmem:[#allocation5] sm:$0xff]
    %v5362 = vld [vmem:[#allocation5 + $0x8] sm:$0xff]
    %v5363 = vld [vmem:[#allocation5 + $0x10] sm:$0xff]
    %v5364 = vld [vmem:[#allocation5 + $0x18] sm:$0xff]
    %v5365 = vld [vmem:[#allocation5 + $0x20] sm:$0xff]
    %v5366 = vld [vmem:[#allocation5 + $0x28] sm:$0xff]
    %v5367 = vld [vmem:[#allocation5 + $0x30] sm:$0xff]
    %v5368 = vld [vmem:[#allocation5 + $0x38] sm:$0xff]
    %v5369 = vld [vmem:[#allocation5 + $0x40] sm:$0xff]
    %v5370 = vld [vmem:[#allocation5 + $0x48] sm:$0xff]
    %v5371 = vld [vmem:[#allocation5 + $0x50] sm:$0xff]
    %v5372 = vld [vmem:[#allocation5 + $0x58] sm:$0xff]
    %v5373 = vld [vmem:[#allocation5 + $0x60] sm:$0xff]
    %v5374 = vld [vmem:[#allocation5 + $0x68] sm:$0xff]
    %v5375 = vld [vmem:[#allocation5 + $0x70] sm:$0xff]
    %v5376 = vld [vmem:[#allocation5 + $0x78] sm:$0xff]
    %v5377 = vld [vmem:[#allocation5 + $0x80] sm:$0xff]
    %v5378 = vld [vmem:[#allocation5 + $0x88] sm:$0xff]
    %v5379 = vld [vmem:[#allocation5 + $0x90] sm:$0xff]
    %v5380 = vld [vmem:[#allocation5 + $0x98] sm:$0xff]
    %v5381 = vld [vmem:[#allocation5 + $0xa0] sm:$0xff]
    %v5382 = vld [vmem:[#allocation5 + $0xa8] sm:$0xff]
    %v5383 = vld [vmem:[#allocation5 + $0xb0] sm:$0xff]
    %v5384 = vld [vmem:[#allocation5 + $0xb8] sm:$0xff]
    %v5385 = vld [vmem:[#allocation5 + $0xc0] sm:$0xff]
    %v5386 = vld [vmem:[#allocation5 + $0xc8] sm:$0xff]
    %v5387 = vld [vmem:[#allocation5 + $0xd0] sm:$0xff]
    %v5388 = vld [vmem:[#allocation5 + $0xd8] sm:$0xff]
    %v5389 = vld [vmem:[#allocation5 + $0xe0] sm:$0xff]
    %v5390 = vld [vmem:[#allocation5 + $0xe8] sm:$0xff]
    %v5391 = vld [vmem:[#allocation5 + $0xf0] sm:$0xff]
    %v5392 = vld [vmem:[#allocation5 + $0xf8] sm:$0xff]
    %v5393 = vld [vmem:[#allocation5 + $0x100] sm:$0xff]
    %v5394 = vld [vmem:[#allocation5 + $0x108] sm:$0xff]
    %v5395 = vld [vmem:[#allocation5 + $0x110] sm:$0xff]
    %v5396 = vld [vmem:[#allocation5 + $0x118] sm:$0xff]
    %v5397 = vld [vmem:[#allocation5 + $0x120] sm:$0xff]
    %v5398 = vld [vmem:[#allocation5 + $0x128] sm:$0xff]
    %v5399 = vld [vmem:[#allocation5 + $0x130] sm:$0xff]
    %v5400 = vld [vmem:[#allocation5 + $0x138] sm:$0xff]
    %v5401 = vld [vmem:[#allocation5 + $0x140] sm:$0xff]
    %v5402 = vld [vmem:[#allocation5 + $0x148] sm:$0xff]
    %v5403 = vld [vmem:[#allocation5 + $0x150] sm:$0xff]
    %v5404 = vld [vmem:[#allocation5 + $0x158] sm:$0xff]
    %v5405 = vld [vmem:[#allocation5 + $0x160] sm:$0xff]
    %v5406 = vld [vmem:[#allocation5 + $0x168] sm:$0xff]
    %v5407 = vld [vmem:[#allocation5 + $0x170] sm:$0xff]
    %v5408 = vld [vmem:[#allocation5 + $0x178] sm:$0xff]
    %v5409 = vld [vmem:[#allocation5 + $0x180] sm:$0xff]
    %v5410 = vld [vmem:[#allocation5 + $0x188] sm:$0xff]
    %v5411 = vld [vmem:[#allocation5 + $0x190] sm:$0xff]
    %v5412 = vld [vmem:[#allocation5 + $0x198] sm:$0xff]
    %v5413 = vld [vmem:[#allocation5 + $0x1a0] sm:$0xff]
    %v5414 = vld [vmem:[#allocation5 + $0x1a8] sm:$0xff]
    %v5415 = vld [vmem:[#allocation5 + $0x1b0] sm:$0xff]
    %v5416 = vld [vmem:[#allocation5 + $0x1b8] sm:$0xff]
    %v5417 = vld [vmem:[#allocation5 + $0x1c0] sm:$0xff]
    %v5418 = vld [vmem:[#allocation5 + $0x1c8] sm:$0xff]
    %v5419 = vld [vmem:[#allocation5 + $0x1d0] sm:$0xff]
    %v5420 = vld [vmem:[#allocation5 + $0x1d8] sm:$0xff]
    %v5421 = vld [vmem:[#allocation5 + $0x1e0] sm:$0xff]
    %v5422 = vld [vmem:[#allocation5 + $0x1e8] sm:$0xff]
    %v5423 = vld [vmem:[#allocation5 + $0x1f0] sm:$0xff]
    %v5424 = vld [vmem:[#allocation5 + $0x1f8] sm:$0xff]
    %v5425 = vmul.f32 %v4978, %v5361
    %v5426 = vmul.f32 %v4980, %v5362
    %v5427 = vmul.f32 %v4982, %v5363
    %v5428 = vmul.f32 %v4984, %v5364
    %v5429 = vmul.f32 %v4986, %v5365
    %v5430 = vmul.f32 %v4988, %v5366
    %v5431 = vmul.f32 %v4990, %v5367
    %v5432 = vmul.f32 %v4992, %v5368
    %v5433 = vmul.f32 %v4994, %v5369
    %v5434 = vmul.f32 %v4996, %v5370
    %v5435 = vmul.f32 %v4998, %v5371
    %v5436 = vmul.f32 %v5000, %v5372
    %v5437 = vmul.f32 %v5002, %v5373
    %v5438 = vmul.f32 %v5004, %v5374
    %v5439 = vmul.f32 %v5006, %v5375
    %v5440 = vmul.f32 %v5008, %v5376
    %v5441 = vmul.f32 %v5010, %v5377
    %v5442 = vmul.f32 %v5012, %v5378
    %v5443 = vmul.f32 %v5014, %v5379
    %v5444 = vmul.f32 %v5016, %v5380
    %v5445 = vmul.f32 %v5018, %v5381
    %v5446 = vmul.f32 %v5020, %v5382
    %v5447 = vmul.f32 %v5022, %v5383
    %v5448 = vmul.f32 %v5024, %v5384
    %v5449 = vmul.f32 %v5026, %v5385
    %v5450 = vmul.f32 %v5028, %v5386
    %v5451 = vmul.f32 %v5030, %v5387
    %v5452 = vmul.f32 %v5032, %v5388
    %v5453 = vmul.f32 %v5034, %v5389
    %v5454 = vmul.f32 %v5036, %v5390
    %v5455 = vmul.f32 %v5038, %v5391
    %v5456 = vmul.f32 %v5040, %v5392
    %v5457 = vmul.f32 %v5042, %v5393
    %v5458 = vmul.f32 %v5044, %v5394
    %v5459 = vmul.f32 %v5046, %v5395
    %v5460 = vmul.f32 %v5048, %v5396
    %v5461 = vmul.f32 %v5050, %v5397
    %v5462 = vmul.f32 %v5052, %v5398
    %v5463 = vmul.f32 %v5054, %v5399
    %v5464 = vmul.f32 %v5056, %v5400
    %v5465 = vmul.f32 %v5058, %v5401
    %v5466 = vmul.f32 %v5060, %v5402
    %v5467 = vmul.f32 %v5062, %v5403
    %v5468 = vmul.f32 %v5064, %v5404
    %v5469 = vmul.f32 %v5066, %v5405
    %v5470 = vmul.f32 %v5068, %v5406
    %v5471 = vmul.f32 %v5070, %v5407
    %v5472 = vmul.f32 %v5072, %v5408
    %v5473 = vmul.f32 %v5074, %v5409
    %v5474 = vmul.f32 %v5076, %v5410
    %v5475 = vmul.f32 %v5078, %v5411
    %v5476 = vmul.f32 %v5080, %v5412
    %v5477 = vmul.f32 %v5082, %v5413
    %v5478 = vmul.f32 %v5084, %v5414
    %v5479 = vmul.f32 %v5086, %v5415
    %v5480 = vmul.f32 %v5088, %v5416
    %v5481 = vmul.f32 %v5090, %v5417
    %v5482 = vmul.f32 %v5092, %v5418
    %v5483 = vmul.f32 %v5094, %v5419
    %v5484 = vmul.f32 %v5096, %v5420
    %v5485 = vmul.f32 %v5098, %v5421
    %v5486 = vmul.f32 %v5100, %v5422
    %v5487 = vmul.f32 %v5102, %v5423
    %v5488 = vmul.f32 %v5104, %v5424
    %v5489 = vadd.f32 %v5425, %v4849
    %v5490 = vadd.f32 %v5426, %v4850
    %v5491 = vadd.f32 %v5427, %v4851
    %v5492 = vadd.f32 %v5428, %v4852
    %v5493 = vadd.f32 %v5429, %v4853
    %v5494 = vadd.f32 %v5430, %v4854
    %v5495 = vadd.f32 %v5431, %v4855
    %v5496 = vadd.f32 %v5432, %v4856
    %v5497 = vadd.f32 %v5433, %v4857
    %v5498 = vadd.f32 %v5434, %v4858
    %v5499 = vadd.f32 %v5435, %v4859
    %v5500 = vadd.f32 %v5436, %v4860
    %v5501 = vadd.f32 %v5437, %v4861
    %v5502 = vadd.f32 %v5438, %v4862
    %v5503 = vadd.f32 %v5439, %v4863
    %v5504 = vadd.f32 %v5440, %v4864
    %v5505 = vadd.f32 %v5441, %v4865
    %v5506 = vadd.f32 %v5442, %v4866
    %v5507 = vadd.f32 %v5443, %v4867
    %v5508 = vadd.f32 %v5444, %v4868
    %v5509 = vadd.f32 %v5445, %v4869
    %v5510 = vadd.f32 %v5446, %v4870
    %v5511 = vadd.f32 %v5447, %v4871
    %v5512 = vadd.f32 %v5448, %v4872
    %v5513 = vadd.f32 %v5449, %v4873
    %v5514 = vadd.f32 %v5450, %v4874
    %v5515 = vadd.f32 %v5451, %v4875
    %v5516 = vadd.f32 %v5452, %v4876
    %v5517 = vadd.f32 %v5453, %v4877
    %v5518 = vadd.f32 %v5454, %v4878
    %v5519 = vadd.f32 %v5455, %v4879
    %v5520 = vadd.f32 %v5456, %v4880
    %v5521 = vadd.f32 %v5457, %v4881
    %v5522 = vadd.f32 %v5458, %v4882
    %v5523 = vadd.f32 %v5459, %v4883
    %v5524 = vadd.f32 %v5460, %v4884
    %v5525 = vadd.f32 %v5461, %v4885
    %v5526 = vadd.f32 %v5462, %v4886
    %v5527 = vadd.f32 %v5463, %v4887
    %v5528 = vadd.f32 %v5464, %v4888
    %v5529 = vadd.f32 %v5465, %v4889
    %v5530 = vadd.f32 %v5466, %v4890
    %v5531 = vadd.f32 %v5467, %v4891
    %v5532 = vadd.f32 %v5468, %v4892
    %v5533 = vadd.f32 %v5469, %v4893
    %v5534 = vadd.f32 %v5470, %v4894
    %v5535 = vadd.f32 %v5471, %v4895
    %v5536 = vadd.f32 %v5472, %v4896
    %v5537 = vadd.f32 %v5473, %v4897
    %v5538 = vadd.f32 %v5474, %v4898
    %v5539 = vadd.f32 %v5475, %v4899
    %v5540 = vadd.f32 %v5476, %v4900
    %v5541 = vadd.f32 %v5477, %v4901
    %v5542 = vadd.f32 %v5478, %v4902
    %v5543 = vadd.f32 %v5479, %v4903
    %v5544 = vadd.f32 %v5480, %v4904
    %v5545 = vadd.f32 %v5481, %v4905
    %v5546 = vadd.f32 %v5482, %v4906
    %v5547 = vadd.f32 %v5483, %v4907
    %v5548 = vadd.f32 %v5484, %v4908
    %v5549 = vadd.f32 %v5485, %v4909
    %v5550 = vadd.f32 %v5486, %v4910
    %v5551 = vadd.f32 %v5487, %v4911
    %v5552 = vadd.f32 %v5488, %v4912
    %5553 = vst [vmem:[#allocation5] sm:$0xff] %v5489
    %5554 = vst [vmem:[#allocation5 + $0x8] sm:$0xff] %v5490
    %5555 = vst [vmem:[#allocation5 + $0x10] sm:$0xff] %v5491
    %5556 = vst [vmem:[#allocation5 + $0x18] sm:$0xff] %v5492
    %5557 = vst [vmem:[#allocation5 + $0x20] sm:$0xff] %v5493
    %5558 = vst [vmem:[#allocation5 + $0x28] sm:$0xff] %v5494
    %5559 = vst [vmem:[#allocation5 + $0x30] sm:$0xff] %v5495
    %5560 = vst [vmem:[#allocation5 + $0x38] sm:$0xff] %v5496
    %5561 = vst [vmem:[#allocation5 + $0x40] sm:$0xff] %v5497
    %5562 = vst [vmem:[#allocation5 + $0x48] sm:$0xff] %v5498
    %5563 = vst [vmem:[#allocation5 + $0x50] sm:$0xff] %v5499
    %5564 = vst [vmem:[#allocation5 + $0x58] sm:$0xff] %v5500
    %5565 = vst [vmem:[#allocation5 + $0x60] sm:$0xff] %v5501
    %5566 = vst [vmem:[#allocation5 + $0x68] sm:$0xff] %v5502
    %5567 = vst [vmem:[#allocation5 + $0x70] sm:$0xff] %v5503
    %5568 = vst [vmem:[#allocation5 + $0x78] sm:$0xff] %v5504
    %5569 = vst [vmem:[#allocation5 + $0x80] sm:$0xff] %v5505
    %5570 = vst [vmem:[#allocation5 + $0x88] sm:$0xff] %v5506
    %5571 = vst [vmem:[#allocation5 + $0x90] sm:$0xff] %v5507
    %5572 = vst [vmem:[#allocation5 + $0x98] sm:$0xff] %v5508
    %5573 = vst [vmem:[#allocation5 + $0xa0] sm:$0xff] %v5509
    %5574 = vst [vmem:[#allocation5 + $0xa8] sm:$0xff] %v5510
    %5575 = vst [vmem:[#allocation5 + $0xb0] sm:$0xff] %v5511
    %5576 = vst [vmem:[#allocation5 + $0xb8] sm:$0xff] %v5512
    %5577 = vst [vmem:[#allocation5 + $0xc0] sm:$0xff] %v5513
    %5578 = vst [vmem:[#allocation5 + $0xc8] sm:$0xff] %v5514
    %5579 = vst [vmem:[#allocation5 + $0xd0] sm:$0xff] %v5515
    %5580 = vst [vmem:[#allocation5 + $0xd8] sm:$0xff] %v5516
    %5581 = vst [vmem:[#allocation5 + $0xe0] sm:$0xff] %v5517
    %5582 = vst [vmem:[#allocation5 + $0xe8] sm:$0xff] %v5518
    %5583 = vst [vmem:[#allocation5 + $0xf0] sm:$0xff] %v5519
    %5584 = vst [vmem:[#allocation5 + $0xf8] sm:$0xff] %v5520
    %5585 = vst [vmem:[#allocation5 + $0x100] sm:$0xff] %v5521
    %5586 = vst [vmem:[#allocation5 + $0x108] sm:$0xff] %v5522
    %5587 = vst [vmem:[#allocation5 + $0x110] sm:$0xff] %v5523
    %5588 = vst [vmem:[#allocation5 + $0x118] sm:$0xff] %v5524
    %5589 = vst [vmem:[#allocation5 + $0x120] sm:$0xff] %v5525
    %5590 = vst [vmem:[#allocation5 + $0x128] sm:$0xff] %v5526
    %5591 = vst [vmem:[#allocation5 + $0x130] sm:$0xff] %v5527
    %5592 = vst [vmem:[#allocation5 + $0x138] sm:$0xff] %v5528
    %5593 = vst [vmem:[#allocation5 + $0x140] sm:$0xff] %v5529
    %5594 = vst [vmem:[#allocation5 + $0x148] sm:$0xff] %v5530
    %5595 = vst [vmem:[#allocation5 + $0x150] sm:$0xff] %v5531
    %5596 = vst [vmem:[#allocation5 + $0x158] sm:$0xff] %v5532
    %5597 = vst [vmem:[#allocation5 + $0x160] sm:$0xff] %v5533
    %5598 = vst [vmem:[#allocation5 + $0x168] sm:$0xff] %v5534
    %5599 = vst [vmem:[#allocation5 + $0x170] sm:$0xff] %v5535
    %5600 = vst [vmem:[#allocation5 + $0x178] sm:$0xff] %v5536
    %5601 = vst [vmem:[#allocation5 + $0x180] sm:$0xff] %v5537
    %5602 = vst [vmem:[#allocation5 + $0x188] sm:$0xff] %v5538
    %5603 = vst [vmem:[#allocation5 + $0x190] sm:$0xff] %v5539
    %5604 = vst [vmem:[#allocation5 + $0x198] sm:$0xff] %v5540
    %5605 = vst [vmem:[#allocation5 + $0x1a0] sm:$0xff] %v5541
    %5606 = vst [vmem:[#allocation5 + $0x1a8] sm:$0xff] %v5542
    %5607 = vst [vmem:[#allocation5 + $0x1b0] sm:$0xff] %v5543
    %5608 = vst [vmem:[#allocation5 + $0x1b8] sm:$0xff] %v5544
    %5609 = vst [vmem:[#allocation5 + $0x1c0] sm:$0xff] %v5545
    %5610 = vst [vmem:[#allocation5 + $0x1c8] sm:$0xff] %v5546
    %5611 = vst [vmem:[#allocation5 + $0x1d0] sm:$0xff] %v5547
    %5612 = vst [vmem:[#allocation5 + $0x1d8] sm:$0xff] %v5548
    %5613 = vst [vmem:[#allocation5 + $0x1e0] sm:$0xff] %v5549
    %5614 = vst [vmem:[#allocation5 + $0x1e8] sm:$0xff] %v5550
    %5615 = vst [vmem:[#allocation5 + $0x1f0] sm:$0xff] %v5551
    %5616 = vst [vmem:[#allocation5 + $0x1f8] sm:$0xff] %v5552
    %5617 = vst [vmem:[#allocation3] sm:$0xff] %v4209
    %5618 = vst [vmem:[#allocation3 + $0x8] sm:$0xff] %v4210
    %5619 = vst [vmem:[#allocation3 + $0x10] sm:$0xff] %v4211
    %5620 = vst [vmem:[#allocation3 + $0x18] sm:$0xff] %v4212
    %5621 = vst [vmem:[#allocation3 + $0x20] sm:$0xff] %v4213
    %5622 = vst [vmem:[#allocation3 + $0x28] sm:$0xff] %v4214
    %5623 = vst [vmem:[#allocation3 + $0x30] sm:$0xff] %v4215
    %5624 = vst [vmem:[#allocation3 + $0x38] sm:$0xff] %v4216
    %5625 = vst [vmem:[#allocation3 + $0x40] sm:$0xff] %v4217
    %5626 = vst [vmem:[#allocation3 + $0x48] sm:$0xff] %v4218
    %5627 = vst [vmem:[#allocation3 + $0x50] sm:$0xff] %v4219
    %5628 = vst [vmem:[#allocation3 + $0x58] sm:$0xff] %v4220
    %5629 = vst [vmem:[#allocation3 + $0x60] sm:$0xff] %v4221
    %5630 = vst [vmem:[#allocation3 + $0x68] sm:$0xff] %v4222
    %5631 = vst [vmem:[#allocation3 + $0x70] sm:$0xff] %v4223
    %5632 = vst [vmem:[#allocation3 + $0x78] sm:$0xff] %v4224
    %5633 = vst [vmem:[#allocation3 + $0x80] sm:$0xff] %v4225
    %5634 = vst [vmem:[#allocation3 + $0x88] sm:$0xff] %v4226
    %5635 = vst [vmem:[#allocation3 + $0x90] sm:$0xff] %v4227
    %5636 = vst [vmem:[#allocation3 + $0x98] sm:$0xff] %v4228
    %5637 = vst [vmem:[#allocation3 + $0xa0] sm:$0xff] %v4229
    %5638 = vst [vmem:[#allocation3 + $0xa8] sm:$0xff] %v4230
    %5639 = vst [vmem:[#allocation3 + $0xb0] sm:$0xff] %v4231
    %5640 = vst [vmem:[#allocation3 + $0xb8] sm:$0xff] %v4232
    %5641 = vst [vmem:[#allocation3 + $0xc0] sm:$0xff] %v4233
    %5642 = vst [vmem:[#allocation3 + $0xc8] sm:$0xff] %v4234
    %5643 = vst [vmem:[#allocation3 + $0xd0] sm:$0xff] %v4235
    %5644 = vst [vmem:[#allocation3 + $0xd8] sm:$0xff] %v4236
    %5645 = vst [vmem:[#allocation3 + $0xe0] sm:$0xff] %v4237
    %5646 = vst [vmem:[#allocation3 + $0xe8] sm:$0xff] %v4238
    %5647 = vst [vmem:[#allocation3 + $0xf0] sm:$0xff] %v4239
    %5648 = vst [vmem:[#allocation3 + $0xf8] sm:$0xff] %v4240
    %5649 = vst [vmem:[#allocation3 + $0x100] sm:$0xff] %v4241
    %5650 = vst [vmem:[#allocation3 + $0x108] sm:$0xff] %v4242
    %5651 = vst [vmem:[#allocation3 + $0x110] sm:$0xff] %v4243
    %5652 = vst [vmem:[#allocation3 + $0x118] sm:$0xff] %v4244
    %5653 = vst [vmem:[#allocation3 + $0x120] sm:$0xff] %v4245
    %5654 = vst [vmem:[#allocation3 + $0x128] sm:$0xff] %v4246
    %5655 = vst [vmem:[#allocation3 + $0x130] sm:$0xff] %v4247
    %5656 = vst [vmem:[#allocation3 + $0x138] sm:$0xff] %v4248
    %5657 = vst [vmem:[#allocation3 + $0x140] sm:$0xff] %v4249
    %5658 = vst [vmem:[#allocation3 + $0x148] sm:$0xff] %v4250
    %5659 = vst [vmem:[#allocation3 + $0x150] sm:$0xff] %v4251
    %5660 = vst [vmem:[#allocation3 + $0x158] sm:$0xff] %v4252
    %5661 = vst [vmem:[#allocation3 + $0x160] sm:$0xff] %v4253
    %5662 = vst [vmem:[#allocation3 + $0x168] sm:$0xff] %v4254
    %5663 = vst [vmem:[#allocation3 + $0x170] sm:$0xff] %v4255
    %5664 = vst [vmem:[#allocation3 + $0x178] sm:$0xff] %v4256
    %5665 = vst [vmem:[#allocation3 + $0x180] sm:$0xff] %v4257
    %5666 = vst [vmem:[#allocation3 + $0x188] sm:$0xff] %v4258
    %5667 = vst [vmem:[#allocation3 + $0x190] sm:$0xff] %v4259
    %5668 = vst [vmem:[#allocation3 + $0x198] sm:$0xff] %v4260
    %5669 = vst [vmem:[#allocation3 + $0x1a0] sm:$0xff] %v4261
    %5670 = vst [vmem:[#allocation3 + $0x1a8] sm:$0xff] %v4262
    %5671 = vst [vmem:[#allocation3 + $0x1b0] sm:$0xff] %v4263
    %5672 = vst [vmem:[#allocation3 + $0x1b8] sm:$0xff] %v4264
    %5673 = vst [vmem:[#allocation3 + $0x1c0] sm:$0xff] %v4265
    %5674 = vst [vmem:[#allocation3 + $0x1c8] sm:$0xff] %v4266
    %5675 = vst [vmem:[#allocation3 + $0x1d0] sm:$0xff] %v4267
    %5676 = vst [vmem:[#allocation3 + $0x1d8] sm:$0xff] %v4268
    %5677 = vst [vmem:[#allocation3 + $0x1e0] sm:$0xff] %v4269
    %5678 = vst [vmem:[#allocation3 + $0x1e8] sm:$0xff] %v4270
    %5679 = vst [vmem:[#allocation3 + $0x1f0] sm:$0xff] %v4271
    %5680 = vst [vmem:[#allocation3 + $0x1f8] sm:$0xff] %v4272
    // Predicated region
    $region34: #{tpu_custom_call.1} parent=1 // pred_check
      %p5681 = pneg %p28
    $region35: #{tpu_custom_call.1} parent=1 // pred_check_branch
      %5683 = sbr.rel (%p5681) target = $region37
    $region36: #{tpu_custom_call.1} parent=1 // pred_region
      %v5684 = vld [vmem:[#allocation4] sm:$0xff]
      %v5685 = vld [vmem:[#allocation4 + $0x8] sm:$0xff]
      %v5686 = vld [vmem:[#allocation4 + $0x10] sm:$0xff]
      %v5687 = vld [vmem:[#allocation4 + $0x18] sm:$0xff]
      %v5688 = vld [vmem:[#allocation4 + $0x20] sm:$0xff]
      %v5689 = vld [vmem:[#allocation4 + $0x28] sm:$0xff]
      %v5690 = vld [vmem:[#allocation4 + $0x30] sm:$0xff]
      %v5691 = vld [vmem:[#allocation4 + $0x38] sm:$0xff]
      %v5692 = vld [vmem:[#allocation4 + $0x40] sm:$0xff]
      %v5693 = vld [vmem:[#allocation4 + $0x48] sm:$0xff]
      %v5694 = vld [vmem:[#allocation4 + $0x50] sm:$0xff]
      %v5695 = vld [vmem:[#allocation4 + $0x58] sm:$0xff]
      %v5696 = vld [vmem:[#allocation4 + $0x60] sm:$0xff]
      %v5697 = vld [vmem:[#allocation4 + $0x68] sm:$0xff]
      %v5698 = vld [vmem:[#allocation4 + $0x70] sm:$0xff]
      %v5699 = vld [vmem:[#allocation4 + $0x78] sm:$0xff]
      %v5700 = vld [vmem:[#allocation4 + $0x80] sm:$0xff]
      %v5701 = vld [vmem:[#allocation4 + $0x88] sm:$0xff]
      %v5702 = vld [vmem:[#allocation4 + $0x90] sm:$0xff]
      %v5703 = vld [vmem:[#allocation4 + $0x98] sm:$0xff]
      %v5704 = vld [vmem:[#allocation4 + $0xa0] sm:$0xff]
      %v5705 = vld [vmem:[#allocation4 + $0xa8] sm:$0xff]
      %v5706 = vld [vmem:[#allocation4 + $0xb0] sm:$0xff]
      %v5707 = vld [vmem:[#allocation4 + $0xb8] sm:$0xff]
      %v5708 = vld [vmem:[#allocation4 + $0xc0] sm:$0xff]
      %v5709 = vld [vmem:[#allocation4 + $0xc8] sm:$0xff]
      %v5710 = vld [vmem:[#allocation4 + $0xd0] sm:$0xff]
      %v5711 = vld [vmem:[#allocation4 + $0xd8] sm:$0xff]
      %v5712 = vld [vmem:[#allocation4 + $0xe0] sm:$0xff]
      %v5713 = vld [vmem:[#allocation4 + $0xe8] sm:$0xff]
      %v5714 = vld [vmem:[#allocation4 + $0xf0] sm:$0xff]
      %v5715 = vld [vmem:[#allocation4 + $0xf8] sm:$0xff]
      %v5716 = vld [vmem:[#allocation4 + $0x100] sm:$0xff]
      %v5717 = vld [vmem:[#allocation4 + $0x108] sm:$0xff]
      %v5718 = vld [vmem:[#allocation4 + $0x110] sm:$0xff]
      %v5719 = vld [vmem:[#allocation4 + $0x118] sm:$0xff]
      %v5720 = vld [vmem:[#allocation4 + $0x120] sm:$0xff]
      %v5721 = vld [vmem:[#allocation4 + $0x128] sm:$0xff]
      %v5722 = vld [vmem:[#allocation4 + $0x130] sm:$0xff]
      %v5723 = vld [vmem:[#allocation4 + $0x138] sm:$0xff]
      %v5724 = vld [vmem:[#allocation4 + $0x140] sm:$0xff]
      %v5725 = vld [vmem:[#allocation4 + $0x148] sm:$0xff]
      %v5726 = vld [vmem:[#allocation4 + $0x150] sm:$0xff]
      %v5727 = vld [vmem:[#allocation4 + $0x158] sm:$0xff]
      %v5728 = vld [vmem:[#allocation4 + $0x160] sm:$0xff]
      %v5729 = vld [vmem:[#allocation4 + $0x168] sm:$0xff]
      %v5730 = vld [vmem:[#allocation4 + $0x170] sm:$0xff]
      %v5731 = vld [vmem:[#allocation4 + $0x178] sm:$0xff]
      %v5732 = vld [vmem:[#allocation4 + $0x180] sm:$0xff]
      %v5733 = vld [vmem:[#allocation4 + $0x188] sm:$0xff]
      %v5734 = vld [vmem:[#allocation4 + $0x190] sm:$0xff]
      %v5735 = vld [vmem:[#allocation4 + $0x198] sm:$0xff]
      %v5736 = vld [vmem:[#allocation4 + $0x1a0] sm:$0xff]
      %v5737 = vld [vmem:[#allocation4 + $0x1a8] sm:$0xff]
      %v5738 = vld [vmem:[#allocation4 + $0x1b0] sm:$0xff]
      %v5739 = vld [vmem:[#allocation4 + $0x1b8] sm:$0xff]
      %v5740 = vld [vmem:[#allocation4 + $0x1c0] sm:$0xff]
      %v5741 = vld [vmem:[#allocation4 + $0x1c8] sm:$0xff]
      %v5742 = vld [vmem:[#allocation4 + $0x1d0] sm:$0xff]
      %v5743 = vld [vmem:[#allocation4 + $0x1d8] sm:$0xff]
      %v5744 = vld [vmem:[#allocation4 + $0x1e0] sm:$0xff]
      %v5745 = vld [vmem:[#allocation4 + $0x1e8] sm:$0xff]
      %v5746 = vld [vmem:[#allocation4 + $0x1f0] sm:$0xff]
      %v5747 = vld [vmem:[#allocation4 + $0x1f8] sm:$0xff]
      %v5748 = vmax.f32 %v5684, 1e-30
      %v5749 = vmax.f32 %v5685, 1e-30
      %v5750 = vmax.f32 %v5686, 1e-30
      %v5751 = vmax.f32 %v5687, 1e-30
      %v5752 = vmax.f32 %v5688, 1e-30
      %v5753 = vmax.f32 %v5689, 1e-30
      %v5754 = vmax.f32 %v5690, 1e-30
      %v5755 = vmax.f32 %v5691, 1e-30
      %v5756 = vmax.f32 %v5692, 1e-30
      %v5757 = vmax.f32 %v5693, 1e-30
      %v5758 = vmax.f32 %v5694, 1e-30
      %v5759 = vmax.f32 %v5695, 1e-30
      %v5760 = vmax.f32 %v5696, 1e-30
      %v5761 = vmax.f32 %v5697, 1e-30
      %v5762 = vmax.f32 %v5698, 1e-30
      %v5763 = vmax.f32 %v5699, 1e-30
      %v5764 = vmax.f32 %v5700, 1e-30
      %v5765 = vmax.f32 %v5701, 1e-30
      %v5766 = vmax.f32 %v5702, 1e-30
      %v5767 = vmax.f32 %v5703, 1e-30
      %v5768 = vmax.f32 %v5704, 1e-30
      %v5769 = vmax.f32 %v5705, 1e-30
      %v5770 = vmax.f32 %v5706, 1e-30
      %v5771 = vmax.f32 %v5707, 1e-30
      %v5772 = vmax.f32 %v5708, 1e-30
      %v5773 = vmax.f32 %v5709, 1e-30
      %v5774 = vmax.f32 %v5710, 1e-30
      %v5775 = vmax.f32 %v5711, 1e-30
      %v5776 = vmax.f32 %v5712, 1e-30
      %v5777 = vmax.f32 %v5713, 1e-30
      %v5778 = vmax.f32 %v5714, 1e-30
      %v5779 = vmax.f32 %v5715, 1e-30
      %v5780 = vmax.f32 %v5716, 1e-30
      %v5781 = vmax.f32 %v5717, 1e-30
      %v5782 = vmax.f32 %v5718, 1e-30
      %v5783 = vmax.f32 %v5719, 1e-30
      %v5784 = vmax.f32 %v5720, 1e-30
      %v5785 = vmax.f32 %v5721, 1e-30
      %v5786 = vmax.f32 %v5722, 1e-30
      %v5787 = vmax.f32 %v5723, 1e-30
      %v5788 = vmax.f32 %v5724, 1e-30
      %v5789 = vmax.f32 %v5725, 1e-30
      %v5790 = vmax.f32 %v5726, 1e-30
      %v5791 = vmax.f32 %v5727, 1e-30
      %v5792 = vmax.f32 %v5728, 1e-30
      %v5793 = vmax.f32 %v5729, 1e-30
      %v5794 = vmax.f32 %v5730, 1e-30
      %v5795 = vmax.f32 %v5731, 1e-30
      %v5796 = vmax.f32 %v5732, 1e-30
      %v5797 = vmax.f32 %v5733, 1e-30
      %v5798 = vmax.f32 %v5734, 1e-30
      %v5799 = vmax.f32 %v5735, 1e-30
      %v5800 = vmax.f32 %v5736, 1e-30
      %v5801 = vmax.f32 %v5737, 1e-30
      %v5802 = vmax.f32 %v5738, 1e-30
      %v5803 = vmax.f32 %v5739, 1e-30
      %v5804 = vmax.f32 %v5740, 1e-30
      %v5805 = vmax.f32 %v5741, 1e-30
      %v5806 = vmax.f32 %v5742, 1e-30
      %v5807 = vmax.f32 %v5743, 1e-30
      %v5808 = vmax.f32 %v5744, 1e-30
      %v5809 = vmax.f32 %v5745, 1e-30
      %v5810 = vmax.f32 %v5746, 1e-30
      %v5811 = vmax.f32 %v5747, 1e-30
      %v5812 = vld [vmem:[#allocation5] sm:$0xff]
      %v5813 = vld [vmem:[#allocation5 + $0x8] sm:$0xff]
      %v5814 = vld [vmem:[#allocation5 + $0x10] sm:$0xff]
      %v5815 = vld [vmem:[#allocation5 + $0x18] sm:$0xff]
      %v5816 = vld [vmem:[#allocation5 + $0x20] sm:$0xff]
      %v5817 = vld [vmem:[#allocation5 + $0x28] sm:$0xff]
      %v5818 = vld [vmem:[#allocation5 + $0x30] sm:$0xff]
      %v5819 = vld [vmem:[#allocation5 + $0x38] sm:$0xff]
      %v5820 = vld [vmem:[#allocation5 + $0x40] sm:$0xff]
      %v5821 = vld [vmem:[#allocation5 + $0x48] sm:$0xff]
      %v5822 = vld [vmem:[#allocation5 + $0x50] sm:$0xff]
      %v5823 = vld [vmem:[#allocation5 + $0x58] sm:$0xff]
      %v5824 = vld [vmem:[#allocation5 + $0x60] sm:$0xff]
      %v5825 = vld [vmem:[#allocation5 + $0x68] sm:$0xff]
      %v5826 = vld [vmem:[#allocation5 + $0x70] sm:$0xff]
      %v5827 = vld [vmem:[#allocation5 + $0x78] sm:$0xff]
      %v5828 = vld [vmem:[#allocation5 + $0x80] sm:$0xff]
      %v5829 = vld [vmem:[#allocation5 + $0x88] sm:$0xff]
      %v5830 = vld [vmem:[#allocation5 + $0x90] sm:$0xff]
      %v5831 = vld [vmem:[#allocation5 + $0x98] sm:$0xff]
      %v5832 = vld [vmem:[#allocation5 + $0xa0] sm:$0xff]
      %v5833 = vld [vmem:[#allocation5 + $0xa8] sm:$0xff]
      %v5834 = vld [vmem:[#allocation5 + $0xb0] sm:$0xff]
      %v5835 = vld [vmem:[#allocation5 + $0xb8] sm:$0xff]
      %v5836 = vld [vmem:[#allocation5 + $0xc0] sm:$0xff]
      %v5837 = vld [vmem:[#allocation5 + $0xc8] sm:$0xff]
      %v5838 = vld [vmem:[#allocation5 + $0xd0] sm:$0xff]
      %v5839 = vld [vmem:[#allocation5 + $0xd8] sm:$0xff]
      %v5840 = vld [vmem:[#allocation5 + $0xe0] sm:$0xff]
      %v5841 = vld [vmem:[#allocation5 + $0xe8] sm:$0xff]
      %v5842 = vld [vmem:[#allocation5 + $0xf0] sm:$0xff]
      %v5843 = vld [vmem:[#allocation5 + $0xf8] sm:$0xff]
      %v5844 = vld [vmem:[#allocation5 + $0x100] sm:$0xff]
      %v5845 = vld [vmem:[#allocation5 + $0x108] sm:$0xff]
      %v5846 = vld [vmem:[#allocation5 + $0x110] sm:$0xff]
      %v5847 = vld [vmem:[#allocation5 + $0x118] sm:$0xff]
      %v5848 = vld [vmem:[#allocation5 + $0x120] sm:$0xff]
      %v5849 = vld [vmem:[#allocation5 + $0x128] sm:$0xff]
      %v5850 = vld [vmem:[#allocation5 + $0x130] sm:$0xff]
      %v5851 = vld [vmem:[#allocation5 + $0x138] sm:$0xff]
      %v5852 = vld [vmem:[#allocation5 + $0x140] sm:$0xff]
      %v5853 = vld [vmem:[#allocation5 + $0x148] sm:$0xff]
      %v5854 = vld [vmem:[#allocation5 + $0x150] sm:$0xff]
      %v5855 = vld [vmem:[#allocation5 + $0x158] sm:$0xff]
      %v5856 = vld [vmem:[#allocation5 + $0x160] sm:$0xff]
      %v5857 = vld [vmem:[#allocation5 + $0x168] sm:$0xff]
      %v5858 = vld [vmem:[#allocation5 + $0x170] sm:$0xff]
      %v5859 = vld [vmem:[#allocation5 + $0x178] sm:$0xff]
      %v5860 = vld [vmem:[#allocation5 + $0x180] sm:$0xff]
      %v5861 = vld [vmem:[#allocation5 + $0x188] sm:$0xff]
      %v5862 = vld [vmem:[#allocation5 + $0x190] sm:$0xff]
      %v5863 = vld [vmem:[#allocation5 + $0x198] sm:$0xff]
      %v5864 = vld [vmem:[#allocation5 + $0x1a0] sm:$0xff]
      %v5865 = vld [vmem:[#allocation5 + $0x1a8] sm:$0xff]
      %v5866 = vld [vmem:[#allocation5 + $0x1b0] sm:$0xff]
      %v5867 = vld [vmem:[#allocation5 + $0x1b8] sm:$0xff]
      %v5868 = vld [vmem:[#allocation5 + $0x1c0] sm:$0xff]
      %v5869 = vld [vmem:[#allocation5 + $0x1c8] sm:$0xff]
      %v5870 = vld [vmem:[#allocation5 + $0x1d0] sm:$0xff]
      %v5871 = vld [vmem:[#allocation5 + $0x1d8] sm:$0xff]
      %v5872 = vld [vmem:[#allocation5 + $0x1e0] sm:$0xff]
      %v5873 = vld [vmem:[#allocation5 + $0x1e8] sm:$0xff]
      %v5874 = vld [vmem:[#allocation5 + $0x1f0] sm:$0xff]
      %v5875 = vld [vmem:[#allocation5 + $0x1f8] sm:$0xff]
      %v5876 = vrcp.pop %v5748
      %v5877 = vmul.f32 %v5812, %v5876
      %v5878 = vrcp.pop %v5749
      %v5879 = vmul.f32 %v5813, %v5878
      %v5880 = vrcp.pop %v5750
      %v5881 = vmul.f32 %v5814, %v5880
      %v5882 = vrcp.pop %v5751
      %v5883 = vmul.f32 %v5815, %v5882
      %v5884 = vrcp.pop %v5752
      %v5885 = vmul.f32 %v5816, %v5884
      %v5886 = vrcp.pop %v5753
      %v5887 = vmul.f32 %v5817, %v5886
      %v5888 = vrcp.pop %v5754
      %v5889 = vmul.f32 %v5818, %v5888
      %v5890 = vrcp.pop %v5755
      %v5891 = vmul.f32 %v5819, %v5890
      %v5892 = vrcp.pop %v5756
      %v5893 = vmul.f32 %v5820, %v5892
      %v5894 = vrcp.pop %v5757
      %v5895 = vmul.f32 %v5821, %v5894
      %v5896 = vrcp.pop %v5758
      %v5897 = vmul.f32 %v5822, %v5896
      %v5898 = vrcp.pop %v5759
      %v5899 = vmul.f32 %v5823, %v5898
      %v5900 = vrcp.pop %v5760
      %v5901 = vmul.f32 %v5824, %v5900
      %v5902 = vrcp.pop %v5761
      %v5903 = vmul.f32 %v5825, %v5902
      %v5904 = vrcp.pop %v5762
      %v5905 = vmul.f32 %v5826, %v5904
      %v5906 = vrcp.pop %v5763
      %v5907 = vmul.f32 %v5827, %v5906
      %v5908 = vrcp.pop %v5764
      %v5909 = vmul.f32 %v5828, %v5908
      %v5910 = vrcp.pop %v5765
      %v5911 = vmul.f32 %v5829, %v5910
      %v5912 = vrcp.pop %v5766
      %v5913 = vmul.f32 %v5830, %v5912
      %v5914 = vrcp.pop %v5767
      %v5915 = vmul.f32 %v5831, %v5914
      %v5916 = vrcp.pop %v5768
      %v5917 = vmul.f32 %v5832, %v5916
      %v5918 = vrcp.pop %v5769
      %v5919 = vmul.f32 %v5833, %v5918
      %v5920 = vrcp.pop %v5770
      %v5921 = vmul.f32 %v5834, %v5920
      %v5922 = vrcp.pop %v5771
      %v5923 = vmul.f32 %v5835, %v5922
      %v5924 = vrcp.pop %v5772
      %v5925 = vmul.f32 %v5836, %v5924
      %v5926 = vrcp.pop %v5773
      %v5927 = vmul.f32 %v5837, %v5926
      %v5928 = vrcp.pop %v5774
      %v5929 = vmul.f32 %v5838, %v5928
      %v5930 = vrcp.pop %v5775
      %v5931 = vmul.f32 %v5839, %v5930
      %v5932 = vrcp.pop %v5776
      %v5933 = vmul.f32 %v5840, %v5932
      %v5934 = vrcp.pop %v5777
      %v5935 = vmul.f32 %v5841, %v5934
      %v5936 = vrcp.pop %v5778
      %v5937 = vmul.f32 %v5842, %v5936
      %v5938 = vrcp.pop %v5779
      %v5939 = vmul.f32 %v5843, %v5938
      %v5940 = vrcp.pop %v5780
      %v5941 = vmul.f32 %v5844, %v5940
      %v5942 = vrcp.pop %v5781
      %v5943 = vmul.f32 %v5845, %v5942
      %v5944 = vrcp.pop %v5782
      %v5945 = vmul.f32 %v5846, %v5944
      %v5946 = vrcp.pop %v5783
      %v5947 = vmul.f32 %v5847, %v5946
      %v5948 = vrcp.pop %v5784
      %v5949 = vmul.f32 %v5848, %v5948
      %v5950 = vrcp.pop %v5785
      %v5951 = vmul.f32 %v5849, %v5950
      %v5952 = vrcp.pop %v5786
      %v5953 = vmul.f32 %v5850, %v5952
      %v5954 = vrcp.pop %v5787
      %v5955 = vmul.f32 %v5851, %v5954
      %v5956 = vrcp.pop %v5788
      %v5957 = vmul.f32 %v5852, %v5956
      %v5958 = vrcp.pop %v5789
      %v5959 = vmul.f32 %v5853, %v5958
      %v5960 = vrcp.pop %v5790
      %v5961 = vmul.f32 %v5854, %v5960
      %v5962 = vrcp.pop %v5791
      %v5963 = vmul.f32 %v5855, %v5962
      %v5964 = vrcp.pop %v5792
      %v5965 = vmul.f32 %v5856, %v5964
      %v5966 = vrcp.pop %v5793
      %v5967 = vmul.f32 %v5857, %v5966
      %v5968 = vrcp.pop %v5794
      %v5969 = vmul.f32 %v5858, %v5968
      %v5970 = vrcp.pop %v5795
      %v5971 = vmul.f32 %v5859, %v5970
      %v5972 = vrcp.pop %v5796
      %v5973 = vmul.f32 %v5860, %v5972
      %v5974 = vrcp.pop %v5797
      %v5975 = vmul.f32 %v5861, %v5974
      %v5976 = vrcp.pop %v5798
      %v5977 = vmul.f32 %v5862, %v5976
      %v5978 = vrcp.pop %v5799
      %v5979 = vmul.f32 %v5863, %v5978
      %v5980 = vrcp.pop %v5800
      %v5981 = vmul.f32 %v5864, %v5980
      %v5982 = vrcp.pop %v5801
      %v5983 = vmul.f32 %v5865, %v5982
      %v5984 = vrcp.pop %v5802
      %v5985 = vmul.f32 %v5866, %v5984
      %v5986 = vrcp.pop %v5803
      %v5987 = vmul.f32 %v5867, %v5986
      %v5988 = vrcp.pop %v5804
      %v5989 = vmul.f32 %v5868, %v5988
      %v5990 = vrcp.pop %v5805
      %v5991 = vmul.f32 %v5869, %v5990
      %v5992 = vrcp.pop %v5806
      %v5993 = vmul.f32 %v5870, %v5992
      %v5994 = vrcp.pop %v5807
      %v5995 = vmul.f32 %v5871, %v5994
      %v5996 = vrcp.pop %v5808
      %v5997 = vmul.f32 %v5872, %v5996
      %v5998 = vrcp.pop %v5809
      %v5999 = vmul.f32 %v5873, %v5998
      %v6000 = vrcp.pop %v5810
      %v6001 = vmul.f32 %v5874, %v6000
      %v6002 = vrcp.pop %v5811
      %v6003 = vmul.f32 %v5875, %v6002
      %v6004 = vld [vmem:[%s5] sm:$0xff]
      %v6005 = vld [vmem:[%s5 + $0x8] sm:$0xff]
      %v6006 = vld [vmem:[%s5 + $0x10] sm:$0xff]
      %v6007 = vld [vmem:[%s5 + $0x18] sm:$0xff]
      %v6008 = vld [vmem:[%s5 + $0x20] sm:$0xff]
      %v6009 = vld [vmem:[%s5 + $0x28] sm:$0xff]
      %v6010 = vld [vmem:[%s5 + $0x30] sm:$0xff]
      %v6011 = vld [vmem:[%s5 + $0x38] sm:$0xff]
      %v6012 = vld [vmem:[%s5 + $0x40] sm:$0xff]
      %v6013 = vld [vmem:[%s5 + $0x48] sm:$0xff]
      %v6014 = vld [vmem:[%s5 + $0x50] sm:$0xff]
      %v6015 = vld [vmem:[%s5 + $0x58] sm:$0xff]
      %v6016 = vld [vmem:[%s5 + $0x60] sm:$0xff]
      %v6017 = vld [vmem:[%s5 + $0x68] sm:$0xff]
      %v6018 = vld [vmem:[%s5 + $0x70] sm:$0xff]
      %v6019 = vld [vmem:[%s5 + $0x78] sm:$0xff]
      %6020 = vmatprep.subr.mxu0 0.0
      %6021 = vmatpush1.msra.mxu0 %v6004
      %6022 = vmatprep.subr.mxu0 0.0
      %6023 = vmatpush1.msra.mxu0 %v6005
      %6024 = vmatprep.subr.mxu0 0.0
      %6025 = vmatpush1.msra.mxu0 %v6006
      %6026 = vmatprep.subr.mxu0 0.0
      %6027 = vmatpush1.msra.mxu0 %v6007
      %6028 = vmatprep.subr.mxu0 0.0
      %6029 = vmatpush1.msra.mxu0 %v6008
      %6030 = vmatprep.subr.mxu0 0.0
      %6031 = vmatpush1.msra.mxu0 %v6009
      %6032 = vmatprep.subr.mxu0 0.0
      %6033 = vmatpush1.msra.mxu0 %v6010
      %6034 = vmatprep.subr.mxu0 0.0
      %6035 = vmatpush1.msra.mxu0 %v6011
      %6036 = vmatprep.subr.mxu0 0.0
      %6037 = vmatpush1.msra.mxu0 %v6012
      %6038 = vmatprep.subr.mxu0 0.0
      %6039 = vmatpush1.msra.mxu0 %v6013
      %6040 = vmatprep.subr.mxu0 0.0
      %6041 = vmatpush1.msra.mxu0 %v6014
      %6042 = vmatprep.subr.mxu0 0.0
      %6043 = vmatpush1.msra.mxu0 %v6015
      %6044 = vmatprep.subr.mxu0 0.0
      %6045 = vmatpush1.msra.mxu0 %v6016
      %6046 = vmatprep.subr.mxu0 0.0
      %6047 = vmatpush1.msra.mxu0 %v6017
      %6048 = vmatprep.subr.mxu0 0.0
      %6049 = vmatpush1.msra.mxu0 %v6018
      %6050 = vmatprep.subr.mxu0 0.0
      %6051 = vmatpush1.msra.mxu0 %v6019
      %6052 = vmatprep.subr.mxu0 0.0
      %6053 = vmatpush1.msra.mxu0 0.0
      %6054 = vmatprep.subr.mxu0 0.0
      %6055 = vmatpush1.msra.mxu0 0.0
      %6056 = vmatprep.subr.mxu0 0.0
      %6057 = vmatpush1.msra.mxu0 0.0
      %6058 = vmatprep.subr.mxu0 0.0
      %6059 = vmatpush1.msra.mxu0 0.0
      %6060 = vmatprep.subr.mxu0 0.0
      %6061 = vmatpush1.msra.mxu0 0.0
      %6062 = vmatprep.subr.mxu0 0.0
      %6063 = vmatpush1.msra.mxu0 0.0
      %6064 = vmatprep.subr.mxu0 0.0
      %6065 = vmatpush1.msra.mxu0 0.0
      %6066 = vmatprep.subr.mxu0 0.0
      %6067 = vmatpush1.msra.mxu0 0.0
      %6068 = vmatprep.subr.mxu0 0.0
      %6069 = vmatpush1.msra.mxu0 0.0
      %6070 = vmatprep.subr.mxu0 0.0
      %6071 = vmatpush1.msra.mxu0 0.0
      %6072 = vmatprep.subr.mxu0 0.0
      %6073 = vmatpush1.msra.mxu0 0.0
      %6074 = vmatprep.subr.mxu0 0.0
      %6075 = vmatpush1.msra.mxu0 0.0
      %6076 = vmatprep.subr.mxu0 0.0
      %6077 = vmatpush1.msra.mxu0 0.0
      %6078 = vmatprep.subr.mxu0 0.0
      %6079 = vmatpush1.msra.mxu0 0.0
      %6080 = vmatprep.subr.mxu0 0.0
      %6081 = vmatpush1.msra.mxu0 0.0
      %6082 = vmatprep.subr.mxu0 0.0
      %6083 = vmatpush1.msra.mxu0 0.0
      %6084 = vmatprep.mubr.f32.mxu0 0.0
      %6085 = vmatmul.mubr.f32.gmra.mrb[0].mxu0 %v5877
      %v6086 = vpop.f32.mrb[0].mxu0
      %v6087 = vadd.f32 0.0, %v6086
      %v6088 = vpop.f32.mrb[0].mxu0
      %6089 = vmatprep.mubr.f32.mxu0 0.0
      %6090 = vmatmul.mubr.f32.gmra.mrb[0].mxu0 %v5879
      %v6091 = vpop.f32.mrb[0].mxu0
      %v6092 = vadd.f32 0.0, %v6091
      %v6093 = vpop.f32.mrb[0].mxu0
      %6094 = vmatprep.mubr.f32.mxu0 0.0
      %6095 = vmatmul.mubr.f32.gmra.mrb[0].mxu0 %v5881
      %v6096 = vpop.f32.mrb[0].mxu0
      %v6097 = vadd.f32 0.0, %v6096
      %v6098 = vpop.f32.mrb[0].mxu0
      %6099 = vmatprep.mubr.f32.mxu0 0.0
      %6100 = vmatmul.mubr.f32.gmra.mrb[0].mxu0 %v5883
      %v6101 = vpop.f32.mrb[0].mxu0
      %v6102 = vadd.f32 0.0, %v6101
      %v6103 = vpop.f32.mrb[0].mxu0
      %6104 = vmatprep.mubr.f32.mxu0 0.0
      %6105 = vmatmul.mubr.f32.gmra.mrb[0].mxu0 %v5885
      %v6106 = vpop.f32.mrb[0].mxu0
      %v6107 = vadd.f32 0.0, %v6106
      %v6108 = vpop.f32.mrb[0].mxu0
      %6109 = vmatprep.mubr.f32.mxu0 0.0
      %6110 = vmatmul.mubr.f32.gmra.mrb[0].mxu0 %v5887
      %v6111 = vpop.f32.mrb[0].mxu0
      %v6112 = vadd.f32 0.0, %v6111
      %v6113 = vpop.f32.mrb[0].mxu0
      %6114 = vmatprep.mubr.f32.mxu0 0.0
      %6115 = vmatmul.mubr.f32.gmra.mrb[0].mxu0 %v5889
      %v6116 = vpop.f32.mrb[0].mxu0
      %v6117 = vadd.f32 0.0, %v6116
      %v6118 = vpop.f32.mrb[0].mxu0
      %6119 = vmatprep.mubr.f32.mxu0 0.0
      %6120 = vmatmul.mubr.f32.gmra.mrb[0].mxu0 %v5891
      %v6121 = vpop.f32.mrb[0].mxu0
      %v6122 = vadd.f32 0.0, %v6121
      %v6123 = vpop.f32.mrb[0].mxu0
      %6124 = vmatprep.mubr.f32.mxu0 0.0
      %6125 = vmatmul.mubr.f32.gmra.mrb[0].mxu0 %v5893
      %v6126 = vpop.f32.mrb[0].mxu0
      %v6127 = vadd.f32 0.0, %v6126
      %v6128 = vpop.f32.mrb[0].mxu0
      %6129 = vmatprep.mubr.f32.mxu0 0.0
      %6130 = vmatmul.mubr.f32.gmra.mrb[0].mxu0 %v5895
      %v6131 = vpop.f32.mrb[0].mxu0
      %v6132 = vadd.f32 0.0, %v6131
      %v6133 = vpop.f32.mrb[0].mxu0
      %6134 = vmatprep.mubr.f32.mxu0 0.0
      %6135 = vmatmul.mubr.f32.gmra.mrb[0].mxu0 %v5897
      %v6136 = vpop.f32.mrb[0].mxu0
      %v6137 = vadd.f32 0.0, %v6136
      %v6138 = vpop.f32.mrb[0].mxu0
      %6139 = vmatprep.mubr.f32.mxu0 0.0
      %6140 = vmatmul.mubr.f32.gmra.mrb[0].mxu0 %v5899
      %v6141 = vpop.f32.mrb[0].mxu0
      %v6142 = vadd.f32 0.0, %v6141
      %v6143 = vpop.f32.mrb[0].mxu0
      %6144 = vmatprep.mubr.f32.mxu0 0.0
      %6145 = vmatmul.mubr.f32.gmra.mrb[0].mxu0 %v5901
      %v6146 = vpop.f32.mrb[0].mxu0
      %v6147 = vadd.f32 0.0, %v6146
      %v6148 = vpop.f32.mrb[0].mxu0
      %6149 = vmatprep.mubr.f32.mxu0 0.0
      %6150 = vmatmul.mubr.f32.gmra.mrb[0].mxu0 %v5903
      %v6151 = vpop.f32.mrb[0].mxu0
      %v6152 = vadd.f32 0.0, %v6151
      %v6153 = vpop.f32.mrb[0].mxu0
      %6154 = vmatprep.mubr.f32.mxu0 0.0
      %6155 = vmatmul.mubr.f32.gmra.mrb[0].mxu0 %v5905
      %v6156 = vpop.f32.mrb[0].mxu0
      %v6157 = vadd.f32 0.0, %v6156
      %v6158 = vpop.f32.mrb[0].mxu0
      %6159 = vmatprep.mubr.f32.mxu0 0.0
      %6160 = vmatmul.mubr.f32.gmra.mrb[0].mxu0 %v5907
      %v6161 = vpop.f32.mrb[0].mxu0
      %v6162 = vadd.f32 0.0, %v6161
      %v6163 = vpop.f32.mrb[0].mxu0
      %6164 = vmatprep.mubr.f32.mxu0 0.0
      %6165 = vmatmul.mubr.f32.gmra.mrb[0].mxu0 %v5909
      %v6166 = vpop.f32.mrb[0].mxu0
      %v6167 = vadd.f32 0.0, %v6166
      %v6168 = vpop.f32.mrb[0].mxu0
      %6169 = vmatprep.mubr.f32.mxu0 0.0
      %6170 = vmatmul.mubr.f32.gmra.mrb[0].mxu0 %v5911
      %v6171 = vpop.f32.mrb[0].mxu0
      %v6172 = vadd.f32 0.0, %v6171
      %v6173 = vpop.f32.mrb[0].mxu0
      %6174 = vmatprep.mubr.f32.mxu0 0.0
      %6175 = vmatmul.mubr.f32.gmra.mrb[0].mxu0 %v5913
      %v6176 = vpop.f32.mrb[0].mxu0
      %v6177 = vadd.f32 0.0, %v6176
      %v6178 = vpop.f32.mrb[0].mxu0
      %6179 = vmatprep.mubr.f32.mxu0 0.0
      %6180 = vmatmul.mubr.f32.gmra.mrb[0].mxu0 %v5915
      %v6181 = vpop.f32.mrb[0].mxu0
      %v6182 = vadd.f32 0.0, %v6181
      %v6183 = vpop.f32.mrb[0].mxu0
      %6184 = vmatprep.mubr.f32.mxu0 0.0
      %6185 = vmatmul.mubr.f32.gmra.mrb[0].mxu0 %v5917
      %v6186 = vpop.f32.mrb[0].mxu0
      %v6187 = vadd.f32 0.0, %v6186
      %v6188 = vpop.f32.mrb[0].mxu0
      %6189 = vmatprep.mubr.f32.mxu0 0.0
      %6190 = vmatmul.mubr.f32.gmra.mrb[0].mxu0 %v5919
      %v6191 = vpop.f32.mrb[0].mxu0
      %v6192 = vadd.f32 0.0, %v6191
      %v6193 = vpop.f32.mrb[0].mxu0
      %6194 = vmatprep.mubr.f32.mxu0 0.0
      %6195 = vmatmul.mubr.f32.gmra.mrb[0].mxu0 %v5921
      %v6196 = vpop.f32.mrb[0].mxu0
      %v6197 = vadd.f32 0.0, %v6196
      %v6198 = vpop.f32.mrb[0].mxu0
      %6199 = vmatprep.mubr.f32.mxu0 0.0
      %6200 = vmatmul.mubr.f32.gmra.mrb[0].mxu0 %v5923
      %v6201 = vpop.f32.mrb[0].mxu0
      %v6202 = vadd.f32 0.0, %v6201
      %v6203 = vpop.f32.mrb[0].mxu0
      %6204 = vmatprep.mubr.f32.mxu0 0.0
      %6205 = vmatmul.mubr.f32.gmra.mrb[0].mxu0 %v5925
      %v6206 = vpop.f32.mrb[0].mxu0
      %v6207 = vadd.f32 0.0, %v6206
      %v6208 = vpop.f32.mrb[0].mxu0
      %6209 = vmatprep.mubr.f32.mxu0 0.0
      %6210 = vmatmul.mubr.f32.gmra.mrb[0].mxu0 %v5927
      %v6211 = vpop.f32.mrb[0].mxu0
      %v6212 = vadd.f32 0.0, %v6211
      %v6213 = vpop.f32.mrb[0].mxu0
      %6214 = vmatprep.mubr.f32.mxu0 0.0
      %6215 = vmatmul.mubr.f32.gmra.mrb[0].mxu0 %v5929
      %v6216 = vpop.f32.mrb[0].mxu0
      %v6217 = vadd.f32 0.0, %v6216
      %v6218 = vpop.f32.mrb[0].mxu0
      %6219 = vmatprep.mubr.f32.mxu0 0.0
      %6220 = vmatmul.mubr.f32.gmra.mrb[0].mxu0 %v5931
      %v6221 = vpop.f32.mrb[0].mxu0
      %v6222 = vadd.f32 0.0, %v6221
      %v6223 = vpop.f32.mrb[0].mxu0
      %6224 = vmatprep.mubr.f32.mxu0 0.0
      %6225 = vmatmul.mubr.f32.gmra.mrb[0].mxu0 %v5933
      %v6226 = vpop.f32.mrb[0].mxu0
      %v6227 = vadd.f32 0.0, %v6226
      %v6228 = vpop.f32.mrb[0].mxu0
      %6229 = vmatprep.mubr.f32.mxu0 0.0
      %6230 = vmatmul.mubr.f32.gmra.mrb[0].mxu0 %v5935
      %v6231 = vpop.f32.mrb[0].mxu0
      %v6232 = vadd.f32 0.0, %v6231
      %v6233 = vpop.f32.mrb[0].mxu0
      %6234 = vmatprep.mubr.f32.mxu0 0.0
      %6235 = vmatmul.mubr.f32.gmra.mrb[0].mxu0 %v5937
      %v6236 = vpop.f32.mrb[0].mxu0
      %v6237 = vadd.f32 0.0, %v6236
      %v6238 = vpop.f32.mrb[0].mxu0
      %6239 = vmatprep.mubr.f32.mxu0 0.0
      %6240 = vmatmul.mubr.f32.gmra.mrb[0].mxu0 %v5939
      %v6241 = vpop.f32.mrb[0].mxu0
      %v6242 = vadd.f32 0.0, %v6241
      %v6243 = vpop.f32.mrb[0].mxu0
      %6244 = vmatprep.mubr.f32.mxu0 0.0
      %6245 = vmatmul.mubr.f32.gmra.mrb[0].mxu0 %v5941
      %v6246 = vpop.f32.mrb[0].mxu0
      %v6247 = vadd.f32 0.0, %v6246
      %v6248 = vpop.f32.mrb[0].mxu0
      %6249 = vmatprep.mubr.f32.mxu0 0.0
      %6250 = vmatmul.mubr.f32.gmra.mrb[0].mxu0 %v5943
      %v6251 = vpop.f32.mrb[0].mxu0
      %v6252 = vadd.f32 0.0, %v6251
      %v6253 = vpop.f32.mrb[0].mxu0
      %6254 = vmatprep.mubr.f32.mxu0 0.0
      %6255 = vmatmul.mubr.f32.gmra.mrb[0].mxu0 %v5945
      %v6256 = vpop.f32.mrb[0].mxu0
      %v6257 = vadd.f32 0.0, %v6256
      %v6258 = vpop.f32.mrb[0].mxu0
      %6259 = vmatprep.mubr.f32.mxu0 0.0
      %6260 = vmatmul.mubr.f32.gmra.mrb[0].mxu0 %v5947
      %v6261 = vpop.f32.mrb[0].mxu0
      %v6262 = vadd.f32 0.0, %v6261
      %v6263 = vpop.f32.mrb[0].mxu0
      %6264 = vmatprep.mubr.f32.mxu0 0.0
      %6265 = vmatmul.mubr.f32.gmra.mrb[0].mxu0 %v5949
      %v6266 = vpop.f32.mrb[0].mxu0
      %v6267 = vadd.f32 0.0, %v6266
      %v6268 = vpop.f32.mrb[0].mxu0
      %6269 = vmatprep.mubr.f32.mxu0 0.0
      %6270 = vmatmul.mubr.f32.gmra.mrb[0].mxu0 %v5951
      %v6271 = vpop.f32.mrb[0].mxu0
      %v6272 = vadd.f32 0.0, %v6271
      %v6273 = vpop.f32.mrb[0].mxu0
      %6274 = vmatprep.mubr.f32.mxu0 0.0
      %6275 = vmatmul.mubr.f32.gmra.mrb[0].mxu0 %v5953
      %v6276 = vpop.f32.mrb[0].mxu0
      %v6277 = vadd.f32 0.0, %v6276
      %v6278 = vpop.f32.mrb[0].mxu0
      %6279 = vmatprep.mubr.f32.mxu0 0.0
      %6280 = vmatmul.mubr.f32.gmra.mrb[0].mxu0 %v5955
      %v6281 = vpop.f32.mrb[0].mxu0
      %v6282 = vadd.f32 0.0, %v6281
      %v6283 = vpop.f32.mrb[0].mxu0
      %6284 = vmatprep.mubr.f32.mxu0 0.0
      %6285 = vmatmul.mubr.f32.gmra.mrb[0].mxu0 %v5957
      %v6286 = vpop.f32.mrb[0].mxu0
      %v6287 = vadd.f32 0.0, %v6286
      %v6288 = vpop.f32.mrb[0].mxu0
      %6289 = vmatprep.mubr.f32.mxu0 0.0
      %6290 = vmatmul.mubr.f32.gmra.mrb[0].mxu0 %v5959
      %v6291 = vpop.f32.mrb[0].mxu0
      %v6292 = vadd.f32 0.0, %v6291
      %v6293 = vpop.f32.mrb[0].mxu0
      %6294 = vmatprep.mubr.f32.mxu0 0.0
      %6295 = vmatmul.mubr.f32.gmra.mrb[0].mxu0 %v5961
      %v6296 = vpop.f32.mrb[0].mxu0
      %v6297 = vadd.f32 0.0, %v6296
      %v6298 = vpop.f32.mrb[0].mxu0
      %6299 = vmatprep.mubr.f32.mxu0 0.0
      %6300 = vmatmul.mubr.f32.gmra.mrb[0].mxu0 %v5963
      %v6301 = vpop.f32.mrb[0].mxu0
      %v6302 = vadd.f32 0.0, %v6301
      %v6303 = vpop.f32.mrb[0].mxu0
      %6304 = vmatprep.mubr.f32.mxu0 0.0
      %6305 = vmatmul.mubr.f32.gmra.mrb[0].mxu0 %v5965
      %v6306 = vpop.f32.mrb[0].mxu0
      %v6307 = vadd.f32 0.0, %v6306
      %v6308 = vpop.f32.mrb[0].mxu0
      %6309 = vmatprep.mubr.f32.mxu0 0.0
      %6310 = vmatmul.mubr.f32.gmra.mrb[0].mxu0 %v5967
      %v6311 = vpop.f32.mrb[0].mxu0
      %v6312 = vadd.f32 0.0, %v6311
      %v6313 = vpop.f32.mrb[0].mxu0
      %6314 = vmatprep.mubr.f32.mxu0 0.0
      %6315 = vmatmul.mubr.f32.gmra.mrb[0].mxu0 %v5969
      %v6316 = vpop.f32.mrb[0].mxu0
      %v6317 = vadd.f32 0.0, %v6316
      %v6318 = vpop.f32.mrb[0].mxu0
      %6319 = vmatprep.mubr.f32.mxu0 0.0
      %6320 = vmatmul.mubr.f32.gmra.mrb[0].mxu0 %v5971
      %v6321 = vpop.f32.mrb[0].mxu0
      %v6322 = vadd.f32 0.0, %v6321
      %v6323 = vpop.f32.mrb[0].mxu0
      %6324 = vmatprep.mubr.f32.mxu0 0.0
      %6325 = vmatmul.mubr.f32.gmra.mrb[0].mxu0 %v5973
      %v6326 = vpop.f32.mrb[0].mxu0
      %v6327 = vadd.f32 0.0, %v6326
      %v6328 = vpop.f32.mrb[0].mxu0
      %6329 = vmatprep.mubr.f32.mxu0 0.0
      %6330 = vmatmul.mubr.f32.gmra.mrb[0].mxu0 %v5975
      %v6331 = vpop.f32.mrb[0].mxu0
      %v6332 = vadd.f32 0.0, %v6331
      %v6333 = vpop.f32.mrb[0].mxu0
      %6334 = vmatprep.mubr.f32.mxu0 0.0
      %6335 = vmatmul.mubr.f32.gmra.mrb[0].mxu0 %v5977
      %v6336 = vpop.f32.mrb[0].mxu0
      %v6337 = vadd.f32 0.0, %v6336
      %v6338 = vpop.f32.mrb[0].mxu0
      %6339 = vmatprep.mubr.f32.mxu0 0.0
      %6340 = vmatmul.mubr.f32.gmra.mrb[0].mxu0 %v5979
      %v6341 = vpop.f32.mrb[0].mxu0
      %v6342 = vadd.f32 0.0, %v6341
      %v6343 = vpop.f32.mrb[0].mxu0
      %6344 = vmatprep.mubr.f32.mxu0 0.0
      %6345 = vmatmul.mubr.f32.gmra.mrb[0].mxu0 %v5981
      %v6346 = vpop.f32.mrb[0].mxu0
      %v6347 = vadd.f32 0.0, %v6346
      %v6348 = vpop.f32.mrb[0].mxu0
      %6349 = vmatprep.mubr.f32.mxu0 0.0
      %6350 = vmatmul.mubr.f32.gmra.mrb[0].mxu0 %v5983
      %v6351 = vpop.f32.mrb[0].mxu0
      %v6352 = vadd.f32 0.0, %v6351
      %v6353 = vpop.f32.mrb[0].mxu0
      %6354 = vmatprep.mubr.f32.mxu0 0.0
      %6355 = vmatmul.mubr.f32.gmra.mrb[0].mxu0 %v5985
      %v6356 = vpop.f32.mrb[0].mxu0
      %v6357 = vadd.f32 0.0, %v6356
      %v6358 = vpop.f32.mrb[0].mxu0
      %6359 = vmatprep.mubr.f32.mxu0 0.0
      %6360 = vmatmul.mubr.f32.gmra.mrb[0].mxu0 %v5987
      %v6361 = vpop.f32.mrb[0].mxu0
      %v6362 = vadd.f32 0.0, %v6361
      %v6363 = vpop.f32.mrb[0].mxu0
      %6364 = vmatprep.mubr.f32.mxu0 0.0
      %6365 = vmatmul.mubr.f32.gmra.mrb[0].mxu0 %v5989
      %v6366 = vpop.f32.mrb[0].mxu0
      %v6367 = vadd.f32 0.0, %v6366
      %v6368 = vpop.f32.mrb[0].mxu0
      %6369 = vmatprep.mubr.f32.mxu0 0.0
      %6370 = vmatmul.mubr.f32.gmra.mrb[0].mxu0 %v5991
      %v6371 = vpop.f32.mrb[0].mxu0
      %v6372 = vadd.f32 0.0, %v6371
      %v6373 = vpop.f32.mrb[0].mxu0
      %6374 = vmatprep.mubr.f32.mxu0 0.0
      %6375 = vmatmul.mubr.f32.gmra.mrb[0].mxu0 %v5993
      %v6376 = vpop.f32.mrb[0].mxu0
      %v6377 = vadd.f32 0.0, %v6376
      %v6378 = vpop.f32.mrb[0].mxu0
      %6379 = vmatprep.mubr.f32.mxu0 0.0
      %6380 = vmatmul.mubr.f32.gmra.mrb[0].mxu0 %v5995
      %v6381 = vpop.f32.mrb[0].mxu0
      %v6382 = vadd.f32 0.0, %v6381
      %v6383 = vpop.f32.mrb[0].mxu0
      %6384 = vmatprep.mubr.f32.mxu0 0.0
      %6385 = vmatmul.mubr.f32.gmra.mrb[0].mxu0 %v5997
      %v6386 = vpop.f32.mrb[0].mxu0
      %v6387 = vadd.f32 0.0, %v6386
      %v6388 = vpop.f32.mrb[0].mxu0
      %6389 = vmatprep.mubr.f32.mxu0 0.0
      %6390 = vmatmul.mubr.f32.gmra.mrb[0].mxu0 %v5999
      %v6391 = vpop.f32.mrb[0].mxu0
      %v6392 = vadd.f32 0.0, %v6391
      %v6393 = vpop.f32.mrb[0].mxu0
      %6394 = vmatprep.mubr.f32.mxu0 0.0
      %6395 = vmatmul.mubr.f32.gmra.mrb[0].mxu0 %v6001
      %v6396 = vpop.f32.mrb[0].mxu0
      %v6397 = vadd.f32 0.0, %v6396
      %v6398 = vpop.f32.mrb[0].mxu0
      %6399 = vmatprep.mubr.f32.mxu0 0.0
      %6400 = vmatmul.mubr.f32.gmra.mrb[0].mxu0 %v6003
      %v6401 = vpop.f32.mrb[0].mxu0
      %v6402 = vadd.f32 0.0, %v6401
      %v6403 = vpop.f32.mrb[0].mxu0
      %6404 = vdwg.mxu0
      %6405 = vst [vmem:[#allocation6] sm:$0xff] %v6087
      %6406 = vst [vmem:[#allocation6 + $0x8] sm:$0xff] %v6092
      %6407 = vst [vmem:[#allocation6 + $0x10] sm:$0xff] %v6097
      %6408 = vst [vmem:[#allocation6 + $0x18] sm:$0xff] %v6102
      %6409 = vst [vmem:[#allocation6 + $0x20] sm:$0xff] %v6107
      %6410 = vst [vmem:[#allocation6 + $0x28] sm:$0xff] %v6112
      %6411 = vst [vmem:[#allocation6 + $0x30] sm:$0xff] %v6117
      %6412 = vst [vmem:[#allocation6 + $0x38] sm:$0xff] %v6122
      %6413 = vst [vmem:[#allocation6 + $0x40] sm:$0xff] %v6127
      %6414 = vst [vmem:[#allocation6 + $0x48] sm:$0xff] %v6132
      %6415 = vst [vmem:[#allocation6 + $0x50] sm:$0xff] %v6137
      %6416 = vst [vmem:[#allocation6 + $0x58] sm:$0xff] %v6142
      %6417 = vst [vmem:[#allocation6 + $0x60] sm:$0xff] %v6147
      %6418 = vst [vmem:[#allocation6 + $0x68] sm:$0xff] %v6152
      %6419 = vst [vmem:[#allocation6 + $0x70] sm:$0xff] %v6157
      %6420 = vst [vmem:[#allocation6 + $0x78] sm:$0xff] %v6162
      %6421 = vst [vmem:[#allocation6 + $0x80] sm:$0xff] %v6167
      %6422 = vst [vmem:[#allocation6 + $0x88] sm:$0xff] %v6172
      %6423 = vst [vmem:[#allocation6 + $0x90] sm:$0xff] %v6177
      %6424 = vst [vmem:[#allocation6 + $0x98] sm:$0xff] %v6182
      %6425 = vst [vmem:[#allocation6 + $0xa0] sm:$0xff] %v6187
      %6426 = vst [vmem:[#allocation6 + $0xa8] sm:$0xff] %v6192
      %6427 = vst [vmem:[#allocation6 + $0xb0] sm:$0xff] %v6197
      %6428 = vst [vmem:[#allocation6 + $0xb8] sm:$0xff] %v6202
      %6429 = vst [vmem:[#allocation6 + $0xc0] sm:$0xff] %v6207
      %6430 = vst [vmem:[#allocation6 + $0xc8] sm:$0xff] %v6212
      %6431 = vst [vmem:[#allocation6 + $0xd0] sm:$0xff] %v6217
      %6432 = vst [vmem:[#allocation6 + $0xd8] sm:$0xff] %v6222
      %6433 = vst [vmem:[#allocation6 + $0xe0] sm:$0xff] %v6227
      %6434 = vst [vmem:[#allocation6 + $0xe8] sm:$0xff] %v6232
      %6435 = vst [vmem:[#allocation6 + $0xf0] sm:$0xff] %v6237
      %6436 = vst [vmem:[#allocation6 + $0xf8] sm:$0xff] %v6242
      %6437 = vst [vmem:[#allocation6 + $0x100] sm:$0xff] %v6247
      %6438 = vst [vmem:[#allocation6 + $0x108] sm:$0xff] %v6252
      %6439 = vst [vmem:[#allocation6 + $0x110] sm:$0xff] %v6257
      %6440 = vst [vmem:[#allocation6 + $0x118] sm:$0xff] %v6262
      %6441 = vst [vmem:[#allocation6 + $0x120] sm:$0xff] %v6267
      %6442 = vst [vmem:[#allocation6 + $0x128] sm:$0xff] %v6272
      %6443 = vst [vmem:[#allocation6 + $0x130] sm:$0xff] %v6277
      %6444 = vst [vmem:[#allocation6 + $0x138] sm:$0xff] %v6282
      %6445 = vst [vmem:[#allocation6 + $0x140] sm:$0xff] %v6287
      %6446 = vst [vmem:[#allocation6 + $0x148] sm:$0xff] %v6292
      %6447 = vst [vmem:[#allocation6 + $0x150] sm:$0xff] %v6297
      %6448 = vst [vmem:[#allocation6 + $0x158] sm:$0xff] %v6302
      %6449 = vst [vmem:[#allocation6 + $0x160] sm:$0xff] %v6307
      %6450 = vst [vmem:[#allocation6 + $0x168] sm:$0xff] %v6312
      %6451 = vst [vmem:[#allocation6 + $0x170] sm:$0xff] %v6317
      %6452 = vst [vmem:[#allocation6 + $0x178] sm:$0xff] %v6322
      %6453 = vst [vmem:[#allocation6 + $0x180] sm:$0xff] %v6327
      %6454 = vst [vmem:[#allocation6 + $0x188] sm:$0xff] %v6332
      %6455 = vst [vmem:[#allocation6 + $0x190] sm:$0xff] %v6337
      %6456 = vst [vmem:[#allocation6 + $0x198] sm:$0xff] %v6342
      %6457 = vst [vmem:[#allocation6 + $0x1a0] sm:$0xff] %v6347
      %6458 = vst [vmem:[#allocation6 + $0x1a8] sm:$0xff] %v6352
      %6459 = vst [vmem:[#allocation6 + $0x1b0] sm:$0xff] %v6357
      %6460 = vst [vmem:[#allocation6 + $0x1b8] sm:$0xff] %v6362
      %6461 = vst [vmem:[#allocation6 + $0x1c0] sm:$0xff] %v6367
      %6462 = vst [vmem:[#allocation6 + $0x1c8] sm:$0xff] %v6372
      %6463 = vst [vmem:[#allocation6 + $0x1d0] sm:$0xff] %v6377
      %6464 = vst [vmem:[#allocation6 + $0x1d8] sm:$0xff] %v6382
      %6465 = vst [vmem:[#allocation6 + $0x1e0] sm:$0xff] %v6387
      %6466 = vst [vmem:[#allocation6 + $0x1e8] sm:$0xff] %v6392
      %6467 = vst [vmem:[#allocation6 + $0x1f0] sm:$0xff] %v6397
      %6468 = vst [vmem:[#allocation6 + $0x1f8] sm:$0xff] %v6402
    $region37: #{tpu_custom_call.1} parent=1 // pred_fallthru
      _
    // Predicated region
    $region38: #{tpu_custom_call.1} parent=1 // pred_check
      _
    $region39: #{tpu_custom_call.1} parent=1 // pred_check_branch
      %6470 = sbr.rel (0) target = $region41
    $region40: #{tpu_custom_call.1} parent=1 // pred_region
      %s6472 = ssub.s32 8192, 8192
      %6473 = vsyncadd [#allocation7], %s6472
      %s6474 = sshll.u32 [#allocation6], 4
      %s6475 = int_to_ptr.vmem [resolvable:$true] %s6474
      %6480 = dma.vmem_to_hbm [thread:$0]  %s6475, 8192, %s7, [#allocation7], 128, 128, 8
    $region41: #{tpu_custom_call.1} parent=1 // pred_fallthru
      _
    // Predicated region
    $region42: #{tpu_custom_call.1} parent=1 // pred_check
      _
    $region43: #{tpu_custom_call.1} parent=1 // pred_check_branch
      %6482 = sbr.rel (0) target = $region45
    $region44: #{tpu_custom_call.1} parent=1 // pred_region
      %6483 = dma.done [#allocation7], 8192
    $region45: #{tpu_custom_call.1} parent=1 // pred_fallthru
      _
    %6484 = vsyncpa [#allocation7], 1

</llo_original>
